<compile_context>
chip_gen: v7x
topology: tpu7x:2x2x1
jax: 0.10.0
libtpu: 0.0.40
codegen_flags: <defaults>
</compile_context>

<pallas_src>
import numpy as np
import jax
import jax.numpy as jnp
from jax.experimental import pallas as pl
from jax.experimental.pallas import tpu as pltpu

# --- module hyper-parameters (match the PyTorch __init__ defaults) ----------
F_IN = 3619          # concatenated fingerprint+formula feature dim
U1 = 512             # layers_hid_size[0]
U2 = 256             # layers_hid_size[1] == units_decoder
L_DEC = 3            # layers_decoder
S_PER = 2            # states_per_layer
NS = L_DEC * S_PER   # 6 state heads total
NSU = NS * U2        # 1536 fused state-head output width
BN_EPS = 1e-3


def _round_up(n, m):
    return ((n + m - 1) // m) * m


F_PAD = _round_up(F_IN, 128)   # 3712: lane-dense feature dim (zero padded)


# --- the Pallas kernel -------------------------------------------------------
def encoder_kernel(x_ref, w1_ref, b1_ref, w2_ref, b2_ref, ws_ref, bs_ref,
                   z_ref, states_ref):
    # dense1 with BN pre-folded into W1/b1 (bf16 inputs, f32 accumulation)
    h1 = jnp.dot(x_ref[...], w1_ref[...],
                 preferred_element_type=jnp.float32) + b1_ref[...]   # [B, U1]

    # dense2 (no activation, as in the PyTorch forward)
    z = jnp.dot(h1.astype(jnp.bfloat16), w2_ref[...],
                preferred_element_type=jnp.float32) + b2_ref[...]    # [B, U2]
    z_ref[...] = z

    # 6 state heads fused into one wide matmul + ReLU, lane-dense store.
    s = jnp.dot(z.astype(jnp.bfloat16), ws_ref[...],
                preferred_element_type=jnp.float32) + bs_ref[...]    # [B, NSU]
    states_ref[...] = jnp.maximum(s, 0.0)


# --- one-time parameter preparation ------------------------------------------
def prepare_params(params):
    """Fold BN into W1/b1 (f32), pad W1, cast weights to bf16, concat heads."""
    gamma, beta, rmean, rvar = params["bn"]
    scale = gamma / jnp.sqrt(rvar + BN_EPS)          # [F_IN]
    shift = beta - rmean * scale                     # [F_IN]

    # Exact BN folding in f32 BEFORE the bf16 cast.
    w1_folded = scale[:, None] * params["w1"]                        # [F_IN, U1]
    b1_folded = params["b1"] + shift @ params["w1"]                  # [U1]

    padf = F_PAD - F_IN
    prep = {
        "w1": jnp.pad(w1_folded, ((0, padf), (0, 0))).astype(jnp.bfloat16),
        "b1": b1_folded.reshape(1, U1).astype(jnp.float32),
        "w2": params["w2"].astype(jnp.bfloat16),
        "b2": params["b2"].reshape(1, U2).astype(jnp.float32),
        # [NS, U2_in, U2_out] -> [U2_in, NS*U2_out]; cols j*U2:(j+1)*U2 = head j
        "ws": jnp.transpose(params["ws"], (1, 0, 2)).reshape(U2, NSU)
                 .astype(jnp.bfloat16),
        "bs": params["bs"].reshape(1, NSU).astype(jnp.float32),
    }
    return jax.tree_util.tree_map(jnp.asarray, prep)


# --- forward wrapper -----------------------------------------------------------
@jax.jit
def _encoder_forward(x, prep):
    B = x.shape[0]
    B_pad = _round_up(max(B, 1), 8)
    # Zero-padded batch rows & feature cols are benign (zero rows of W1').
    x_p = jnp.pad(x.astype(jnp.float32),
                  ((0, B_pad - B), (0, F_PAD - F_IN))).astype(jnp.bfloat16)

    z_p, states_p = pl.pallas_call(
        encoder_kernel,
        out_shape=(
            jax.ShapeDtypeStruct((B_pad, U2), jnp.float32),
            jax.ShapeDtypeStruct((B_pad, NSU), jnp.float32),
        ),
        compiler_params=pltpu.CompilerParams(
            vmem_limit_bytes=32 * 1024 * 1024,
        ),
    )(x_p, prep["w1"], prep["b1"], prep["w2"], prep["b2"],
      prep["ws"], prep["bs"])

    z = z_p[:B]
    # [B, NS*U2] -> [NS, B, U2], ordered layer0_h, layer0_c, layer1_h, ...
    states = states_p[:B].reshape(B, NS, U2).transpose(1, 0, 2)
    h_states = states[0::S_PER]   # [L_DEC, B, U2]
    c_states = states[1::S_PER]   # [L_DEC, B, U2]
    return z, (h_states, c_states)


def fingerprint_formula_encoder(inputs_list, prep):
    """inputs_list: list of [B, f_i] arrays, sum(f_i) == 3619."""
    x = jnp.concatenate([i.astype(jnp.float32) for i in inputs_list], axis=-1)
    assert x.shape[1] == F_IN
    return _encoder_forward(x, prep)


# --- pure-JAX reference (f32) for correctness ---------------------------------
def reference_forward(inputs_list, params):
    x = jnp.concatenate([i.astype(jnp.float32) for i in inputs_list], axis=-1)
    gamma, beta, rmean, rvar = params["bn"]
    xbn = (x - rmean) / jnp.sqrt(rvar + BN_EPS) * gamma + beta
    h1 = xbn @ params["w1"] + params["b1"]
    z = h1 @ params["w2"] + params["b2"]
    states = jnp.stack(
        [jnp.maximum(z @ params["ws"][i] + params["bs"][i], 0.0)
         for i in range(NS)])
    return z, (states[0::S_PER], states[1::S_PER])


# --- deterministic parameter initialization (xavier_uniform, zero bias) ------
def init_params(key):
    def xavier(key, fan_in, fan_out):
        bound = float(np.sqrt(6.0 / (fan_in + fan_out)))
        # stored as [in, out] (already transposed for x @ W)
        return jax.random.uniform(key, (fan_in, fan_out), jnp.float32,
                                  minval=-bound, maxval=bound)

    keys = jax.random.split(key, 2 + NS)
    params = {}
    # BatchNorm1d defaults: weight=1, bias=0, running_mean=0, running_var=1
    # TODO(synk): BatchNorm1d training-mode batch statistics are not modeled;
    # the kernel implements inference (eval) mode with running stats.
    params["bn"] = (jnp.ones((F_IN,), jnp.float32),
                    jnp.zeros((F_IN,), jnp.float32),
                    jnp.zeros((F_IN,), jnp.float32),
                    jnp.ones((F_IN,), jnp.float32))
    params["w1"] = xavier(keys[0], F_IN, U1)
    params["b1"] = jnp.zeros((U1,), jnp.float32)
    params["w2"] = xavier(keys[1], U1, U2)
    params["b2"] = jnp.zeros((U2,), jnp.float32)
    params["ws"] = jnp.stack([xavier(keys[2 + i], U2, U2) for i in range(NS)])
    params["bs"] = jnp.zeros((NS, U2), jnp.float32)
    return params


if __name__ == "__main__":
    key = jax.random.PRNGKey(0)
    k_param, k_fp, k_form = jax.random.split(key, 3)

    params = init_params(k_param)
    prep = prepare_params(params)      # one-time prep: BN fold, bf16, padding

    B = 4
    # Two inputs that the forward concatenates to the 3619-dim feature vector:
    fingerprint = (jax.random.uniform(k_fp, (B, 3600)) > 0.5).astype(jnp.float32)
    formula = jax.random.uniform(k_form, (B, 19), jnp.float32)

    z, (h_states, c_states) = fingerprint_formula_encoder(
        [fingerprint, formula], prep)
    jax.block_until_ready((z, h_states, c_states))

    assert z.shape == (B, U2)
    assert h_states.shape == (L_DEC, B, U2)
    assert c_states.shape == (L_DEC, B, U2)
    assert bool(jnp.all(h_states >= 0.0)) and bool(jnp.all(c_states >= 0.0))

    # Correctness vs f32 reference (bf16 weights/inputs -> scale-relative tol)
    z_ref, (h_ref, c_ref) = reference_forward([fingerprint, formula], params)

    def rel_err(a, b):
        return float(jnp.max(jnp.abs(a - b)) / (jnp.max(jnp.abs(b)) + 1e-6))

    assert rel_err(z, z_ref) < 0.05, rel_err(z, z_ref)
    assert rel_err(h_states, h_ref) < 0.05, rel_err(h_states, h_ref)
    assert rel_err(c_states, c_ref) < 0.05, rel_err(c_states, c_ref)

    print("KERNEL_OK")
</pallas_src>

<mosaic_0001>
module attributes {stable_mosaic.version = 11 : i64} {
  func.func @encoder_kernel(%arg0: memref<8x3712xbf16, #tpu.memory_space<vmem>>, %arg1: memref<3712x512xbf16, #tpu.memory_space<vmem>>, %arg2: memref<1x512xf32, #tpu.memory_space<vmem>>, %arg3: memref<512x256xbf16, #tpu.memory_space<vmem>>, %arg4: memref<1x256xf32, #tpu.memory_space<vmem>>, %arg5: memref<256x1536xbf16, #tpu.memory_space<vmem>>, %arg6: memref<1x1536xf32, #tpu.memory_space<vmem>>, %arg7: memref<8x256xf32, #tpu.memory_space<vmem>>, %arg8: memref<8x1536xf32, #tpu.memory_space<vmem>>) attributes {dimension_semantics = [], scalar_prefetch = 0 : i64, scratch_operands = 0 : i64, tpu.core_type = #tpu.core_type<tc>} {
    %c0 = arith.constant 0 : index
    %c0_0 = arith.constant 0 : index
    %0 = vector.load %arg0[%c0, %c0_0] : memref<8x3712xbf16, #tpu.memory_space<vmem>>, vector<8x3712xbf16>
    %c0_1 = arith.constant 0 : index
    %c0_2 = arith.constant 0 : index
    %1 = vector.load %arg1[%c0_1, %c0_2] : memref<3712x512xbf16, #tpu.memory_space<vmem>>, vector<3712x512xbf16>
    %cst = arith.constant dense<0.000000e+00> : vector<8x512xf32>
    %2 = tpu.matmul %0, %1, %cst {dimension_numbers = #tpu.dot_dimension_numbers<[1], [0], [0], [1], [0, 0, 1, 1], [], []>} : vector<8x3712xbf16>, vector<3712x512xbf16>, vector<8x512xf32> -> vector<8x512xf32>
    %c0_3 = arith.constant 0 : index
    %c0_4 = arith.constant 0 : index
    %3 = vector.load %arg2[%c0_3, %c0_4] : memref<1x512xf32, #tpu.memory_space<vmem>>, vector<1x512xf32>
    %4 = vector.broadcast %3 : vector<1x512xf32> to vector<8x512xf32>
    %5 = arith.addf %2, %4 : vector<8x512xf32>
    %6 = arith.truncf %5 : vector<8x512xf32> to vector<8x512xbf16>
    %c0_5 = arith.constant 0 : index
    %c0_6 = arith.constant 0 : index
    %7 = vector.load %arg3[%c0_5, %c0_6] : memref<512x256xbf16, #tpu.memory_space<vmem>>, vector<512x256xbf16>
    %cst_7 = arith.constant dense<0.000000e+00> : vector<8x256xf32>
    %8 = tpu.matmul %6, %7, %cst_7 {dimension_numbers = #tpu.dot_dimension_numbers<[1], [0], [0], [1], [0, 0, 1, 1], [], []>} : vector<8x512xbf16>, vector<512x256xbf16>, vector<8x256xf32> -> vector<8x256xf32>
    %c0_8 = arith.constant 0 : index
    %c0_9 = arith.constant 0 : index
    %9 = vector.load %arg4[%c0_8, %c0_9] : memref<1x256xf32, #tpu.memory_space<vmem>>, vector<1x256xf32>
    %10 = vector.broadcast %9 : vector<1x256xf32> to vector<8x256xf32>
    %11 = arith.addf %8, %10 : vector<8x256xf32>
    %c0_10 = arith.constant 0 : index
    %c0_11 = arith.constant 0 : index
    %12 = vector.load %arg7[%c0_10, %c0_11] : memref<8x256xf32, #tpu.memory_space<vmem>>, vector<8x256xf32>
    tpu.vector_store %arg7[%c0_10, %c0_11], %11 {strides = array<i32>} : memref<8x256xf32, #tpu.memory_space<vmem>>, vector<8x256xf32>,
    %13 = arith.truncf %11 : vector<8x256xf32> to vector<8x256xbf16>
    %c0_12 = arith.constant 0 : index
    %c0_13 = arith.constant 0 : index
    %14 = vector.load %arg5[%c0_12, %c0_13] : memref<256x1536xbf16, #tpu.memory_space<vmem>>, vector<256x1536xbf16>
    %cst_14 = arith.constant dense<0.000000e+00> : vector<8x1536xf32>
    %15 = tpu.matmul %13, %14, %cst_14 {dimension_numbers = #tpu.dot_dimension_numbers<[1], [0], [0], [1], [0, 0, 1, 1], [], []>} : vector<8x256xbf16>, vector<256x1536xbf16>, vector<8x1536xf32> -> vector<8x1536xf32>
    %c0_15 = arith.constant 0 : index
    %c0_16 = arith.constant 0 : index
    %16 = vector.load %arg6[%c0_15, %c0_16] : memref<1x1536xf32, #tpu.memory_space<vmem>>, vector<1x1536xf32>
    %17 = vector.broadcast %16 : vector<1x1536xf32> to vector<8x1536xf32>
    %18 = arith.addf %15, %17 : vector<8x1536xf32>
    %cst_17 = arith.constant 0.000000e+00 : f32
    %19 = vector.broadcast %cst_17 : f32 to vector<8x1536xf32>
    %20 = arith.maximumf %18, %19 : vector<8x1536xf32>
    %c0_18 = arith.constant 0 : index
    %c0_19 = arith.constant 0 : index
    %21 = vector.load %arg8[%c0_18, %c0_19] : memref<8x1536xf32, #tpu.memory_space<vmem>>, vector<8x1536xf32>
    tpu.vector_store %arg8[%c0_18, %c0_19], %20 {strides = array<i32>} : memref<8x1536xf32, #tpu.memory_space<vmem>>, vector<8x1536xf32>,
    return
  }
}

</mosaic_0001>

<llo_original>
// kernel: _encoder_forward.1
$region0: #{_encoder_forward.1}
  #allocation0 [shape = 'u32[]', space=smem, size = 0x4, offset = 0x4, fixed_abs, tag = 'smem constant byte address 0x4 - core index']
  #allocation1 [shape = 'u32[144,128]{1,0:T(1,128)}', space=vmem, size = 0x12000, scoped, tag = 'internal scratch']
  %s0 = inlined_call_operand.vmem [shape: bf16[8,3712], index: 0, kind: input, shape index: {}]
  %s1 = inlined_call_operand.hbm [shape: bf16[3712,512], index: 1, kind: input, shape index: {}]
  %s2 = inlined_call_operand.hbm [shape: f32[1,512], index: 2, kind: input, shape index: {}]
  %s3 = inlined_call_operand.hbm [shape: bf16[512,256], index: 3, kind: input, shape index: {}]
  %s4 = inlined_call_operand.hbm [shape: f32[1,256], index: 4, kind: input, shape index: {}]
  %s5 = inlined_call_operand.hbm [shape: bf16[256,1536], index: 5, kind: input, shape index: {}]
  %s6 = inlined_call_operand.hbm [shape: f32[1,1536], index: 6, kind: input, shape index: {}]
  %s7 = inlined_call_operand.vmem [shape: f32[8,256], index: 7, kind: output, shape index: {0}]
  %s8 = inlined_call_operand.vmem [shape: f32[8,1536], index: 8, kind: output, shape index: {1}]
  %9 = xla_tuple %s7, %s8
  %s10 = sld [smem:[#allocation0]]
  $region70: #{_encoder_forward.1} parent=0
    _
  %s12 = ssub.s32 1, %s10
  %s13 = scalar_select 0, %s12, %s10
  $region1: #{_encoder_forward.1} parent=0
    #allocation2 [shape = 'u8[3801088]{0}', space=vmem, size = 0x3a0000, scoped, tag = 'input window, operand 1, single buffered']
    #allocation3 [shape = 's32[1]{0}', space=sflag, size = 0x4, scoped, tag = 'scoped memory for _encoder_forward.1']
    #allocation4 [shape = 'u8[2048]{0}', space=vmem, size = 0x800, scoped, tag = 'input window, operand 2, single buffered']
    #allocation5 [shape = 's32[1]{0}', space=sflag, size = 0x4, scoped, tag = 'scoped memory for _encoder_forward.1']
    #allocation6 [shape = 'u8[262144]{0}', space=vmem, size = 0x40000, scoped, tag = 'input window, operand 3, single buffered']
    #allocation7 [shape = 'u8[1024]{0}', space=vmem, size = 0x400, scoped, tag = 'input window, operand 4, single buffered']
    #allocation8 [shape = 's32[1]{0}', space=sflag, size = 0x4, scoped, tag = 'scoped memory for _encoder_forward.1']
    #allocation9 [shape = 'u8[786432]{0}', space=vmem, size = 0xc0000, scoped, tag = 'input window, operand 5, single buffered']
    #allocation10 [shape = 'u8[6144]{0}', space=vmem, size = 0x1800, scoped, tag = 'input window, operand 6, single buffered']
    #allocation11 [shape = 's32[1]{0}', space=sflag, size = 0x4, scoped, tag = 'scoped memory for _encoder_forward.1']
    %14 = vsyncpa [#allocation3], 0
    %15 = vsyncpa [#allocation5], 0
    %16 = vsyncpa [#allocation8], 0
    %17 = vsyncpa [#allocation11], 0
    // Predicated region
    $region2: #{_encoder_forward.1} parent=1 // pred_check
      _
    $region3: #{_encoder_forward.1} parent=1 // pred_check_branch
      %19 = sbr.rel (0) target = $region5
    $region4: #{_encoder_forward.1} parent=1 // pred_region
      _
    $region5: #{_encoder_forward.1} parent=1 // pred_fallthru
      _
    // Predicated region
    $region6: #{_encoder_forward.1} parent=1 // pred_check
      _
    $region7: #{_encoder_forward.1} parent=1 // pred_check_branch
      %21 = sbr.rel (0) target = $region9
    $region8: #{_encoder_forward.1} parent=1 // pred_region
      %s23 = ssub.s32 118784, 118784
      %24 = vsyncadd [#allocation3], %s23
      %s25 = sshll.u32 [#allocation2], 4
      %s26 = int_to_ptr.vmem [resolvable:$true] %s25
      %31 = dma.hbm_to_vmem [thread:$0]  %s1, 118784, %s26, [#allocation3], 256, 256, 16
    $region9: #{_encoder_forward.1} parent=1 // pred_fallthru
      _
    // Predicated region
    $region10: #{_encoder_forward.1} parent=1 // pred_check
      _
    $region11: #{_encoder_forward.1} parent=1 // pred_check_branch
      %33 = sbr.rel (0) target = $region13
    $region12: #{_encoder_forward.1} parent=1 // pred_region
      %s35 = ssub.s32 64, 64
      %36 = vsyncadd [#allocation5], %s35
      %s38 = sshll.u32 [#allocation4], 4
      %s39 = int_to_ptr.vmem [resolvable:$true] %s38
      %41 = dma.hbm_to_vmem [thread:$0]  %s2, 64, %s39, [#allocation5]
    $region13: #{_encoder_forward.1} parent=1 // pred_fallthru
      _
    // Predicated region
    $region14: #{_encoder_forward.1} parent=1 // pred_check
      _
    $region15: #{_encoder_forward.1} parent=1 // pred_check_branch
      %43 = sbr.rel (0) target = $region17
    $region16: #{_encoder_forward.1} parent=1 // pred_region
      %s45 = ssub.s32 8192, 8192
      %46 = vsyncadd [#allocation5], %s45
      %s47 = sshll.u32 [#allocation6], 4
      %s48 = int_to_ptr.vmem [resolvable:$true] %s47
      %53 = dma.hbm_to_vmem [thread:$0]  %s3, 8192, %s48, [#allocation5], 128, 128, 8
    $region17: #{_encoder_forward.1} parent=1 // pred_fallthru
      _
    // Predicated region
    $region18: #{_encoder_forward.1} parent=1 // pred_check
      _
    $region19: #{_encoder_forward.1} parent=1 // pred_check_branch
      %55 = sbr.rel (0) target = $region21
    $region20: #{_encoder_forward.1} parent=1 // pred_region
      %s57 = ssub.s32 32, 32
      %58 = vsyncadd [#allocation8], %s57
      %s60 = sshll.u32 [#allocation7], 4
      %s61 = int_to_ptr.vmem [resolvable:$true] %s60
      %63 = dma.hbm_to_vmem [thread:$0]  %s4, 32, %s61, [#allocation8]
    $region21: #{_encoder_forward.1} parent=1 // pred_fallthru
      _
    // Predicated region
    $region22: #{_encoder_forward.1} parent=1 // pred_check
      _
    $region23: #{_encoder_forward.1} parent=1 // pred_check_branch
      %65 = sbr.rel (0) target = $region25
    $region24: #{_encoder_forward.1} parent=1 // pred_region
      %s67 = ssub.s32 24576, 24576
      %68 = vsyncadd [#allocation8], %s67
      %s69 = sshll.u32 [#allocation9], 4
      %s70 = int_to_ptr.vmem [resolvable:$true] %s69
      %75 = dma.hbm_to_vmem [thread:$0]  %s5, 24576, %s70, [#allocation8], 768, 768, 48
    $region25: #{_encoder_forward.1} parent=1 // pred_fallthru
      _
    // Predicated region
    $region26: #{_encoder_forward.1} parent=1 // pred_check
      _
    $region27: #{_encoder_forward.1} parent=1 // pred_check_branch
      %77 = sbr.rel (0) target = $region29
    $region28: #{_encoder_forward.1} parent=1 // pred_region
      %s79 = ssub.s32 192, 192
      %80 = vsyncadd [#allocation11], %s79
      %s82 = sshll.u32 [#allocation10], 4
      %s83 = int_to_ptr.vmem [resolvable:$true] %s82
      %85 = dma.hbm_to_vmem [thread:$0]  %s6, 192, %s83, [#allocation11]
    $region29: #{_encoder_forward.1} parent=1 // pred_fallthru
      _
    // Predicated region
    $region30: #{_encoder_forward.1} parent=1 // pred_check
      _
    $region31: #{_encoder_forward.1} parent=1 // pred_check_branch
      %87 = sbr.rel (0) target = $region33
    $region32: #{_encoder_forward.1} parent=1 // pred_region
      %88 = dma.done [#allocation3], 118784
    $region33: #{_encoder_forward.1} parent=1 // pred_fallthru
      _
    // Predicated region
    $region34: #{_encoder_forward.1} parent=1 // pred_check
      _
    $region35: #{_encoder_forward.1} parent=1 // pred_check_branch
      %90 = sbr.rel (0) target = $region37
    $region36: #{_encoder_forward.1} parent=1 // pred_region
      %91 = dma.done [#allocation5], 64
    $region37: #{_encoder_forward.1} parent=1 // pred_fallthru
      _
    // Predicated region
    $region38: #{_encoder_forward.1} parent=1 // pred_check
      _
    $region39: #{_encoder_forward.1} parent=1 // pred_check_branch
      %93 = sbr.rel (0) target = $region41
    $region40: #{_encoder_forward.1} parent=1 // pred_region
      %94 = dma.done [#allocation5], 8192
    $region41: #{_encoder_forward.1} parent=1 // pred_fallthru
      _
    // Predicated region
    $region42: #{_encoder_forward.1} parent=1 // pred_check
      _
    $region43: #{_encoder_forward.1} parent=1 // pred_check_branch
      %96 = sbr.rel (0) target = $region45
    $region44: #{_encoder_forward.1} parent=1 // pred_region
      %97 = dma.done [#allocation8], 32
    $region45: #{_encoder_forward.1} parent=1 // pred_fallthru
      _
    // Predicated region
    $region46: #{_encoder_forward.1} parent=1 // pred_check
      _
    $region47: #{_encoder_forward.1} parent=1 // pred_check_branch
      %99 = sbr.rel (0) target = $region49
    $region48: #{_encoder_forward.1} parent=1 // pred_region
      %100 = dma.done [#allocation8], 24576
    $region49: #{_encoder_forward.1} parent=1 // pred_fallthru
      _
    // Predicated region
    $region50: #{_encoder_forward.1} parent=1 // pred_check
      _
    $region51: #{_encoder_forward.1} parent=1 // pred_check_branch
      %102 = sbr.rel (0) target = $region53
    $region52: #{_encoder_forward.1} parent=1 // pred_region
      %103 = dma.done [#allocation11], 192
    $region53: #{_encoder_forward.1} parent=1 // pred_fallthru
      _
    %v105 = vld [vmem:[%s0] sm:$0xff]
    %v106 = vld [vmem:[%s0 + $0x8] sm:$0xff]
    %v107 = vld [vmem:[%s0 + $0x10] sm:$0xff]
    %v108 = vld [vmem:[%s0 + $0x18] sm:$0xff]
    %v109 = vld [vmem:[%s0 + $0x20] sm:$0xff]
    %v110 = vld [vmem:[%s0 + $0x28] sm:$0xff]
    %v111 = vld [vmem:[%s0 + $0x30] sm:$0xff]
    %v112 = vld [vmem:[%s0 + $0x38] sm:$0xff]
    %v113 = vld [vmem:[%s0 + $0x40] sm:$0xff]
    %v114 = vld [vmem:[%s0 + $0x48] sm:$0xff]
    %v115 = vld [vmem:[%s0 + $0x50] sm:$0xff]
    %v116 = vld [vmem:[%s0 + $0x58] sm:$0xff]
    %v117 = vld [vmem:[%s0 + $0x60] sm:$0xff]
    %v118 = vld [vmem:[%s0 + $0x68] sm:$0xff]
    %v119 = vld [vmem:[%s0 + $0x70] sm:$0xf]
    %v120 = vld [vmem:[#allocation2] sm:$0xff]
    %v121 = vld [vmem:[#allocation2 + $0x8] sm:$0xff]
    %v122 = vld [vmem:[#allocation2 + $0x10] sm:$0xff]
    %v123 = vld [vmem:[#allocation2 + $0x18] sm:$0xff]
    %v124 = vld [vmem:[#allocation2 + $0x20] sm:$0xff]
    %v125 = vld [vmem:[#allocation2 + $0x28] sm:$0xff]
    %v126 = vld [vmem:[#allocation2 + $0x30] sm:$0xff]
    %v127 = vld [vmem:[#allocation2 + $0x38] sm:$0xff]
    %v128 = vld [vmem:[#allocation2 + $0x40] sm:$0xff]
    %v129 = vld [vmem:[#allocation2 + $0x48] sm:$0xff]
    %v130 = vld [vmem:[#allocation2 + $0x50] sm:$0xff]
    %v131 = vld [vmem:[#allocation2 + $0x58] sm:$0xff]
    %v132 = vld [vmem:[#allocation2 + $0x60] sm:$0xff]
    %v133 = vld [vmem:[#allocation2 + $0x68] sm:$0xff]
    %v134 = vld [vmem:[#allocation2 + $0x70] sm:$0xff]
    %v135 = vld [vmem:[#allocation2 + $0x78] sm:$0xff]
    %v136 = vld [vmem:[#allocation2 + $0x80] sm:$0xff]
    %v137 = vld [vmem:[#allocation2 + $0x88] sm:$0xff]
    %v138 = vld [vmem:[#allocation2 + $0x90] sm:$0xff]
    %v139 = vld [vmem:[#allocation2 + $0x98] sm:$0xff]
    %v140 = vld [vmem:[#allocation2 + $0xa0] sm:$0xff]
    %v141 = vld [vmem:[#allocation2 + $0xa8] sm:$0xff]
    %v142 = vld [vmem:[#allocation2 + $0xb0] sm:$0xff]
    %v143 = vld [vmem:[#allocation2 + $0xb8] sm:$0xff]
    %v144 = vld [vmem:[#allocation2 + $0xc0] sm:$0xff]
    %v145 = vld [vmem:[#allocation2 + $0xc8] sm:$0xff]
    %v146 = vld [vmem:[#allocation2 + $0xd0] sm:$0xff]
    %v147 = vld [vmem:[#allocation2 + $0xd8] sm:$0xff]
    %v148 = vld [vmem:[#allocation2 + $0xe0] sm:$0xff]
    %v149 = vld [vmem:[#allocation2 + $0xe8] sm:$0xff]
    %v150 = vld [vmem:[#allocation2 + $0xf0] sm:$0xff]
    %v151 = vld [vmem:[#allocation2 + $0xf8] sm:$0xff]
    %v152 = vld [vmem:[#allocation2 + $0x100] sm:$0xff]
    %v153 = vld [vmem:[#allocation2 + $0x108] sm:$0xff]
    %v154 = vld [vmem:[#allocation2 + $0x110] sm:$0xff]
    %v155 = vld [vmem:[#allocation2 + $0x118] sm:$0xff]
    %v156 = vld [vmem:[#allocation2 + $0x120] sm:$0xff]
    %v157 = vld [vmem:[#allocation2 + $0x128] sm:$0xff]
    %v158 = vld [vmem:[#allocation2 + $0x130] sm:$0xff]
    %v159 = vld [vmem:[#allocation2 + $0x138] sm:$0xff]
    %v160 = vld [vmem:[#allocation2 + $0x140] sm:$0xff]
    %v161 = vld [vmem:[#allocation2 + $0x148] sm:$0xff]
    %v162 = vld [vmem:[#allocation2 + $0x150] sm:$0xff]
    %v163 = vld [vmem:[#allocation2 + $0x158] sm:$0xff]
    %v164 = vld [vmem:[#allocation2 + $0x160] sm:$0xff]
    %v165 = vld [vmem:[#allocation2 + $0x168] sm:$0xff]
    %v166 = vld [vmem:[#allocation2 + $0x170] sm:$0xff]
    %v167 = vld [vmem:[#allocation2 + $0x178] sm:$0xff]
    %v168 = vld [vmem:[#allocation2 + $0x180] sm:$0xff]
    %v169 = vld [vmem:[#allocation2 + $0x188] sm:$0xff]
    %v170 = vld [vmem:[#allocation2 + $0x190] sm:$0xff]
    %v171 = vld [vmem:[#allocation2 + $0x198] sm:$0xff]
    %v172 = vld [vmem:[#allocation2 + $0x1a0] sm:$0xff]
    %v173 = vld [vmem:[#allocation2 + $0x1a8] sm:$0xff]
    %v174 = vld [vmem:[#allocation2 + $0x1b0] sm:$0xff]
    %v175 = vld [vmem:[#allocation2 + $0x1b8] sm:$0xff]
    %v176 = vld [vmem:[#allocation2 + $0x1c0] sm:$0xff]
    %v177 = vld [vmem:[#allocation2 + $0x1c8] sm:$0xff]
    %v178 = vld [vmem:[#allocation2 + $0x1d0] sm:$0xff]
    %v179 = vld [vmem:[#allocation2 + $0x1d8] sm:$0xff]
    %v180 = vld [vmem:[#allocation2 + $0x1e0] sm:$0xff]
    %v181 = vld [vmem:[#allocation2 + $0x1e8] sm:$0xff]
    %v182 = vld [vmem:[#allocation2 + $0x1f0] sm:$0xff]
    %v183 = vld [vmem:[#allocation2 + $0x1f8] sm:$0xff]
    %v184 = vld [vmem:[#allocation2 + $0x200] sm:$0xff]
    %v185 = vld [vmem:[#allocation2 + $0x208] sm:$0xff]
    %v186 = vld [vmem:[#allocation2 + $0x210] sm:$0xff]
    %v187 = vld [vmem:[#allocation2 + $0x218] sm:$0xff]
    %v188 = vld [vmem:[#allocation2 + $0x220] sm:$0xff]
    %v189 = vld [vmem:[#allocation2 + $0x228] sm:$0xff]
    %v190 = vld [vmem:[#allocation2 + $0x230] sm:$0xff]
    %v191 = vld [vmem:[#allocation2 + $0x238] sm:$0xff]
    %v192 = vld [vmem:[#allocation2 + $0x240] sm:$0xff]
    %v193 = vld [vmem:[#allocation2 + $0x248] sm:$0xff]
    %v194 = vld [vmem:[#allocation2 + $0x250] sm:$0xff]
    %v195 = vld [vmem:[#allocation2 + $0x258] sm:$0xff]
    %v196 = vld [vmem:[#allocation2 + $0x260] sm:$0xff]
    %v197 = vld [vmem:[#allocation2 + $0x268] sm:$0xff]
    %v198 = vld [vmem:[#allocation2 + $0x270] sm:$0xff]
    %v199 = vld [vmem:[#allocation2 + $0x278] sm:$0xff]
    %v200 = vld [vmem:[#allocation2 + $0x280] sm:$0xff]
    %v201 = vld [vmem:[#allocation2 + $0x288] sm:$0xff]
    %v202 = vld [vmem:[#allocation2 + $0x290] sm:$0xff]
    %v203 = vld [vmem:[#allocation2 + $0x298] sm:$0xff]
    %v204 = vld [vmem:[#allocation2 + $0x2a0] sm:$0xff]
    %v205 = vld [vmem:[#allocation2 + $0x2a8] sm:$0xff]
    %v206 = vld [vmem:[#allocation2 + $0x2b0] sm:$0xff]
    %v207 = vld [vmem:[#allocation2 + $0x2b8] sm:$0xff]
    %v208 = vld [vmem:[#allocation2 + $0x2c0] sm:$0xff]
    %v209 = vld [vmem:[#allocation2 + $0x2c8] sm:$0xff]
    %v210 = vld [vmem:[#allocation2 + $0x2d0] sm:$0xff]
    %v211 = vld [vmem:[#allocation2 + $0x2d8] sm:$0xff]
    %v212 = vld [vmem:[#allocation2 + $0x2e0] sm:$0xff]
    %v213 = vld [vmem:[#allocation2 + $0x2e8] sm:$0xff]
    %v214 = vld [vmem:[#allocation2 + $0x2f0] sm:$0xff]
    %v215 = vld [vmem:[#allocation2 + $0x2f8] sm:$0xff]
    %v216 = vld [vmem:[#allocation2 + $0x300] sm:$0xff]
    %v217 = vld [vmem:[#allocation2 + $0x308] sm:$0xff]
    %v218 = vld [vmem:[#allocation2 + $0x310] sm:$0xff]
    %v219 = vld [vmem:[#allocation2 + $0x318] sm:$0xff]
    %v220 = vld [vmem:[#allocation2 + $0x320] sm:$0xff]
    %v221 = vld [vmem:[#allocation2 + $0x328] sm:$0xff]
    %v222 = vld [vmem:[#allocation2 + $0x330] sm:$0xff]
    %v223 = vld [vmem:[#allocation2 + $0x338] sm:$0xff]
    %v224 = vld [vmem:[#allocation2 + $0x340] sm:$0xff]
    %v225 = vld [vmem:[#allocation2 + $0x348] sm:$0xff]
    %v226 = vld [vmem:[#allocation2 + $0x350] sm:$0xff]
    %v227 = vld [vmem:[#allocation2 + $0x358] sm:$0xff]
    %v228 = vld [vmem:[#allocation2 + $0x360] sm:$0xff]
    %v229 = vld [vmem:[#allocation2 + $0x368] sm:$0xff]
    %v230 = vld [vmem:[#allocation2 + $0x370] sm:$0xff]
    %v231 = vld [vmem:[#allocation2 + $0x378] sm:$0xff]
    %v232 = vld [vmem:[#allocation2 + $0x380] sm:$0xff]
    %v233 = vld [vmem:[#allocation2 + $0x388] sm:$0xff]
    %v234 = vld [vmem:[#allocation2 + $0x390] sm:$0xff]
    %v235 = vld [vmem:[#allocation2 + $0x398] sm:$0xff]
    %v236 = vld [vmem:[#allocation2 + $0x3a0] sm:$0xff]
    %v237 = vld [vmem:[#allocation2 + $0x3a8] sm:$0xff]
    %v238 = vld [vmem:[#allocation2 + $0x3b0] sm:$0xff]
    %v239 = vld [vmem:[#allocation2 + $0x3b8] sm:$0xff]
    %v240 = vld [vmem:[#allocation2 + $0x3c0] sm:$0xff]
    %v241 = vld [vmem:[#allocation2 + $0x3c8] sm:$0xff]
    %v242 = vld [vmem:[#allocation2 + $0x3d0] sm:$0xff]
    %v243 = vld [vmem:[#allocation2 + $0x3d8] sm:$0xff]
    %v244 = vld [vmem:[#allocation2 + $0x3e0] sm:$0xff]
    %v245 = vld [vmem:[#allocation2 + $0x3e8] sm:$0xff]
    %v246 = vld [vmem:[#allocation2 + $0x3f0] sm:$0xff]
    %v247 = vld [vmem:[#allocation2 + $0x3f8] sm:$0xff]
    %v248 = vld [vmem:[#allocation2 + $0x400] sm:$0xff]
    %v249 = vld [vmem:[#allocation2 + $0x408] sm:$0xff]
    %v250 = vld [vmem:[#allocation2 + $0x410] sm:$0xff]
    %v251 = vld [vmem:[#allocation2 + $0x418] sm:$0xff]
    %v252 = vld [vmem:[#allocation2 + $0x420] sm:$0xff]
    %v253 = vld [vmem:[#allocation2 + $0x428] sm:$0xff]
    %v254 = vld [vmem:[#allocation2 + $0x430] sm:$0xff]
    %v255 = vld [vmem:[#allocation2 + $0x438] sm:$0xff]
    %v256 = vld [vmem:[#allocation2 + $0x440] sm:$0xff]
    %v257 = vld [vmem:[#allocation2 + $0x448] sm:$0xff]
    %v258 = vld [vmem:[#allocation2 + $0x450] sm:$0xff]
    %v259 = vld [vmem:[#allocation2 + $0x458] sm:$0xff]
    %v260 = vld [vmem:[#allocation2 + $0x460] sm:$0xff]
    %v261 = vld [vmem:[#allocation2 + $0x468] sm:$0xff]
    %v262 = vld [vmem:[#allocation2 + $0x470] sm:$0xff]
    %v263 = vld [vmem:[#allocation2 + $0x478] sm:$0xff]
    %v264 = vld [vmem:[#allocation2 + $0x480] sm:$0xff]
    %v265 = vld [vmem:[#allocation2 + $0x488] sm:$0xff]
    %v266 = vld [vmem:[#allocation2 + $0x490] sm:$0xff]
    %v267 = vld [vmem:[#allocation2 + $0x498] sm:$0xff]
    %v268 = vld [vmem:[#allocation2 + $0x4a0] sm:$0xff]
    %v269 = vld [vmem:[#allocation2 + $0x4a8] sm:$0xff]
    %v270 = vld [vmem:[#allocation2 + $0x4b0] sm:$0xff]
    %v271 = vld [vmem:[#allocation2 + $0x4b8] sm:$0xff]
    %v272 = vld [vmem:[#allocation2 + $0x4c0] sm:$0xff]
    %v273 = vld [vmem:[#allocation2 + $0x4c8] sm:$0xff]
    %v274 = vld [vmem:[#allocation2 + $0x4d0] sm:$0xff]
    %v275 = vld [vmem:[#allocation2 + $0x4d8] sm:$0xff]
    %v276 = vld [vmem:[#allocation2 + $0x4e0] sm:$0xff]
    %v277 = vld [vmem:[#allocation2 + $0x4e8] sm:$0xff]
    %v278 = vld [vmem:[#allocation2 + $0x4f0] sm:$0xff]
    %v279 = vld [vmem:[#allocation2 + $0x4f8] sm:$0xff]
    %v280 = vld [vmem:[#allocation2 + $0x500] sm:$0xff]
    %v281 = vld [vmem:[#allocation2 + $0x508] sm:$0xff]
    %v282 = vld [vmem:[#allocation2 + $0x510] sm:$0xff]
    %v283 = vld [vmem:[#allocation2 + $0x518] sm:$0xff]
    %v284 = vld [vmem:[#allocation2 + $0x520] sm:$0xff]
    %v285 = vld [vmem:[#allocation2 + $0x528] sm:$0xff]
    %v286 = vld [vmem:[#allocation2 + $0x530] sm:$0xff]
    %v287 = vld [vmem:[#allocation2 + $0x538] sm:$0xff]
    %v288 = vld [vmem:[#allocation2 + $0x540] sm:$0xff]
    %v289 = vld [vmem:[#allocation2 + $0x548] sm:$0xff]
    %v290 = vld [vmem:[#allocation2 + $0x550] sm:$0xff]
    %v291 = vld [vmem:[#allocation2 + $0x558] sm:$0xff]
    %v292 = vld [vmem:[#allocation2 + $0x560] sm:$0xff]
    %v293 = vld [vmem:[#allocation2 + $0x568] sm:$0xff]
    %v294 = vld [vmem:[#allocation2 + $0x570] sm:$0xff]
    %v295 = vld [vmem:[#allocation2 + $0x578] sm:$0xff]
    %v296 = vld [vmem:[#allocation2 + $0x580] sm:$0xff]
    %v297 = vld [vmem:[#allocation2 + $0x588] sm:$0xff]
    %v298 = vld [vmem:[#allocation2 + $0x590] sm:$0xff]
    %v299 = vld [vmem:[#allocation2 + $0x598] sm:$0xff]
    %v300 = vld [vmem:[#allocation2 + $0x5a0] sm:$0xff]
    %v301 = vld [vmem:[#allocation2 + $0x5a8] sm:$0xff]
    %v302 = vld [vmem:[#allocation2 + $0x5b0] sm:$0xff]
    %v303 = vld [vmem:[#allocation2 + $0x5b8] sm:$0xff]
    %v304 = vld [vmem:[#allocation2 + $0x5c0] sm:$0xff]
    %v305 = vld [vmem:[#allocation2 + $0x5c8] sm:$0xff]
    %v306 = vld [vmem:[#allocation2 + $0x5d0] sm:$0xff]
    %v307 = vld [vmem:[#allocation2 + $0x5d8] sm:$0xff]
    %v308 = vld [vmem:[#allocation2 + $0x5e0] sm:$0xff]
    %v309 = vld [vmem:[#allocation2 + $0x5e8] sm:$0xff]
    %v310 = vld [vmem:[#allocation2 + $0x5f0] sm:$0xff]
    %v311 = vld [vmem:[#allocation2 + $0x5f8] sm:$0xff]
    %v312 = vld [vmem:[#allocation2 + $0x600] sm:$0xff]
    %v313 = vld [vmem:[#allocation2 + $0x608] sm:$0xff]
    %v314 = vld [vmem:[#allocation2 + $0x610] sm:$0xff]
    %v315 = vld [vmem:[#allocation2 + $0x618] sm:$0xff]
    %v316 = vld [vmem:[#allocation2 + $0x620] sm:$0xff]
    %v317 = vld [vmem:[#allocation2 + $0x628] sm:$0xff]
    %v318 = vld [vmem:[#allocation2 + $0x630] sm:$0xff]
    %v319 = vld [vmem:[#allocation2 + $0x638] sm:$0xff]
    %v320 = vld [vmem:[#allocation2 + $0x640] sm:$0xff]
    %v321 = vld [vmem:[#allocation2 + $0x648] sm:$0xff]
    %v322 = vld [vmem:[#allocation2 + $0x650] sm:$0xff]
    %v323 = vld [vmem:[#allocation2 + $0x658] sm:$0xff]
    %v324 = vld [vmem:[#allocation2 + $0x660] sm:$0xff]
    %v325 = vld [vmem:[#allocation2 + $0x668] sm:$0xff]
    %v326 = vld [vmem:[#allocation2 + $0x670] sm:$0xff]
    %v327 = vld [vmem:[#allocation2 + $0x678] sm:$0xff]
    %v328 = vld [vmem:[#allocation2 + $0x680] sm:$0xff]
    %v329 = vld [vmem:[#allocation2 + $0x688] sm:$0xff]
    %v330 = vld [vmem:[#allocation2 + $0x690] sm:$0xff]
    %v331 = vld [vmem:[#allocation2 + $0x698] sm:$0xff]
    %v332 = vld [vmem:[#allocation2 + $0x6a0] sm:$0xff]
    %v333 = vld [vmem:[#allocation2 + $0x6a8] sm:$0xff]
    %v334 = vld [vmem:[#allocation2 + $0x6b0] sm:$0xff]
    %v335 = vld [vmem:[#allocation2 + $0x6b8] sm:$0xff]
    %v336 = vld [vmem:[#allocation2 + $0x6c0] sm:$0xff]
    %v337 = vld [vmem:[#allocation2 + $0x6c8] sm:$0xff]
    %v338 = vld [vmem:[#allocation2 + $0x6d0] sm:$0xff]
    %v339 = vld [vmem:[#allocation2 + $0x6d8] sm:$0xff]
    %v340 = vld [vmem:[#allocation2 + $0x6e0] sm:$0xff]
    %v341 = vld [vmem:[#allocation2 + $0x6e8] sm:$0xff]
    %v342 = vld [vmem:[#allocation2 + $0x6f0] sm:$0xff]
    %v343 = vld [vmem:[#allocation2 + $0x6f8] sm:$0xff]
    %v344 = vld [vmem:[#allocation2 + $0x700] sm:$0xff]
    %v345 = vld [vmem:[#allocation2 + $0x708] sm:$0xff]
    %v346 = vld [vmem:[#allocation2 + $0x710] sm:$0xff]
    %v347 = vld [vmem:[#allocation2 + $0x718] sm:$0xff]
    %v348 = vld [vmem:[#allocation2 + $0x720] sm:$0xff]
    %v349 = vld [vmem:[#allocation2 + $0x728] sm:$0xff]
    %v350 = vld [vmem:[#allocation2 + $0x730] sm:$0xff]
    %v351 = vld [vmem:[#allocation2 + $0x738] sm:$0xff]
    %v352 = vld [vmem:[#allocation2 + $0x740] sm:$0xff]
    %v353 = vld [vmem:[#allocation2 + $0x748] sm:$0xff]
    %v354 = vld [vmem:[#allocation2 + $0x750] sm:$0xff]
    %v355 = vld [vmem:[#allocation2 + $0x758] sm:$0xff]
    %v356 = vld [vmem:[#allocation2 + $0x760] sm:$0xff]
    %v357 = vld [vmem:[#allocation2 + $0x768] sm:$0xff]
    %v358 = vld [vmem:[#allocation2 + $0x770] sm:$0xff]
    %v359 = vld [vmem:[#allocation2 + $0x778] sm:$0xff]
    %v360 = vld [vmem:[#allocation2 + $0x780] sm:$0xff]
    %v361 = vld [vmem:[#allocation2 + $0x788] sm:$0xff]
    %v362 = vld [vmem:[#allocation2 + $0x790] sm:$0xff]
    %v363 = vld [vmem:[#allocation2 + $0x798] sm:$0xff]
    %v364 = vld [vmem:[#allocation2 + $0x7a0] sm:$0xff]
    %v365 = vld [vmem:[#allocation2 + $0x7a8] sm:$0xff]
    %v366 = vld [vmem:[#allocation2 + $0x7b0] sm:$0xff]
    %v367 = vld [vmem:[#allocation2 + $0x7b8] sm:$0xff]
    %v368 = vld [vmem:[#allocation2 + $0x7c0] sm:$0xff]
    %v369 = vld [vmem:[#allocation2 + $0x7c8] sm:$0xff]
    %v370 = vld [vmem:[#allocation2 + $0x7d0] sm:$0xff]
    %v371 = vld [vmem:[#allocation2 + $0x7d8] sm:$0xff]
    %v372 = vld [vmem:[#allocation2 + $0x7e0] sm:$0xff]
    %v373 = vld [vmem:[#allocation2 + $0x7e8] sm:$0xff]
    %v374 = vld [vmem:[#allocation2 + $0x7f0] sm:$0xff]
    %v375 = vld [vmem:[#allocation2 + $0x7f8] sm:$0xff]
    %v376 = vld [vmem:[#allocation2 + $0x800] sm:$0xff]
    %v377 = vld [vmem:[#allocation2 + $0x808] sm:$0xff]
    %v378 = vld [vmem:[#allocation2 + $0x810] sm:$0xff]
    %v379 = vld [vmem:[#allocation2 + $0x818] sm:$0xff]
    %v380 = vld [vmem:[#allocation2 + $0x820] sm:$0xff]
    %v381 = vld [vmem:[#allocation2 + $0x828] sm:$0xff]
    %v382 = vld [vmem:[#allocation2 + $0x830] sm:$0xff]
    %v383 = vld [vmem:[#allocation2 + $0x838] sm:$0xff]
    %v384 = vld [vmem:[#allocation2 + $0x840] sm:$0xff]
    %v385 = vld [vmem:[#allocation2 + $0x848] sm:$0xff]
    %v386 = vld [vmem:[#allocation2 + $0x850] sm:$0xff]
    %v387 = vld [vmem:[#allocation2 + $0x858] sm:$0xff]
    %v388 = vld [vmem:[#allocation2 + $0x860] sm:$0xff]
    %v389 = vld [vmem:[#allocation2 + $0x868] sm:$0xff]
    %v390 = vld [vmem:[#allocation2 + $0x870] sm:$0xff]
    %v391 = vld [vmem:[#allocation2 + $0x878] sm:$0xff]
    %v392 = vld [vmem:[#allocation2 + $0x880] sm:$0xff]
    %v393 = vld [vmem:[#allocation2 + $0x888] sm:$0xff]
    %v394 = vld [vmem:[#allocation2 + $0x890] sm:$0xff]
    %v395 = vld [vmem:[#allocation2 + $0x898] sm:$0xff]
    %v396 = vld [vmem:[#allocation2 + $0x8a0] sm:$0xff]
    %v397 = vld [vmem:[#allocation2 + $0x8a8] sm:$0xff]
    %v398 = vld [vmem:[#allocation2 + $0x8b0] sm:$0xff]
    %v399 = vld [vmem:[#allocation2 + $0x8b8] sm:$0xff]
    %v400 = vld [vmem:[#allocation2 + $0x8c0] sm:$0xff]
    %v401 = vld [vmem:[#allocation2 + $0x8c8] sm:$0xff]
    %v402 = vld [vmem:[#allocation2 + $0x8d0] sm:$0xff]
    %v403 = vld [vmem:[#allocation2 + $0x8d8] sm:$0xff]
    %v404 = vld [vmem:[#allocation2 + $0x8e0] sm:$0xff]
    %v405 = vld [vmem:[#allocation2 + $0x8e8] sm:$0xff]
    %v406 = vld [vmem:[#allocation2 + $0x8f0] sm:$0xff]
    %v407 = vld [vmem:[#allocation2 + $0x8f8] sm:$0xff]
    %v408 = vld [vmem:[#allocation2 + $0x900] sm:$0xff]
    %v409 = vld [vmem:[#allocation2 + $0x908] sm:$0xff]
    %v410 = vld [vmem:[#allocation2 + $0x910] sm:$0xff]
    %v411 = vld [vmem:[#allocation2 + $0x918] sm:$0xff]
    %v412 = vld [vmem:[#allocation2 + $0x920] sm:$0xff]
    %v413 = vld [vmem:[#allocation2 + $0x928] sm:$0xff]
    %v414 = vld [vmem:[#allocation2 + $0x930] sm:$0xff]
    %v415 = vld [vmem:[#allocation2 + $0x938] sm:$0xff]
    %v416 = vld [vmem:[#allocation2 + $0x940] sm:$0xff]
    %v417 = vld [vmem:[#allocation2 + $0x948] sm:$0xff]
    %v418 = vld [vmem:[#allocation2 + $0x950] sm:$0xff]
    %v419 = vld [vmem:[#allocation2 + $0x958] sm:$0xff]
    %v420 = vld [vmem:[#allocation2 + $0x960] sm:$0xff]
    %v421 = vld [vmem:[#allocation2 + $0x968] sm:$0xff]
    %v422 = vld [vmem:[#allocation2 + $0x970] sm:$0xff]
    %v423 = vld [vmem:[#allocation2 + $0x978] sm:$0xff]
    %v424 = vld [vmem:[#allocation2 + $0x980] sm:$0xff]
    %v425 = vld [vmem:[#allocation2 + $0x988] sm:$0xff]
    %v426 = vld [vmem:[#allocation2 + $0x990] sm:$0xff]
    %v427 = vld [vmem:[#allocation2 + $0x998] sm:$0xff]
    %v428 = vld [vmem:[#allocation2 + $0x9a0] sm:$0xff]
    %v429 = vld [vmem:[#allocation2 + $0x9a8] sm:$0xff]
    %v430 = vld [vmem:[#allocation2 + $0x9b0] sm:$0xff]
    %v431 = vld [vmem:[#allocation2 + $0x9b8] sm:$0xff]
    %v432 = vld [vmem:[#allocation2 + $0x9c0] sm:$0xff]
    %v433 = vld [vmem:[#allocation2 + $0x9c8] sm:$0xff]
    %v434 = vld [vmem:[#allocation2 + $0x9d0] sm:$0xff]
    %v435 = vld [vmem:[#allocation2 + $0x9d8] sm:$0xff]
    %v436 = vld [vmem:[#allocation2 + $0x9e0] sm:$0xff]
    %v437 = vld [vmem:[#allocation2 + $0x9e8] sm:$0xff]
    %v438 = vld [vmem:[#allocation2 + $0x9f0] sm:$0xff]
    %v439 = vld [vmem:[#allocation2 + $0x9f8] sm:$0xff]
    %v440 = vld [vmem:[#allocation2 + $0xa00] sm:$0xff]
    %v441 = vld [vmem:[#allocation2 + $0xa08] sm:$0xff]
    %v442 = vld [vmem:[#allocation2 + $0xa10] sm:$0xff]
    %v443 = vld [vmem:[#allocation2 + $0xa18] sm:$0xff]
    %v444 = vld [vmem:[#allocation2 + $0xa20] sm:$0xff]
    %v445 = vld [vmem:[#allocation2 + $0xa28] sm:$0xff]
    %v446 = vld [vmem:[#allocation2 + $0xa30] sm:$0xff]
    %v447 = vld [vmem:[#allocation2 + $0xa38] sm:$0xff]
    %v448 = vld [vmem:[#allocation2 + $0xa40] sm:$0xff]
    %v449 = vld [vmem:[#allocation2 + $0xa48] sm:$0xff]
    %v450 = vld [vmem:[#allocation2 + $0xa50] sm:$0xff]
    %v451 = vld [vmem:[#allocation2 + $0xa58] sm:$0xff]
    %v452 = vld [vmem:[#allocation2 + $0xa60] sm:$0xff]
    %v453 = vld [vmem:[#allocation2 + $0xa68] sm:$0xff]
    %v454 = vld [vmem:[#allocation2 + $0xa70] sm:$0xff]
    %v455 = vld [vmem:[#allocation2 + $0xa78] sm:$0xff]
    %v456 = vld [vmem:[#allocation2 + $0xa80] sm:$0xff]
    %v457 = vld [vmem:[#allocation2 + $0xa88] sm:$0xff]
    %v458 = vld [vmem:[#allocation2 + $0xa90] sm:$0xff]
    %v459 = vld [vmem:[#allocation2 + $0xa98] sm:$0xff]
    %v460 = vld [vmem:[#allocation2 + $0xaa0] sm:$0xff]
    %v461 = vld [vmem:[#allocation2 + $0xaa8] sm:$0xff]
    %v462 = vld [vmem:[#allocation2 + $0xab0] sm:$0xff]
    %v463 = vld [vmem:[#allocation2 + $0xab8] sm:$0xff]
    %v464 = vld [vmem:[#allocation2 + $0xac0] sm:$0xff]
    %v465 = vld [vmem:[#allocation2 + $0xac8] sm:$0xff]
    %v466 = vld [vmem:[#allocation2 + $0xad0] sm:$0xff]
    %v467 = vld [vmem:[#allocation2 + $0xad8] sm:$0xff]
    %v468 = vld [vmem:[#allocation2 + $0xae0] sm:$0xff]
    %v469 = vld [vmem:[#allocation2 + $0xae8] sm:$0xff]
    %v470 = vld [vmem:[#allocation2 + $0xaf0] sm:$0xff]
    %v471 = vld [vmem:[#allocation2 + $0xaf8] sm:$0xff]
    %v472 = vld [vmem:[#allocation2 + $0xb00] sm:$0xff]
    %v473 = vld [vmem:[#allocation2 + $0xb08] sm:$0xff]
    %v474 = vld [vmem:[#allocation2 + $0xb10] sm:$0xff]
    %v475 = vld [vmem:[#allocation2 + $0xb18] sm:$0xff]
    %v476 = vld [vmem:[#allocation2 + $0xb20] sm:$0xff]
    %v477 = vld [vmem:[#allocation2 + $0xb28] sm:$0xff]
    %v478 = vld [vmem:[#allocation2 + $0xb30] sm:$0xff]
    %v479 = vld [vmem:[#allocation2 + $0xb38] sm:$0xff]
    %v480 = vld [vmem:[#allocation2 + $0xb40] sm:$0xff]
    %v481 = vld [vmem:[#allocation2 + $0xb48] sm:$0xff]
    %v482 = vld [vmem:[#allocation2 + $0xb50] sm:$0xff]
    %v483 = vld [vmem:[#allocation2 + $0xb58] sm:$0xff]
    %v484 = vld [vmem:[#allocation2 + $0xb60] sm:$0xff]
    %v485 = vld [vmem:[#allocation2 + $0xb68] sm:$0xff]
    %v486 = vld [vmem:[#allocation2 + $0xb70] sm:$0xff]
    %v487 = vld [vmem:[#allocation2 + $0xb78] sm:$0xff]
    %v488 = vld [vmem:[#allocation2 + $0xb80] sm:$0xff]
    %v489 = vld [vmem:[#allocation2 + $0xb88] sm:$0xff]
    %v490 = vld [vmem:[#allocation2 + $0xb90] sm:$0xff]
    %v491 = vld [vmem:[#allocation2 + $0xb98] sm:$0xff]
    %v492 = vld [vmem:[#allocation2 + $0xba0] sm:$0xff]
    %v493 = vld [vmem:[#allocation2 + $0xba8] sm:$0xff]
    %v494 = vld [vmem:[#allocation2 + $0xbb0] sm:$0xff]
    %v495 = vld [vmem:[#allocation2 + $0xbb8] sm:$0xff]
    %v496 = vld [vmem:[#allocation2 + $0xbc0] sm:$0xff]
    %v497 = vld [vmem:[#allocation2 + $0xbc8] sm:$0xff]
    %v498 = vld [vmem:[#allocation2 + $0xbd0] sm:$0xff]
    %v499 = vld [vmem:[#allocation2 + $0xbd8] sm:$0xff]
    %v500 = vld [vmem:[#allocation2 + $0xbe0] sm:$0xff]
    %v501 = vld [vmem:[#allocation2 + $0xbe8] sm:$0xff]
    %v502 = vld [vmem:[#allocation2 + $0xbf0] sm:$0xff]
    %v503 = vld [vmem:[#allocation2 + $0xbf8] sm:$0xff]
    %v504 = vld [vmem:[#allocation2 + $0xc00] sm:$0xff]
    %v505 = vld [vmem:[#allocation2 + $0xc08] sm:$0xff]
    %v506 = vld [vmem:[#allocation2 + $0xc10] sm:$0xff]
    %v507 = vld [vmem:[#allocation2 + $0xc18] sm:$0xff]
    %v508 = vld [vmem:[#allocation2 + $0xc20] sm:$0xff]
    %v509 = vld [vmem:[#allocation2 + $0xc28] sm:$0xff]
    %v510 = vld [vmem:[#allocation2 + $0xc30] sm:$0xff]
    %v511 = vld [vmem:[#allocation2 + $0xc38] sm:$0xff]
    %v512 = vld [vmem:[#allocation2 + $0xc40] sm:$0xff]
    %v513 = vld [vmem:[#allocation2 + $0xc48] sm:$0xff]
    %v514 = vld [vmem:[#allocation2 + $0xc50] sm:$0xff]
    %v515 = vld [vmem:[#allocation2 + $0xc58] sm:$0xff]
    %v516 = vld [vmem:[#allocation2 + $0xc60] sm:$0xff]
    %v517 = vld [vmem:[#allocation2 + $0xc68] sm:$0xff]
    %v518 = vld [vmem:[#allocation2 + $0xc70] sm:$0xff]
    %v519 = vld [vmem:[#allocation2 + $0xc78] sm:$0xff]
    %v520 = vld [vmem:[#allocation2 + $0xc80] sm:$0xff]
    %v521 = vld [vmem:[#allocation2 + $0xc88] sm:$0xff]
    %v522 = vld [vmem:[#allocation2 + $0xc90] sm:$0xff]
    %v523 = vld [vmem:[#allocation2 + $0xc98] sm:$0xff]
    %v524 = vld [vmem:[#allocation2 + $0xca0] sm:$0xff]
    %v525 = vld [vmem:[#allocation2 + $0xca8] sm:$0xff]
    %v526 = vld [vmem:[#allocation2 + $0xcb0] sm:$0xff]
    %v527 = vld [vmem:[#allocation2 + $0xcb8] sm:$0xff]
    %v528 = vld [vmem:[#allocation2 + $0xcc0] sm:$0xff]
    %v529 = vld [vmem:[#allocation2 + $0xcc8] sm:$0xff]
    %v530 = vld [vmem:[#allocation2 + $0xcd0] sm:$0xff]
    %v531 = vld [vmem:[#allocation2 + $0xcd8] sm:$0xff]
    %v532 = vld [vmem:[#allocation2 + $0xce0] sm:$0xff]
    %v533 = vld [vmem:[#allocation2 + $0xce8] sm:$0xff]
    %v534 = vld [vmem:[#allocation2 + $0xcf0] sm:$0xff]
    %v535 = vld [vmem:[#allocation2 + $0xcf8] sm:$0xff]
    %v536 = vld [vmem:[#allocation2 + $0xd00] sm:$0xff]
    %v537 = vld [vmem:[#allocation2 + $0xd08] sm:$0xff]
    %v538 = vld [vmem:[#allocation2 + $0xd10] sm:$0xff]
    %v539 = vld [vmem:[#allocation2 + $0xd18] sm:$0xff]
    %v540 = vld [vmem:[#allocation2 + $0xd20] sm:$0xff]
    %v541 = vld [vmem:[#allocation2 + $0xd28] sm:$0xff]
    %v542 = vld [vmem:[#allocation2 + $0xd30] sm:$0xff]
    %v543 = vld [vmem:[#allocation2 + $0xd38] sm:$0xff]
    %v544 = vld [vmem:[#allocation2 + $0xd40] sm:$0xff]
    %v545 = vld [vmem:[#allocation2 + $0xd48] sm:$0xff]
    %v546 = vld [vmem:[#allocation2 + $0xd50] sm:$0xff]
    %v547 = vld [vmem:[#allocation2 + $0xd58] sm:$0xff]
    %v548 = vld [vmem:[#allocation2 + $0xd60] sm:$0xff]
    %v549 = vld [vmem:[#allocation2 + $0xd68] sm:$0xff]
    %v550 = vld [vmem:[#allocation2 + $0xd70] sm:$0xff]
    %v551 = vld [vmem:[#allocation2 + $0xd78] sm:$0xff]
    %v552 = vld [vmem:[#allocation2 + $0xd80] sm:$0xff]
    %v553 = vld [vmem:[#allocation2 + $0xd88] sm:$0xff]
    %v554 = vld [vmem:[#allocation2 + $0xd90] sm:$0xff]
    %v555 = vld [vmem:[#allocation2 + $0xd98] sm:$0xff]
    %v556 = vld [vmem:[#allocation2 + $0xda0] sm:$0xff]
    %v557 = vld [vmem:[#allocation2 + $0xda8] sm:$0xff]
    %v558 = vld [vmem:[#allocation2 + $0xdb0] sm:$0xff]
    %v559 = vld [vmem:[#allocation2 + $0xdb8] sm:$0xff]
    %v560 = vld [vmem:[#allocation2 + $0xdc0] sm:$0xff]
    %v561 = vld [vmem:[#allocation2 + $0xdc8] sm:$0xff]
    %v562 = vld [vmem:[#allocation2 + $0xdd0] sm:$0xff]
    %v563 = vld [vmem:[#allocation2 + $0xdd8] sm:$0xff]
    %v564 = vld [vmem:[#allocation2 + $0xde0] sm:$0xff]
    %v565 = vld [vmem:[#allocation2 + $0xde8] sm:$0xff]
    %v566 = vld [vmem:[#allocation2 + $0xdf0] sm:$0xff]
    %v567 = vld [vmem:[#allocation2 + $0xdf8] sm:$0xff]
    %v568 = vld [vmem:[#allocation2 + $0xe00] sm:$0xff]
    %v569 = vld [vmem:[#allocation2 + $0xe08] sm:$0xff]
    %v570 = vld [vmem:[#allocation2 + $0xe10] sm:$0xff]
    %v571 = vld [vmem:[#allocation2 + $0xe18] sm:$0xff]
    %v572 = vld [vmem:[#allocation2 + $0xe20] sm:$0xff]
    %v573 = vld [vmem:[#allocation2 + $0xe28] sm:$0xff]
    %v574 = vld [vmem:[#allocation2 + $0xe30] sm:$0xff]
    %v575 = vld [vmem:[#allocation2 + $0xe38] sm:$0xff]
    %v576 = vld [vmem:[#allocation2 + $0xe40] sm:$0xff]
    %v577 = vld [vmem:[#allocation2 + $0xe48] sm:$0xff]
    %v578 = vld [vmem:[#allocation2 + $0xe50] sm:$0xff]
    %v579 = vld [vmem:[#allocation2 + $0xe58] sm:$0xff]
    %v580 = vld [vmem:[#allocation2 + $0xe60] sm:$0xff]
    %v581 = vld [vmem:[#allocation2 + $0xe68] sm:$0xff]
    %v582 = vld [vmem:[#allocation2 + $0xe70] sm:$0xff]
    %v583 = vld [vmem:[#allocation2 + $0xe78] sm:$0xff]
    %v584 = vld [vmem:[#allocation2 + $0xe80] sm:$0xff]
    %v585 = vld [vmem:[#allocation2 + $0xe88] sm:$0xff]
    %v586 = vld [vmem:[#allocation2 + $0xe90] sm:$0xff]
    %v587 = vld [vmem:[#allocation2 + $0xe98] sm:$0xff]
    %v588 = vld [vmem:[#allocation2 + $0xea0] sm:$0xff]
    %v589 = vld [vmem:[#allocation2 + $0xea8] sm:$0xff]
    %v590 = vld [vmem:[#allocation2 + $0xeb0] sm:$0xff]
    %v591 = vld [vmem:[#allocation2 + $0xeb8] sm:$0xff]
    %v592 = vld [vmem:[#allocation2 + $0xec0] sm:$0xff]
    %v593 = vld [vmem:[#allocation2 + $0xec8] sm:$0xff]
    %v594 = vld [vmem:[#allocation2 + $0xed0] sm:$0xff]
    %v595 = vld [vmem:[#allocation2 + $0xed8] sm:$0xff]
    %v596 = vld [vmem:[#allocation2 + $0xee0] sm:$0xff]
    %v597 = vld [vmem:[#allocation2 + $0xee8] sm:$0xff]
    %v598 = vld [vmem:[#allocation2 + $0xef0] sm:$0xff]
    %v599 = vld [vmem:[#allocation2 + $0xef8] sm:$0xff]
    %v600 = vld [vmem:[#allocation2 + $0xf00] sm:$0xff]
    %v601 = vld [vmem:[#allocation2 + $0xf08] sm:$0xff]
    %v602 = vld [vmem:[#allocation2 + $0xf10] sm:$0xff]
    %v603 = vld [vmem:[#allocation2 + $0xf18] sm:$0xff]
    %v604 = vld [vmem:[#allocation2 + $0xf20] sm:$0xff]
    %v605 = vld [vmem:[#allocation2 + $0xf28] sm:$0xff]
    %v606 = vld [vmem:[#allocation2 + $0xf30] sm:$0xff]
    %v607 = vld [vmem:[#allocation2 + $0xf38] sm:$0xff]
    %v608 = vld [vmem:[#allocation2 + $0xf40] sm:$0xff]
    %v609 = vld [vmem:[#allocation2 + $0xf48] sm:$0xff]
    %v610 = vld [vmem:[#allocation2 + $0xf50] sm:$0xff]
    %v611 = vld [vmem:[#allocation2 + $0xf58] sm:$0xff]
    %v612 = vld [vmem:[#allocation2 + $0xf60] sm:$0xff]
    %v613 = vld [vmem:[#allocation2 + $0xf68] sm:$0xff]
    %v614 = vld [vmem:[#allocation2 + $0xf70] sm:$0xff]
    %v615 = vld [vmem:[#allocation2 + $0xf78] sm:$0xff]
    %v616 = vld [vmem:[#allocation2 + $0xf80] sm:$0xff]
    %v617 = vld [vmem:[#allocation2 + $0xf88] sm:$0xff]
    %v618 = vld [vmem:[#allocation2 + $0xf90] sm:$0xff]
    %v619 = vld [vmem:[#allocation2 + $0xf98] sm:$0xff]
    %v620 = vld [vmem:[#allocation2 + $0xfa0] sm:$0xff]
    %v621 = vld [vmem:[#allocation2 + $0xfa8] sm:$0xff]
    %v622 = vld [vmem:[#allocation2 + $0xfb0] sm:$0xff]
    %v623 = vld [vmem:[#allocation2 + $0xfb8] sm:$0xff]
    %v624 = vld [vmem:[#allocation2 + $0xfc0] sm:$0xff]
    %v625 = vld [vmem:[#allocation2 + $0xfc8] sm:$0xff]
    %v626 = vld [vmem:[#allocation2 + $0xfd0] sm:$0xff]
    %v627 = vld [vmem:[#allocation2 + $0xfd8] sm:$0xff]
    %v628 = vld [vmem:[#allocation2 + $0xfe0] sm:$0xff]
    %v629 = vld [vmem:[#allocation2 + $0xfe8] sm:$0xff]
    %v630 = vld [vmem:[#allocation2 + $0xff0] sm:$0xff]
    %v631 = vld [vmem:[#allocation2 + $0xff8] sm:$0xff]
    %v632 = vld [vmem:[#allocation2 + $0x1000] sm:$0xff]
    %v633 = vld [vmem:[#allocation2 + $0x1008] sm:$0xff]
    %v634 = vld [vmem:[#allocation2 + $0x1010] sm:$0xff]
    %v635 = vld [vmem:[#allocation2 + $0x1018] sm:$0xff]
    %v636 = vld [vmem:[#allocation2 + $0x1020] sm:$0xff]
    %v637 = vld [vmem:[#allocation2 + $0x1028] sm:$0xff]
    %v638 = vld [vmem:[#allocation2 + $0x1030] sm:$0xff]
    %v639 = vld [vmem:[#allocation2 + $0x1038] sm:$0xff]
    %v640 = vld [vmem:[#allocation2 + $0x1040] sm:$0xff]
    %v641 = vld [vmem:[#allocation2 + $0x1048] sm:$0xff]
    %v642 = vld [vmem:[#allocation2 + $0x1050] sm:$0xff]
    %v643 = vld [vmem:[#allocation2 + $0x1058] sm:$0xff]
    %v644 = vld [vmem:[#allocation2 + $0x1060] sm:$0xff]
    %v645 = vld [vmem:[#allocation2 + $0x1068] sm:$0xff]
    %v646 = vld [vmem:[#allocation2 + $0x1070] sm:$0xff]
    %v647 = vld [vmem:[#allocation2 + $0x1078] sm:$0xff]
    %v648 = vld [vmem:[#allocation2 + $0x1080] sm:$0xff]
    %v649 = vld [vmem:[#allocation2 + $0x1088] sm:$0xff]
    %v650 = vld [vmem:[#allocation2 + $0x1090] sm:$0xff]
    %v651 = vld [vmem:[#allocation2 + $0x1098] sm:$0xff]
    %v652 = vld [vmem:[#allocation2 + $0x10a0] sm:$0xff]
    %v653 = vld [vmem:[#allocation2 + $0x10a8] sm:$0xff]
    %v654 = vld [vmem:[#allocation2 + $0x10b0] sm:$0xff]
    %v655 = vld [vmem:[#allocation2 + $0x10b8] sm:$0xff]
    %v656 = vld [vmem:[#allocation2 + $0x10c0] sm:$0xff]
    %v657 = vld [vmem:[#allocation2 + $0x10c8] sm:$0xff]
    %v658 = vld [vmem:[#allocation2 + $0x10d0] sm:$0xff]
    %v659 = vld [vmem:[#allocation2 + $0x10d8] sm:$0xff]
    %v660 = vld [vmem:[#allocation2 + $0x10e0] sm:$0xff]
    %v661 = vld [vmem:[#allocation2 + $0x10e8] sm:$0xff]
    %v662 = vld [vmem:[#allocation2 + $0x10f0] sm:$0xff]
    %v663 = vld [vmem:[#allocation2 + $0x10f8] sm:$0xff]
    %v664 = vld [vmem:[#allocation2 + $0x1100] sm:$0xff]
    %v665 = vld [vmem:[#allocation2 + $0x1108] sm:$0xff]
    %v666 = vld [vmem:[#allocation2 + $0x1110] sm:$0xff]
    %v667 = vld [vmem:[#allocation2 + $0x1118] sm:$0xff]
    %v668 = vld [vmem:[#allocation2 + $0x1120] sm:$0xff]
    %v669 = vld [vmem:[#allocation2 + $0x1128] sm:$0xff]
    %v670 = vld [vmem:[#allocation2 + $0x1130] sm:$0xff]
    %v671 = vld [vmem:[#allocation2 + $0x1138] sm:$0xff]
    %v672 = vld [vmem:[#allocation2 + $0x1140] sm:$0xff]
    %v673 = vld [vmem:[#allocation2 + $0x1148] sm:$0xff]
    %v674 = vld [vmem:[#allocation2 + $0x1150] sm:$0xff]
    %v675 = vld [vmem:[#allocation2 + $0x1158] sm:$0xff]
    %v676 = vld [vmem:[#allocation2 + $0x1160] sm:$0xff]
    %v677 = vld [vmem:[#allocation2 + $0x1168] sm:$0xff]
    %v678 = vld [vmem:[#allocation2 + $0x1170] sm:$0xff]
    %v679 = vld [vmem:[#allocation2 + $0x1178] sm:$0xff]
    %v680 = vld [vmem:[#allocation2 + $0x1180] sm:$0xff]
    %v681 = vld [vmem:[#allocation2 + $0x1188] sm:$0xff]
    %v682 = vld [vmem:[#allocation2 + $0x1190] sm:$0xff]
    %v683 = vld [vmem:[#allocation2 + $0x1198] sm:$0xff]
    %v684 = vld [vmem:[#allocation2 + $0x11a0] sm:$0xff]
    %v685 = vld [vmem:[#allocation2 + $0x11a8] sm:$0xff]
    %v686 = vld [vmem:[#allocation2 + $0x11b0] sm:$0xff]
    %v687 = vld [vmem:[#allocation2 + $0x11b8] sm:$0xff]
    %v688 = vld [vmem:[#allocation2 + $0x11c0] sm:$0xff]
    %v689 = vld [vmem:[#allocation2 + $0x11c8] sm:$0xff]
    %v690 = vld [vmem:[#allocation2 + $0x11d0] sm:$0xff]
    %v691 = vld [vmem:[#allocation2 + $0x11d8] sm:$0xff]
    %v692 = vld [vmem:[#allocation2 + $0x11e0] sm:$0xff]
    %v693 = vld [vmem:[#allocation2 + $0x11e8] sm:$0xff]
    %v694 = vld [vmem:[#allocation2 + $0x11f0] sm:$0xff]
    %v695 = vld [vmem:[#allocation2 + $0x11f8] sm:$0xff]
    %v696 = vld [vmem:[#allocation2 + $0x1200] sm:$0xff]
    %v697 = vld [vmem:[#allocation2 + $0x1208] sm:$0xff]
    %v698 = vld [vmem:[#allocation2 + $0x1210] sm:$0xff]
    %v699 = vld [vmem:[#allocation2 + $0x1218] sm:$0xff]
    %v700 = vld [vmem:[#allocation2 + $0x1220] sm:$0xff]
    %v701 = vld [vmem:[#allocation2 + $0x1228] sm:$0xff]
    %v702 = vld [vmem:[#allocation2 + $0x1230] sm:$0xff]
    %v703 = vld [vmem:[#allocation2 + $0x1238] sm:$0xff]
    %v704 = vld [vmem:[#allocation2 + $0x1240] sm:$0xff]
    %v705 = vld [vmem:[#allocation2 + $0x1248] sm:$0xff]
    %v706 = vld [vmem:[#allocation2 + $0x1250] sm:$0xff]
    %v707 = vld [vmem:[#allocation2 + $0x1258] sm:$0xff]
    %v708 = vld [vmem:[#allocation2 + $0x1260] sm:$0xff]
    %v709 = vld [vmem:[#allocation2 + $0x1268] sm:$0xff]
    %v710 = vld [vmem:[#allocation2 + $0x1270] sm:$0xff]
    %v711 = vld [vmem:[#allocation2 + $0x1278] sm:$0xff]
    %v712 = vld [vmem:[#allocation2 + $0x1280] sm:$0xff]
    %v713 = vld [vmem:[#allocation2 + $0x1288] sm:$0xff]
    %v714 = vld [vmem:[#allocation2 + $0x1290] sm:$0xff]
    %v715 = vld [vmem:[#allocation2 + $0x1298] sm:$0xff]
    %v716 = vld [vmem:[#allocation2 + $0x12a0] sm:$0xff]
    %v717 = vld [vmem:[#allocation2 + $0x12a8] sm:$0xff]
    %v718 = vld [vmem:[#allocation2 + $0x12b0] sm:$0xff]
    %v719 = vld [vmem:[#allocation2 + $0x12b8] sm:$0xff]
    %v720 = vld [vmem:[#allocation2 + $0x12c0] sm:$0xff]
    %v721 = vld [vmem:[#allocation2 + $0x12c8] sm:$0xff]
    %v722 = vld [vmem:[#allocation2 + $0x12d0] sm:$0xff]
    %v723 = vld [vmem:[#allocation2 + $0x12d8] sm:$0xff]
    %v724 = vld [vmem:[#allocation2 + $0x12e0] sm:$0xff]
    %v725 = vld [vmem:[#allocation2 + $0x12e8] sm:$0xff]
    %v726 = vld [vmem:[#allocation2 + $0x12f0] sm:$0xff]
    %v727 = vld [vmem:[#allocation2 + $0x12f8] sm:$0xff]
    %v728 = vld [vmem:[#allocation2 + $0x1300] sm:$0xff]
    %v729 = vld [vmem:[#allocation2 + $0x1308] sm:$0xff]
    %v730 = vld [vmem:[#allocation2 + $0x1310] sm:$0xff]
    %v731 = vld [vmem:[#allocation2 + $0x1318] sm:$0xff]
    %v732 = vld [vmem:[#allocation2 + $0x1320] sm:$0xff]
    %v733 = vld [vmem:[#allocation2 + $0x1328] sm:$0xff]
    %v734 = vld [vmem:[#allocation2 + $0x1330] sm:$0xff]
    %v735 = vld [vmem:[#allocation2 + $0x1338] sm:$0xff]
    %v736 = vld [vmem:[#allocation2 + $0x1340] sm:$0xff]
    %v737 = vld [vmem:[#allocation2 + $0x1348] sm:$0xff]
    %v738 = vld [vmem:[#allocation2 + $0x1350] sm:$0xff]
    %v739 = vld [vmem:[#allocation2 + $0x1358] sm:$0xff]
    %v740 = vld [vmem:[#allocation2 + $0x1360] sm:$0xff]
    %v741 = vld [vmem:[#allocation2 + $0x1368] sm:$0xff]
    %v742 = vld [vmem:[#allocation2 + $0x1370] sm:$0xff]
    %v743 = vld [vmem:[#allocation2 + $0x1378] sm:$0xff]
    %v744 = vld [vmem:[#allocation2 + $0x1380] sm:$0xff]
    %v745 = vld [vmem:[#allocation2 + $0x1388] sm:$0xff]
    %v746 = vld [vmem:[#allocation2 + $0x1390] sm:$0xff]
    %v747 = vld [vmem:[#allocation2 + $0x1398] sm:$0xff]
    %v748 = vld [vmem:[#allocation2 + $0x13a0] sm:$0xff]
    %v749 = vld [vmem:[#allocation2 + $0x13a8] sm:$0xff]
    %v750 = vld [vmem:[#allocation2 + $0x13b0] sm:$0xff]
    %v751 = vld [vmem:[#allocation2 + $0x13b8] sm:$0xff]
    %v752 = vld [vmem:[#allocation2 + $0x13c0] sm:$0xff]
    %v753 = vld [vmem:[#allocation2 + $0x13c8] sm:$0xff]
    %v754 = vld [vmem:[#allocation2 + $0x13d0] sm:$0xff]
    %v755 = vld [vmem:[#allocation2 + $0x13d8] sm:$0xff]
    %v756 = vld [vmem:[#allocation2 + $0x13e0] sm:$0xff]
    %v757 = vld [vmem:[#allocation2 + $0x13e8] sm:$0xff]
    %v758 = vld [vmem:[#allocation2 + $0x13f0] sm:$0xff]
    %v759 = vld [vmem:[#allocation2 + $0x13f8] sm:$0xff]
    %v760 = vld [vmem:[#allocation2 + $0x1400] sm:$0xff]
    %v761 = vld [vmem:[#allocation2 + $0x1408] sm:$0xff]
    %v762 = vld [vmem:[#allocation2 + $0x1410] sm:$0xff]
    %v763 = vld [vmem:[#allocation2 + $0x1418] sm:$0xff]
    %v764 = vld [vmem:[#allocation2 + $0x1420] sm:$0xff]
    %v765 = vld [vmem:[#allocation2 + $0x1428] sm:$0xff]
    %v766 = vld [vmem:[#allocation2 + $0x1430] sm:$0xff]
    %v767 = vld [vmem:[#allocation2 + $0x1438] sm:$0xff]
    %v768 = vld [vmem:[#allocation2 + $0x1440] sm:$0xff]
    %v769 = vld [vmem:[#allocation2 + $0x1448] sm:$0xff]
    %v770 = vld [vmem:[#allocation2 + $0x1450] sm:$0xff]
    %v771 = vld [vmem:[#allocation2 + $0x1458] sm:$0xff]
    %v772 = vld [vmem:[#allocation2 + $0x1460] sm:$0xff]
    %v773 = vld [vmem:[#allocation2 + $0x1468] sm:$0xff]
    %v774 = vld [vmem:[#allocation2 + $0x1470] sm:$0xff]
    %v775 = vld [vmem:[#allocation2 + $0x1478] sm:$0xff]
    %v776 = vld [vmem:[#allocation2 + $0x1480] sm:$0xff]
    %v777 = vld [vmem:[#allocation2 + $0x1488] sm:$0xff]
    %v778 = vld [vmem:[#allocation2 + $0x1490] sm:$0xff]
    %v779 = vld [vmem:[#allocation2 + $0x1498] sm:$0xff]
    %v780 = vld [vmem:[#allocation2 + $0x14a0] sm:$0xff]
    %v781 = vld [vmem:[#allocation2 + $0x14a8] sm:$0xff]
    %v782 = vld [vmem:[#allocation2 + $0x14b0] sm:$0xff]
    %v783 = vld [vmem:[#allocation2 + $0x14b8] sm:$0xff]
    %v784 = vld [vmem:[#allocation2 + $0x14c0] sm:$0xff]
    %v785 = vld [vmem:[#allocation2 + $0x14c8] sm:$0xff]
    %v786 = vld [vmem:[#allocation2 + $0x14d0] sm:$0xff]
    %v787 = vld [vmem:[#allocation2 + $0x14d8] sm:$0xff]
    %v788 = vld [vmem:[#allocation2 + $0x14e0] sm:$0xff]
    %v789 = vld [vmem:[#allocation2 + $0x14e8] sm:$0xff]
    %v790 = vld [vmem:[#allocation2 + $0x14f0] sm:$0xff]
    %v791 = vld [vmem:[#allocation2 + $0x14f8] sm:$0xff]
    %v792 = vld [vmem:[#allocation2 + $0x1500] sm:$0xff]
    %v793 = vld [vmem:[#allocation2 + $0x1508] sm:$0xff]
    %v794 = vld [vmem:[#allocation2 + $0x1510] sm:$0xff]
    %v795 = vld [vmem:[#allocation2 + $0x1518] sm:$0xff]
    %v796 = vld [vmem:[#allocation2 + $0x1520] sm:$0xff]
    %v797 = vld [vmem:[#allocation2 + $0x1528] sm:$0xff]
    %v798 = vld [vmem:[#allocation2 + $0x1530] sm:$0xff]
    %v799 = vld [vmem:[#allocation2 + $0x1538] sm:$0xff]
    %v800 = vld [vmem:[#allocation2 + $0x1540] sm:$0xff]
    %v801 = vld [vmem:[#allocation2 + $0x1548] sm:$0xff]
    %v802 = vld [vmem:[#allocation2 + $0x1550] sm:$0xff]
    %v803 = vld [vmem:[#allocation2 + $0x1558] sm:$0xff]
    %v804 = vld [vmem:[#allocation2 + $0x1560] sm:$0xff]
    %v805 = vld [vmem:[#allocation2 + $0x1568] sm:$0xff]
    %v806 = vld [vmem:[#allocation2 + $0x1570] sm:$0xff]
    %v807 = vld [vmem:[#allocation2 + $0x1578] sm:$0xff]
    %v808 = vld [vmem:[#allocation2 + $0x1580] sm:$0xff]
    %v809 = vld [vmem:[#allocation2 + $0x1588] sm:$0xff]
    %v810 = vld [vmem:[#allocation2 + $0x1590] sm:$0xff]
    %v811 = vld [vmem:[#allocation2 + $0x1598] sm:$0xff]
    %v812 = vld [vmem:[#allocation2 + $0x15a0] sm:$0xff]
    %v813 = vld [vmem:[#allocation2 + $0x15a8] sm:$0xff]
    %v814 = vld [vmem:[#allocation2 + $0x15b0] sm:$0xff]
    %v815 = vld [vmem:[#allocation2 + $0x15b8] sm:$0xff]
    %v816 = vld [vmem:[#allocation2 + $0x15c0] sm:$0xff]
    %v817 = vld [vmem:[#allocation2 + $0x15c8] sm:$0xff]
    %v818 = vld [vmem:[#allocation2 + $0x15d0] sm:$0xff]
    %v819 = vld [vmem:[#allocation2 + $0x15d8] sm:$0xff]
    %v820 = vld [vmem:[#allocation2 + $0x15e0] sm:$0xff]
    %v821 = vld [vmem:[#allocation2 + $0x15e8] sm:$0xff]
    %v822 = vld [vmem:[#allocation2 + $0x15f0] sm:$0xff]
    %v823 = vld [vmem:[#allocation2 + $0x15f8] sm:$0xff]
    %v824 = vld [vmem:[#allocation2 + $0x1600] sm:$0xff]
    %v825 = vld [vmem:[#allocation2 + $0x1608] sm:$0xff]
    %v826 = vld [vmem:[#allocation2 + $0x1610] sm:$0xff]
    %v827 = vld [vmem:[#allocation2 + $0x1618] sm:$0xff]
    %v828 = vld [vmem:[#allocation2 + $0x1620] sm:$0xff]
    %v829 = vld [vmem:[#allocation2 + $0x1628] sm:$0xff]
    %v830 = vld [vmem:[#allocation2 + $0x1630] sm:$0xff]
    %v831 = vld [vmem:[#allocation2 + $0x1638] sm:$0xff]
    %v832 = vld [vmem:[#allocation2 + $0x1640] sm:$0xff]
    %v833 = vld [vmem:[#allocation2 + $0x1648] sm:$0xff]
    %v834 = vld [vmem:[#allocation2 + $0x1650] sm:$0xff]
    %v835 = vld [vmem:[#allocation2 + $0x1658] sm:$0xff]
    %v836 = vld [vmem:[#allocation2 + $0x1660] sm:$0xff]
    %v837 = vld [vmem:[#allocation2 + $0x1668] sm:$0xff]
    %v838 = vld [vmem:[#allocation2 + $0x1670] sm:$0xff]
    %v839 = vld [vmem:[#allocation2 + $0x1678] sm:$0xff]
    %v840 = vld [vmem:[#allocation2 + $0x1680] sm:$0xff]
    %v841 = vld [vmem:[#allocation2 + $0x1688] sm:$0xff]
    %v842 = vld [vmem:[#allocation2 + $0x1690] sm:$0xff]
    %v843 = vld [vmem:[#allocation2 + $0x1698] sm:$0xff]
    %v844 = vld [vmem:[#allocation2 + $0x16a0] sm:$0xff]
    %v845 = vld [vmem:[#allocation2 + $0x16a8] sm:$0xff]
    %v846 = vld [vmem:[#allocation2 + $0x16b0] sm:$0xff]
    %v847 = vld [vmem:[#allocation2 + $0x16b8] sm:$0xff]
    %v848 = vld [vmem:[#allocation2 + $0x16c0] sm:$0xff]
    %v849 = vld [vmem:[#allocation2 + $0x16c8] sm:$0xff]
    %v850 = vld [vmem:[#allocation2 + $0x16d0] sm:$0xff]
    %v851 = vld [vmem:[#allocation2 + $0x16d8] sm:$0xff]
    %v852 = vld [vmem:[#allocation2 + $0x16e0] sm:$0xff]
    %v853 = vld [vmem:[#allocation2 + $0x16e8] sm:$0xff]
    %v854 = vld [vmem:[#allocation2 + $0x16f0] sm:$0xff]
    %v855 = vld [vmem:[#allocation2 + $0x16f8] sm:$0xff]
    %v856 = vld [vmem:[#allocation2 + $0x1700] sm:$0xff]
    %v857 = vld [vmem:[#allocation2 + $0x1708] sm:$0xff]
    %v858 = vld [vmem:[#allocation2 + $0x1710] sm:$0xff]
    %v859 = vld [vmem:[#allocation2 + $0x1718] sm:$0xff]
    %v860 = vld [vmem:[#allocation2 + $0x1720] sm:$0xff]
    %v861 = vld [vmem:[#allocation2 + $0x1728] sm:$0xff]
    %v862 = vld [vmem:[#allocation2 + $0x1730] sm:$0xff]
    %v863 = vld [vmem:[#allocation2 + $0x1738] sm:$0xff]
    %v864 = vld [vmem:[#allocation2 + $0x1740] sm:$0xff]
    %v865 = vld [vmem:[#allocation2 + $0x1748] sm:$0xff]
    %v866 = vld [vmem:[#allocation2 + $0x1750] sm:$0xff]
    %v867 = vld [vmem:[#allocation2 + $0x1758] sm:$0xff]
    %v868 = vld [vmem:[#allocation2 + $0x1760] sm:$0xff]
    %v869 = vld [vmem:[#allocation2 + $0x1768] sm:$0xff]
    %v870 = vld [vmem:[#allocation2 + $0x1770] sm:$0xff]
    %v871 = vld [vmem:[#allocation2 + $0x1778] sm:$0xff]
    %v872 = vld [vmem:[#allocation2 + $0x1780] sm:$0xff]
    %v873 = vld [vmem:[#allocation2 + $0x1788] sm:$0xff]
    %v874 = vld [vmem:[#allocation2 + $0x1790] sm:$0xff]
    %v875 = vld [vmem:[#allocation2 + $0x1798] sm:$0xff]
    %v876 = vld [vmem:[#allocation2 + $0x17a0] sm:$0xff]
    %v877 = vld [vmem:[#allocation2 + $0x17a8] sm:$0xff]
    %v878 = vld [vmem:[#allocation2 + $0x17b0] sm:$0xff]
    %v879 = vld [vmem:[#allocation2 + $0x17b8] sm:$0xff]
    %v880 = vld [vmem:[#allocation2 + $0x17c0] sm:$0xff]
    %v881 = vld [vmem:[#allocation2 + $0x17c8] sm:$0xff]
    %v882 = vld [vmem:[#allocation2 + $0x17d0] sm:$0xff]
    %v883 = vld [vmem:[#allocation2 + $0x17d8] sm:$0xff]
    %v884 = vld [vmem:[#allocation2 + $0x17e0] sm:$0xff]
    %v885 = vld [vmem:[#allocation2 + $0x17e8] sm:$0xff]
    %v886 = vld [vmem:[#allocation2 + $0x17f0] sm:$0xff]
    %v887 = vld [vmem:[#allocation2 + $0x17f8] sm:$0xff]
    %v888 = vld [vmem:[#allocation2 + $0x1800] sm:$0xff]
    %v889 = vld [vmem:[#allocation2 + $0x1808] sm:$0xff]
    %v890 = vld [vmem:[#allocation2 + $0x1810] sm:$0xff]
    %v891 = vld [vmem:[#allocation2 + $0x1818] sm:$0xff]
    %v892 = vld [vmem:[#allocation2 + $0x1820] sm:$0xff]
    %v893 = vld [vmem:[#allocation2 + $0x1828] sm:$0xff]
    %v894 = vld [vmem:[#allocation2 + $0x1830] sm:$0xff]
    %v895 = vld [vmem:[#allocation2 + $0x1838] sm:$0xff]
    %v896 = vld [vmem:[#allocation2 + $0x1840] sm:$0xff]
    %v897 = vld [vmem:[#allocation2 + $0x1848] sm:$0xff]
    %v898 = vld [vmem:[#allocation2 + $0x1850] sm:$0xff]
    %v899 = vld [vmem:[#allocation2 + $0x1858] sm:$0xff]
    %v900 = vld [vmem:[#allocation2 + $0x1860] sm:$0xff]
    %v901 = vld [vmem:[#allocation2 + $0x1868] sm:$0xff]
    %v902 = vld [vmem:[#allocation2 + $0x1870] sm:$0xff]
    %v903 = vld [vmem:[#allocation2 + $0x1878] sm:$0xff]
    %v904 = vld [vmem:[#allocation2 + $0x1880] sm:$0xff]
    %v905 = vld [vmem:[#allocation2 + $0x1888] sm:$0xff]
    %v906 = vld [vmem:[#allocation2 + $0x1890] sm:$0xff]
    %v907 = vld [vmem:[#allocation2 + $0x1898] sm:$0xff]
    %v908 = vld [vmem:[#allocation2 + $0x18a0] sm:$0xff]
    %v909 = vld [vmem:[#allocation2 + $0x18a8] sm:$0xff]
    %v910 = vld [vmem:[#allocation2 + $0x18b0] sm:$0xff]
    %v911 = vld [vmem:[#allocation2 + $0x18b8] sm:$0xff]
    %v912 = vld [vmem:[#allocation2 + $0x18c0] sm:$0xff]
    %v913 = vld [vmem:[#allocation2 + $0x18c8] sm:$0xff]
    %v914 = vld [vmem:[#allocation2 + $0x18d0] sm:$0xff]
    %v915 = vld [vmem:[#allocation2 + $0x18d8] sm:$0xff]
    %v916 = vld [vmem:[#allocation2 + $0x18e0] sm:$0xff]
    %v917 = vld [vmem:[#allocation2 + $0x18e8] sm:$0xff]
    %v918 = vld [vmem:[#allocation2 + $0x18f0] sm:$0xff]
    %v919 = vld [vmem:[#allocation2 + $0x18f8] sm:$0xff]
    %v920 = vld [vmem:[#allocation2 + $0x1900] sm:$0xff]
    %v921 = vld [vmem:[#allocation2 + $0x1908] sm:$0xff]
    %v922 = vld [vmem:[#allocation2 + $0x1910] sm:$0xff]
    %v923 = vld [vmem:[#allocation2 + $0x1918] sm:$0xff]
    %v924 = vld [vmem:[#allocation2 + $0x1920] sm:$0xff]
    %v925 = vld [vmem:[#allocation2 + $0x1928] sm:$0xff]
    %v926 = vld [vmem:[#allocation2 + $0x1930] sm:$0xff]
    %v927 = vld [vmem:[#allocation2 + $0x1938] sm:$0xff]
    %v928 = vld [vmem:[#allocation2 + $0x1940] sm:$0xff]
    %v929 = vld [vmem:[#allocation2 + $0x1948] sm:$0xff]
    %v930 = vld [vmem:[#allocation2 + $0x1950] sm:$0xff]
    %v931 = vld [vmem:[#allocation2 + $0x1958] sm:$0xff]
    %v932 = vld [vmem:[#allocation2 + $0x1960] sm:$0xff]
    %v933 = vld [vmem:[#allocation2 + $0x1968] sm:$0xff]
    %v934 = vld [vmem:[#allocation2 + $0x1970] sm:$0xff]
    %v935 = vld [vmem:[#allocation2 + $0x1978] sm:$0xff]
    %v936 = vld [vmem:[#allocation2 + $0x1980] sm:$0xff]
    %v937 = vld [vmem:[#allocation2 + $0x1988] sm:$0xff]
    %v938 = vld [vmem:[#allocation2 + $0x1990] sm:$0xff]
    %v939 = vld [vmem:[#allocation2 + $0x1998] sm:$0xff]
    %v940 = vld [vmem:[#allocation2 + $0x19a0] sm:$0xff]
    %v941 = vld [vmem:[#allocation2 + $0x19a8] sm:$0xff]
    %v942 = vld [vmem:[#allocation2 + $0x19b0] sm:$0xff]
    %v943 = vld [vmem:[#allocation2 + $0x19b8] sm:$0xff]
    %v944 = vld [vmem:[#allocation2 + $0x19c0] sm:$0xff]
    %v945 = vld [vmem:[#allocation2 + $0x19c8] sm:$0xff]
    %v946 = vld [vmem:[#allocation2 + $0x19d0] sm:$0xff]
    %v947 = vld [vmem:[#allocation2 + $0x19d8] sm:$0xff]
    %v948 = vld [vmem:[#allocation2 + $0x19e0] sm:$0xff]
    %v949 = vld [vmem:[#allocation2 + $0x19e8] sm:$0xff]
    %v950 = vld [vmem:[#allocation2 + $0x19f0] sm:$0xff]
    %v951 = vld [vmem:[#allocation2 + $0x19f8] sm:$0xff]
    %v952 = vld [vmem:[#allocation2 + $0x1a00] sm:$0xff]
    %v953 = vld [vmem:[#allocation2 + $0x1a08] sm:$0xff]
    %v954 = vld [vmem:[#allocation2 + $0x1a10] sm:$0xff]
    %v955 = vld [vmem:[#allocation2 + $0x1a18] sm:$0xff]
    %v956 = vld [vmem:[#allocation2 + $0x1a20] sm:$0xff]
    %v957 = vld [vmem:[#allocation2 + $0x1a28] sm:$0xff]
    %v958 = vld [vmem:[#allocation2 + $0x1a30] sm:$0xff]
    %v959 = vld [vmem:[#allocation2 + $0x1a38] sm:$0xff]
    %v960 = vld [vmem:[#allocation2 + $0x1a40] sm:$0xff]
    %v961 = vld [vmem:[#allocation2 + $0x1a48] sm:$0xff]
    %v962 = vld [vmem:[#allocation2 + $0x1a50] sm:$0xff]
    %v963 = vld [vmem:[#allocation2 + $0x1a58] sm:$0xff]
    %v964 = vld [vmem:[#allocation2 + $0x1a60] sm:$0xff]
    %v965 = vld [vmem:[#allocation2 + $0x1a68] sm:$0xff]
    %v966 = vld [vmem:[#allocation2 + $0x1a70] sm:$0xff]
    %v967 = vld [vmem:[#allocation2 + $0x1a78] sm:$0xff]
    %v968 = vld [vmem:[#allocation2 + $0x1a80] sm:$0xff]
    %v969 = vld [vmem:[#allocation2 + $0x1a88] sm:$0xff]
    %v970 = vld [vmem:[#allocation2 + $0x1a90] sm:$0xff]
    %v971 = vld [vmem:[#allocation2 + $0x1a98] sm:$0xff]
    %v972 = vld [vmem:[#allocation2 + $0x1aa0] sm:$0xff]
    %v973 = vld [vmem:[#allocation2 + $0x1aa8] sm:$0xff]
    %v974 = vld [vmem:[#allocation2 + $0x1ab0] sm:$0xff]
    %v975 = vld [vmem:[#allocation2 + $0x1ab8] sm:$0xff]
    %v976 = vld [vmem:[#allocation2 + $0x1ac0] sm:$0xff]
    %v977 = vld [vmem:[#allocation2 + $0x1ac8] sm:$0xff]
    %v978 = vld [vmem:[#allocation2 + $0x1ad0] sm:$0xff]
    %v979 = vld [vmem:[#allocation2 + $0x1ad8] sm:$0xff]
    %v980 = vld [vmem:[#allocation2 + $0x1ae0] sm:$0xff]
    %v981 = vld [vmem:[#allocation2 + $0x1ae8] sm:$0xff]
    %v982 = vld [vmem:[#allocation2 + $0x1af0] sm:$0xff]
    %v983 = vld [vmem:[#allocation2 + $0x1af8] sm:$0xff]
    %v984 = vld [vmem:[#allocation2 + $0x1b00] sm:$0xff]
    %v985 = vld [vmem:[#allocation2 + $0x1b08] sm:$0xff]
    %v986 = vld [vmem:[#allocation2 + $0x1b10] sm:$0xff]
    %v987 = vld [vmem:[#allocation2 + $0x1b18] sm:$0xff]
    %v988 = vld [vmem:[#allocation2 + $0x1b20] sm:$0xff]
    %v989 = vld [vmem:[#allocation2 + $0x1b28] sm:$0xff]
    %v990 = vld [vmem:[#allocation2 + $0x1b30] sm:$0xff]
    %v991 = vld [vmem:[#allocation2 + $0x1b38] sm:$0xff]
    %v992 = vld [vmem:[#allocation2 + $0x1b40] sm:$0xff]
    %v993 = vld [vmem:[#allocation2 + $0x1b48] sm:$0xff]
    %v994 = vld [vmem:[#allocation2 + $0x1b50] sm:$0xff]
    %v995 = vld [vmem:[#allocation2 + $0x1b58] sm:$0xff]
    %v996 = vld [vmem:[#allocation2 + $0x1b60] sm:$0xff]
    %v997 = vld [vmem:[#allocation2 + $0x1b68] sm:$0xff]
    %v998 = vld [vmem:[#allocation2 + $0x1b70] sm:$0xff]
    %v999 = vld [vmem:[#allocation2 + $0x1b78] sm:$0xff]
    %v1000 = vld [vmem:[#allocation2 + $0x1b80] sm:$0xff]
    %v1001 = vld [vmem:[#allocation2 + $0x1b88] sm:$0xff]
    %v1002 = vld [vmem:[#allocation2 + $0x1b90] sm:$0xff]
    %v1003 = vld [vmem:[#allocation2 + $0x1b98] sm:$0xff]
    %v1004 = vld [vmem:[#allocation2 + $0x1ba0] sm:$0xff]
    %v1005 = vld [vmem:[#allocation2 + $0x1ba8] sm:$0xff]
    %v1006 = vld [vmem:[#allocation2 + $0x1bb0] sm:$0xff]
    %v1007 = vld [vmem:[#allocation2 + $0x1bb8] sm:$0xff]
    %v1008 = vld [vmem:[#allocation2 + $0x1bc0] sm:$0xff]
    %v1009 = vld [vmem:[#allocation2 + $0x1bc8] sm:$0xff]
    %v1010 = vld [vmem:[#allocation2 + $0x1bd0] sm:$0xff]
    %v1011 = vld [vmem:[#allocation2 + $0x1bd8] sm:$0xff]
    %v1012 = vld [vmem:[#allocation2 + $0x1be0] sm:$0xff]
    %v1013 = vld [vmem:[#allocation2 + $0x1be8] sm:$0xff]
    %v1014 = vld [vmem:[#allocation2 + $0x1bf0] sm:$0xff]
    %v1015 = vld [vmem:[#allocation2 + $0x1bf8] sm:$0xff]
    %v1016 = vld [vmem:[#allocation2 + $0x1c00] sm:$0xff]
    %v1017 = vld [vmem:[#allocation2 + $0x1c08] sm:$0xff]
    %v1018 = vld [vmem:[#allocation2 + $0x1c10] sm:$0xff]
    %v1019 = vld [vmem:[#allocation2 + $0x1c18] sm:$0xff]
    %v1020 = vld [vmem:[#allocation2 + $0x1c20] sm:$0xff]
    %v1021 = vld [vmem:[#allocation2 + $0x1c28] sm:$0xff]
    %v1022 = vld [vmem:[#allocation2 + $0x1c30] sm:$0xff]
    %v1023 = vld [vmem:[#allocation2 + $0x1c38] sm:$0xff]
    %v1024 = vld [vmem:[#allocation2 + $0x1c40] sm:$0xff]
    %v1025 = vld [vmem:[#allocation2 + $0x1c48] sm:$0xff]
    %v1026 = vld [vmem:[#allocation2 + $0x1c50] sm:$0xff]
    %v1027 = vld [vmem:[#allocation2 + $0x1c58] sm:$0xff]
    %v1028 = vld [vmem:[#allocation2 + $0x1c60] sm:$0xff]
    %v1029 = vld [vmem:[#allocation2 + $0x1c68] sm:$0xff]
    %v1030 = vld [vmem:[#allocation2 + $0x1c70] sm:$0xff]
    %v1031 = vld [vmem:[#allocation2 + $0x1c78] sm:$0xff]
    %v1032 = vld [vmem:[#allocation2 + $0x1c80] sm:$0xff]
    %v1033 = vld [vmem:[#allocation2 + $0x1c88] sm:$0xff]
    %v1034 = vld [vmem:[#allocation2 + $0x1c90] sm:$0xff]
    %v1035 = vld [vmem:[#allocation2 + $0x1c98] sm:$0xff]
    %v1036 = vld [vmem:[#allocation2 + $0x1ca0] sm:$0xff]
    %v1037 = vld [vmem:[#allocation2 + $0x1ca8] sm:$0xff]
    %v1038 = vld [vmem:[#allocation2 + $0x1cb0] sm:$0xff]
    %v1039 = vld [vmem:[#allocation2 + $0x1cb8] sm:$0xff]
    %v1040 = vld [vmem:[#allocation2 + $0x1cc0] sm:$0xff]
    %v1041 = vld [vmem:[#allocation2 + $0x1cc8] sm:$0xff]
    %v1042 = vld [vmem:[#allocation2 + $0x1cd0] sm:$0xff]
    %v1043 = vld [vmem:[#allocation2 + $0x1cd8] sm:$0xff]
    %v1044 = vld [vmem:[#allocation2 + $0x1ce0] sm:$0xff]
    %v1045 = vld [vmem:[#allocation2 + $0x1ce8] sm:$0xff]
    %v1046 = vld [vmem:[#allocation2 + $0x1cf0] sm:$0xff]
    %v1047 = vld [vmem:[#allocation2 + $0x1cf8] sm:$0xff]
    %v1048 = vld [vmem:[#allocation4] sm:$0xf]
    %v1050 = vlaneseq
    %v1051 = vshrl.u32 %v1050, 7
    %v1052 = vsub.s32 0, %v1051
    %v1053 = vrot.slane %v1048, %v1052
    %v1054 = vlaneseq
    %v1055 = vshrl.u32 %v1054, 7
    %v1056 = vsub.s32 1, %v1055
    %v1057 = vrot.slane %v1048, %v1056
    %v1058 = vlaneseq
    %v1059 = vshrl.u32 %v1058, 7
    %v1060 = vsub.s32 2, %v1059
    %v1061 = vrot.slane %v1048, %v1060
    %v1062 = vlaneseq
    %v1063 = vshrl.u32 %v1062, 7
    %v1064 = vsub.s32 3, %v1063
    %v1065 = vrot.slane %v1048, %v1064
    %v1085 = vunpack.c.l.b16 %v105
    %v1086 = vunpack.c.h.b16 %v105
    %v1087 = vunpack.c.l.b16 %v106
    %v1088 = vunpack.c.h.b16 %v106
    %v1089 = vunpack.c.l.b16 %v107
    %v1090 = vunpack.c.h.b16 %v107
    %v1091 = vunpack.c.l.b16 %v108
    %v1092 = vunpack.c.h.b16 %v108
    %v1093 = vunpack.c.l.b16 %v109
    %v1094 = vunpack.c.h.b16 %v109
    %v1095 = vunpack.c.l.b16 %v110
    %v1096 = vunpack.c.h.b16 %v110
    %v1097 = vunpack.c.l.b16 %v111
    %v1098 = vunpack.c.h.b16 %v111
    %v1099 = vunpack.c.l.b16 %v112
    %v1100 = vunpack.c.h.b16 %v112
    %v1101 = vunpack.c.l.b16 %v113
    %v1102 = vunpack.c.h.b16 %v113
    %v1103 = vunpack.c.l.b16 %v114
    %v1104 = vunpack.c.h.b16 %v114
    %v1105 = vunpack.c.l.b16 %v115
    %v1106 = vunpack.c.h.b16 %v115
    %v1107 = vunpack.c.l.b16 %v116
    %v1108 = vunpack.c.h.b16 %v116
    %v1109 = vunpack.c.l.b16 %v117
    %v1110 = vunpack.c.h.b16 %v117
    %v1111 = vunpack.c.l.b16 %v118
    %v1112 = vunpack.c.h.b16 %v118
    %v1113 = vunpack.c.l.b16 %v119
    %v1114 = vpack.c.b16 %v1085, %v1085
    %v1115 = vpack.c.b16 %v1086, %v1086
    %v1116 = vpack.c.b16 %v1087, %v1087
    %v1117 = vpack.c.b16 %v1088, %v1088
    %v1118 = vpack.c.b16 %v1089, %v1089
    %v1119 = vpack.c.b16 %v1090, %v1090
    %v1120 = vpack.c.b16 %v1091, %v1091
    %v1121 = vpack.c.b16 %v1092, %v1092
    %v1122 = vpack.c.b16 %v1093, %v1093
    %v1123 = vpack.c.b16 %v1094, %v1094
    %v1124 = vpack.c.b16 %v1095, %v1095
    %v1125 = vpack.c.b16 %v1096, %v1096
    %v1126 = vpack.c.b16 %v1097, %v1097
    %v1127 = vpack.c.b16 %v1098, %v1098
    %v1128 = vpack.c.b16 %v1099, %v1099
    %v1129 = vpack.c.b16 %v1100, %v1100
    %v1130 = vpack.c.b16 %v1101, %v1101
    %v1131 = vpack.c.b16 %v1102, %v1102
    %v1132 = vpack.c.b16 %v1103, %v1103
    %v1133 = vpack.c.b16 %v1104, %v1104
    %v1134 = vpack.c.b16 %v1105, %v1105
    %v1135 = vpack.c.b16 %v1106, %v1106
    %v1136 = vpack.c.b16 %v1107, %v1107
    %v1137 = vpack.c.b16 %v1108, %v1108
    %v1138 = vpack.c.b16 %v1109, %v1109
    %v1139 = vpack.c.b16 %v1110, %v1110
    %v1140 = vpack.c.b16 %v1111, %v1111
    %v1141 = vpack.c.b16 %v1112, %v1112
    %v1142 = vpack.c.b16 %v1113, %v1113
    %v2100 = vunpack.c.l.b16 %v120
    %v2101 = vunpack.c.h.b16 %v120
    %v2102 = vunpack.c.l.b16 %v121
    %v2103 = vunpack.c.h.b16 %v121
    %v2104 = vunpack.c.l.b16 %v122
    %v2105 = vunpack.c.h.b16 %v122
    %v2106 = vunpack.c.l.b16 %v123
    %v2107 = vunpack.c.h.b16 %v123
    %v2108 = vunpack.c.l.b16 %v124
    %v2109 = vunpack.c.h.b16 %v124
    %v2110 = vunpack.c.l.b16 %v125
    %v2111 = vunpack.c.h.b16 %v125
    %v2112 = vunpack.c.l.b16 %v126
    %v2113 = vunpack.c.h.b16 %v126
    %v2114 = vunpack.c.l.b16 %v127
    %v2115 = vunpack.c.h.b16 %v127
    %v2116 = vunpack.c.l.b16 %v128
    %v2117 = vunpack.c.h.b16 %v128
    %v2118 = vunpack.c.l.b16 %v129
    %v2119 = vunpack.c.h.b16 %v129
    %v2120 = vunpack.c.l.b16 %v130
    %v2121 = vunpack.c.h.b16 %v130
    %v2122 = vunpack.c.l.b16 %v131
    %v2123 = vunpack.c.h.b16 %v131
    %v2124 = vunpack.c.l.b16 %v132
    %v2125 = vunpack.c.h.b16 %v132
    %v2126 = vunpack.c.l.b16 %v133
    %v2127 = vunpack.c.h.b16 %v133
    %v2128 = vunpack.c.l.b16 %v134
    %v2129 = vunpack.c.h.b16 %v134
    %v2130 = vunpack.c.l.b16 %v135
    %v2131 = vunpack.c.h.b16 %v135
    %v2132 = vunpack.c.l.b16 %v136
    %v2133 = vunpack.c.h.b16 %v136
    %v2134 = vunpack.c.l.b16 %v137
    %v2135 = vunpack.c.h.b16 %v137
    %v2136 = vunpack.c.l.b16 %v138
    %v2137 = vunpack.c.h.b16 %v138
    %v2138 = vunpack.c.l.b16 %v139
    %v2139 = vunpack.c.h.b16 %v139
    %v2140 = vunpack.c.l.b16 %v140
    %v2141 = vunpack.c.h.b16 %v140
    %v2142 = vunpack.c.l.b16 %v141
    %v2143 = vunpack.c.h.b16 %v141
    %v2144 = vunpack.c.l.b16 %v142
    %v2145 = vunpack.c.h.b16 %v142
    %v2146 = vunpack.c.l.b16 %v143
    %v2147 = vunpack.c.h.b16 %v143
    %v2148 = vunpack.c.l.b16 %v144
    %v2149 = vunpack.c.h.b16 %v144
    %v2150 = vunpack.c.l.b16 %v145
    %v2151 = vunpack.c.h.b16 %v145
    %v2152 = vunpack.c.l.b16 %v146
    %v2153 = vunpack.c.h.b16 %v146
    %v2154 = vunpack.c.l.b16 %v147
    %v2155 = vunpack.c.h.b16 %v147
    %v2156 = vunpack.c.l.b16 %v148
    %v2157 = vunpack.c.h.b16 %v148
    %v2158 = vunpack.c.l.b16 %v149
    %v2159 = vunpack.c.h.b16 %v149
    %v2160 = vunpack.c.l.b16 %v150
    %v2161 = vunpack.c.h.b16 %v150
    %v2162 = vunpack.c.l.b16 %v151
    %v2163 = vunpack.c.h.b16 %v151
    %v2164 = vunpack.c.l.b16 %v152
    %v2165 = vunpack.c.h.b16 %v152
    %v2166 = vunpack.c.l.b16 %v153
    %v2167 = vunpack.c.h.b16 %v153
    %v2168 = vunpack.c.l.b16 %v154
    %v2169 = vunpack.c.h.b16 %v154
    %v2170 = vunpack.c.l.b16 %v155
    %v2171 = vunpack.c.h.b16 %v155
    %v2172 = vunpack.c.l.b16 %v156
    %v2173 = vunpack.c.h.b16 %v156
    %v2174 = vunpack.c.l.b16 %v157
    %v2175 = vunpack.c.h.b16 %v157
    %v2176 = vunpack.c.l.b16 %v158
    %v2177 = vunpack.c.h.b16 %v158
    %v2178 = vunpack.c.l.b16 %v159
    %v2179 = vunpack.c.h.b16 %v159
    %v2180 = vunpack.c.l.b16 %v160
    %v2181 = vunpack.c.h.b16 %v160
    %v2182 = vunpack.c.l.b16 %v161
    %v2183 = vunpack.c.h.b16 %v161
    %v2184 = vunpack.c.l.b16 %v162
    %v2185 = vunpack.c.h.b16 %v162
    %v2186 = vunpack.c.l.b16 %v163
    %v2187 = vunpack.c.h.b16 %v163
    %v2188 = vunpack.c.l.b16 %v164
    %v2189 = vunpack.c.h.b16 %v164
    %v2190 = vunpack.c.l.b16 %v165
    %v2191 = vunpack.c.h.b16 %v165
    %v2192 = vunpack.c.l.b16 %v166
    %v2193 = vunpack.c.h.b16 %v166
    %v2194 = vunpack.c.l.b16 %v167
    %v2195 = vunpack.c.h.b16 %v167
    %v2196 = vunpack.c.l.b16 %v168
    %v2197 = vunpack.c.h.b16 %v168
    %v2198 = vunpack.c.l.b16 %v169
    %v2199 = vunpack.c.h.b16 %v169
    %v2200 = vunpack.c.l.b16 %v170
    %v2201 = vunpack.c.h.b16 %v170
    %v2202 = vunpack.c.l.b16 %v171
    %v2203 = vunpack.c.h.b16 %v171
    %v2204 = vunpack.c.l.b16 %v172
    %v2205 = vunpack.c.h.b16 %v172
    %v2206 = vunpack.c.l.b16 %v173
    %v2207 = vunpack.c.h.b16 %v173
    %v2208 = vunpack.c.l.b16 %v174
    %v2209 = vunpack.c.h.b16 %v174
    %v2210 = vunpack.c.l.b16 %v175
    %v2211 = vunpack.c.h.b16 %v175
    %v2212 = vunpack.c.l.b16 %v176
    %v2213 = vunpack.c.h.b16 %v176
    %v2214 = vunpack.c.l.b16 %v177
    %v2215 = vunpack.c.h.b16 %v177
    %v2216 = vunpack.c.l.b16 %v178
    %v2217 = vunpack.c.h.b16 %v178
    %v2218 = vunpack.c.l.b16 %v179
    %v2219 = vunpack.c.h.b16 %v179
    %v2220 = vunpack.c.l.b16 %v180
    %v2221 = vunpack.c.h.b16 %v180
    %v2222 = vunpack.c.l.b16 %v181
    %v2223 = vunpack.c.h.b16 %v181
    %v2224 = vunpack.c.l.b16 %v182
    %v2225 = vunpack.c.h.b16 %v182
    %v2226 = vunpack.c.l.b16 %v183
    %v2227 = vunpack.c.h.b16 %v183
    %v2228 = vunpack.c.l.b16 %v184
    %v2229 = vunpack.c.h.b16 %v184
    %v2230 = vunpack.c.l.b16 %v185
    %v2231 = vunpack.c.h.b16 %v185
    %v2232 = vunpack.c.l.b16 %v186
    %v2233 = vunpack.c.h.b16 %v186
    %v2234 = vunpack.c.l.b16 %v187
    %v2235 = vunpack.c.h.b16 %v187
    %v2236 = vunpack.c.l.b16 %v188
    %v2237 = vunpack.c.h.b16 %v188
    %v2238 = vunpack.c.l.b16 %v189
    %v2239 = vunpack.c.h.b16 %v189
    %v2240 = vunpack.c.l.b16 %v190
    %v2241 = vunpack.c.h.b16 %v190
    %v2242 = vunpack.c.l.b16 %v191
    %v2243 = vunpack.c.h.b16 %v191
    %v2244 = vunpack.c.l.b16 %v192
    %v2245 = vunpack.c.h.b16 %v192
    %v2246 = vunpack.c.l.b16 %v193
    %v2247 = vunpack.c.h.b16 %v193
    %v2248 = vunpack.c.l.b16 %v194
    %v2249 = vunpack.c.h.b16 %v194
    %v2250 = vunpack.c.l.b16 %v195
    %v2251 = vunpack.c.h.b16 %v195
    %v2252 = vunpack.c.l.b16 %v196
    %v2253 = vunpack.c.h.b16 %v196
    %v2254 = vunpack.c.l.b16 %v197
    %v2255 = vunpack.c.h.b16 %v197
    %v2256 = vunpack.c.l.b16 %v198
    %v2257 = vunpack.c.h.b16 %v198
    %v2258 = vunpack.c.l.b16 %v199
    %v2259 = vunpack.c.h.b16 %v199
    %v2260 = vunpack.c.l.b16 %v200
    %v2261 = vunpack.c.h.b16 %v200
    %v2262 = vunpack.c.l.b16 %v201
    %v2263 = vunpack.c.h.b16 %v201
    %v2264 = vunpack.c.l.b16 %v202
    %v2265 = vunpack.c.h.b16 %v202
    %v2266 = vunpack.c.l.b16 %v203
    %v2267 = vunpack.c.h.b16 %v203
    %v2268 = vunpack.c.l.b16 %v204
    %v2269 = vunpack.c.h.b16 %v204
    %v2270 = vunpack.c.l.b16 %v205
    %v2271 = vunpack.c.h.b16 %v205
    %v2272 = vunpack.c.l.b16 %v206
    %v2273 = vunpack.c.h.b16 %v206
    %v2274 = vunpack.c.l.b16 %v207
    %v2275 = vunpack.c.h.b16 %v207
    %v2276 = vunpack.c.l.b16 %v208
    %v2277 = vunpack.c.h.b16 %v208
    %v2278 = vunpack.c.l.b16 %v209
    %v2279 = vunpack.c.h.b16 %v209
    %v2280 = vunpack.c.l.b16 %v210
    %v2281 = vunpack.c.h.b16 %v210
    %v2282 = vunpack.c.l.b16 %v211
    %v2283 = vunpack.c.h.b16 %v211
    %v2284 = vunpack.c.l.b16 %v212
    %v2285 = vunpack.c.h.b16 %v212
    %v2286 = vunpack.c.l.b16 %v213
    %v2287 = vunpack.c.h.b16 %v213
    %v2288 = vunpack.c.l.b16 %v214
    %v2289 = vunpack.c.h.b16 %v214
    %v2290 = vunpack.c.l.b16 %v215
    %v2291 = vunpack.c.h.b16 %v215
    %v2292 = vunpack.c.l.b16 %v216
    %v2293 = vunpack.c.h.b16 %v216
    %v2294 = vunpack.c.l.b16 %v217
    %v2295 = vunpack.c.h.b16 %v217
    %v2296 = vunpack.c.l.b16 %v218
    %v2297 = vunpack.c.h.b16 %v218
    %v2298 = vunpack.c.l.b16 %v219
    %v2299 = vunpack.c.h.b16 %v219
    %v2300 = vunpack.c.l.b16 %v220
    %v2301 = vunpack.c.h.b16 %v220
    %v2302 = vunpack.c.l.b16 %v221
    %v2303 = vunpack.c.h.b16 %v221
    %v2304 = vunpack.c.l.b16 %v222
    %v2305 = vunpack.c.h.b16 %v222
    %v2306 = vunpack.c.l.b16 %v223
    %v2307 = vunpack.c.h.b16 %v223
    %v2308 = vunpack.c.l.b16 %v224
    %v2309 = vunpack.c.h.b16 %v224
    %v2310 = vunpack.c.l.b16 %v225
    %v2311 = vunpack.c.h.b16 %v225
    %v2312 = vunpack.c.l.b16 %v226
    %v2313 = vunpack.c.h.b16 %v226
    %v2314 = vunpack.c.l.b16 %v227
    %v2315 = vunpack.c.h.b16 %v227
    %v2316 = vunpack.c.l.b16 %v228
    %v2317 = vunpack.c.h.b16 %v228
    %v2318 = vunpack.c.l.b16 %v229
    %v2319 = vunpack.c.h.b16 %v229
    %v2320 = vunpack.c.l.b16 %v230
    %v2321 = vunpack.c.h.b16 %v230
    %v2322 = vunpack.c.l.b16 %v231
    %v2323 = vunpack.c.h.b16 %v231
    %v2324 = vunpack.c.l.b16 %v232
    %v2325 = vunpack.c.h.b16 %v232
    %v2326 = vunpack.c.l.b16 %v233
    %v2327 = vunpack.c.h.b16 %v233
    %v2328 = vunpack.c.l.b16 %v234
    %v2329 = vunpack.c.h.b16 %v234
    %v2330 = vunpack.c.l.b16 %v235
    %v2331 = vunpack.c.h.b16 %v235
    %v2332 = vunpack.c.l.b16 %v236
    %v2333 = vunpack.c.h.b16 %v236
    %v2334 = vunpack.c.l.b16 %v237
    %v2335 = vunpack.c.h.b16 %v237
    %v2336 = vunpack.c.l.b16 %v238
    %v2337 = vunpack.c.h.b16 %v238
    %v2338 = vunpack.c.l.b16 %v239
    %v2339 = vunpack.c.h.b16 %v239
    %v2340 = vunpack.c.l.b16 %v240
    %v2341 = vunpack.c.h.b16 %v240
    %v2342 = vunpack.c.l.b16 %v241
    %v2343 = vunpack.c.h.b16 %v241
    %v2344 = vunpack.c.l.b16 %v242
    %v2345 = vunpack.c.h.b16 %v242
    %v2346 = vunpack.c.l.b16 %v243
    %v2347 = vunpack.c.h.b16 %v243
    %v2348 = vunpack.c.l.b16 %v244
    %v2349 = vunpack.c.h.b16 %v244
    %v2350 = vunpack.c.l.b16 %v245
    %v2351 = vunpack.c.h.b16 %v245
    %v2352 = vunpack.c.l.b16 %v246
    %v2353 = vunpack.c.h.b16 %v246
    %v2354 = vunpack.c.l.b16 %v247
    %v2355 = vunpack.c.h.b16 %v247
    %v2356 = vunpack.c.l.b16 %v248
    %v2357 = vunpack.c.h.b16 %v248
    %v2358 = vunpack.c.l.b16 %v249
    %v2359 = vunpack.c.h.b16 %v249
    %v2360 = vunpack.c.l.b16 %v250
    %v2361 = vunpack.c.h.b16 %v250
    %v2362 = vunpack.c.l.b16 %v251
    %v2363 = vunpack.c.h.b16 %v251
    %v2364 = vunpack.c.l.b16 %v252
    %v2365 = vunpack.c.h.b16 %v252
    %v2366 = vunpack.c.l.b16 %v253
    %v2367 = vunpack.c.h.b16 %v253
    %v2368 = vunpack.c.l.b16 %v254
    %v2369 = vunpack.c.h.b16 %v254
    %v2370 = vunpack.c.l.b16 %v255
    %v2371 = vunpack.c.h.b16 %v255
    %v2372 = vunpack.c.l.b16 %v256
    %v2373 = vunpack.c.h.b16 %v256
    %v2374 = vunpack.c.l.b16 %v257
    %v2375 = vunpack.c.h.b16 %v257
    %v2376 = vunpack.c.l.b16 %v258
    %v2377 = vunpack.c.h.b16 %v258
    %v2378 = vunpack.c.l.b16 %v259
    %v2379 = vunpack.c.h.b16 %v259
    %v2380 = vunpack.c.l.b16 %v260
    %v2381 = vunpack.c.h.b16 %v260
    %v2382 = vunpack.c.l.b16 %v261
    %v2383 = vunpack.c.h.b16 %v261
    %v2384 = vunpack.c.l.b16 %v262
    %v2385 = vunpack.c.h.b16 %v262
    %v2386 = vunpack.c.l.b16 %v263
    %v2387 = vunpack.c.h.b16 %v263
    %v2388 = vunpack.c.l.b16 %v264
    %v2389 = vunpack.c.h.b16 %v264
    %v2390 = vunpack.c.l.b16 %v265
    %v2391 = vunpack.c.h.b16 %v265
    %v2392 = vunpack.c.l.b16 %v266
    %v2393 = vunpack.c.h.b16 %v266
    %v2394 = vunpack.c.l.b16 %v267
    %v2395 = vunpack.c.h.b16 %v267
    %v2396 = vunpack.c.l.b16 %v268
    %v2397 = vunpack.c.h.b16 %v268
    %v2398 = vunpack.c.l.b16 %v269
    %v2399 = vunpack.c.h.b16 %v269
    %v2400 = vunpack.c.l.b16 %v270
    %v2401 = vunpack.c.h.b16 %v270
    %v2402 = vunpack.c.l.b16 %v271
    %v2403 = vunpack.c.h.b16 %v271
    %v2404 = vunpack.c.l.b16 %v272
    %v2405 = vunpack.c.h.b16 %v272
    %v2406 = vunpack.c.l.b16 %v273
    %v2407 = vunpack.c.h.b16 %v273
    %v2408 = vunpack.c.l.b16 %v274
    %v2409 = vunpack.c.h.b16 %v274
    %v2410 = vunpack.c.l.b16 %v275
    %v2411 = vunpack.c.h.b16 %v275
    %v2412 = vunpack.c.l.b16 %v276
    %v2413 = vunpack.c.h.b16 %v276
    %v2414 = vunpack.c.l.b16 %v277
    %v2415 = vunpack.c.h.b16 %v277
    %v2416 = vunpack.c.l.b16 %v278
    %v2417 = vunpack.c.h.b16 %v278
    %v2418 = vunpack.c.l.b16 %v279
    %v2419 = vunpack.c.h.b16 %v279
    %v2420 = vunpack.c.l.b16 %v280
    %v2421 = vunpack.c.h.b16 %v280
    %v2422 = vunpack.c.l.b16 %v281
    %v2423 = vunpack.c.h.b16 %v281
    %v2424 = vunpack.c.l.b16 %v282
    %v2425 = vunpack.c.h.b16 %v282
    %v2426 = vunpack.c.l.b16 %v283
    %v2427 = vunpack.c.h.b16 %v283
    %v2428 = vunpack.c.l.b16 %v284
    %v2429 = vunpack.c.h.b16 %v284
    %v2430 = vunpack.c.l.b16 %v285
    %v2431 = vunpack.c.h.b16 %v285
    %v2432 = vunpack.c.l.b16 %v286
    %v2433 = vunpack.c.h.b16 %v286
    %v2434 = vunpack.c.l.b16 %v287
    %v2435 = vunpack.c.h.b16 %v287
    %v2436 = vunpack.c.l.b16 %v288
    %v2437 = vunpack.c.h.b16 %v288
    %v2438 = vunpack.c.l.b16 %v289
    %v2439 = vunpack.c.h.b16 %v289
    %v2440 = vunpack.c.l.b16 %v290
    %v2441 = vunpack.c.h.b16 %v290
    %v2442 = vunpack.c.l.b16 %v291
    %v2443 = vunpack.c.h.b16 %v291
    %v2444 = vunpack.c.l.b16 %v292
    %v2445 = vunpack.c.h.b16 %v292
    %v2446 = vunpack.c.l.b16 %v293
    %v2447 = vunpack.c.h.b16 %v293
    %v2448 = vunpack.c.l.b16 %v294
    %v2449 = vunpack.c.h.b16 %v294
    %v2450 = vunpack.c.l.b16 %v295
    %v2451 = vunpack.c.h.b16 %v295
    %v2452 = vunpack.c.l.b16 %v296
    %v2453 = vunpack.c.h.b16 %v296
    %v2454 = vunpack.c.l.b16 %v297
    %v2455 = vunpack.c.h.b16 %v297
    %v2456 = vunpack.c.l.b16 %v298
    %v2457 = vunpack.c.h.b16 %v298
    %v2458 = vunpack.c.l.b16 %v299
    %v2459 = vunpack.c.h.b16 %v299
    %v2460 = vunpack.c.l.b16 %v300
    %v2461 = vunpack.c.h.b16 %v300
    %v2462 = vunpack.c.l.b16 %v301
    %v2463 = vunpack.c.h.b16 %v301
    %v2464 = vunpack.c.l.b16 %v302
    %v2465 = vunpack.c.h.b16 %v302
    %v2466 = vunpack.c.l.b16 %v303
    %v2467 = vunpack.c.h.b16 %v303
    %v2468 = vunpack.c.l.b16 %v304
    %v2469 = vunpack.c.h.b16 %v304
    %v2470 = vunpack.c.l.b16 %v305
    %v2471 = vunpack.c.h.b16 %v305
    %v2472 = vunpack.c.l.b16 %v306
    %v2473 = vunpack.c.h.b16 %v306
    %v2474 = vunpack.c.l.b16 %v307
    %v2475 = vunpack.c.h.b16 %v307
    %v2476 = vunpack.c.l.b16 %v308
    %v2477 = vunpack.c.h.b16 %v308
    %v2478 = vunpack.c.l.b16 %v309
    %v2479 = vunpack.c.h.b16 %v309
    %v2480 = vunpack.c.l.b16 %v310
    %v2481 = vunpack.c.h.b16 %v310
    %v2482 = vunpack.c.l.b16 %v311
    %v2483 = vunpack.c.h.b16 %v311
    %v2484 = vunpack.c.l.b16 %v312
    %v2485 = vunpack.c.h.b16 %v312
    %v2486 = vunpack.c.l.b16 %v313
    %v2487 = vunpack.c.h.b16 %v313
    %v2488 = vunpack.c.l.b16 %v314
    %v2489 = vunpack.c.h.b16 %v314
    %v2490 = vunpack.c.l.b16 %v315
    %v2491 = vunpack.c.h.b16 %v315
    %v2492 = vunpack.c.l.b16 %v316
    %v2493 = vunpack.c.h.b16 %v316
    %v2494 = vunpack.c.l.b16 %v317
    %v2495 = vunpack.c.h.b16 %v317
    %v2496 = vunpack.c.l.b16 %v318
    %v2497 = vunpack.c.h.b16 %v318
    %v2498 = vunpack.c.l.b16 %v319
    %v2499 = vunpack.c.h.b16 %v319
    %v2500 = vunpack.c.l.b16 %v320
    %v2501 = vunpack.c.h.b16 %v320
    %v2502 = vunpack.c.l.b16 %v321
    %v2503 = vunpack.c.h.b16 %v321
    %v2504 = vunpack.c.l.b16 %v322
    %v2505 = vunpack.c.h.b16 %v322
    %v2506 = vunpack.c.l.b16 %v323
    %v2507 = vunpack.c.h.b16 %v323
    %v2508 = vunpack.c.l.b16 %v324
    %v2509 = vunpack.c.h.b16 %v324
    %v2510 = vunpack.c.l.b16 %v325
    %v2511 = vunpack.c.h.b16 %v325
    %v2512 = vunpack.c.l.b16 %v326
    %v2513 = vunpack.c.h.b16 %v326
    %v2514 = vunpack.c.l.b16 %v327
    %v2515 = vunpack.c.h.b16 %v327
    %v2516 = vunpack.c.l.b16 %v328
    %v2517 = vunpack.c.h.b16 %v328
    %v2518 = vunpack.c.l.b16 %v329
    %v2519 = vunpack.c.h.b16 %v329
    %v2520 = vunpack.c.l.b16 %v330
    %v2521 = vunpack.c.h.b16 %v330
    %v2522 = vunpack.c.l.b16 %v331
    %v2523 = vunpack.c.h.b16 %v331
    %v2524 = vunpack.c.l.b16 %v332
    %v2525 = vunpack.c.h.b16 %v332
    %v2526 = vunpack.c.l.b16 %v333
    %v2527 = vunpack.c.h.b16 %v333
    %v2528 = vunpack.c.l.b16 %v334
    %v2529 = vunpack.c.h.b16 %v334
    %v2530 = vunpack.c.l.b16 %v335
    %v2531 = vunpack.c.h.b16 %v335
    %v2532 = vunpack.c.l.b16 %v336
    %v2533 = vunpack.c.h.b16 %v336
    %v2534 = vunpack.c.l.b16 %v337
    %v2535 = vunpack.c.h.b16 %v337
    %v2536 = vunpack.c.l.b16 %v338
    %v2537 = vunpack.c.h.b16 %v338
    %v2538 = vunpack.c.l.b16 %v339
    %v2539 = vunpack.c.h.b16 %v339
    %v2540 = vunpack.c.l.b16 %v340
    %v2541 = vunpack.c.h.b16 %v340
    %v2542 = vunpack.c.l.b16 %v341
    %v2543 = vunpack.c.h.b16 %v341
    %v2544 = vunpack.c.l.b16 %v342
    %v2545 = vunpack.c.h.b16 %v342
    %v2546 = vunpack.c.l.b16 %v343
    %v2547 = vunpack.c.h.b16 %v343
    %v2548 = vunpack.c.l.b16 %v344
    %v2549 = vunpack.c.h.b16 %v344
    %v2550 = vunpack.c.l.b16 %v345
    %v2551 = vunpack.c.h.b16 %v345
    %v2552 = vunpack.c.l.b16 %v346
    %v2553 = vunpack.c.h.b16 %v346
    %v2554 = vunpack.c.l.b16 %v347
    %v2555 = vunpack.c.h.b16 %v347
    %v2556 = vunpack.c.l.b16 %v348
    %v2557 = vunpack.c.h.b16 %v348
    %v2558 = vunpack.c.l.b16 %v349
    %v2559 = vunpack.c.h.b16 %v349
    %v2560 = vunpack.c.l.b16 %v350
    %v2561 = vunpack.c.h.b16 %v350
    %v2562 = vunpack.c.l.b16 %v351
    %v2563 = vunpack.c.h.b16 %v351
    %v2564 = vunpack.c.l.b16 %v352
    %v2565 = vunpack.c.h.b16 %v352
    %v2566 = vunpack.c.l.b16 %v353
    %v2567 = vunpack.c.h.b16 %v353
    %v2568 = vunpack.c.l.b16 %v354
    %v2569 = vunpack.c.h.b16 %v354
    %v2570 = vunpack.c.l.b16 %v355
    %v2571 = vunpack.c.h.b16 %v355
    %v2572 = vunpack.c.l.b16 %v356
    %v2573 = vunpack.c.h.b16 %v356
    %v2574 = vunpack.c.l.b16 %v357
    %v2575 = vunpack.c.h.b16 %v357
    %v2576 = vunpack.c.l.b16 %v358
    %v2577 = vunpack.c.h.b16 %v358
    %v2578 = vunpack.c.l.b16 %v359
    %v2579 = vunpack.c.h.b16 %v359
    %v2580 = vunpack.c.l.b16 %v360
    %v2581 = vunpack.c.h.b16 %v360
    %v2582 = vunpack.c.l.b16 %v361
    %v2583 = vunpack.c.h.b16 %v361
    %v2584 = vunpack.c.l.b16 %v362
    %v2585 = vunpack.c.h.b16 %v362
    %v2586 = vunpack.c.l.b16 %v363
    %v2587 = vunpack.c.h.b16 %v363
    %v2588 = vunpack.c.l.b16 %v364
    %v2589 = vunpack.c.h.b16 %v364
    %v2590 = vunpack.c.l.b16 %v365
    %v2591 = vunpack.c.h.b16 %v365
    %v2592 = vunpack.c.l.b16 %v366
    %v2593 = vunpack.c.h.b16 %v366
    %v2594 = vunpack.c.l.b16 %v367
    %v2595 = vunpack.c.h.b16 %v367
    %v2596 = vunpack.c.l.b16 %v368
    %v2597 = vunpack.c.h.b16 %v368
    %v2598 = vunpack.c.l.b16 %v369
    %v2599 = vunpack.c.h.b16 %v369
    %v2600 = vunpack.c.l.b16 %v370
    %v2601 = vunpack.c.h.b16 %v370
    %v2602 = vunpack.c.l.b16 %v371
    %v2603 = vunpack.c.h.b16 %v371
    %v2604 = vunpack.c.l.b16 %v372
    %v2605 = vunpack.c.h.b16 %v372
    %v2606 = vunpack.c.l.b16 %v373
    %v2607 = vunpack.c.h.b16 %v373
    %v2608 = vunpack.c.l.b16 %v374
    %v2609 = vunpack.c.h.b16 %v374
    %v2610 = vunpack.c.l.b16 %v375
    %v2611 = vunpack.c.h.b16 %v375
    %v2612 = vunpack.c.l.b16 %v376
    %v2613 = vunpack.c.h.b16 %v376
    %v2614 = vunpack.c.l.b16 %v377
    %v2615 = vunpack.c.h.b16 %v377
    %v2616 = vunpack.c.l.b16 %v378
    %v2617 = vunpack.c.h.b16 %v378
    %v2618 = vunpack.c.l.b16 %v379
    %v2619 = vunpack.c.h.b16 %v379
    %v2620 = vunpack.c.l.b16 %v380
    %v2621 = vunpack.c.h.b16 %v380
    %v2622 = vunpack.c.l.b16 %v381
    %v2623 = vunpack.c.h.b16 %v381
    %v2624 = vunpack.c.l.b16 %v382
    %v2625 = vunpack.c.h.b16 %v382
    %v2626 = vunpack.c.l.b16 %v383
    %v2627 = vunpack.c.h.b16 %v383
    %v2628 = vunpack.c.l.b16 %v384
    %v2629 = vunpack.c.h.b16 %v384
    %v2630 = vunpack.c.l.b16 %v385
    %v2631 = vunpack.c.h.b16 %v385
    %v2632 = vunpack.c.l.b16 %v386
    %v2633 = vunpack.c.h.b16 %v386
    %v2634 = vunpack.c.l.b16 %v387
    %v2635 = vunpack.c.h.b16 %v387
    %v2636 = vunpack.c.l.b16 %v388
    %v2637 = vunpack.c.h.b16 %v388
    %v2638 = vunpack.c.l.b16 %v389
    %v2639 = vunpack.c.h.b16 %v389
    %v2640 = vunpack.c.l.b16 %v390
    %v2641 = vunpack.c.h.b16 %v390
    %v2642 = vunpack.c.l.b16 %v391
    %v2643 = vunpack.c.h.b16 %v391
    %v2644 = vunpack.c.l.b16 %v392
    %v2645 = vunpack.c.h.b16 %v392
    %v2646 = vunpack.c.l.b16 %v393
    %v2647 = vunpack.c.h.b16 %v393
    %v2648 = vunpack.c.l.b16 %v394
    %v2649 = vunpack.c.h.b16 %v394
    %v2650 = vunpack.c.l.b16 %v395
    %v2651 = vunpack.c.h.b16 %v395
    %v2652 = vunpack.c.l.b16 %v396
    %v2653 = vunpack.c.h.b16 %v396
    %v2654 = vunpack.c.l.b16 %v397
    %v2655 = vunpack.c.h.b16 %v397
    %v2656 = vunpack.c.l.b16 %v398
    %v2657 = vunpack.c.h.b16 %v398
    %v2658 = vunpack.c.l.b16 %v399
    %v2659 = vunpack.c.h.b16 %v399
    %v2660 = vunpack.c.l.b16 %v400
    %v2661 = vunpack.c.h.b16 %v400
    %v2662 = vunpack.c.l.b16 %v401
    %v2663 = vunpack.c.h.b16 %v401
    %v2664 = vunpack.c.l.b16 %v402
    %v2665 = vunpack.c.h.b16 %v402
    %v2666 = vunpack.c.l.b16 %v403
    %v2667 = vunpack.c.h.b16 %v403
    %v2668 = vunpack.c.l.b16 %v404
    %v2669 = vunpack.c.h.b16 %v404
    %v2670 = vunpack.c.l.b16 %v405
    %v2671 = vunpack.c.h.b16 %v405
    %v2672 = vunpack.c.l.b16 %v406
    %v2673 = vunpack.c.h.b16 %v406
    %v2674 = vunpack.c.l.b16 %v407
    %v2675 = vunpack.c.h.b16 %v407
    %v2676 = vunpack.c.l.b16 %v408
    %v2677 = vunpack.c.h.b16 %v408
    %v2678 = vunpack.c.l.b16 %v409
    %v2679 = vunpack.c.h.b16 %v409
    %v2680 = vunpack.c.l.b16 %v410
    %v2681 = vunpack.c.h.b16 %v410
    %v2682 = vunpack.c.l.b16 %v411
    %v2683 = vunpack.c.h.b16 %v411
    %v2684 = vunpack.c.l.b16 %v412
    %v2685 = vunpack.c.h.b16 %v412
    %v2686 = vunpack.c.l.b16 %v413
    %v2687 = vunpack.c.h.b16 %v413
    %v2688 = vunpack.c.l.b16 %v414
    %v2689 = vunpack.c.h.b16 %v414
    %v2690 = vunpack.c.l.b16 %v415
    %v2691 = vunpack.c.h.b16 %v415
    %v2692 = vunpack.c.l.b16 %v416
    %v2693 = vunpack.c.h.b16 %v416
    %v2694 = vunpack.c.l.b16 %v417
    %v2695 = vunpack.c.h.b16 %v417
    %v2696 = vunpack.c.l.b16 %v418
    %v2697 = vunpack.c.h.b16 %v418
    %v2698 = vunpack.c.l.b16 %v419
    %v2699 = vunpack.c.h.b16 %v419
    %v2700 = vunpack.c.l.b16 %v420
    %v2701 = vunpack.c.h.b16 %v420
    %v2702 = vunpack.c.l.b16 %v421
    %v2703 = vunpack.c.h.b16 %v421
    %v2704 = vunpack.c.l.b16 %v422
    %v2705 = vunpack.c.h.b16 %v422
    %v2706 = vunpack.c.l.b16 %v423
    %v2707 = vunpack.c.h.b16 %v423
    %v2708 = vunpack.c.l.b16 %v424
    %v2709 = vunpack.c.h.b16 %v424
    %v2710 = vunpack.c.l.b16 %v425
    %v2711 = vunpack.c.h.b16 %v425
    %v2712 = vunpack.c.l.b16 %v426
    %v2713 = vunpack.c.h.b16 %v426
    %v2714 = vunpack.c.l.b16 %v427
    %v2715 = vunpack.c.h.b16 %v427
    %v2716 = vunpack.c.l.b16 %v428
    %v2717 = vunpack.c.h.b16 %v428
    %v2718 = vunpack.c.l.b16 %v429
    %v2719 = vunpack.c.h.b16 %v429
    %v2720 = vunpack.c.l.b16 %v430
    %v2721 = vunpack.c.h.b16 %v430
    %v2722 = vunpack.c.l.b16 %v431
    %v2723 = vunpack.c.h.b16 %v431
    %v2724 = vunpack.c.l.b16 %v432
    %v2725 = vunpack.c.h.b16 %v432
    %v2726 = vunpack.c.l.b16 %v433
    %v2727 = vunpack.c.h.b16 %v433
    %v2728 = vunpack.c.l.b16 %v434
    %v2729 = vunpack.c.h.b16 %v434
    %v2730 = vunpack.c.l.b16 %v435
    %v2731 = vunpack.c.h.b16 %v435
    %v2732 = vunpack.c.l.b16 %v436
    %v2733 = vunpack.c.h.b16 %v436
    %v2734 = vunpack.c.l.b16 %v437
    %v2735 = vunpack.c.h.b16 %v437
    %v2736 = vunpack.c.l.b16 %v438
    %v2737 = vunpack.c.h.b16 %v438
    %v2738 = vunpack.c.l.b16 %v439
    %v2739 = vunpack.c.h.b16 %v439
    %v2740 = vunpack.c.l.b16 %v440
    %v2741 = vunpack.c.h.b16 %v440
    %v2742 = vunpack.c.l.b16 %v441
    %v2743 = vunpack.c.h.b16 %v441
    %v2744 = vunpack.c.l.b16 %v442
    %v2745 = vunpack.c.h.b16 %v442
    %v2746 = vunpack.c.l.b16 %v443
    %v2747 = vunpack.c.h.b16 %v443
    %v2748 = vunpack.c.l.b16 %v444
    %v2749 = vunpack.c.h.b16 %v444
    %v2750 = vunpack.c.l.b16 %v445
    %v2751 = vunpack.c.h.b16 %v445
    %v2752 = vunpack.c.l.b16 %v446
    %v2753 = vunpack.c.h.b16 %v446
    %v2754 = vunpack.c.l.b16 %v447
    %v2755 = vunpack.c.h.b16 %v447
    %v2756 = vunpack.c.l.b16 %v448
    %v2757 = vunpack.c.h.b16 %v448
    %v2758 = vunpack.c.l.b16 %v449
    %v2759 = vunpack.c.h.b16 %v449
    %v2760 = vunpack.c.l.b16 %v450
    %v2761 = vunpack.c.h.b16 %v450
    %v2762 = vunpack.c.l.b16 %v451
    %v2763 = vunpack.c.h.b16 %v451
    %v2764 = vunpack.c.l.b16 %v452
    %v2765 = vunpack.c.h.b16 %v452
    %v2766 = vunpack.c.l.b16 %v453
    %v2767 = vunpack.c.h.b16 %v453
    %v2768 = vunpack.c.l.b16 %v454
    %v2769 = vunpack.c.h.b16 %v454
    %v2770 = vunpack.c.l.b16 %v455
    %v2771 = vunpack.c.h.b16 %v455
    %v2772 = vunpack.c.l.b16 %v456
    %v2773 = vunpack.c.h.b16 %v456
    %v2774 = vunpack.c.l.b16 %v457
    %v2775 = vunpack.c.h.b16 %v457
    %v2776 = vunpack.c.l.b16 %v458
    %v2777 = vunpack.c.h.b16 %v458
    %v2778 = vunpack.c.l.b16 %v459
    %v2779 = vunpack.c.h.b16 %v459
    %v2780 = vunpack.c.l.b16 %v460
    %v2781 = vunpack.c.h.b16 %v460
    %v2782 = vunpack.c.l.b16 %v461
    %v2783 = vunpack.c.h.b16 %v461
    %v2784 = vunpack.c.l.b16 %v462
    %v2785 = vunpack.c.h.b16 %v462
    %v2786 = vunpack.c.l.b16 %v463
    %v2787 = vunpack.c.h.b16 %v463
    %v2788 = vunpack.c.l.b16 %v464
    %v2789 = vunpack.c.h.b16 %v464
    %v2790 = vunpack.c.l.b16 %v465
    %v2791 = vunpack.c.h.b16 %v465
    %v2792 = vunpack.c.l.b16 %v466
    %v2793 = vunpack.c.h.b16 %v466
    %v2794 = vunpack.c.l.b16 %v467
    %v2795 = vunpack.c.h.b16 %v467
    %v2796 = vunpack.c.l.b16 %v468
    %v2797 = vunpack.c.h.b16 %v468
    %v2798 = vunpack.c.l.b16 %v469
    %v2799 = vunpack.c.h.b16 %v469
    %v2800 = vunpack.c.l.b16 %v470
    %v2801 = vunpack.c.h.b16 %v470
    %v2802 = vunpack.c.l.b16 %v471
    %v2803 = vunpack.c.h.b16 %v471
    %v2804 = vunpack.c.l.b16 %v472
    %v2805 = vunpack.c.h.b16 %v472
    %v2806 = vunpack.c.l.b16 %v473
    %v2807 = vunpack.c.h.b16 %v473
    %v2808 = vunpack.c.l.b16 %v474
    %v2809 = vunpack.c.h.b16 %v474
    %v2810 = vunpack.c.l.b16 %v475
    %v2811 = vunpack.c.h.b16 %v475
    %v2812 = vunpack.c.l.b16 %v476
    %v2813 = vunpack.c.h.b16 %v476
    %v2814 = vunpack.c.l.b16 %v477
    %v2815 = vunpack.c.h.b16 %v477
    %v2816 = vunpack.c.l.b16 %v478
    %v2817 = vunpack.c.h.b16 %v478
    %v2818 = vunpack.c.l.b16 %v479
    %v2819 = vunpack.c.h.b16 %v479
    %v2820 = vunpack.c.l.b16 %v480
    %v2821 = vunpack.c.h.b16 %v480
    %v2822 = vunpack.c.l.b16 %v481
    %v2823 = vunpack.c.h.b16 %v481
    %v2824 = vunpack.c.l.b16 %v482
    %v2825 = vunpack.c.h.b16 %v482
    %v2826 = vunpack.c.l.b16 %v483
    %v2827 = vunpack.c.h.b16 %v483
    %v2828 = vunpack.c.l.b16 %v484
    %v2829 = vunpack.c.h.b16 %v484
    %v2830 = vunpack.c.l.b16 %v485
    %v2831 = vunpack.c.h.b16 %v485
    %v2832 = vunpack.c.l.b16 %v486
    %v2833 = vunpack.c.h.b16 %v486
    %v2834 = vunpack.c.l.b16 %v487
    %v2835 = vunpack.c.h.b16 %v487
    %v2836 = vunpack.c.l.b16 %v488
    %v2837 = vunpack.c.h.b16 %v488
    %v2838 = vunpack.c.l.b16 %v489
    %v2839 = vunpack.c.h.b16 %v489
    %v2840 = vunpack.c.l.b16 %v490
    %v2841 = vunpack.c.h.b16 %v490
    %v2842 = vunpack.c.l.b16 %v491
    %v2843 = vunpack.c.h.b16 %v491
    %v2844 = vunpack.c.l.b16 %v492
    %v2845 = vunpack.c.h.b16 %v492
    %v2846 = vunpack.c.l.b16 %v493
    %v2847 = vunpack.c.h.b16 %v493
    %v2848 = vunpack.c.l.b16 %v494
    %v2849 = vunpack.c.h.b16 %v494
    %v2850 = vunpack.c.l.b16 %v495
    %v2851 = vunpack.c.h.b16 %v495
    %v2852 = vunpack.c.l.b16 %v496
    %v2853 = vunpack.c.h.b16 %v496
    %v2854 = vunpack.c.l.b16 %v497
    %v2855 = vunpack.c.h.b16 %v497
    %v2856 = vunpack.c.l.b16 %v498
    %v2857 = vunpack.c.h.b16 %v498
    %v2858 = vunpack.c.l.b16 %v499
    %v2859 = vunpack.c.h.b16 %v499
    %v2860 = vunpack.c.l.b16 %v500
    %v2861 = vunpack.c.h.b16 %v500
    %v2862 = vunpack.c.l.b16 %v501
    %v2863 = vunpack.c.h.b16 %v501
    %v2864 = vunpack.c.l.b16 %v502
    %v2865 = vunpack.c.h.b16 %v502
    %v2866 = vunpack.c.l.b16 %v503
    %v2867 = vunpack.c.h.b16 %v503
    %v2868 = vunpack.c.l.b16 %v504
    %v2869 = vunpack.c.h.b16 %v504
    %v2870 = vunpack.c.l.b16 %v505
    %v2871 = vunpack.c.h.b16 %v505
    %v2872 = vunpack.c.l.b16 %v506
    %v2873 = vunpack.c.h.b16 %v506
    %v2874 = vunpack.c.l.b16 %v507
    %v2875 = vunpack.c.h.b16 %v507
    %v2876 = vunpack.c.l.b16 %v508
    %v2877 = vunpack.c.h.b16 %v508
    %v2878 = vunpack.c.l.b16 %v509
    %v2879 = vunpack.c.h.b16 %v509
    %v2880 = vunpack.c.l.b16 %v510
    %v2881 = vunpack.c.h.b16 %v510
    %v2882 = vunpack.c.l.b16 %v511
    %v2883 = vunpack.c.h.b16 %v511
    %v2884 = vunpack.c.l.b16 %v512
    %v2885 = vunpack.c.h.b16 %v512
    %v2886 = vunpack.c.l.b16 %v513
    %v2887 = vunpack.c.h.b16 %v513
    %v2888 = vunpack.c.l.b16 %v514
    %v2889 = vunpack.c.h.b16 %v514
    %v2890 = vunpack.c.l.b16 %v515
    %v2891 = vunpack.c.h.b16 %v515
    %v2892 = vunpack.c.l.b16 %v516
    %v2893 = vunpack.c.h.b16 %v516
    %v2894 = vunpack.c.l.b16 %v517
    %v2895 = vunpack.c.h.b16 %v517
    %v2896 = vunpack.c.l.b16 %v518
    %v2897 = vunpack.c.h.b16 %v518
    %v2898 = vunpack.c.l.b16 %v519
    %v2899 = vunpack.c.h.b16 %v519
    %v2900 = vunpack.c.l.b16 %v520
    %v2901 = vunpack.c.h.b16 %v520
    %v2902 = vunpack.c.l.b16 %v521
    %v2903 = vunpack.c.h.b16 %v521
    %v2904 = vunpack.c.l.b16 %v522
    %v2905 = vunpack.c.h.b16 %v522
    %v2906 = vunpack.c.l.b16 %v523
    %v2907 = vunpack.c.h.b16 %v523
    %v2908 = vunpack.c.l.b16 %v524
    %v2909 = vunpack.c.h.b16 %v524
    %v2910 = vunpack.c.l.b16 %v525
    %v2911 = vunpack.c.h.b16 %v525
    %v2912 = vunpack.c.l.b16 %v526
    %v2913 = vunpack.c.h.b16 %v526
    %v2914 = vunpack.c.l.b16 %v527
    %v2915 = vunpack.c.h.b16 %v527
    %v2916 = vunpack.c.l.b16 %v528
    %v2917 = vunpack.c.h.b16 %v528
    %v2918 = vunpack.c.l.b16 %v529
    %v2919 = vunpack.c.h.b16 %v529
    %v2920 = vunpack.c.l.b16 %v530
    %v2921 = vunpack.c.h.b16 %v530
    %v2922 = vunpack.c.l.b16 %v531
    %v2923 = vunpack.c.h.b16 %v531
    %v2924 = vunpack.c.l.b16 %v532
    %v2925 = vunpack.c.h.b16 %v532
    %v2926 = vunpack.c.l.b16 %v533
    %v2927 = vunpack.c.h.b16 %v533
    %v2928 = vunpack.c.l.b16 %v534
    %v2929 = vunpack.c.h.b16 %v534
    %v2930 = vunpack.c.l.b16 %v535
    %v2931 = vunpack.c.h.b16 %v535
    %v2932 = vunpack.c.l.b16 %v536
    %v2933 = vunpack.c.h.b16 %v536
    %v2934 = vunpack.c.l.b16 %v537
    %v2935 = vunpack.c.h.b16 %v537
    %v2936 = vunpack.c.l.b16 %v538
    %v2937 = vunpack.c.h.b16 %v538
    %v2938 = vunpack.c.l.b16 %v539
    %v2939 = vunpack.c.h.b16 %v539
    %v2940 = vunpack.c.l.b16 %v540
    %v2941 = vunpack.c.h.b16 %v540
    %v2942 = vunpack.c.l.b16 %v541
    %v2943 = vunpack.c.h.b16 %v541
    %v2944 = vunpack.c.l.b16 %v542
    %v2945 = vunpack.c.h.b16 %v542
    %v2946 = vunpack.c.l.b16 %v543
    %v2947 = vunpack.c.h.b16 %v543
    %v2948 = vunpack.c.l.b16 %v544
    %v2949 = vunpack.c.h.b16 %v544
    %v2950 = vunpack.c.l.b16 %v545
    %v2951 = vunpack.c.h.b16 %v545
    %v2952 = vunpack.c.l.b16 %v546
    %v2953 = vunpack.c.h.b16 %v546
    %v2954 = vunpack.c.l.b16 %v547
    %v2955 = vunpack.c.h.b16 %v547
    %v2956 = vunpack.c.l.b16 %v548
    %v2957 = vunpack.c.h.b16 %v548
    %v2958 = vunpack.c.l.b16 %v549
    %v2959 = vunpack.c.h.b16 %v549
    %v2960 = vunpack.c.l.b16 %v550
    %v2961 = vunpack.c.h.b16 %v550
    %v2962 = vunpack.c.l.b16 %v551
    %v2963 = vunpack.c.h.b16 %v551
    %v2964 = vunpack.c.l.b16 %v552
    %v2965 = vunpack.c.h.b16 %v552
    %v2966 = vunpack.c.l.b16 %v553
    %v2967 = vunpack.c.h.b16 %v553
    %v2968 = vunpack.c.l.b16 %v554
    %v2969 = vunpack.c.h.b16 %v554
    %v2970 = vunpack.c.l.b16 %v555
    %v2971 = vunpack.c.h.b16 %v555
    %v2972 = vunpack.c.l.b16 %v556
    %v2973 = vunpack.c.h.b16 %v556
    %v2974 = vunpack.c.l.b16 %v557
    %v2975 = vunpack.c.h.b16 %v557
    %v2976 = vunpack.c.l.b16 %v558
    %v2977 = vunpack.c.h.b16 %v558
    %v2978 = vunpack.c.l.b16 %v559
    %v2979 = vunpack.c.h.b16 %v559
    %v2980 = vunpack.c.l.b16 %v560
    %v2981 = vunpack.c.h.b16 %v560
    %v2982 = vunpack.c.l.b16 %v561
    %v2983 = vunpack.c.h.b16 %v561
    %v2984 = vunpack.c.l.b16 %v562
    %v2985 = vunpack.c.h.b16 %v562
    %v2986 = vunpack.c.l.b16 %v563
    %v2987 = vunpack.c.h.b16 %v563
    %v2988 = vunpack.c.l.b16 %v564
    %v2989 = vunpack.c.h.b16 %v564
    %v2990 = vunpack.c.l.b16 %v565
    %v2991 = vunpack.c.h.b16 %v565
    %v2992 = vunpack.c.l.b16 %v566
    %v2993 = vunpack.c.h.b16 %v566
    %v2994 = vunpack.c.l.b16 %v567
    %v2995 = vunpack.c.h.b16 %v567
    %v2996 = vunpack.c.l.b16 %v568
    %v2997 = vunpack.c.h.b16 %v568
    %v2998 = vunpack.c.l.b16 %v569
    %v2999 = vunpack.c.h.b16 %v569
    %v3000 = vunpack.c.l.b16 %v570
    %v3001 = vunpack.c.h.b16 %v570
    %v3002 = vunpack.c.l.b16 %v571
    %v3003 = vunpack.c.h.b16 %v571
    %v3004 = vunpack.c.l.b16 %v572
    %v3005 = vunpack.c.h.b16 %v572
    %v3006 = vunpack.c.l.b16 %v573
    %v3007 = vunpack.c.h.b16 %v573
    %v3008 = vunpack.c.l.b16 %v574
    %v3009 = vunpack.c.h.b16 %v574
    %v3010 = vunpack.c.l.b16 %v575
    %v3011 = vunpack.c.h.b16 %v575
    %v3012 = vunpack.c.l.b16 %v576
    %v3013 = vunpack.c.h.b16 %v576
    %v3014 = vunpack.c.l.b16 %v577
    %v3015 = vunpack.c.h.b16 %v577
    %v3016 = vunpack.c.l.b16 %v578
    %v3017 = vunpack.c.h.b16 %v578
    %v3018 = vunpack.c.l.b16 %v579
    %v3019 = vunpack.c.h.b16 %v579
    %v3020 = vunpack.c.l.b16 %v580
    %v3021 = vunpack.c.h.b16 %v580
    %v3022 = vunpack.c.l.b16 %v581
    %v3023 = vunpack.c.h.b16 %v581
    %v3024 = vunpack.c.l.b16 %v582
    %v3025 = vunpack.c.h.b16 %v582
    %v3026 = vunpack.c.l.b16 %v583
    %v3027 = vunpack.c.h.b16 %v583
    %v3028 = vunpack.c.l.b16 %v584
    %v3029 = vunpack.c.h.b16 %v584
    %v3030 = vunpack.c.l.b16 %v585
    %v3031 = vunpack.c.h.b16 %v585
    %v3032 = vunpack.c.l.b16 %v586
    %v3033 = vunpack.c.h.b16 %v586
    %v3034 = vunpack.c.l.b16 %v587
    %v3035 = vunpack.c.h.b16 %v587
    %v3036 = vunpack.c.l.b16 %v588
    %v3037 = vunpack.c.h.b16 %v588
    %v3038 = vunpack.c.l.b16 %v589
    %v3039 = vunpack.c.h.b16 %v589
    %v3040 = vunpack.c.l.b16 %v590
    %v3041 = vunpack.c.h.b16 %v590
    %v3042 = vunpack.c.l.b16 %v591
    %v3043 = vunpack.c.h.b16 %v591
    %v3044 = vunpack.c.l.b16 %v592
    %v3045 = vunpack.c.h.b16 %v592
    %v3046 = vunpack.c.l.b16 %v593
    %v3047 = vunpack.c.h.b16 %v593
    %v3048 = vunpack.c.l.b16 %v594
    %v3049 = vunpack.c.h.b16 %v594
    %v3050 = vunpack.c.l.b16 %v595
    %v3051 = vunpack.c.h.b16 %v595
    %v3052 = vunpack.c.l.b16 %v596
    %v3053 = vunpack.c.h.b16 %v596
    %v3054 = vunpack.c.l.b16 %v597
    %v3055 = vunpack.c.h.b16 %v597
    %v3056 = vunpack.c.l.b16 %v598
    %v3057 = vunpack.c.h.b16 %v598
    %v3058 = vunpack.c.l.b16 %v599
    %v3059 = vunpack.c.h.b16 %v599
    %v3060 = vunpack.c.l.b16 %v600
    %v3061 = vunpack.c.h.b16 %v600
    %v3062 = vunpack.c.l.b16 %v601
    %v3063 = vunpack.c.h.b16 %v601
    %v3064 = vunpack.c.l.b16 %v602
    %v3065 = vunpack.c.h.b16 %v602
    %v3066 = vunpack.c.l.b16 %v603
    %v3067 = vunpack.c.h.b16 %v603
    %v3068 = vunpack.c.l.b16 %v604
    %v3069 = vunpack.c.h.b16 %v604
    %v3070 = vunpack.c.l.b16 %v605
    %v3071 = vunpack.c.h.b16 %v605
    %v3072 = vunpack.c.l.b16 %v606
    %v3073 = vunpack.c.h.b16 %v606
    %v3074 = vunpack.c.l.b16 %v607
    %v3075 = vunpack.c.h.b16 %v607
    %v3076 = vunpack.c.l.b16 %v608
    %v3077 = vunpack.c.h.b16 %v608
    %v3078 = vunpack.c.l.b16 %v609
    %v3079 = vunpack.c.h.b16 %v609
    %v3080 = vunpack.c.l.b16 %v610
    %v3081 = vunpack.c.h.b16 %v610
    %v3082 = vunpack.c.l.b16 %v611
    %v3083 = vunpack.c.h.b16 %v611
    %v3084 = vunpack.c.l.b16 %v612
    %v3085 = vunpack.c.h.b16 %v612
    %v3086 = vunpack.c.l.b16 %v613
    %v3087 = vunpack.c.h.b16 %v613
    %v3088 = vunpack.c.l.b16 %v614
    %v3089 = vunpack.c.h.b16 %v614
    %v3090 = vunpack.c.l.b16 %v615
    %v3091 = vunpack.c.h.b16 %v615
    %v3092 = vunpack.c.l.b16 %v616
    %v3093 = vunpack.c.h.b16 %v616
    %v3094 = vunpack.c.l.b16 %v617
    %v3095 = vunpack.c.h.b16 %v617
    %v3096 = vunpack.c.l.b16 %v618
    %v3097 = vunpack.c.h.b16 %v618
    %v3098 = vunpack.c.l.b16 %v619
    %v3099 = vunpack.c.h.b16 %v619
    %v3100 = vunpack.c.l.b16 %v620
    %v3101 = vunpack.c.h.b16 %v620
    %v3102 = vunpack.c.l.b16 %v621
    %v3103 = vunpack.c.h.b16 %v621
    %v3104 = vunpack.c.l.b16 %v622
    %v3105 = vunpack.c.h.b16 %v622
    %v3106 = vunpack.c.l.b16 %v623
    %v3107 = vunpack.c.h.b16 %v623
    %v3108 = vunpack.c.l.b16 %v624
    %v3109 = vunpack.c.h.b16 %v624
    %v3110 = vunpack.c.l.b16 %v625
    %v3111 = vunpack.c.h.b16 %v625
    %v3112 = vunpack.c.l.b16 %v626
    %v3113 = vunpack.c.h.b16 %v626
    %v3114 = vunpack.c.l.b16 %v627
    %v3115 = vunpack.c.h.b16 %v627
    %v3116 = vunpack.c.l.b16 %v628
    %v3117 = vunpack.c.h.b16 %v628
    %v3118 = vunpack.c.l.b16 %v629
    %v3119 = vunpack.c.h.b16 %v629
    %v3120 = vunpack.c.l.b16 %v630
    %v3121 = vunpack.c.h.b16 %v630
    %v3122 = vunpack.c.l.b16 %v631
    %v3123 = vunpack.c.h.b16 %v631
    %v3124 = vunpack.c.l.b16 %v632
    %v3125 = vunpack.c.h.b16 %v632
    %v3126 = vunpack.c.l.b16 %v633
    %v3127 = vunpack.c.h.b16 %v633
    %v3128 = vunpack.c.l.b16 %v634
    %v3129 = vunpack.c.h.b16 %v634
    %v3130 = vunpack.c.l.b16 %v635
    %v3131 = vunpack.c.h.b16 %v635
    %v3132 = vunpack.c.l.b16 %v636
    %v3133 = vunpack.c.h.b16 %v636
    %v3134 = vunpack.c.l.b16 %v637
    %v3135 = vunpack.c.h.b16 %v637
    %v3136 = vunpack.c.l.b16 %v638
    %v3137 = vunpack.c.h.b16 %v638
    %v3138 = vunpack.c.l.b16 %v639
    %v3139 = vunpack.c.h.b16 %v639
    %v3140 = vunpack.c.l.b16 %v640
    %v3141 = vunpack.c.h.b16 %v640
    %v3142 = vunpack.c.l.b16 %v641
    %v3143 = vunpack.c.h.b16 %v641
    %v3144 = vunpack.c.l.b16 %v642
    %v3145 = vunpack.c.h.b16 %v642
    %v3146 = vunpack.c.l.b16 %v643
    %v3147 = vunpack.c.h.b16 %v643
    %v3148 = vunpack.c.l.b16 %v644
    %v3149 = vunpack.c.h.b16 %v644
    %v3150 = vunpack.c.l.b16 %v645
    %v3151 = vunpack.c.h.b16 %v645
    %v3152 = vunpack.c.l.b16 %v646
    %v3153 = vunpack.c.h.b16 %v646
    %v3154 = vunpack.c.l.b16 %v647
    %v3155 = vunpack.c.h.b16 %v647
    %v3156 = vunpack.c.l.b16 %v648
    %v3157 = vunpack.c.h.b16 %v648
    %v3158 = vunpack.c.l.b16 %v649
    %v3159 = vunpack.c.h.b16 %v649
    %v3160 = vunpack.c.l.b16 %v650
    %v3161 = vunpack.c.h.b16 %v650
    %v3162 = vunpack.c.l.b16 %v651
    %v3163 = vunpack.c.h.b16 %v651
    %v3164 = vunpack.c.l.b16 %v652
    %v3165 = vunpack.c.h.b16 %v652
    %v3166 = vunpack.c.l.b16 %v653
    %v3167 = vunpack.c.h.b16 %v653
    %v3168 = vunpack.c.l.b16 %v654
    %v3169 = vunpack.c.h.b16 %v654
    %v3170 = vunpack.c.l.b16 %v655
    %v3171 = vunpack.c.h.b16 %v655
    %v3172 = vunpack.c.l.b16 %v656
    %v3173 = vunpack.c.h.b16 %v656
    %v3174 = vunpack.c.l.b16 %v657
    %v3175 = vunpack.c.h.b16 %v657
    %v3176 = vunpack.c.l.b16 %v658
    %v3177 = vunpack.c.h.b16 %v658
    %v3178 = vunpack.c.l.b16 %v659
    %v3179 = vunpack.c.h.b16 %v659
    %v3180 = vunpack.c.l.b16 %v660
    %v3181 = vunpack.c.h.b16 %v660
    %v3182 = vunpack.c.l.b16 %v661
    %v3183 = vunpack.c.h.b16 %v661
    %v3184 = vunpack.c.l.b16 %v662
    %v3185 = vunpack.c.h.b16 %v662
    %v3186 = vunpack.c.l.b16 %v663
    %v3187 = vunpack.c.h.b16 %v663
    %v3188 = vunpack.c.l.b16 %v664
    %v3189 = vunpack.c.h.b16 %v664
    %v3190 = vunpack.c.l.b16 %v665
    %v3191 = vunpack.c.h.b16 %v665
    %v3192 = vunpack.c.l.b16 %v666
    %v3193 = vunpack.c.h.b16 %v666
    %v3194 = vunpack.c.l.b16 %v667
    %v3195 = vunpack.c.h.b16 %v667
    %v3196 = vunpack.c.l.b16 %v668
    %v3197 = vunpack.c.h.b16 %v668
    %v3198 = vunpack.c.l.b16 %v669
    %v3199 = vunpack.c.h.b16 %v669
    %v3200 = vunpack.c.l.b16 %v670
    %v3201 = vunpack.c.h.b16 %v670
    %v3202 = vunpack.c.l.b16 %v671
    %v3203 = vunpack.c.h.b16 %v671
    %v3204 = vunpack.c.l.b16 %v672
    %v3205 = vunpack.c.h.b16 %v672
    %v3206 = vunpack.c.l.b16 %v673
    %v3207 = vunpack.c.h.b16 %v673
    %v3208 = vunpack.c.l.b16 %v674
    %v3209 = vunpack.c.h.b16 %v674
    %v3210 = vunpack.c.l.b16 %v675
    %v3211 = vunpack.c.h.b16 %v675
    %v3212 = vunpack.c.l.b16 %v676
    %v3213 = vunpack.c.h.b16 %v676
    %v3214 = vunpack.c.l.b16 %v677
    %v3215 = vunpack.c.h.b16 %v677
    %v3216 = vunpack.c.l.b16 %v678
    %v3217 = vunpack.c.h.b16 %v678
    %v3218 = vunpack.c.l.b16 %v679
    %v3219 = vunpack.c.h.b16 %v679
    %v3220 = vunpack.c.l.b16 %v680
    %v3221 = vunpack.c.h.b16 %v680
    %v3222 = vunpack.c.l.b16 %v681
    %v3223 = vunpack.c.h.b16 %v681
    %v3224 = vunpack.c.l.b16 %v682
    %v3225 = vunpack.c.h.b16 %v682
    %v3226 = vunpack.c.l.b16 %v683
    %v3227 = vunpack.c.h.b16 %v683
    %v3228 = vunpack.c.l.b16 %v684
    %v3229 = vunpack.c.h.b16 %v684
    %v3230 = vunpack.c.l.b16 %v685
    %v3231 = vunpack.c.h.b16 %v685
    %v3232 = vunpack.c.l.b16 %v686
    %v3233 = vunpack.c.h.b16 %v686
    %v3234 = vunpack.c.l.b16 %v687
    %v3235 = vunpack.c.h.b16 %v687
    %v3236 = vunpack.c.l.b16 %v688
    %v3237 = vunpack.c.h.b16 %v688
    %v3238 = vunpack.c.l.b16 %v689
    %v3239 = vunpack.c.h.b16 %v689
    %v3240 = vunpack.c.l.b16 %v690
    %v3241 = vunpack.c.h.b16 %v690
    %v3242 = vunpack.c.l.b16 %v691
    %v3243 = vunpack.c.h.b16 %v691
    %v3244 = vunpack.c.l.b16 %v692
    %v3245 = vunpack.c.h.b16 %v692
    %v3246 = vunpack.c.l.b16 %v693
    %v3247 = vunpack.c.h.b16 %v693
    %v3248 = vunpack.c.l.b16 %v694
    %v3249 = vunpack.c.h.b16 %v694
    %v3250 = vunpack.c.l.b16 %v695
    %v3251 = vunpack.c.h.b16 %v695
    %v3252 = vunpack.c.l.b16 %v696
    %v3253 = vunpack.c.h.b16 %v696
    %v3254 = vunpack.c.l.b16 %v697
    %v3255 = vunpack.c.h.b16 %v697
    %v3256 = vunpack.c.l.b16 %v698
    %v3257 = vunpack.c.h.b16 %v698
    %v3258 = vunpack.c.l.b16 %v699
    %v3259 = vunpack.c.h.b16 %v699
    %v3260 = vunpack.c.l.b16 %v700
    %v3261 = vunpack.c.h.b16 %v700
    %v3262 = vunpack.c.l.b16 %v701
    %v3263 = vunpack.c.h.b16 %v701
    %v3264 = vunpack.c.l.b16 %v702
    %v3265 = vunpack.c.h.b16 %v702
    %v3266 = vunpack.c.l.b16 %v703
    %v3267 = vunpack.c.h.b16 %v703
    %v3268 = vunpack.c.l.b16 %v704
    %v3269 = vunpack.c.h.b16 %v704
    %v3270 = vunpack.c.l.b16 %v705
    %v3271 = vunpack.c.h.b16 %v705
    %v3272 = vunpack.c.l.b16 %v706
    %v3273 = vunpack.c.h.b16 %v706
    %v3274 = vunpack.c.l.b16 %v707
    %v3275 = vunpack.c.h.b16 %v707
    %v3276 = vunpack.c.l.b16 %v708
    %v3277 = vunpack.c.h.b16 %v708
    %v3278 = vunpack.c.l.b16 %v709
    %v3279 = vunpack.c.h.b16 %v709
    %v3280 = vunpack.c.l.b16 %v710
    %v3281 = vunpack.c.h.b16 %v710
    %v3282 = vunpack.c.l.b16 %v711
    %v3283 = vunpack.c.h.b16 %v711
    %v3284 = vunpack.c.l.b16 %v712
    %v3285 = vunpack.c.h.b16 %v712
    %v3286 = vunpack.c.l.b16 %v713
    %v3287 = vunpack.c.h.b16 %v713
    %v3288 = vunpack.c.l.b16 %v714
    %v3289 = vunpack.c.h.b16 %v714
    %v3290 = vunpack.c.l.b16 %v715
    %v3291 = vunpack.c.h.b16 %v715
    %v3292 = vunpack.c.l.b16 %v716
    %v3293 = vunpack.c.h.b16 %v716
    %v3294 = vunpack.c.l.b16 %v717
    %v3295 = vunpack.c.h.b16 %v717
    %v3296 = vunpack.c.l.b16 %v718
    %v3297 = vunpack.c.h.b16 %v718
    %v3298 = vunpack.c.l.b16 %v719
    %v3299 = vunpack.c.h.b16 %v719
    %v3300 = vunpack.c.l.b16 %v720
    %v3301 = vunpack.c.h.b16 %v720
    %v3302 = vunpack.c.l.b16 %v721
    %v3303 = vunpack.c.h.b16 %v721
    %v3304 = vunpack.c.l.b16 %v722
    %v3305 = vunpack.c.h.b16 %v722
    %v3306 = vunpack.c.l.b16 %v723
    %v3307 = vunpack.c.h.b16 %v723
    %v3308 = vunpack.c.l.b16 %v724
    %v3309 = vunpack.c.h.b16 %v724
    %v3310 = vunpack.c.l.b16 %v725
    %v3311 = vunpack.c.h.b16 %v725
    %v3312 = vunpack.c.l.b16 %v726
    %v3313 = vunpack.c.h.b16 %v726
    %v3314 = vunpack.c.l.b16 %v727
    %v3315 = vunpack.c.h.b16 %v727
    %v3316 = vunpack.c.l.b16 %v728
    %v3317 = vunpack.c.h.b16 %v728
    %v3318 = vunpack.c.l.b16 %v729
    %v3319 = vunpack.c.h.b16 %v729
    %v3320 = vunpack.c.l.b16 %v730
    %v3321 = vunpack.c.h.b16 %v730
    %v3322 = vunpack.c.l.b16 %v731
    %v3323 = vunpack.c.h.b16 %v731
    %v3324 = vunpack.c.l.b16 %v732
    %v3325 = vunpack.c.h.b16 %v732
    %v3326 = vunpack.c.l.b16 %v733
    %v3327 = vunpack.c.h.b16 %v733
    %v3328 = vunpack.c.l.b16 %v734
    %v3329 = vunpack.c.h.b16 %v734
    %v3330 = vunpack.c.l.b16 %v735
    %v3331 = vunpack.c.h.b16 %v735
    %v3332 = vunpack.c.l.b16 %v736
    %v3333 = vunpack.c.h.b16 %v736
    %v3334 = vunpack.c.l.b16 %v737
    %v3335 = vunpack.c.h.b16 %v737
    %v3336 = vunpack.c.l.b16 %v738
    %v3337 = vunpack.c.h.b16 %v738
    %v3338 = vunpack.c.l.b16 %v739
    %v3339 = vunpack.c.h.b16 %v739
    %v3340 = vunpack.c.l.b16 %v740
    %v3341 = vunpack.c.h.b16 %v740
    %v3342 = vunpack.c.l.b16 %v741
    %v3343 = vunpack.c.h.b16 %v741
    %v3344 = vunpack.c.l.b16 %v742
    %v3345 = vunpack.c.h.b16 %v742
    %v3346 = vunpack.c.l.b16 %v743
    %v3347 = vunpack.c.h.b16 %v743
    %v3348 = vunpack.c.l.b16 %v744
    %v3349 = vunpack.c.h.b16 %v744
    %v3350 = vunpack.c.l.b16 %v745
    %v3351 = vunpack.c.h.b16 %v745
    %v3352 = vunpack.c.l.b16 %v746
    %v3353 = vunpack.c.h.b16 %v746
    %v3354 = vunpack.c.l.b16 %v747
    %v3355 = vunpack.c.h.b16 %v747
    %v3356 = vunpack.c.l.b16 %v748
    %v3357 = vunpack.c.h.b16 %v748
    %v3358 = vunpack.c.l.b16 %v749
    %v3359 = vunpack.c.h.b16 %v749
    %v3360 = vunpack.c.l.b16 %v750
    %v3361 = vunpack.c.h.b16 %v750
    %v3362 = vunpack.c.l.b16 %v751
    %v3363 = vunpack.c.h.b16 %v751
    %v3364 = vunpack.c.l.b16 %v752
    %v3365 = vunpack.c.h.b16 %v752
    %v3366 = vunpack.c.l.b16 %v753
    %v3367 = vunpack.c.h.b16 %v753
    %v3368 = vunpack.c.l.b16 %v754
    %v3369 = vunpack.c.h.b16 %v754
    %v3370 = vunpack.c.l.b16 %v755
    %v3371 = vunpack.c.h.b16 %v755
    %v3372 = vunpack.c.l.b16 %v756
    %v3373 = vunpack.c.h.b16 %v756
    %v3374 = vunpack.c.l.b16 %v757
    %v3375 = vunpack.c.h.b16 %v757
    %v3376 = vunpack.c.l.b16 %v758
    %v3377 = vunpack.c.h.b16 %v758
    %v3378 = vunpack.c.l.b16 %v759
    %v3379 = vunpack.c.h.b16 %v759
    %v3380 = vunpack.c.l.b16 %v760
    %v3381 = vunpack.c.h.b16 %v760
    %v3382 = vunpack.c.l.b16 %v761
    %v3383 = vunpack.c.h.b16 %v761
    %v3384 = vunpack.c.l.b16 %v762
    %v3385 = vunpack.c.h.b16 %v762
    %v3386 = vunpack.c.l.b16 %v763
    %v3387 = vunpack.c.h.b16 %v763
    %v3388 = vunpack.c.l.b16 %v764
    %v3389 = vunpack.c.h.b16 %v764
    %v3390 = vunpack.c.l.b16 %v765
    %v3391 = vunpack.c.h.b16 %v765
    %v3392 = vunpack.c.l.b16 %v766
    %v3393 = vunpack.c.h.b16 %v766
    %v3394 = vunpack.c.l.b16 %v767
    %v3395 = vunpack.c.h.b16 %v767
    %v3396 = vunpack.c.l.b16 %v768
    %v3397 = vunpack.c.h.b16 %v768
    %v3398 = vunpack.c.l.b16 %v769
    %v3399 = vunpack.c.h.b16 %v769
    %v3400 = vunpack.c.l.b16 %v770
    %v3401 = vunpack.c.h.b16 %v770
    %v3402 = vunpack.c.l.b16 %v771
    %v3403 = vunpack.c.h.b16 %v771
    %v3404 = vunpack.c.l.b16 %v772
    %v3405 = vunpack.c.h.b16 %v772
    %v3406 = vunpack.c.l.b16 %v773
    %v3407 = vunpack.c.h.b16 %v773
    %v3408 = vunpack.c.l.b16 %v774
    %v3409 = vunpack.c.h.b16 %v774
    %v3410 = vunpack.c.l.b16 %v775
    %v3411 = vunpack.c.h.b16 %v775
    %v3412 = vunpack.c.l.b16 %v776
    %v3413 = vunpack.c.h.b16 %v776
    %v3414 = vunpack.c.l.b16 %v777
    %v3415 = vunpack.c.h.b16 %v777
    %v3416 = vunpack.c.l.b16 %v778
    %v3417 = vunpack.c.h.b16 %v778
    %v3418 = vunpack.c.l.b16 %v779
    %v3419 = vunpack.c.h.b16 %v779
    %v3420 = vunpack.c.l.b16 %v780
    %v3421 = vunpack.c.h.b16 %v780
    %v3422 = vunpack.c.l.b16 %v781
    %v3423 = vunpack.c.h.b16 %v781
    %v3424 = vunpack.c.l.b16 %v782
    %v3425 = vunpack.c.h.b16 %v782
    %v3426 = vunpack.c.l.b16 %v783
    %v3427 = vunpack.c.h.b16 %v783
    %v3428 = vunpack.c.l.b16 %v784
    %v3429 = vunpack.c.h.b16 %v784
    %v3430 = vunpack.c.l.b16 %v785
    %v3431 = vunpack.c.h.b16 %v785
    %v3432 = vunpack.c.l.b16 %v786
    %v3433 = vunpack.c.h.b16 %v786
    %v3434 = vunpack.c.l.b16 %v787
    %v3435 = vunpack.c.h.b16 %v787
    %v3436 = vunpack.c.l.b16 %v788
    %v3437 = vunpack.c.h.b16 %v788
    %v3438 = vunpack.c.l.b16 %v789
    %v3439 = vunpack.c.h.b16 %v789
    %v3440 = vunpack.c.l.b16 %v790
    %v3441 = vunpack.c.h.b16 %v790
    %v3442 = vunpack.c.l.b16 %v791
    %v3443 = vunpack.c.h.b16 %v791
    %v3444 = vunpack.c.l.b16 %v792
    %v3445 = vunpack.c.h.b16 %v792
    %v3446 = vunpack.c.l.b16 %v793
    %v3447 = vunpack.c.h.b16 %v793
    %v3448 = vunpack.c.l.b16 %v794
    %v3449 = vunpack.c.h.b16 %v794
    %v3450 = vunpack.c.l.b16 %v795
    %v3451 = vunpack.c.h.b16 %v795
    %v3452 = vunpack.c.l.b16 %v796
    %v3453 = vunpack.c.h.b16 %v796
    %v3454 = vunpack.c.l.b16 %v797
    %v3455 = vunpack.c.h.b16 %v797
    %v3456 = vunpack.c.l.b16 %v798
    %v3457 = vunpack.c.h.b16 %v798
    %v3458 = vunpack.c.l.b16 %v799
    %v3459 = vunpack.c.h.b16 %v799
    %v3460 = vunpack.c.l.b16 %v800
    %v3461 = vunpack.c.h.b16 %v800
    %v3462 = vunpack.c.l.b16 %v801
    %v3463 = vunpack.c.h.b16 %v801
    %v3464 = vunpack.c.l.b16 %v802
    %v3465 = vunpack.c.h.b16 %v802
    %v3466 = vunpack.c.l.b16 %v803
    %v3467 = vunpack.c.h.b16 %v803
    %v3468 = vunpack.c.l.b16 %v804
    %v3469 = vunpack.c.h.b16 %v804
    %v3470 = vunpack.c.l.b16 %v805
    %v3471 = vunpack.c.h.b16 %v805
    %v3472 = vunpack.c.l.b16 %v806
    %v3473 = vunpack.c.h.b16 %v806
    %v3474 = vunpack.c.l.b16 %v807
    %v3475 = vunpack.c.h.b16 %v807
    %v3476 = vunpack.c.l.b16 %v808
    %v3477 = vunpack.c.h.b16 %v808
    %v3478 = vunpack.c.l.b16 %v809
    %v3479 = vunpack.c.h.b16 %v809
    %v3480 = vunpack.c.l.b16 %v810
    %v3481 = vunpack.c.h.b16 %v810
    %v3482 = vunpack.c.l.b16 %v811
    %v3483 = vunpack.c.h.b16 %v811
    %v3484 = vunpack.c.l.b16 %v812
    %v3485 = vunpack.c.h.b16 %v812
    %v3486 = vunpack.c.l.b16 %v813
    %v3487 = vunpack.c.h.b16 %v813
    %v3488 = vunpack.c.l.b16 %v814
    %v3489 = vunpack.c.h.b16 %v814
    %v3490 = vunpack.c.l.b16 %v815
    %v3491 = vunpack.c.h.b16 %v815
    %v3492 = vunpack.c.l.b16 %v816
    %v3493 = vunpack.c.h.b16 %v816
    %v3494 = vunpack.c.l.b16 %v817
    %v3495 = vunpack.c.h.b16 %v817
    %v3496 = vunpack.c.l.b16 %v818
    %v3497 = vunpack.c.h.b16 %v818
    %v3498 = vunpack.c.l.b16 %v819
    %v3499 = vunpack.c.h.b16 %v819
    %v3500 = vunpack.c.l.b16 %v820
    %v3501 = vunpack.c.h.b16 %v820
    %v3502 = vunpack.c.l.b16 %v821
    %v3503 = vunpack.c.h.b16 %v821
    %v3504 = vunpack.c.l.b16 %v822
    %v3505 = vunpack.c.h.b16 %v822
    %v3506 = vunpack.c.l.b16 %v823
    %v3507 = vunpack.c.h.b16 %v823
    %v3508 = vunpack.c.l.b16 %v824
    %v3509 = vunpack.c.h.b16 %v824
    %v3510 = vunpack.c.l.b16 %v825
    %v3511 = vunpack.c.h.b16 %v825
    %v3512 = vunpack.c.l.b16 %v826
    %v3513 = vunpack.c.h.b16 %v826
    %v3514 = vunpack.c.l.b16 %v827
    %v3515 = vunpack.c.h.b16 %v827
    %v3516 = vunpack.c.l.b16 %v828
    %v3517 = vunpack.c.h.b16 %v828
    %v3518 = vunpack.c.l.b16 %v829
    %v3519 = vunpack.c.h.b16 %v829
    %v3520 = vunpack.c.l.b16 %v830
    %v3521 = vunpack.c.h.b16 %v830
    %v3522 = vunpack.c.l.b16 %v831
    %v3523 = vunpack.c.h.b16 %v831
    %v3524 = vunpack.c.l.b16 %v832
    %v3525 = vunpack.c.h.b16 %v832
    %v3526 = vunpack.c.l.b16 %v833
    %v3527 = vunpack.c.h.b16 %v833
    %v3528 = vunpack.c.l.b16 %v834
    %v3529 = vunpack.c.h.b16 %v834
    %v3530 = vunpack.c.l.b16 %v835
    %v3531 = vunpack.c.h.b16 %v835
    %v3532 = vunpack.c.l.b16 %v836
    %v3533 = vunpack.c.h.b16 %v836
    %v3534 = vunpack.c.l.b16 %v837
    %v3535 = vunpack.c.h.b16 %v837
    %v3536 = vunpack.c.l.b16 %v838
    %v3537 = vunpack.c.h.b16 %v838
    %v3538 = vunpack.c.l.b16 %v839
    %v3539 = vunpack.c.h.b16 %v839
    %v3540 = vunpack.c.l.b16 %v840
    %v3541 = vunpack.c.h.b16 %v840
    %v3542 = vunpack.c.l.b16 %v841
    %v3543 = vunpack.c.h.b16 %v841
    %v3544 = vunpack.c.l.b16 %v842
    %v3545 = vunpack.c.h.b16 %v842
    %v3546 = vunpack.c.l.b16 %v843
    %v3547 = vunpack.c.h.b16 %v843
    %v3548 = vunpack.c.l.b16 %v844
    %v3549 = vunpack.c.h.b16 %v844
    %v3550 = vunpack.c.l.b16 %v845
    %v3551 = vunpack.c.h.b16 %v845
    %v3552 = vunpack.c.l.b16 %v846
    %v3553 = vunpack.c.h.b16 %v846
    %v3554 = vunpack.c.l.b16 %v847
    %v3555 = vunpack.c.h.b16 %v847
    %v3556 = vunpack.c.l.b16 %v848
    %v3557 = vunpack.c.h.b16 %v848
    %v3558 = vunpack.c.l.b16 %v849
    %v3559 = vunpack.c.h.b16 %v849
    %v3560 = vunpack.c.l.b16 %v850
    %v3561 = vunpack.c.h.b16 %v850
    %v3562 = vunpack.c.l.b16 %v851
    %v3563 = vunpack.c.h.b16 %v851
    %v3564 = vunpack.c.l.b16 %v852
    %v3565 = vunpack.c.h.b16 %v852
    %v3566 = vunpack.c.l.b16 %v853
    %v3567 = vunpack.c.h.b16 %v853
    %v3568 = vunpack.c.l.b16 %v854
    %v3569 = vunpack.c.h.b16 %v854
    %v3570 = vunpack.c.l.b16 %v855
    %v3571 = vunpack.c.h.b16 %v855
    %v3572 = vunpack.c.l.b16 %v856
    %v3573 = vunpack.c.h.b16 %v856
    %v3574 = vunpack.c.l.b16 %v857
    %v3575 = vunpack.c.h.b16 %v857
    %v3576 = vunpack.c.l.b16 %v858
    %v3577 = vunpack.c.h.b16 %v858
    %v3578 = vunpack.c.l.b16 %v859
    %v3579 = vunpack.c.h.b16 %v859
    %v3580 = vunpack.c.l.b16 %v860
    %v3581 = vunpack.c.h.b16 %v860
    %v3582 = vunpack.c.l.b16 %v861
    %v3583 = vunpack.c.h.b16 %v861
    %v3584 = vunpack.c.l.b16 %v862
    %v3585 = vunpack.c.h.b16 %v862
    %v3586 = vunpack.c.l.b16 %v863
    %v3587 = vunpack.c.h.b16 %v863
    %v3588 = vunpack.c.l.b16 %v864
    %v3589 = vunpack.c.h.b16 %v864
    %v3590 = vunpack.c.l.b16 %v865
    %v3591 = vunpack.c.h.b16 %v865
    %v3592 = vunpack.c.l.b16 %v866
    %v3593 = vunpack.c.h.b16 %v866
    %v3594 = vunpack.c.l.b16 %v867
    %v3595 = vunpack.c.h.b16 %v867
    %v3596 = vunpack.c.l.b16 %v868
    %v3597 = vunpack.c.h.b16 %v868
    %v3598 = vunpack.c.l.b16 %v869
    %v3599 = vunpack.c.h.b16 %v869
    %v3600 = vunpack.c.l.b16 %v870
    %v3601 = vunpack.c.h.b16 %v870
    %v3602 = vunpack.c.l.b16 %v871
    %v3603 = vunpack.c.h.b16 %v871
    %v3604 = vunpack.c.l.b16 %v872
    %v3605 = vunpack.c.h.b16 %v872
    %v3606 = vunpack.c.l.b16 %v873
    %v3607 = vunpack.c.h.b16 %v873
    %v3608 = vunpack.c.l.b16 %v874
    %v3609 = vunpack.c.h.b16 %v874
    %v3610 = vunpack.c.l.b16 %v875
    %v3611 = vunpack.c.h.b16 %v875
    %v3612 = vunpack.c.l.b16 %v876
    %v3613 = vunpack.c.h.b16 %v876
    %v3614 = vunpack.c.l.b16 %v877
    %v3615 = vunpack.c.h.b16 %v877
    %v3616 = vunpack.c.l.b16 %v878
    %v3617 = vunpack.c.h.b16 %v878
    %v3618 = vunpack.c.l.b16 %v879
    %v3619 = vunpack.c.h.b16 %v879
    %v3620 = vunpack.c.l.b16 %v880
    %v3621 = vunpack.c.h.b16 %v880
    %v3622 = vunpack.c.l.b16 %v881
    %v3623 = vunpack.c.h.b16 %v881
    %v3624 = vunpack.c.l.b16 %v882
    %v3625 = vunpack.c.h.b16 %v882
    %v3626 = vunpack.c.l.b16 %v883
    %v3627 = vunpack.c.h.b16 %v883
    %v3628 = vunpack.c.l.b16 %v884
    %v3629 = vunpack.c.h.b16 %v884
    %v3630 = vunpack.c.l.b16 %v885
    %v3631 = vunpack.c.h.b16 %v885
    %v3632 = vunpack.c.l.b16 %v886
    %v3633 = vunpack.c.h.b16 %v886
    %v3634 = vunpack.c.l.b16 %v887
    %v3635 = vunpack.c.h.b16 %v887
    %v3636 = vunpack.c.l.b16 %v888
    %v3637 = vunpack.c.h.b16 %v888
    %v3638 = vunpack.c.l.b16 %v889
    %v3639 = vunpack.c.h.b16 %v889
    %v3640 = vunpack.c.l.b16 %v890
    %v3641 = vunpack.c.h.b16 %v890
    %v3642 = vunpack.c.l.b16 %v891
    %v3643 = vunpack.c.h.b16 %v891
    %v3644 = vunpack.c.l.b16 %v892
    %v3645 = vunpack.c.h.b16 %v892
    %v3646 = vunpack.c.l.b16 %v893
    %v3647 = vunpack.c.h.b16 %v893
    %v3648 = vunpack.c.l.b16 %v894
    %v3649 = vunpack.c.h.b16 %v894
    %v3650 = vunpack.c.l.b16 %v895
    %v3651 = vunpack.c.h.b16 %v895
    %v3652 = vunpack.c.l.b16 %v896
    %v3653 = vunpack.c.h.b16 %v896
    %v3654 = vunpack.c.l.b16 %v897
    %v3655 = vunpack.c.h.b16 %v897
    %v3656 = vunpack.c.l.b16 %v898
    %v3657 = vunpack.c.h.b16 %v898
    %v3658 = vunpack.c.l.b16 %v899
    %v3659 = vunpack.c.h.b16 %v899
    %v3660 = vunpack.c.l.b16 %v900
    %v3661 = vunpack.c.h.b16 %v900
    %v3662 = vunpack.c.l.b16 %v901
    %v3663 = vunpack.c.h.b16 %v901
    %v3664 = vunpack.c.l.b16 %v902
    %v3665 = vunpack.c.h.b16 %v902
    %v3666 = vunpack.c.l.b16 %v903
    %v3667 = vunpack.c.h.b16 %v903
    %v3668 = vunpack.c.l.b16 %v904
    %v3669 = vunpack.c.h.b16 %v904
    %v3670 = vunpack.c.l.b16 %v905
    %v3671 = vunpack.c.h.b16 %v905
    %v3672 = vunpack.c.l.b16 %v906
    %v3673 = vunpack.c.h.b16 %v906
    %v3674 = vunpack.c.l.b16 %v907
    %v3675 = vunpack.c.h.b16 %v907
    %v3676 = vunpack.c.l.b16 %v908
    %v3677 = vunpack.c.h.b16 %v908
    %v3678 = vunpack.c.l.b16 %v909
    %v3679 = vunpack.c.h.b16 %v909
    %v3680 = vunpack.c.l.b16 %v910
    %v3681 = vunpack.c.h.b16 %v910
    %v3682 = vunpack.c.l.b16 %v911
    %v3683 = vunpack.c.h.b16 %v911
    %v3684 = vunpack.c.l.b16 %v912
    %v3685 = vunpack.c.h.b16 %v912
    %v3686 = vunpack.c.l.b16 %v913
    %v3687 = vunpack.c.h.b16 %v913
    %v3688 = vunpack.c.l.b16 %v914
    %v3689 = vunpack.c.h.b16 %v914
    %v3690 = vunpack.c.l.b16 %v915
    %v3691 = vunpack.c.h.b16 %v915
    %v3692 = vunpack.c.l.b16 %v916
    %v3693 = vunpack.c.h.b16 %v916
    %v3694 = vunpack.c.l.b16 %v917
    %v3695 = vunpack.c.h.b16 %v917
    %v3696 = vunpack.c.l.b16 %v918
    %v3697 = vunpack.c.h.b16 %v918
    %v3698 = vunpack.c.l.b16 %v919
    %v3699 = vunpack.c.h.b16 %v919
    %v3700 = vunpack.c.l.b16 %v920
    %v3701 = vunpack.c.h.b16 %v920
    %v3702 = vunpack.c.l.b16 %v921
    %v3703 = vunpack.c.h.b16 %v921
    %v3704 = vunpack.c.l.b16 %v922
    %v3705 = vunpack.c.h.b16 %v922
    %v3706 = vunpack.c.l.b16 %v923
    %v3707 = vunpack.c.h.b16 %v923
    %v3708 = vunpack.c.l.b16 %v924
    %v3709 = vunpack.c.h.b16 %v924
    %v3710 = vunpack.c.l.b16 %v925
    %v3711 = vunpack.c.h.b16 %v925
    %v3712 = vunpack.c.l.b16 %v926
    %v3713 = vunpack.c.h.b16 %v926
    %v3714 = vunpack.c.l.b16 %v927
    %v3715 = vunpack.c.h.b16 %v927
    %v3716 = vunpack.c.l.b16 %v928
    %v3717 = vunpack.c.h.b16 %v928
    %v3718 = vunpack.c.l.b16 %v929
    %v3719 = vunpack.c.h.b16 %v929
    %v3720 = vunpack.c.l.b16 %v930
    %v3721 = vunpack.c.h.b16 %v930
    %v3722 = vunpack.c.l.b16 %v931
    %v3723 = vunpack.c.h.b16 %v931
    %v3724 = vunpack.c.l.b16 %v932
    %v3725 = vunpack.c.h.b16 %v932
    %v3726 = vunpack.c.l.b16 %v933
    %v3727 = vunpack.c.h.b16 %v933
    %v3728 = vunpack.c.l.b16 %v934
    %v3729 = vunpack.c.h.b16 %v934
    %v3730 = vunpack.c.l.b16 %v935
    %v3731 = vunpack.c.h.b16 %v935
    %v3732 = vunpack.c.l.b16 %v936
    %v3733 = vunpack.c.h.b16 %v936
    %v3734 = vunpack.c.l.b16 %v937
    %v3735 = vunpack.c.h.b16 %v937
    %v3736 = vunpack.c.l.b16 %v938
    %v3737 = vunpack.c.h.b16 %v938
    %v3738 = vunpack.c.l.b16 %v939
    %v3739 = vunpack.c.h.b16 %v939
    %v3740 = vunpack.c.l.b16 %v940
    %v3741 = vunpack.c.h.b16 %v940
    %v3742 = vunpack.c.l.b16 %v941
    %v3743 = vunpack.c.h.b16 %v941
    %v3744 = vunpack.c.l.b16 %v942
    %v3745 = vunpack.c.h.b16 %v942
    %v3746 = vunpack.c.l.b16 %v943
    %v3747 = vunpack.c.h.b16 %v943
    %v3748 = vunpack.c.l.b16 %v944
    %v3749 = vunpack.c.h.b16 %v944
    %v3750 = vunpack.c.l.b16 %v945
    %v3751 = vunpack.c.h.b16 %v945
    %v3752 = vunpack.c.l.b16 %v946
    %v3753 = vunpack.c.h.b16 %v946
    %v3754 = vunpack.c.l.b16 %v947
    %v3755 = vunpack.c.h.b16 %v947
    %v3756 = vunpack.c.l.b16 %v948
    %v3757 = vunpack.c.h.b16 %v948
    %v3758 = vunpack.c.l.b16 %v949
    %v3759 = vunpack.c.h.b16 %v949
    %v3760 = vunpack.c.l.b16 %v950
    %v3761 = vunpack.c.h.b16 %v950
    %v3762 = vunpack.c.l.b16 %v951
    %v3763 = vunpack.c.h.b16 %v951
    %v3764 = vunpack.c.l.b16 %v952
    %v3765 = vunpack.c.h.b16 %v952
    %v3766 = vunpack.c.l.b16 %v953
    %v3767 = vunpack.c.h.b16 %v953
    %v3768 = vunpack.c.l.b16 %v954
    %v3769 = vunpack.c.h.b16 %v954
    %v3770 = vunpack.c.l.b16 %v955
    %v3771 = vunpack.c.h.b16 %v955
    %v3772 = vunpack.c.l.b16 %v956
    %v3773 = vunpack.c.h.b16 %v956
    %v3774 = vunpack.c.l.b16 %v957
    %v3775 = vunpack.c.h.b16 %v957
    %v3776 = vunpack.c.l.b16 %v958
    %v3777 = vunpack.c.h.b16 %v958
    %v3778 = vunpack.c.l.b16 %v959
    %v3779 = vunpack.c.h.b16 %v959
    %v3780 = vunpack.c.l.b16 %v960
    %v3781 = vunpack.c.h.b16 %v960
    %v3782 = vunpack.c.l.b16 %v961
    %v3783 = vunpack.c.h.b16 %v961
    %v3784 = vunpack.c.l.b16 %v962
    %v3785 = vunpack.c.h.b16 %v962
    %v3786 = vunpack.c.l.b16 %v963
    %v3787 = vunpack.c.h.b16 %v963
    %v3788 = vunpack.c.l.b16 %v964
    %v3789 = vunpack.c.h.b16 %v964
    %v3790 = vunpack.c.l.b16 %v965
    %v3791 = vunpack.c.h.b16 %v965
    %v3792 = vunpack.c.l.b16 %v966
    %v3793 = vunpack.c.h.b16 %v966
    %v3794 = vunpack.c.l.b16 %v967
    %v3795 = vunpack.c.h.b16 %v967
    %v3796 = vunpack.c.l.b16 %v968
    %v3797 = vunpack.c.h.b16 %v968
    %v3798 = vunpack.c.l.b16 %v969
    %v3799 = vunpack.c.h.b16 %v969
    %v3800 = vunpack.c.l.b16 %v970
    %v3801 = vunpack.c.h.b16 %v970
    %v3802 = vunpack.c.l.b16 %v971
    %v3803 = vunpack.c.h.b16 %v971
    %v3804 = vunpack.c.l.b16 %v972
    %v3805 = vunpack.c.h.b16 %v972
    %v3806 = vunpack.c.l.b16 %v973
    %v3807 = vunpack.c.h.b16 %v973
    %v3808 = vunpack.c.l.b16 %v974
    %v3809 = vunpack.c.h.b16 %v974
    %v3810 = vunpack.c.l.b16 %v975
    %v3811 = vunpack.c.h.b16 %v975
    %v3812 = vunpack.c.l.b16 %v976
    %v3813 = vunpack.c.h.b16 %v976
    %v3814 = vunpack.c.l.b16 %v977
    %v3815 = vunpack.c.h.b16 %v977
    %v3816 = vunpack.c.l.b16 %v978
    %v3817 = vunpack.c.h.b16 %v978
    %v3818 = vunpack.c.l.b16 %v979
    %v3819 = vunpack.c.h.b16 %v979
    %v3820 = vunpack.c.l.b16 %v980
    %v3821 = vunpack.c.h.b16 %v980
    %v3822 = vunpack.c.l.b16 %v981
    %v3823 = vunpack.c.h.b16 %v981
    %v3824 = vunpack.c.l.b16 %v982
    %v3825 = vunpack.c.h.b16 %v982
    %v3826 = vunpack.c.l.b16 %v983
    %v3827 = vunpack.c.h.b16 %v983
    %v3828 = vunpack.c.l.b16 %v984
    %v3829 = vunpack.c.h.b16 %v984
    %v3830 = vunpack.c.l.b16 %v985
    %v3831 = vunpack.c.h.b16 %v985
    %v3832 = vunpack.c.l.b16 %v986
    %v3833 = vunpack.c.h.b16 %v986
    %v3834 = vunpack.c.l.b16 %v987
    %v3835 = vunpack.c.h.b16 %v987
    %v3836 = vunpack.c.l.b16 %v988
    %v3837 = vunpack.c.h.b16 %v988
    %v3838 = vunpack.c.l.b16 %v989
    %v3839 = vunpack.c.h.b16 %v989
    %v3840 = vunpack.c.l.b16 %v990
    %v3841 = vunpack.c.h.b16 %v990
    %v3842 = vunpack.c.l.b16 %v991
    %v3843 = vunpack.c.h.b16 %v991
    %v3844 = vunpack.c.l.b16 %v992
    %v3845 = vunpack.c.h.b16 %v992
    %v3846 = vunpack.c.l.b16 %v993
    %v3847 = vunpack.c.h.b16 %v993
    %v3848 = vunpack.c.l.b16 %v994
    %v3849 = vunpack.c.h.b16 %v994
    %v3850 = vunpack.c.l.b16 %v995
    %v3851 = vunpack.c.h.b16 %v995
    %v3852 = vunpack.c.l.b16 %v996
    %v3853 = vunpack.c.h.b16 %v996
    %v3854 = vunpack.c.l.b16 %v997
    %v3855 = vunpack.c.h.b16 %v997
    %v3856 = vunpack.c.l.b16 %v998
    %v3857 = vunpack.c.h.b16 %v998
    %v3858 = vunpack.c.l.b16 %v999
    %v3859 = vunpack.c.h.b16 %v999
    %v3860 = vunpack.c.l.b16 %v1000
    %v3861 = vunpack.c.h.b16 %v1000
    %v3862 = vunpack.c.l.b16 %v1001
    %v3863 = vunpack.c.h.b16 %v1001
    %v3864 = vunpack.c.l.b16 %v1002
    %v3865 = vunpack.c.h.b16 %v1002
    %v3866 = vunpack.c.l.b16 %v1003
    %v3867 = vunpack.c.h.b16 %v1003
    %v3868 = vunpack.c.l.b16 %v1004
    %v3869 = vunpack.c.h.b16 %v1004
    %v3870 = vunpack.c.l.b16 %v1005
    %v3871 = vunpack.c.h.b16 %v1005
    %v3872 = vunpack.c.l.b16 %v1006
    %v3873 = vunpack.c.h.b16 %v1006
    %v3874 = vunpack.c.l.b16 %v1007
    %v3875 = vunpack.c.h.b16 %v1007
    %v3876 = vunpack.c.l.b16 %v1008
    %v3877 = vunpack.c.h.b16 %v1008
    %v3878 = vunpack.c.l.b16 %v1009
    %v3879 = vunpack.c.h.b16 %v1009
    %v3880 = vunpack.c.l.b16 %v1010
    %v3881 = vunpack.c.h.b16 %v1010
    %v3882 = vunpack.c.l.b16 %v1011
    %v3883 = vunpack.c.h.b16 %v1011
    %v3884 = vunpack.c.l.b16 %v1012
    %v3885 = vunpack.c.h.b16 %v1012
    %v3886 = vunpack.c.l.b16 %v1013
    %v3887 = vunpack.c.h.b16 %v1013
    %v3888 = vunpack.c.l.b16 %v1014
    %v3889 = vunpack.c.h.b16 %v1014
    %v3890 = vunpack.c.l.b16 %v1015
    %v3891 = vunpack.c.h.b16 %v1015
    %v3892 = vunpack.c.l.b16 %v1016
    %v3893 = vunpack.c.h.b16 %v1016
    %v3894 = vunpack.c.l.b16 %v1017
    %v3895 = vunpack.c.h.b16 %v1017
    %v3896 = vunpack.c.l.b16 %v1018
    %v3897 = vunpack.c.h.b16 %v1018
    %v3898 = vunpack.c.l.b16 %v1019
    %v3899 = vunpack.c.h.b16 %v1019
    %v3900 = vunpack.c.l.b16 %v1020
    %v3901 = vunpack.c.h.b16 %v1020
    %v3902 = vunpack.c.l.b16 %v1021
    %v3903 = vunpack.c.h.b16 %v1021
    %v3904 = vunpack.c.l.b16 %v1022
    %v3905 = vunpack.c.h.b16 %v1022
    %v3906 = vunpack.c.l.b16 %v1023
    %v3907 = vunpack.c.h.b16 %v1023
    %v3908 = vunpack.c.l.b16 %v1024
    %v3909 = vunpack.c.h.b16 %v1024
    %v3910 = vunpack.c.l.b16 %v1025
    %v3911 = vunpack.c.h.b16 %v1025
    %v3912 = vunpack.c.l.b16 %v1026
    %v3913 = vunpack.c.h.b16 %v1026
    %v3914 = vunpack.c.l.b16 %v1027
    %v3915 = vunpack.c.h.b16 %v1027
    %v3916 = vunpack.c.l.b16 %v1028
    %v3917 = vunpack.c.h.b16 %v1028
    %v3918 = vunpack.c.l.b16 %v1029
    %v3919 = vunpack.c.h.b16 %v1029
    %v3920 = vunpack.c.l.b16 %v1030
    %v3921 = vunpack.c.h.b16 %v1030
    %v3922 = vunpack.c.l.b16 %v1031
    %v3923 = vunpack.c.h.b16 %v1031
    %v3924 = vunpack.c.l.b16 %v1032
    %v3925 = vunpack.c.h.b16 %v1032
    %v3926 = vunpack.c.l.b16 %v1033
    %v3927 = vunpack.c.h.b16 %v1033
    %v3928 = vunpack.c.l.b16 %v1034
    %v3929 = vunpack.c.h.b16 %v1034
    %v3930 = vunpack.c.l.b16 %v1035
    %v3931 = vunpack.c.h.b16 %v1035
    %v3932 = vunpack.c.l.b16 %v1036
    %v3933 = vunpack.c.h.b16 %v1036
    %v3934 = vunpack.c.l.b16 %v1037
    %v3935 = vunpack.c.h.b16 %v1037
    %v3936 = vunpack.c.l.b16 %v1038
    %v3937 = vunpack.c.h.b16 %v1038
    %v3938 = vunpack.c.l.b16 %v1039
    %v3939 = vunpack.c.h.b16 %v1039
    %v3940 = vunpack.c.l.b16 %v1040
    %v3941 = vunpack.c.h.b16 %v1040
    %v3942 = vunpack.c.l.b16 %v1041
    %v3943 = vunpack.c.h.b16 %v1041
    %v3944 = vunpack.c.l.b16 %v1042
    %v3945 = vunpack.c.h.b16 %v1042
    %v3946 = vunpack.c.l.b16 %v1043
    %v3947 = vunpack.c.h.b16 %v1043
    %v3948 = vunpack.c.l.b16 %v1044
    %v3949 = vunpack.c.h.b16 %v1044
    %v3950 = vunpack.c.l.b16 %v1045
    %v3951 = vunpack.c.h.b16 %v1045
    %v3952 = vunpack.c.l.b16 %v1046
    %v3953 = vunpack.c.h.b16 %v1046
    %v3954 = vunpack.c.l.b16 %v1047
    %v3955 = vunpack.c.h.b16 %v1047
    %v3956 = vpack.c.b16 %v2104, %v2100
    %v3957 = vpack.c.b16 %v2105, %v2101
    %v3958 = vpack.c.b16 %v2106, %v2102
    %v3959 = vpack.c.b16 %v2107, %v2103
    %v3960 = vpack.c.b16 %v2112, %v2108
    %v3961 = vpack.c.b16 %v2113, %v2109
    %v3962 = vpack.c.b16 %v2114, %v2110
    %v3963 = vpack.c.b16 %v2115, %v2111
    %v3964 = vpack.c.b16 %v2120, %v2116
    %v3965 = vpack.c.b16 %v2121, %v2117
    %v3966 = vpack.c.b16 %v2122, %v2118
    %v3967 = vpack.c.b16 %v2123, %v2119
    %v3968 = vpack.c.b16 %v2128, %v2124
    %v3969 = vpack.c.b16 %v2129, %v2125
    %v3970 = vpack.c.b16 %v2130, %v2126
    %v3971 = vpack.c.b16 %v2131, %v2127
    %v3972 = vpack.c.b16 %v2136, %v2132
    %v3973 = vpack.c.b16 %v2137, %v2133
    %v3974 = vpack.c.b16 %v2138, %v2134
    %v3975 = vpack.c.b16 %v2139, %v2135
    %v3976 = vpack.c.b16 %v2144, %v2140
    %v3977 = vpack.c.b16 %v2145, %v2141
    %v3978 = vpack.c.b16 %v2146, %v2142
    %v3979 = vpack.c.b16 %v2147, %v2143
    %v3980 = vpack.c.b16 %v2152, %v2148
    %v3981 = vpack.c.b16 %v2153, %v2149
    %v3982 = vpack.c.b16 %v2154, %v2150
    %v3983 = vpack.c.b16 %v2155, %v2151
    %v3984 = vpack.c.b16 %v2160, %v2156
    %v3985 = vpack.c.b16 %v2161, %v2157
    %v3986 = vpack.c.b16 %v2162, %v2158
    %v3987 = vpack.c.b16 %v2163, %v2159
    %v3988 = vpack.c.b16 %v2168, %v2164
    %v3989 = vpack.c.b16 %v2169, %v2165
    %v3990 = vpack.c.b16 %v2170, %v2166
    %v3991 = vpack.c.b16 %v2171, %v2167
    %v3992 = vpack.c.b16 %v2176, %v2172
    %v3993 = vpack.c.b16 %v2177, %v2173
    %v3994 = vpack.c.b16 %v2178, %v2174
    %v3995 = vpack.c.b16 %v2179, %v2175
    %v3996 = vpack.c.b16 %v2184, %v2180
    %v3997 = vpack.c.b16 %v2185, %v2181
    %v3998 = vpack.c.b16 %v2186, %v2182
    %v3999 = vpack.c.b16 %v2187, %v2183
    %v4000 = vpack.c.b16 %v2192, %v2188
    %v4001 = vpack.c.b16 %v2193, %v2189
    %v4002 = vpack.c.b16 %v2194, %v2190
    %v4003 = vpack.c.b16 %v2195, %v2191
    %v4004 = vpack.c.b16 %v2200, %v2196
    %v4005 = vpack.c.b16 %v2201, %v2197
    %v4006 = vpack.c.b16 %v2202, %v2198
    %v4007 = vpack.c.b16 %v2203, %v2199
    %v4008 = vpack.c.b16 %v2208, %v2204
    %v4009 = vpack.c.b16 %v2209, %v2205
    %v4010 = vpack.c.b16 %v2210, %v2206
    %v4011 = vpack.c.b16 %v2211, %v2207
    %v4012 = vpack.c.b16 %v2216, %v2212
    %v4013 = vpack.c.b16 %v2217, %v2213
    %v4014 = vpack.c.b16 %v2218, %v2214
    %v4015 = vpack.c.b16 %v2219, %v2215
    %v4016 = vpack.c.b16 %v2224, %v2220
    %v4017 = vpack.c.b16 %v2225, %v2221
    %v4018 = vpack.c.b16 %v2226, %v2222
    %v4019 = vpack.c.b16 %v2227, %v2223
    %v4020 = vpack.c.b16 %v2232, %v2228
    %v4021 = vpack.c.b16 %v2233, %v2229
    %v4022 = vpack.c.b16 %v2234, %v2230
    %v4023 = vpack.c.b16 %v2235, %v2231
    %v4024 = vpack.c.b16 %v2240, %v2236
    %v4025 = vpack.c.b16 %v2241, %v2237
    %v4026 = vpack.c.b16 %v2242, %v2238
    %v4027 = vpack.c.b16 %v2243, %v2239
    %v4028 = vpack.c.b16 %v2248, %v2244
    %v4029 = vpack.c.b16 %v2249, %v2245
    %v4030 = vpack.c.b16 %v2250, %v2246
    %v4031 = vpack.c.b16 %v2251, %v2247
    %v4032 = vpack.c.b16 %v2256, %v2252
    %v4033 = vpack.c.b16 %v2257, %v2253
    %v4034 = vpack.c.b16 %v2258, %v2254
    %v4035 = vpack.c.b16 %v2259, %v2255
    %v4036 = vpack.c.b16 %v2264, %v2260
    %v4037 = vpack.c.b16 %v2265, %v2261
    %v4038 = vpack.c.b16 %v2266, %v2262
    %v4039 = vpack.c.b16 %v2267, %v2263
    %v4040 = vpack.c.b16 %v2272, %v2268
    %v4041 = vpack.c.b16 %v2273, %v2269
    %v4042 = vpack.c.b16 %v2274, %v2270
    %v4043 = vpack.c.b16 %v2275, %v2271
    %v4044 = vpack.c.b16 %v2280, %v2276
    %v4045 = vpack.c.b16 %v2281, %v2277
    %v4046 = vpack.c.b16 %v2282, %v2278
    %v4047 = vpack.c.b16 %v2283, %v2279
    %v4048 = vpack.c.b16 %v2288, %v2284
    %v4049 = vpack.c.b16 %v2289, %v2285
    %v4050 = vpack.c.b16 %v2290, %v2286
    %v4051 = vpack.c.b16 %v2291, %v2287
    %v4052 = vpack.c.b16 %v2296, %v2292
    %v4053 = vpack.c.b16 %v2297, %v2293
    %v4054 = vpack.c.b16 %v2298, %v2294
    %v4055 = vpack.c.b16 %v2299, %v2295
    %v4056 = vpack.c.b16 %v2304, %v2300
    %v4057 = vpack.c.b16 %v2305, %v2301
    %v4058 = vpack.c.b16 %v2306, %v2302
    %v4059 = vpack.c.b16 %v2307, %v2303
    %v4060 = vpack.c.b16 %v2312, %v2308
    %v4061 = vpack.c.b16 %v2313, %v2309
    %v4062 = vpack.c.b16 %v2314, %v2310
    %v4063 = vpack.c.b16 %v2315, %v2311
    %v4064 = vpack.c.b16 %v2320, %v2316
    %v4065 = vpack.c.b16 %v2321, %v2317
    %v4066 = vpack.c.b16 %v2322, %v2318
    %v4067 = vpack.c.b16 %v2323, %v2319
    %v4068 = vpack.c.b16 %v2328, %v2324
    %v4069 = vpack.c.b16 %v2329, %v2325
    %v4070 = vpack.c.b16 %v2330, %v2326
    %v4071 = vpack.c.b16 %v2331, %v2327
    %v4072 = vpack.c.b16 %v2336, %v2332
    %v4073 = vpack.c.b16 %v2337, %v2333
    %v4074 = vpack.c.b16 %v2338, %v2334
    %v4075 = vpack.c.b16 %v2339, %v2335
    %v4076 = vpack.c.b16 %v2344, %v2340
    %v4077 = vpack.c.b16 %v2345, %v2341
    %v4078 = vpack.c.b16 %v2346, %v2342
    %v4079 = vpack.c.b16 %v2347, %v2343
    %v4080 = vpack.c.b16 %v2352, %v2348
    %v4081 = vpack.c.b16 %v2353, %v2349
    %v4082 = vpack.c.b16 %v2354, %v2350
    %v4083 = vpack.c.b16 %v2355, %v2351
    %v4084 = vpack.c.b16 %v2360, %v2356
    %v4085 = vpack.c.b16 %v2361, %v2357
    %v4086 = vpack.c.b16 %v2362, %v2358
    %v4087 = vpack.c.b16 %v2363, %v2359
    %v4088 = vpack.c.b16 %v2368, %v2364
    %v4089 = vpack.c.b16 %v2369, %v2365
    %v4090 = vpack.c.b16 %v2370, %v2366
    %v4091 = vpack.c.b16 %v2371, %v2367
    %v4092 = vpack.c.b16 %v2376, %v2372
    %v4093 = vpack.c.b16 %v2377, %v2373
    %v4094 = vpack.c.b16 %v2378, %v2374
    %v4095 = vpack.c.b16 %v2379, %v2375
    %v4096 = vpack.c.b16 %v2384, %v2380
    %v4097 = vpack.c.b16 %v2385, %v2381
    %v4098 = vpack.c.b16 %v2386, %v2382
    %v4099 = vpack.c.b16 %v2387, %v2383
    %v4100 = vpack.c.b16 %v2392, %v2388
    %v4101 = vpack.c.b16 %v2393, %v2389
    %v4102 = vpack.c.b16 %v2394, %v2390
    %v4103 = vpack.c.b16 %v2395, %v2391
    %v4104 = vpack.c.b16 %v2400, %v2396
    %v4105 = vpack.c.b16 %v2401, %v2397
    %v4106 = vpack.c.b16 %v2402, %v2398
    %v4107 = vpack.c.b16 %v2403, %v2399
    %v4108 = vpack.c.b16 %v2408, %v2404
    %v4109 = vpack.c.b16 %v2409, %v2405
    %v4110 = vpack.c.b16 %v2410, %v2406
    %v4111 = vpack.c.b16 %v2411, %v2407
    %v4112 = vpack.c.b16 %v2416, %v2412
    %v4113 = vpack.c.b16 %v2417, %v2413
    %v4114 = vpack.c.b16 %v2418, %v2414
    %v4115 = vpack.c.b16 %v2419, %v2415
    %v4116 = vpack.c.b16 %v2424, %v2420
    %v4117 = vpack.c.b16 %v2425, %v2421
    %v4118 = vpack.c.b16 %v2426, %v2422
    %v4119 = vpack.c.b16 %v2427, %v2423
    %v4120 = vpack.c.b16 %v2432, %v2428
    %v4121 = vpack.c.b16 %v2433, %v2429
    %v4122 = vpack.c.b16 %v2434, %v2430
    %v4123 = vpack.c.b16 %v2435, %v2431
    %v4124 = vpack.c.b16 %v2440, %v2436
    %v4125 = vpack.c.b16 %v2441, %v2437
    %v4126 = vpack.c.b16 %v2442, %v2438
    %v4127 = vpack.c.b16 %v2443, %v2439
    %v4128 = vpack.c.b16 %v2448, %v2444
    %v4129 = vpack.c.b16 %v2449, %v2445
    %v4130 = vpack.c.b16 %v2450, %v2446
    %v4131 = vpack.c.b16 %v2451, %v2447
    %v4132 = vpack.c.b16 %v2456, %v2452
    %v4133 = vpack.c.b16 %v2457, %v2453
    %v4134 = vpack.c.b16 %v2458, %v2454
    %v4135 = vpack.c.b16 %v2459, %v2455
    %v4136 = vpack.c.b16 %v2464, %v2460
    %v4137 = vpack.c.b16 %v2465, %v2461
    %v4138 = vpack.c.b16 %v2466, %v2462
    %v4139 = vpack.c.b16 %v2467, %v2463
    %v4140 = vpack.c.b16 %v2472, %v2468
    %v4141 = vpack.c.b16 %v2473, %v2469
    %v4142 = vpack.c.b16 %v2474, %v2470
    %v4143 = vpack.c.b16 %v2475, %v2471
    %v4144 = vpack.c.b16 %v2480, %v2476
    %v4145 = vpack.c.b16 %v2481, %v2477
    %v4146 = vpack.c.b16 %v2482, %v2478
    %v4147 = vpack.c.b16 %v2483, %v2479
    %v4148 = vpack.c.b16 %v2488, %v2484
    %v4149 = vpack.c.b16 %v2489, %v2485
    %v4150 = vpack.c.b16 %v2490, %v2486
    %v4151 = vpack.c.b16 %v2491, %v2487
    %v4152 = vpack.c.b16 %v2496, %v2492
    %v4153 = vpack.c.b16 %v2497, %v2493
    %v4154 = vpack.c.b16 %v2498, %v2494
    %v4155 = vpack.c.b16 %v2499, %v2495
    %v4156 = vpack.c.b16 %v2504, %v2500
    %v4157 = vpack.c.b16 %v2505, %v2501
    %v4158 = vpack.c.b16 %v2506, %v2502
    %v4159 = vpack.c.b16 %v2507, %v2503
    %v4160 = vpack.c.b16 %v2512, %v2508
    %v4161 = vpack.c.b16 %v2513, %v2509
    %v4162 = vpack.c.b16 %v2514, %v2510
    %v4163 = vpack.c.b16 %v2515, %v2511
    %v4164 = vpack.c.b16 %v2520, %v2516
    %v4165 = vpack.c.b16 %v2521, %v2517
    %v4166 = vpack.c.b16 %v2522, %v2518
    %v4167 = vpack.c.b16 %v2523, %v2519
    %v4168 = vpack.c.b16 %v2528, %v2524
    %v4169 = vpack.c.b16 %v2529, %v2525
    %v4170 = vpack.c.b16 %v2530, %v2526
    %v4171 = vpack.c.b16 %v2531, %v2527
    %v4172 = vpack.c.b16 %v2536, %v2532
    %v4173 = vpack.c.b16 %v2537, %v2533
    %v4174 = vpack.c.b16 %v2538, %v2534
    %v4175 = vpack.c.b16 %v2539, %v2535
    %v4176 = vpack.c.b16 %v2544, %v2540
    %v4177 = vpack.c.b16 %v2545, %v2541
    %v4178 = vpack.c.b16 %v2546, %v2542
    %v4179 = vpack.c.b16 %v2547, %v2543
    %v4180 = vpack.c.b16 %v2552, %v2548
    %v4181 = vpack.c.b16 %v2553, %v2549
    %v4182 = vpack.c.b16 %v2554, %v2550
    %v4183 = vpack.c.b16 %v2555, %v2551
    %v4184 = vpack.c.b16 %v2560, %v2556
    %v4185 = vpack.c.b16 %v2561, %v2557
    %v4186 = vpack.c.b16 %v2562, %v2558
    %v4187 = vpack.c.b16 %v2563, %v2559
    %v4188 = vpack.c.b16 %v2568, %v2564
    %v4189 = vpack.c.b16 %v2569, %v2565
    %v4190 = vpack.c.b16 %v2570, %v2566
    %v4191 = vpack.c.b16 %v2571, %v2567
    %v4192 = vpack.c.b16 %v2576, %v2572
    %v4193 = vpack.c.b16 %v2577, %v2573
    %v4194 = vpack.c.b16 %v2578, %v2574
    %v4195 = vpack.c.b16 %v2579, %v2575
    %v4196 = vpack.c.b16 %v2584, %v2580
    %v4197 = vpack.c.b16 %v2585, %v2581
    %v4198 = vpack.c.b16 %v2586, %v2582
    %v4199 = vpack.c.b16 %v2587, %v2583
    %v4200 = vpack.c.b16 %v2592, %v2588
    %v4201 = vpack.c.b16 %v2593, %v2589
    %v4202 = vpack.c.b16 %v2594, %v2590
    %v4203 = vpack.c.b16 %v2595, %v2591
    %v4204 = vpack.c.b16 %v2600, %v2596
    %v4205 = vpack.c.b16 %v2601, %v2597
    %v4206 = vpack.c.b16 %v2602, %v2598
    %v4207 = vpack.c.b16 %v2603, %v2599
    %v4208 = vpack.c.b16 %v2608, %v2604
    %v4209 = vpack.c.b16 %v2609, %v2605
    %v4210 = vpack.c.b16 %v2610, %v2606
    %v4211 = vpack.c.b16 %v2611, %v2607
    %v4212 = vpack.c.b16 %v2616, %v2612
    %v4213 = vpack.c.b16 %v2617, %v2613
    %v4214 = vpack.c.b16 %v2618, %v2614
    %v4215 = vpack.c.b16 %v2619, %v2615
    %v4216 = vpack.c.b16 %v2624, %v2620
    %v4217 = vpack.c.b16 %v2625, %v2621
    %v4218 = vpack.c.b16 %v2626, %v2622
    %v4219 = vpack.c.b16 %v2627, %v2623
    %v4220 = vpack.c.b16 %v2632, %v2628
    %v4221 = vpack.c.b16 %v2633, %v2629
    %v4222 = vpack.c.b16 %v2634, %v2630
    %v4223 = vpack.c.b16 %v2635, %v2631
    %v4224 = vpack.c.b16 %v2640, %v2636
    %v4225 = vpack.c.b16 %v2641, %v2637
    %v4226 = vpack.c.b16 %v2642, %v2638
    %v4227 = vpack.c.b16 %v2643, %v2639
    %v4228 = vpack.c.b16 %v2648, %v2644
    %v4229 = vpack.c.b16 %v2649, %v2645
    %v4230 = vpack.c.b16 %v2650, %v2646
    %v4231 = vpack.c.b16 %v2651, %v2647
    %v4232 = vpack.c.b16 %v2656, %v2652
    %v4233 = vpack.c.b16 %v2657, %v2653
    %v4234 = vpack.c.b16 %v2658, %v2654
    %v4235 = vpack.c.b16 %v2659, %v2655
    %v4236 = vpack.c.b16 %v2664, %v2660
    %v4237 = vpack.c.b16 %v2665, %v2661
    %v4238 = vpack.c.b16 %v2666, %v2662
    %v4239 = vpack.c.b16 %v2667, %v2663
    %v4240 = vpack.c.b16 %v2672, %v2668
    %v4241 = vpack.c.b16 %v2673, %v2669
    %v4242 = vpack.c.b16 %v2674, %v2670
    %v4243 = vpack.c.b16 %v2675, %v2671
    %v4244 = vpack.c.b16 %v2680, %v2676
    %v4245 = vpack.c.b16 %v2681, %v2677
    %v4246 = vpack.c.b16 %v2682, %v2678
    %v4247 = vpack.c.b16 %v2683, %v2679
    %v4248 = vpack.c.b16 %v2688, %v2684
    %v4249 = vpack.c.b16 %v2689, %v2685
    %v4250 = vpack.c.b16 %v2690, %v2686
    %v4251 = vpack.c.b16 %v2691, %v2687
    %v4252 = vpack.c.b16 %v2696, %v2692
    %v4253 = vpack.c.b16 %v2697, %v2693
    %v4254 = vpack.c.b16 %v2698, %v2694
    %v4255 = vpack.c.b16 %v2699, %v2695
    %v4256 = vpack.c.b16 %v2704, %v2700
    %v4257 = vpack.c.b16 %v2705, %v2701
    %v4258 = vpack.c.b16 %v2706, %v2702
    %v4259 = vpack.c.b16 %v2707, %v2703
    %v4260 = vpack.c.b16 %v2712, %v2708
    %v4261 = vpack.c.b16 %v2713, %v2709
    %v4262 = vpack.c.b16 %v2714, %v2710
    %v4263 = vpack.c.b16 %v2715, %v2711
    %v4264 = vpack.c.b16 %v2720, %v2716
    %v4265 = vpack.c.b16 %v2721, %v2717
    %v4266 = vpack.c.b16 %v2722, %v2718
    %v4267 = vpack.c.b16 %v2723, %v2719
    %v4268 = vpack.c.b16 %v2728, %v2724
    %v4269 = vpack.c.b16 %v2729, %v2725
    %v4270 = vpack.c.b16 %v2730, %v2726
    %v4271 = vpack.c.b16 %v2731, %v2727
    %v4272 = vpack.c.b16 %v2736, %v2732
    %v4273 = vpack.c.b16 %v2737, %v2733
    %v4274 = vpack.c.b16 %v2738, %v2734
    %v4275 = vpack.c.b16 %v2739, %v2735
    %v4276 = vpack.c.b16 %v2744, %v2740
    %v4277 = vpack.c.b16 %v2745, %v2741
    %v4278 = vpack.c.b16 %v2746, %v2742
    %v4279 = vpack.c.b16 %v2747, %v2743
    %v4280 = vpack.c.b16 %v2752, %v2748
    %v4281 = vpack.c.b16 %v2753, %v2749
    %v4282 = vpack.c.b16 %v2754, %v2750
    %v4283 = vpack.c.b16 %v2755, %v2751
    %v4284 = vpack.c.b16 %v2760, %v2756
    %v4285 = vpack.c.b16 %v2761, %v2757
    %v4286 = vpack.c.b16 %v2762, %v2758
    %v4287 = vpack.c.b16 %v2763, %v2759
    %v4288 = vpack.c.b16 %v2768, %v2764
    %v4289 = vpack.c.b16 %v2769, %v2765
    %v4290 = vpack.c.b16 %v2770, %v2766
    %v4291 = vpack.c.b16 %v2771, %v2767
    %v4292 = vpack.c.b16 %v2776, %v2772
    %v4293 = vpack.c.b16 %v2777, %v2773
    %v4294 = vpack.c.b16 %v2778, %v2774
    %v4295 = vpack.c.b16 %v2779, %v2775
    %v4296 = vpack.c.b16 %v2784, %v2780
    %v4297 = vpack.c.b16 %v2785, %v2781
    %v4298 = vpack.c.b16 %v2786, %v2782
    %v4299 = vpack.c.b16 %v2787, %v2783
    %v4300 = vpack.c.b16 %v2792, %v2788
    %v4301 = vpack.c.b16 %v2793, %v2789
    %v4302 = vpack.c.b16 %v2794, %v2790
    %v4303 = vpack.c.b16 %v2795, %v2791
    %v4304 = vpack.c.b16 %v2800, %v2796
    %v4305 = vpack.c.b16 %v2801, %v2797
    %v4306 = vpack.c.b16 %v2802, %v2798
    %v4307 = vpack.c.b16 %v2803, %v2799
    %v4308 = vpack.c.b16 %v2808, %v2804
    %v4309 = vpack.c.b16 %v2809, %v2805
    %v4310 = vpack.c.b16 %v2810, %v2806
    %v4311 = vpack.c.b16 %v2811, %v2807
    %v4312 = vpack.c.b16 %v2816, %v2812
    %v4313 = vpack.c.b16 %v2817, %v2813
    %v4314 = vpack.c.b16 %v2818, %v2814
    %v4315 = vpack.c.b16 %v2819, %v2815
    %v4316 = vpack.c.b16 %v2824, %v2820
    %v4317 = vpack.c.b16 %v2825, %v2821
    %v4318 = vpack.c.b16 %v2826, %v2822
    %v4319 = vpack.c.b16 %v2827, %v2823
    %v4320 = vpack.c.b16 %v2832, %v2828
    %v4321 = vpack.c.b16 %v2833, %v2829
    %v4322 = vpack.c.b16 %v2834, %v2830
    %v4323 = vpack.c.b16 %v2835, %v2831
    %v4324 = vpack.c.b16 %v2840, %v2836
    %v4325 = vpack.c.b16 %v2841, %v2837
    %v4326 = vpack.c.b16 %v2842, %v2838
    %v4327 = vpack.c.b16 %v2843, %v2839
    %v4328 = vpack.c.b16 %v2848, %v2844
    %v4329 = vpack.c.b16 %v2849, %v2845
    %v4330 = vpack.c.b16 %v2850, %v2846
    %v4331 = vpack.c.b16 %v2851, %v2847
    %v4332 = vpack.c.b16 %v2856, %v2852
    %v4333 = vpack.c.b16 %v2857, %v2853
    %v4334 = vpack.c.b16 %v2858, %v2854
    %v4335 = vpack.c.b16 %v2859, %v2855
    %v4336 = vpack.c.b16 %v2864, %v2860
    %v4337 = vpack.c.b16 %v2865, %v2861
    %v4338 = vpack.c.b16 %v2866, %v2862
    %v4339 = vpack.c.b16 %v2867, %v2863
    %v4340 = vpack.c.b16 %v2872, %v2868
    %v4341 = vpack.c.b16 %v2873, %v2869
    %v4342 = vpack.c.b16 %v2874, %v2870
    %v4343 = vpack.c.b16 %v2875, %v2871
    %v4344 = vpack.c.b16 %v2880, %v2876
    %v4345 = vpack.c.b16 %v2881, %v2877
    %v4346 = vpack.c.b16 %v2882, %v2878
    %v4347 = vpack.c.b16 %v2883, %v2879
    %v4348 = vpack.c.b16 %v2888, %v2884
    %v4349 = vpack.c.b16 %v2889, %v2885
    %v4350 = vpack.c.b16 %v2890, %v2886
    %v4351 = vpack.c.b16 %v2891, %v2887
    %v4352 = vpack.c.b16 %v2896, %v2892
    %v4353 = vpack.c.b16 %v2897, %v2893
    %v4354 = vpack.c.b16 %v2898, %v2894
    %v4355 = vpack.c.b16 %v2899, %v2895
    %v4356 = vpack.c.b16 %v2904, %v2900
    %v4357 = vpack.c.b16 %v2905, %v2901
    %v4358 = vpack.c.b16 %v2906, %v2902
    %v4359 = vpack.c.b16 %v2907, %v2903
    %v4360 = vpack.c.b16 %v2912, %v2908
    %v4361 = vpack.c.b16 %v2913, %v2909
    %v4362 = vpack.c.b16 %v2914, %v2910
    %v4363 = vpack.c.b16 %v2915, %v2911
    %v4364 = vpack.c.b16 %v2920, %v2916
    %v4365 = vpack.c.b16 %v2921, %v2917
    %v4366 = vpack.c.b16 %v2922, %v2918
    %v4367 = vpack.c.b16 %v2923, %v2919
    %v4368 = vpack.c.b16 %v2928, %v2924
    %v4369 = vpack.c.b16 %v2929, %v2925
    %v4370 = vpack.c.b16 %v2930, %v2926
    %v4371 = vpack.c.b16 %v2931, %v2927
    %v4372 = vpack.c.b16 %v2936, %v2932
    %v4373 = vpack.c.b16 %v2937, %v2933
    %v4374 = vpack.c.b16 %v2938, %v2934
    %v4375 = vpack.c.b16 %v2939, %v2935
    %v4376 = vpack.c.b16 %v2944, %v2940
    %v4377 = vpack.c.b16 %v2945, %v2941
    %v4378 = vpack.c.b16 %v2946, %v2942
    %v4379 = vpack.c.b16 %v2947, %v2943
    %v4380 = vpack.c.b16 %v2952, %v2948
    %v4381 = vpack.c.b16 %v2953, %v2949
    %v4382 = vpack.c.b16 %v2954, %v2950
    %v4383 = vpack.c.b16 %v2955, %v2951
    %v4384 = vpack.c.b16 %v2960, %v2956
    %v4385 = vpack.c.b16 %v2961, %v2957
    %v4386 = vpack.c.b16 %v2962, %v2958
    %v4387 = vpack.c.b16 %v2963, %v2959
    %v4388 = vpack.c.b16 %v2968, %v2964
    %v4389 = vpack.c.b16 %v2969, %v2965
    %v4390 = vpack.c.b16 %v2970, %v2966
    %v4391 = vpack.c.b16 %v2971, %v2967
    %v4392 = vpack.c.b16 %v2976, %v2972
    %v4393 = vpack.c.b16 %v2977, %v2973
    %v4394 = vpack.c.b16 %v2978, %v2974
    %v4395 = vpack.c.b16 %v2979, %v2975
    %v4396 = vpack.c.b16 %v2984, %v2980
    %v4397 = vpack.c.b16 %v2985, %v2981
    %v4398 = vpack.c.b16 %v2986, %v2982
    %v4399 = vpack.c.b16 %v2987, %v2983
    %v4400 = vpack.c.b16 %v2992, %v2988
    %v4401 = vpack.c.b16 %v2993, %v2989
    %v4402 = vpack.c.b16 %v2994, %v2990
    %v4403 = vpack.c.b16 %v2995, %v2991
    %v4404 = vpack.c.b16 %v3000, %v2996
    %v4405 = vpack.c.b16 %v3001, %v2997
    %v4406 = vpack.c.b16 %v3002, %v2998
    %v4407 = vpack.c.b16 %v3003, %v2999
    %v4408 = vpack.c.b16 %v3008, %v3004
    %v4409 = vpack.c.b16 %v3009, %v3005
    %v4410 = vpack.c.b16 %v3010, %v3006
    %v4411 = vpack.c.b16 %v3011, %v3007
    %v4412 = vpack.c.b16 %v3016, %v3012
    %v4413 = vpack.c.b16 %v3017, %v3013
    %v4414 = vpack.c.b16 %v3018, %v3014
    %v4415 = vpack.c.b16 %v3019, %v3015
    %v4416 = vpack.c.b16 %v3024, %v3020
    %v4417 = vpack.c.b16 %v3025, %v3021
    %v4418 = vpack.c.b16 %v3026, %v3022
    %v4419 = vpack.c.b16 %v3027, %v3023
    %v4420 = vpack.c.b16 %v3032, %v3028
    %v4421 = vpack.c.b16 %v3033, %v3029
    %v4422 = vpack.c.b16 %v3034, %v3030
    %v4423 = vpack.c.b16 %v3035, %v3031
    %v4424 = vpack.c.b16 %v3040, %v3036
    %v4425 = vpack.c.b16 %v3041, %v3037
    %v4426 = vpack.c.b16 %v3042, %v3038
    %v4427 = vpack.c.b16 %v3043, %v3039
    %v4428 = vpack.c.b16 %v3048, %v3044
    %v4429 = vpack.c.b16 %v3049, %v3045
    %v4430 = vpack.c.b16 %v3050, %v3046
    %v4431 = vpack.c.b16 %v3051, %v3047
    %v4432 = vpack.c.b16 %v3056, %v3052
    %v4433 = vpack.c.b16 %v3057, %v3053
    %v4434 = vpack.c.b16 %v3058, %v3054
    %v4435 = vpack.c.b16 %v3059, %v3055
    %v4436 = vpack.c.b16 %v3064, %v3060
    %v4437 = vpack.c.b16 %v3065, %v3061
    %v4438 = vpack.c.b16 %v3066, %v3062
    %v4439 = vpack.c.b16 %v3067, %v3063
    %v4440 = vpack.c.b16 %v3072, %v3068
    %v4441 = vpack.c.b16 %v3073, %v3069
    %v4442 = vpack.c.b16 %v3074, %v3070
    %v4443 = vpack.c.b16 %v3075, %v3071
    %v4444 = vpack.c.b16 %v3080, %v3076
    %v4445 = vpack.c.b16 %v3081, %v3077
    %v4446 = vpack.c.b16 %v3082, %v3078
    %v4447 = vpack.c.b16 %v3083, %v3079
    %v4448 = vpack.c.b16 %v3088, %v3084
    %v4449 = vpack.c.b16 %v3089, %v3085
    %v4450 = vpack.c.b16 %v3090, %v3086
    %v4451 = vpack.c.b16 %v3091, %v3087
    %v4452 = vpack.c.b16 %v3096, %v3092
    %v4453 = vpack.c.b16 %v3097, %v3093
    %v4454 = vpack.c.b16 %v3098, %v3094
    %v4455 = vpack.c.b16 %v3099, %v3095
    %v4456 = vpack.c.b16 %v3104, %v3100
    %v4457 = vpack.c.b16 %v3105, %v3101
    %v4458 = vpack.c.b16 %v3106, %v3102
    %v4459 = vpack.c.b16 %v3107, %v3103
    %v4460 = vpack.c.b16 %v3112, %v3108
    %v4461 = vpack.c.b16 %v3113, %v3109
    %v4462 = vpack.c.b16 %v3114, %v3110
    %v4463 = vpack.c.b16 %v3115, %v3111
    %v4464 = vpack.c.b16 %v3120, %v3116
    %v4465 = vpack.c.b16 %v3121, %v3117
    %v4466 = vpack.c.b16 %v3122, %v3118
    %v4467 = vpack.c.b16 %v3123, %v3119
    %v4468 = vpack.c.b16 %v3128, %v3124
    %v4469 = vpack.c.b16 %v3129, %v3125
    %v4470 = vpack.c.b16 %v3130, %v3126
    %v4471 = vpack.c.b16 %v3131, %v3127
    %v4472 = vpack.c.b16 %v3136, %v3132
    %v4473 = vpack.c.b16 %v3137, %v3133
    %v4474 = vpack.c.b16 %v3138, %v3134
    %v4475 = vpack.c.b16 %v3139, %v3135
    %v4476 = vpack.c.b16 %v3144, %v3140
    %v4477 = vpack.c.b16 %v3145, %v3141
    %v4478 = vpack.c.b16 %v3146, %v3142
    %v4479 = vpack.c.b16 %v3147, %v3143
    %v4480 = vpack.c.b16 %v3152, %v3148
    %v4481 = vpack.c.b16 %v3153, %v3149
    %v4482 = vpack.c.b16 %v3154, %v3150
    %v4483 = vpack.c.b16 %v3155, %v3151
    %v4484 = vpack.c.b16 %v3160, %v3156
    %v4485 = vpack.c.b16 %v3161, %v3157
    %v4486 = vpack.c.b16 %v3162, %v3158
    %v4487 = vpack.c.b16 %v3163, %v3159
    %v4488 = vpack.c.b16 %v3168, %v3164
    %v4489 = vpack.c.b16 %v3169, %v3165
    %v4490 = vpack.c.b16 %v3170, %v3166
    %v4491 = vpack.c.b16 %v3171, %v3167
    %v4492 = vpack.c.b16 %v3176, %v3172
    %v4493 = vpack.c.b16 %v3177, %v3173
    %v4494 = vpack.c.b16 %v3178, %v3174
    %v4495 = vpack.c.b16 %v3179, %v3175
    %v4496 = vpack.c.b16 %v3184, %v3180
    %v4497 = vpack.c.b16 %v3185, %v3181
    %v4498 = vpack.c.b16 %v3186, %v3182
    %v4499 = vpack.c.b16 %v3187, %v3183
    %v4500 = vpack.c.b16 %v3192, %v3188
    %v4501 = vpack.c.b16 %v3193, %v3189
    %v4502 = vpack.c.b16 %v3194, %v3190
    %v4503 = vpack.c.b16 %v3195, %v3191
    %v4504 = vpack.c.b16 %v3200, %v3196
    %v4505 = vpack.c.b16 %v3201, %v3197
    %v4506 = vpack.c.b16 %v3202, %v3198
    %v4507 = vpack.c.b16 %v3203, %v3199
    %v4508 = vpack.c.b16 %v3208, %v3204
    %v4509 = vpack.c.b16 %v3209, %v3205
    %v4510 = vpack.c.b16 %v3210, %v3206
    %v4511 = vpack.c.b16 %v3211, %v3207
    %v4512 = vpack.c.b16 %v3216, %v3212
    %v4513 = vpack.c.b16 %v3217, %v3213
    %v4514 = vpack.c.b16 %v3218, %v3214
    %v4515 = vpack.c.b16 %v3219, %v3215
    %v4516 = vpack.c.b16 %v3224, %v3220
    %v4517 = vpack.c.b16 %v3225, %v3221
    %v4518 = vpack.c.b16 %v3226, %v3222
    %v4519 = vpack.c.b16 %v3227, %v3223
    %v4520 = vpack.c.b16 %v3232, %v3228
    %v4521 = vpack.c.b16 %v3233, %v3229
    %v4522 = vpack.c.b16 %v3234, %v3230
    %v4523 = vpack.c.b16 %v3235, %v3231
    %v4524 = vpack.c.b16 %v3240, %v3236
    %v4525 = vpack.c.b16 %v3241, %v3237
    %v4526 = vpack.c.b16 %v3242, %v3238
    %v4527 = vpack.c.b16 %v3243, %v3239
    %v4528 = vpack.c.b16 %v3248, %v3244
    %v4529 = vpack.c.b16 %v3249, %v3245
    %v4530 = vpack.c.b16 %v3250, %v3246
    %v4531 = vpack.c.b16 %v3251, %v3247
    %v4532 = vpack.c.b16 %v3256, %v3252
    %v4533 = vpack.c.b16 %v3257, %v3253
    %v4534 = vpack.c.b16 %v3258, %v3254
    %v4535 = vpack.c.b16 %v3259, %v3255
    %v4536 = vpack.c.b16 %v3264, %v3260
    %v4537 = vpack.c.b16 %v3265, %v3261
    %v4538 = vpack.c.b16 %v3266, %v3262
    %v4539 = vpack.c.b16 %v3267, %v3263
    %v4540 = vpack.c.b16 %v3272, %v3268
    %v4541 = vpack.c.b16 %v3273, %v3269
    %v4542 = vpack.c.b16 %v3274, %v3270
    %v4543 = vpack.c.b16 %v3275, %v3271
    %v4544 = vpack.c.b16 %v3280, %v3276
    %v4545 = vpack.c.b16 %v3281, %v3277
    %v4546 = vpack.c.b16 %v3282, %v3278
    %v4547 = vpack.c.b16 %v3283, %v3279
    %v4548 = vpack.c.b16 %v3288, %v3284
    %v4549 = vpack.c.b16 %v3289, %v3285
    %v4550 = vpack.c.b16 %v3290, %v3286
    %v4551 = vpack.c.b16 %v3291, %v3287
    %v4552 = vpack.c.b16 %v3296, %v3292
    %v4553 = vpack.c.b16 %v3297, %v3293
    %v4554 = vpack.c.b16 %v3298, %v3294
    %v4555 = vpack.c.b16 %v3299, %v3295
    %v4556 = vpack.c.b16 %v3304, %v3300
    %v4557 = vpack.c.b16 %v3305, %v3301
    %v4558 = vpack.c.b16 %v3306, %v3302
    %v4559 = vpack.c.b16 %v3307, %v3303
    %v4560 = vpack.c.b16 %v3312, %v3308
    %v4561 = vpack.c.b16 %v3313, %v3309
    %v4562 = vpack.c.b16 %v3314, %v3310
    %v4563 = vpack.c.b16 %v3315, %v3311
    %v4564 = vpack.c.b16 %v3320, %v3316
    %v4565 = vpack.c.b16 %v3321, %v3317
    %v4566 = vpack.c.b16 %v3322, %v3318
    %v4567 = vpack.c.b16 %v3323, %v3319
    %v4568 = vpack.c.b16 %v3328, %v3324
    %v4569 = vpack.c.b16 %v3329, %v3325
    %v4570 = vpack.c.b16 %v3330, %v3326
    %v4571 = vpack.c.b16 %v3331, %v3327
    %v4572 = vpack.c.b16 %v3336, %v3332
    %v4573 = vpack.c.b16 %v3337, %v3333
    %v4574 = vpack.c.b16 %v3338, %v3334
    %v4575 = vpack.c.b16 %v3339, %v3335
    %v4576 = vpack.c.b16 %v3344, %v3340
    %v4577 = vpack.c.b16 %v3345, %v3341
    %v4578 = vpack.c.b16 %v3346, %v3342
    %v4579 = vpack.c.b16 %v3347, %v3343
    %v4580 = vpack.c.b16 %v3352, %v3348
    %v4581 = vpack.c.b16 %v3353, %v3349
    %v4582 = vpack.c.b16 %v3354, %v3350
    %v4583 = vpack.c.b16 %v3355, %v3351
    %v4584 = vpack.c.b16 %v3360, %v3356
    %v4585 = vpack.c.b16 %v3361, %v3357
    %v4586 = vpack.c.b16 %v3362, %v3358
    %v4587 = vpack.c.b16 %v3363, %v3359
    %v4588 = vpack.c.b16 %v3368, %v3364
    %v4589 = vpack.c.b16 %v3369, %v3365
    %v4590 = vpack.c.b16 %v3370, %v3366
    %v4591 = vpack.c.b16 %v3371, %v3367
    %v4592 = vpack.c.b16 %v3376, %v3372
    %v4593 = vpack.c.b16 %v3377, %v3373
    %v4594 = vpack.c.b16 %v3378, %v3374
    %v4595 = vpack.c.b16 %v3379, %v3375
    %v4596 = vpack.c.b16 %v3384, %v3380
    %v4597 = vpack.c.b16 %v3385, %v3381
    %v4598 = vpack.c.b16 %v3386, %v3382
    %v4599 = vpack.c.b16 %v3387, %v3383
    %v4600 = vpack.c.b16 %v3392, %v3388
    %v4601 = vpack.c.b16 %v3393, %v3389
    %v4602 = vpack.c.b16 %v3394, %v3390
    %v4603 = vpack.c.b16 %v3395, %v3391
    %v4604 = vpack.c.b16 %v3400, %v3396
    %v4605 = vpack.c.b16 %v3401, %v3397
    %v4606 = vpack.c.b16 %v3402, %v3398
    %v4607 = vpack.c.b16 %v3403, %v3399
    %v4608 = vpack.c.b16 %v3408, %v3404
    %v4609 = vpack.c.b16 %v3409, %v3405
    %v4610 = vpack.c.b16 %v3410, %v3406
    %v4611 = vpack.c.b16 %v3411, %v3407
    %v4612 = vpack.c.b16 %v3416, %v3412
    %v4613 = vpack.c.b16 %v3417, %v3413
    %v4614 = vpack.c.b16 %v3418, %v3414
    %v4615 = vpack.c.b16 %v3419, %v3415
    %v4616 = vpack.c.b16 %v3424, %v3420
    %v4617 = vpack.c.b16 %v3425, %v3421
    %v4618 = vpack.c.b16 %v3426, %v3422
    %v4619 = vpack.c.b16 %v3427, %v3423
    %v4620 = vpack.c.b16 %v3432, %v3428
    %v4621 = vpack.c.b16 %v3433, %v3429
    %v4622 = vpack.c.b16 %v3434, %v3430
    %v4623 = vpack.c.b16 %v3435, %v3431
    %v4624 = vpack.c.b16 %v3440, %v3436
    %v4625 = vpack.c.b16 %v3441, %v3437
    %v4626 = vpack.c.b16 %v3442, %v3438
    %v4627 = vpack.c.b16 %v3443, %v3439
    %v4628 = vpack.c.b16 %v3448, %v3444
    %v4629 = vpack.c.b16 %v3449, %v3445
    %v4630 = vpack.c.b16 %v3450, %v3446
    %v4631 = vpack.c.b16 %v3451, %v3447
    %v4632 = vpack.c.b16 %v3456, %v3452
    %v4633 = vpack.c.b16 %v3457, %v3453
    %v4634 = vpack.c.b16 %v3458, %v3454
    %v4635 = vpack.c.b16 %v3459, %v3455
    %v4636 = vpack.c.b16 %v3464, %v3460
    %v4637 = vpack.c.b16 %v3465, %v3461
    %v4638 = vpack.c.b16 %v3466, %v3462
    %v4639 = vpack.c.b16 %v3467, %v3463
    %v4640 = vpack.c.b16 %v3472, %v3468
    %v4641 = vpack.c.b16 %v3473, %v3469
    %v4642 = vpack.c.b16 %v3474, %v3470
    %v4643 = vpack.c.b16 %v3475, %v3471
    %v4644 = vpack.c.b16 %v3480, %v3476
    %v4645 = vpack.c.b16 %v3481, %v3477
    %v4646 = vpack.c.b16 %v3482, %v3478
    %v4647 = vpack.c.b16 %v3483, %v3479
    %v4648 = vpack.c.b16 %v3488, %v3484
    %v4649 = vpack.c.b16 %v3489, %v3485
    %v4650 = vpack.c.b16 %v3490, %v3486
    %v4651 = vpack.c.b16 %v3491, %v3487
    %v4652 = vpack.c.b16 %v3496, %v3492
    %v4653 = vpack.c.b16 %v3497, %v3493
    %v4654 = vpack.c.b16 %v3498, %v3494
    %v4655 = vpack.c.b16 %v3499, %v3495
    %v4656 = vpack.c.b16 %v3504, %v3500
    %v4657 = vpack.c.b16 %v3505, %v3501
    %v4658 = vpack.c.b16 %v3506, %v3502
    %v4659 = vpack.c.b16 %v3507, %v3503
    %v4660 = vpack.c.b16 %v3512, %v3508
    %v4661 = vpack.c.b16 %v3513, %v3509
    %v4662 = vpack.c.b16 %v3514, %v3510
    %v4663 = vpack.c.b16 %v3515, %v3511
    %v4664 = vpack.c.b16 %v3520, %v3516
    %v4665 = vpack.c.b16 %v3521, %v3517
    %v4666 = vpack.c.b16 %v3522, %v3518
    %v4667 = vpack.c.b16 %v3523, %v3519
    %v4668 = vpack.c.b16 %v3528, %v3524
    %v4669 = vpack.c.b16 %v3529, %v3525
    %v4670 = vpack.c.b16 %v3530, %v3526
    %v4671 = vpack.c.b16 %v3531, %v3527
    %v4672 = vpack.c.b16 %v3536, %v3532
    %v4673 = vpack.c.b16 %v3537, %v3533
    %v4674 = vpack.c.b16 %v3538, %v3534
    %v4675 = vpack.c.b16 %v3539, %v3535
    %v4676 = vpack.c.b16 %v3544, %v3540
    %v4677 = vpack.c.b16 %v3545, %v3541
    %v4678 = vpack.c.b16 %v3546, %v3542
    %v4679 = vpack.c.b16 %v3547, %v3543
    %v4680 = vpack.c.b16 %v3552, %v3548
    %v4681 = vpack.c.b16 %v3553, %v3549
    %v4682 = vpack.c.b16 %v3554, %v3550
    %v4683 = vpack.c.b16 %v3555, %v3551
    %v4684 = vpack.c.b16 %v3560, %v3556
    %v4685 = vpack.c.b16 %v3561, %v3557
    %v4686 = vpack.c.b16 %v3562, %v3558
    %v4687 = vpack.c.b16 %v3563, %v3559
    %v4688 = vpack.c.b16 %v3568, %v3564
    %v4689 = vpack.c.b16 %v3569, %v3565
    %v4690 = vpack.c.b16 %v3570, %v3566
    %v4691 = vpack.c.b16 %v3571, %v3567
    %v4692 = vpack.c.b16 %v3576, %v3572
    %v4693 = vpack.c.b16 %v3577, %v3573
    %v4694 = vpack.c.b16 %v3578, %v3574
    %v4695 = vpack.c.b16 %v3579, %v3575
    %v4696 = vpack.c.b16 %v3584, %v3580
    %v4697 = vpack.c.b16 %v3585, %v3581
    %v4698 = vpack.c.b16 %v3586, %v3582
    %v4699 = vpack.c.b16 %v3587, %v3583
    %v4700 = vpack.c.b16 %v3592, %v3588
    %v4701 = vpack.c.b16 %v3593, %v3589
    %v4702 = vpack.c.b16 %v3594, %v3590
    %v4703 = vpack.c.b16 %v3595, %v3591
    %v4704 = vpack.c.b16 %v3600, %v3596
    %v4705 = vpack.c.b16 %v3601, %v3597
    %v4706 = vpack.c.b16 %v3602, %v3598
    %v4707 = vpack.c.b16 %v3603, %v3599
    %v4708 = vpack.c.b16 %v3608, %v3604
    %v4709 = vpack.c.b16 %v3609, %v3605
    %v4710 = vpack.c.b16 %v3610, %v3606
    %v4711 = vpack.c.b16 %v3611, %v3607
    %v4712 = vpack.c.b16 %v3616, %v3612
    %v4713 = vpack.c.b16 %v3617, %v3613
    %v4714 = vpack.c.b16 %v3618, %v3614
    %v4715 = vpack.c.b16 %v3619, %v3615
    %v4716 = vpack.c.b16 %v3624, %v3620
    %v4717 = vpack.c.b16 %v3625, %v3621
    %v4718 = vpack.c.b16 %v3626, %v3622
    %v4719 = vpack.c.b16 %v3627, %v3623
    %v4720 = vpack.c.b16 %v3632, %v3628
    %v4721 = vpack.c.b16 %v3633, %v3629
    %v4722 = vpack.c.b16 %v3634, %v3630
    %v4723 = vpack.c.b16 %v3635, %v3631
    %v4724 = vpack.c.b16 %v3640, %v3636
    %v4725 = vpack.c.b16 %v3641, %v3637
    %v4726 = vpack.c.b16 %v3642, %v3638
    %v4727 = vpack.c.b16 %v3643, %v3639
    %v4728 = vpack.c.b16 %v3648, %v3644
    %v4729 = vpack.c.b16 %v3649, %v3645
    %v4730 = vpack.c.b16 %v3650, %v3646
    %v4731 = vpack.c.b16 %v3651, %v3647
    %v4732 = vpack.c.b16 %v3656, %v3652
    %v4733 = vpack.c.b16 %v3657, %v3653
    %v4734 = vpack.c.b16 %v3658, %v3654
    %v4735 = vpack.c.b16 %v3659, %v3655
    %v4736 = vpack.c.b16 %v3664, %v3660
    %v4737 = vpack.c.b16 %v3665, %v3661
    %v4738 = vpack.c.b16 %v3666, %v3662
    %v4739 = vpack.c.b16 %v3667, %v3663
    %v4740 = vpack.c.b16 %v3672, %v3668
    %v4741 = vpack.c.b16 %v3673, %v3669
    %v4742 = vpack.c.b16 %v3674, %v3670
    %v4743 = vpack.c.b16 %v3675, %v3671
    %v4744 = vpack.c.b16 %v3680, %v3676
    %v4745 = vpack.c.b16 %v3681, %v3677
    %v4746 = vpack.c.b16 %v3682, %v3678
    %v4747 = vpack.c.b16 %v3683, %v3679
    %v4748 = vpack.c.b16 %v3688, %v3684
    %v4749 = vpack.c.b16 %v3689, %v3685
    %v4750 = vpack.c.b16 %v3690, %v3686
    %v4751 = vpack.c.b16 %v3691, %v3687
    %v4752 = vpack.c.b16 %v3696, %v3692
    %v4753 = vpack.c.b16 %v3697, %v3693
    %v4754 = vpack.c.b16 %v3698, %v3694
    %v4755 = vpack.c.b16 %v3699, %v3695
    %v4756 = vpack.c.b16 %v3704, %v3700
    %v4757 = vpack.c.b16 %v3705, %v3701
    %v4758 = vpack.c.b16 %v3706, %v3702
    %v4759 = vpack.c.b16 %v3707, %v3703
    %v4760 = vpack.c.b16 %v3712, %v3708
    %v4761 = vpack.c.b16 %v3713, %v3709
    %v4762 = vpack.c.b16 %v3714, %v3710
    %v4763 = vpack.c.b16 %v3715, %v3711
    %v4764 = vpack.c.b16 %v3720, %v3716
    %v4765 = vpack.c.b16 %v3721, %v3717
    %v4766 = vpack.c.b16 %v3722, %v3718
    %v4767 = vpack.c.b16 %v3723, %v3719
    %v4768 = vpack.c.b16 %v3728, %v3724
    %v4769 = vpack.c.b16 %v3729, %v3725
    %v4770 = vpack.c.b16 %v3730, %v3726
    %v4771 = vpack.c.b16 %v3731, %v3727
    %v4772 = vpack.c.b16 %v3736, %v3732
    %v4773 = vpack.c.b16 %v3737, %v3733
    %v4774 = vpack.c.b16 %v3738, %v3734
    %v4775 = vpack.c.b16 %v3739, %v3735
    %v4776 = vpack.c.b16 %v3744, %v3740
    %v4777 = vpack.c.b16 %v3745, %v3741
    %v4778 = vpack.c.b16 %v3746, %v3742
    %v4779 = vpack.c.b16 %v3747, %v3743
    %v4780 = vpack.c.b16 %v3752, %v3748
    %v4781 = vpack.c.b16 %v3753, %v3749
    %v4782 = vpack.c.b16 %v3754, %v3750
    %v4783 = vpack.c.b16 %v3755, %v3751
    %v4784 = vpack.c.b16 %v3760, %v3756
    %v4785 = vpack.c.b16 %v3761, %v3757
    %v4786 = vpack.c.b16 %v3762, %v3758
    %v4787 = vpack.c.b16 %v3763, %v3759
    %v4788 = vpack.c.b16 %v3768, %v3764
    %v4789 = vpack.c.b16 %v3769, %v3765
    %v4790 = vpack.c.b16 %v3770, %v3766
    %v4791 = vpack.c.b16 %v3771, %v3767
    %v4792 = vpack.c.b16 %v3776, %v3772
    %v4793 = vpack.c.b16 %v3777, %v3773
    %v4794 = vpack.c.b16 %v3778, %v3774
    %v4795 = vpack.c.b16 %v3779, %v3775
    %v4796 = vpack.c.b16 %v3784, %v3780
    %v4797 = vpack.c.b16 %v3785, %v3781
    %v4798 = vpack.c.b16 %v3786, %v3782
    %v4799 = vpack.c.b16 %v3787, %v3783
    %v4800 = vpack.c.b16 %v3792, %v3788
    %v4801 = vpack.c.b16 %v3793, %v3789
    %v4802 = vpack.c.b16 %v3794, %v3790
    %v4803 = vpack.c.b16 %v3795, %v3791
    %v4804 = vpack.c.b16 %v3800, %v3796
    %v4805 = vpack.c.b16 %v3801, %v3797
    %v4806 = vpack.c.b16 %v3802, %v3798
    %v4807 = vpack.c.b16 %v3803, %v3799
    %v4808 = vpack.c.b16 %v3808, %v3804
    %v4809 = vpack.c.b16 %v3809, %v3805
    %v4810 = vpack.c.b16 %v3810, %v3806
    %v4811 = vpack.c.b16 %v3811, %v3807
    %v4812 = vpack.c.b16 %v3816, %v3812
    %v4813 = vpack.c.b16 %v3817, %v3813
    %v4814 = vpack.c.b16 %v3818, %v3814
    %v4815 = vpack.c.b16 %v3819, %v3815
    %v4816 = vpack.c.b16 %v3824, %v3820
    %v4817 = vpack.c.b16 %v3825, %v3821
    %v4818 = vpack.c.b16 %v3826, %v3822
    %v4819 = vpack.c.b16 %v3827, %v3823
    %v4820 = vpack.c.b16 %v3832, %v3828
    %v4821 = vpack.c.b16 %v3833, %v3829
    %v4822 = vpack.c.b16 %v3834, %v3830
    %v4823 = vpack.c.b16 %v3835, %v3831
    %v4824 = vpack.c.b16 %v3840, %v3836
    %v4825 = vpack.c.b16 %v3841, %v3837
    %v4826 = vpack.c.b16 %v3842, %v3838
    %v4827 = vpack.c.b16 %v3843, %v3839
    %v4828 = vpack.c.b16 %v3848, %v3844
    %v4829 = vpack.c.b16 %v3849, %v3845
    %v4830 = vpack.c.b16 %v3850, %v3846
    %v4831 = vpack.c.b16 %v3851, %v3847
    %v4832 = vpack.c.b16 %v3856, %v3852
    %v4833 = vpack.c.b16 %v3857, %v3853
    %v4834 = vpack.c.b16 %v3858, %v3854
    %v4835 = vpack.c.b16 %v3859, %v3855
    %v4836 = vpack.c.b16 %v3864, %v3860
    %v4837 = vpack.c.b16 %v3865, %v3861
    %v4838 = vpack.c.b16 %v3866, %v3862
    %v4839 = vpack.c.b16 %v3867, %v3863
    %v4840 = vpack.c.b16 %v3872, %v3868
    %v4841 = vpack.c.b16 %v3873, %v3869
    %v4842 = vpack.c.b16 %v3874, %v3870
    %v4843 = vpack.c.b16 %v3875, %v3871
    %v4844 = vpack.c.b16 %v3880, %v3876
    %v4845 = vpack.c.b16 %v3881, %v3877
    %v4846 = vpack.c.b16 %v3882, %v3878
    %v4847 = vpack.c.b16 %v3883, %v3879
    %v4848 = vpack.c.b16 %v3888, %v3884
    %v4849 = vpack.c.b16 %v3889, %v3885
    %v4850 = vpack.c.b16 %v3890, %v3886
    %v4851 = vpack.c.b16 %v3891, %v3887
    %v4852 = vpack.c.b16 %v3896, %v3892
    %v4853 = vpack.c.b16 %v3897, %v3893
    %v4854 = vpack.c.b16 %v3898, %v3894
    %v4855 = vpack.c.b16 %v3899, %v3895
    %v4856 = vpack.c.b16 %v3904, %v3900
    %v4857 = vpack.c.b16 %v3905, %v3901
    %v4858 = vpack.c.b16 %v3906, %v3902
    %v4859 = vpack.c.b16 %v3907, %v3903
    %v4860 = vpack.c.b16 %v3912, %v3908
    %v4861 = vpack.c.b16 %v3913, %v3909
    %v4862 = vpack.c.b16 %v3914, %v3910
    %v4863 = vpack.c.b16 %v3915, %v3911
    %v4864 = vpack.c.b16 %v3920, %v3916
    %v4865 = vpack.c.b16 %v3921, %v3917
    %v4866 = vpack.c.b16 %v3922, %v3918
    %v4867 = vpack.c.b16 %v3923, %v3919
    %v4868 = vpack.c.b16 %v3928, %v3924
    %v4869 = vpack.c.b16 %v3929, %v3925
    %v4870 = vpack.c.b16 %v3930, %v3926
    %v4871 = vpack.c.b16 %v3931, %v3927
    %v4872 = vpack.c.b16 %v3936, %v3932
    %v4873 = vpack.c.b16 %v3937, %v3933
    %v4874 = vpack.c.b16 %v3938, %v3934
    %v4875 = vpack.c.b16 %v3939, %v3935
    %v4876 = vpack.c.b16 %v3944, %v3940
    %v4877 = vpack.c.b16 %v3945, %v3941
    %v4878 = vpack.c.b16 %v3946, %v3942
    %v4879 = vpack.c.b16 %v3947, %v3943
    %v4880 = vpack.c.b16 %v3952, %v3948
    %v4881 = vpack.c.b16 %v3953, %v3949
    %v4882 = vpack.c.b16 %v3954, %v3950
    %v4883 = vpack.c.b16 %v3955, %v3951
    %5812 = vmatprep.subr.bf16.mxu0 %v3957
    %5813 = vmatpush1.bf16.msra.mxu0 %v3956
    %5814 = vmatprep.subr.bf16.mxu0 %v3961
    %5815 = vmatpush1.bf16.msra.mxu0 %v3960
    %5816 = vmatprep.subr.bf16.mxu0 %v3965
    %5817 = vmatpush1.bf16.msra.mxu0 %v3964
    %5818 = vmatprep.subr.bf16.mxu0 %v3969
    %5819 = vmatpush1.bf16.msra.mxu0 %v3968
    %5820 = vmatprep.subr.bf16.mxu0 %v3973
    %5821 = vmatpush1.bf16.msra.mxu0 %v3972
    %5822 = vmatprep.subr.bf16.mxu0 %v3977
    %5823 = vmatpush1.bf16.msra.mxu0 %v3976
    %5824 = vmatprep.subr.bf16.mxu0 %v3981
    %5825 = vmatpush1.bf16.msra.mxu0 %v3980
    %5826 = vmatprep.subr.bf16.mxu0 %v3985
    %5827 = vmatpush1.bf16.msra.mxu0 %v3984
    %5828 = vmatprep.subr.bf16.mxu0 %v3989
    %5829 = vmatpush1.bf16.msra.mxu0 %v3988
    %5830 = vmatprep.subr.bf16.mxu0 %v3993
    %5831 = vmatpush1.bf16.msra.mxu0 %v3992
    %5832 = vmatprep.subr.bf16.mxu0 %v3997
    %5833 = vmatpush1.bf16.msra.mxu0 %v3996
    %5834 = vmatprep.subr.bf16.mxu0 %v4001
    %5835 = vmatpush1.bf16.msra.mxu0 %v4000
    %5836 = vmatprep.subr.bf16.mxu0 %v4005
    %5837 = vmatpush1.bf16.msra.mxu0 %v4004
    %5838 = vmatprep.subr.bf16.mxu0 %v4009
    %5839 = vmatpush1.bf16.msra.mxu0 %v4008
    %5840 = vmatprep.subr.bf16.mxu0 %v4013
    %5841 = vmatpush1.bf16.msra.mxu0 %v4012
    %5842 = vmatprep.subr.bf16.mxu0 %v4017
    %5843 = vmatpush1.bf16.msra.mxu0 %v4016
    %5844 = vmatprep.mubr.bf16.mxu0 %v1115
    %5845 = vmatmul.mubr.bf16.gmra.mrb[0].mxu0 %v1114
    %v5846 = vpop.f32.mrb[0].mxu0
    %v5847 = vadd.f32 %v1053, %v5846
    %v5848 = vpop.f32.mrb[0].mxu0
    %v5849 = vadd.f32 %v1057, %v5848
    %v5850 = vpop.f32.mrb[0].mxu0
    %v5851 = vpop.f32.mrb[0].mxu0
    %5852 = vdwg.mxu0
    %5853 = vmatprep.subr.bf16.mxu0 %v4021
    %5854 = vmatpush1.bf16.msra.mxu0 %v4020
    %5855 = vmatprep.subr.bf16.mxu0 %v4025
    %5856 = vmatpush1.bf16.msra.mxu0 %v4024
    %5857 = vmatprep.subr.bf16.mxu0 %v4029
    %5858 = vmatpush1.bf16.msra.mxu0 %v4028
    %5859 = vmatprep.subr.bf16.mxu0 %v4033
    %5860 = vmatpush1.bf16.msra.mxu0 %v4032
    %5861 = vmatprep.subr.bf16.mxu0 %v4037
    %5862 = vmatpush1.bf16.msra.mxu0 %v4036
    %5863 = vmatprep.subr.bf16.mxu0 %v4041
    %5864 = vmatpush1.bf16.msra.mxu0 %v4040
    %5865 = vmatprep.subr.bf16.mxu0 %v4045
    %5866 = vmatpush1.bf16.msra.mxu0 %v4044
    %5867 = vmatprep.subr.bf16.mxu0 %v4049
    %5868 = vmatpush1.bf16.msra.mxu0 %v4048
    %5869 = vmatprep.subr.bf16.mxu0 %v4053
    %5870 = vmatpush1.bf16.msra.mxu0 %v4052
    %5871 = vmatprep.subr.bf16.mxu0 %v4057
    %5872 = vmatpush1.bf16.msra.mxu0 %v4056
    %5873 = vmatprep.subr.bf16.mxu0 %v4061
    %5874 = vmatpush1.bf16.msra.mxu0 %v4060
    %5875 = vmatprep.subr.bf16.mxu0 %v4065
    %5876 = vmatpush1.bf16.msra.mxu0 %v4064
    %5877 = vmatprep.subr.bf16.mxu0 %v4069
    %5878 = vmatpush1.bf16.msra.mxu0 %v4068
    %5879 = vmatprep.subr.bf16.mxu0 %v4073
    %5880 = vmatpush1.bf16.msra.mxu0 %v4072
    %5881 = vmatprep.subr.bf16.mxu0 %v4077
    %5882 = vmatpush1.bf16.msra.mxu0 %v4076
    %5883 = vmatprep.subr.bf16.mxu0 %v4081
    %5884 = vmatpush1.bf16.msra.mxu0 %v4080
    %5885 = vmatprep.mubr.bf16.mxu0 %v1117
    %5886 = vmatmul.mubr.bf16.gmra.mrb[0].mxu0 %v1116
    %v5887 = vpop.f32.mrb[0].mxu0
    %v5888 = vadd.f32 %v5847, %v5887
    %v5889 = vpop.f32.mrb[0].mxu0
    %v5890 = vadd.f32 %v5849, %v5889
    %v5891 = vpop.f32.mrb[0].mxu0
    %v5892 = vpop.f32.mrb[0].mxu0
    %5893 = vdwg.mxu0
    %5894 = vmatprep.subr.bf16.mxu0 %v4085
    %5895 = vmatpush1.bf16.msra.mxu0 %v4084
    %5896 = vmatprep.subr.bf16.mxu0 %v4089
    %5897 = vmatpush1.bf16.msra.mxu0 %v4088
    %5898 = vmatprep.subr.bf16.mxu0 %v4093
    %5899 = vmatpush1.bf16.msra.mxu0 %v4092
    %5900 = vmatprep.subr.bf16.mxu0 %v4097
    %5901 = vmatpush1.bf16.msra.mxu0 %v4096
    %5902 = vmatprep.subr.bf16.mxu0 %v4101
    %5903 = vmatpush1.bf16.msra.mxu0 %v4100
    %5904 = vmatprep.subr.bf16.mxu0 %v4105
    %5905 = vmatpush1.bf16.msra.mxu0 %v4104
    %5906 = vmatprep.subr.bf16.mxu0 %v4109
    %5907 = vmatpush1.bf16.msra.mxu0 %v4108
    %5908 = vmatprep.subr.bf16.mxu0 %v4113
    %5909 = vmatpush1.bf16.msra.mxu0 %v4112
    %5910 = vmatprep.subr.bf16.mxu0 %v4117
    %5911 = vmatpush1.bf16.msra.mxu0 %v4116
    %5912 = vmatprep.subr.bf16.mxu0 %v4121
    %5913 = vmatpush1.bf16.msra.mxu0 %v4120
    %5914 = vmatprep.subr.bf16.mxu0 %v4125
    %5915 = vmatpush1.bf16.msra.mxu0 %v4124
    %5916 = vmatprep.subr.bf16.mxu0 %v4129
    %5917 = vmatpush1.bf16.msra.mxu0 %v4128
    %5918 = vmatprep.subr.bf16.mxu0 %v4133
    %5919 = vmatpush1.bf16.msra.mxu0 %v4132
    %5920 = vmatprep.subr.bf16.mxu0 %v4137
    %5921 = vmatpush1.bf16.msra.mxu0 %v4136
    %5922 = vmatprep.subr.bf16.mxu0 %v4141
    %5923 = vmatpush1.bf16.msra.mxu0 %v4140
    %5924 = vmatprep.subr.bf16.mxu0 %v4145
    %5925 = vmatpush1.bf16.msra.mxu0 %v4144
    %5926 = vmatprep.mubr.bf16.mxu0 %v1119
    %5927 = vmatmul.mubr.bf16.gmra.mrb[0].mxu0 %v1118
    %v5928 = vpop.f32.mrb[0].mxu0
    %v5929 = vadd.f32 %v5888, %v5928
    %v5930 = vpop.f32.mrb[0].mxu0
    %v5931 = vadd.f32 %v5890, %v5930
    %v5932 = vpop.f32.mrb[0].mxu0
    %v5933 = vpop.f32.mrb[0].mxu0
    %5934 = vdwg.mxu0
    %5935 = vmatprep.subr.bf16.mxu0 %v4149
    %5936 = vmatpush1.bf16.msra.mxu0 %v4148
    %5937 = vmatprep.subr.bf16.mxu0 %v4153
    %5938 = vmatpush1.bf16.msra.mxu0 %v4152
    %5939 = vmatprep.subr.bf16.mxu0 %v4157
    %5940 = vmatpush1.bf16.msra.mxu0 %v4156
    %5941 = vmatprep.subr.bf16.mxu0 %v4161
    %5942 = vmatpush1.bf16.msra.mxu0 %v4160
    %5943 = vmatprep.subr.bf16.mxu0 %v4165
    %5944 = vmatpush1.bf16.msra.mxu0 %v4164
    %5945 = vmatprep.subr.bf16.mxu0 %v4169
    %5946 = vmatpush1.bf16.msra.mxu0 %v4168
    %5947 = vmatprep.subr.bf16.mxu0 %v4173
    %5948 = vmatpush1.bf16.msra.mxu0 %v4172
    %5949 = vmatprep.subr.bf16.mxu0 %v4177
    %5950 = vmatpush1.bf16.msra.mxu0 %v4176
    %5951 = vmatprep.subr.bf16.mxu0 %v4181
    %5952 = vmatpush1.bf16.msra.mxu0 %v4180
    %5953 = vmatprep.subr.bf16.mxu0 %v4185
    %5954 = vmatpush1.bf16.msra.mxu0 %v4184
    %5955 = vmatprep.subr.bf16.mxu0 %v4189
    %5956 = vmatpush1.bf16.msra.mxu0 %v4188
    %5957 = vmatprep.subr.bf16.mxu0 %v4193
    %5958 = vmatpush1.bf16.msra.mxu0 %v4192
    %5959 = vmatprep.subr.bf16.mxu0 %v4197
    %5960 = vmatpush1.bf16.msra.mxu0 %v4196
    %5961 = vmatprep.subr.bf16.mxu0 %v4201
    %5962 = vmatpush1.bf16.msra.mxu0 %v4200
    %5963 = vmatprep.subr.bf16.mxu0 %v4205
    %5964 = vmatpush1.bf16.msra.mxu0 %v4204
    %5965 = vmatprep.subr.bf16.mxu0 %v4209
    %5966 = vmatpush1.bf16.msra.mxu0 %v4208
    %5967 = vmatprep.mubr.bf16.mxu0 %v1121
    %5968 = vmatmul.mubr.bf16.gmra.mrb[0].mxu0 %v1120
    %v5969 = vpop.f32.mrb[0].mxu0
    %v5970 = vadd.f32 %v5929, %v5969
    %v5971 = vpop.f32.mrb[0].mxu0
    %v5972 = vadd.f32 %v5931, %v5971
    %v5973 = vpop.f32.mrb[0].mxu0
    %v5974 = vpop.f32.mrb[0].mxu0
    %5975 = vdwg.mxu0
    %5976 = vmatprep.subr.bf16.mxu0 %v4213
    %5977 = vmatpush1.bf16.msra.mxu0 %v4212
    %5978 = vmatprep.subr.bf16.mxu0 %v4217
    %5979 = vmatpush1.bf16.msra.mxu0 %v4216
    %5980 = vmatprep.subr.bf16.mxu0 %v4221
    %5981 = vmatpush1.bf16.msra.mxu0 %v4220
    %5982 = vmatprep.subr.bf16.mxu0 %v4225
    %5983 = vmatpush1.bf16.msra.mxu0 %v4224
    %5984 = vmatprep.subr.bf16.mxu0 %v4229
    %5985 = vmatpush1.bf16.msra.mxu0 %v4228
    %5986 = vmatprep.subr.bf16.mxu0 %v4233
    %5987 = vmatpush1.bf16.msra.mxu0 %v4232
    %5988 = vmatprep.subr.bf16.mxu0 %v4237
    %5989 = vmatpush1.bf16.msra.mxu0 %v4236
    %5990 = vmatprep.subr.bf16.mxu0 %v4241
    %5991 = vmatpush1.bf16.msra.mxu0 %v4240
    %5992 = vmatprep.subr.bf16.mxu0 %v4245
    %5993 = vmatpush1.bf16.msra.mxu0 %v4244
    %5994 = vmatprep.subr.bf16.mxu0 %v4249
    %5995 = vmatpush1.bf16.msra.mxu0 %v4248
    %5996 = vmatprep.subr.bf16.mxu0 %v4253
    %5997 = vmatpush1.bf16.msra.mxu0 %v4252
    %5998 = vmatprep.subr.bf16.mxu0 %v4257
    %5999 = vmatpush1.bf16.msra.mxu0 %v4256
    %6000 = vmatprep.subr.bf16.mxu0 %v4261
    %6001 = vmatpush1.bf16.msra.mxu0 %v4260
    %6002 = vmatprep.subr.bf16.mxu0 %v4265
    %6003 = vmatpush1.bf16.msra.mxu0 %v4264
    %6004 = vmatprep.subr.bf16.mxu0 %v4269
    %6005 = vmatpush1.bf16.msra.mxu0 %v4268
    %6006 = vmatprep.subr.bf16.mxu0 %v4273
    %6007 = vmatpush1.bf16.msra.mxu0 %v4272
    %6008 = vmatprep.mubr.bf16.mxu0 %v1123
    %6009 = vmatmul.mubr.bf16.gmra.mrb[0].mxu0 %v1122
    %v6010 = vpop.f32.mrb[0].mxu0
    %v6011 = vadd.f32 %v5970, %v6010
    %v6012 = vpop.f32.mrb[0].mxu0
    %v6013 = vadd.f32 %v5972, %v6012
    %v6014 = vpop.f32.mrb[0].mxu0
    %v6015 = vpop.f32.mrb[0].mxu0
    %6016 = vdwg.mxu0
    %6017 = vmatprep.subr.bf16.mxu0 %v4277
    %6018 = vmatpush1.bf16.msra.mxu0 %v4276
    %6019 = vmatprep.subr.bf16.mxu0 %v4281
    %6020 = vmatpush1.bf16.msra.mxu0 %v4280
    %6021 = vmatprep.subr.bf16.mxu0 %v4285
    %6022 = vmatpush1.bf16.msra.mxu0 %v4284
    %6023 = vmatprep.subr.bf16.mxu0 %v4289
    %6024 = vmatpush1.bf16.msra.mxu0 %v4288
    %6025 = vmatprep.subr.bf16.mxu0 %v4293
    %6026 = vmatpush1.bf16.msra.mxu0 %v4292
    %6027 = vmatprep.subr.bf16.mxu0 %v4297
    %6028 = vmatpush1.bf16.msra.mxu0 %v4296
    %6029 = vmatprep.subr.bf16.mxu0 %v4301
    %6030 = vmatpush1.bf16.msra.mxu0 %v4300
    %6031 = vmatprep.subr.bf16.mxu0 %v4305
    %6032 = vmatpush1.bf16.msra.mxu0 %v4304
    %6033 = vmatprep.subr.bf16.mxu0 %v4309
    %6034 = vmatpush1.bf16.msra.mxu0 %v4308
    %6035 = vmatprep.subr.bf16.mxu0 %v4313
    %6036 = vmatpush1.bf16.msra.mxu0 %v4312
    %6037 = vmatprep.subr.bf16.mxu0 %v4317
    %6038 = vmatpush1.bf16.msra.mxu0 %v4316
    %6039 = vmatprep.subr.bf16.mxu0 %v4321
    %6040 = vmatpush1.bf16.msra.mxu0 %v4320
    %6041 = vmatprep.subr.bf16.mxu0 %v4325
    %6042 = vmatpush1.bf16.msra.mxu0 %v4324
    %6043 = vmatprep.subr.bf16.mxu0 %v4329
    %6044 = vmatpush1.bf16.msra.mxu0 %v4328
    %6045 = vmatprep.subr.bf16.mxu0 %v4333
    %6046 = vmatpush1.bf16.msra.mxu0 %v4332
    %6047 = vmatprep.subr.bf16.mxu0 %v4337
    %6048 = vmatpush1.bf16.msra.mxu0 %v4336
    %6049 = vmatprep.mubr.bf16.mxu0 %v1125
    %6050 = vmatmul.mubr.bf16.gmra.mrb[0].mxu0 %v1124
    %v6051 = vpop.f32.mrb[0].mxu0
    %v6052 = vadd.f32 %v6011, %v6051
    %v6053 = vpop.f32.mrb[0].mxu0
    %v6054 = vadd.f32 %v6013, %v6053
    %v6055 = vpop.f32.mrb[0].mxu0
    %v6056 = vpop.f32.mrb[0].mxu0
    %6057 = vdwg.mxu0
    %6058 = vmatprep.subr.bf16.mxu0 %v4341
    %6059 = vmatpush1.bf16.msra.mxu0 %v4340
    %6060 = vmatprep.subr.bf16.mxu0 %v4345
    %6061 = vmatpush1.bf16.msra.mxu0 %v4344
    %6062 = vmatprep.subr.bf16.mxu0 %v4349
    %6063 = vmatpush1.bf16.msra.mxu0 %v4348
    %6064 = vmatprep.subr.bf16.mxu0 %v4353
    %6065 = vmatpush1.bf16.msra.mxu0 %v4352
    %6066 = vmatprep.subr.bf16.mxu0 %v4357
    %6067 = vmatpush1.bf16.msra.mxu0 %v4356
    %6068 = vmatprep.subr.bf16.mxu0 %v4361
    %6069 = vmatpush1.bf16.msra.mxu0 %v4360
    %6070 = vmatprep.subr.bf16.mxu0 %v4365
    %6071 = vmatpush1.bf16.msra.mxu0 %v4364
    %6072 = vmatprep.subr.bf16.mxu0 %v4369
    %6073 = vmatpush1.bf16.msra.mxu0 %v4368
    %6074 = vmatprep.subr.bf16.mxu0 %v4373
    %6075 = vmatpush1.bf16.msra.mxu0 %v4372
    %6076 = vmatprep.subr.bf16.mxu0 %v4377
    %6077 = vmatpush1.bf16.msra.mxu0 %v4376
    %6078 = vmatprep.subr.bf16.mxu0 %v4381
    %6079 = vmatpush1.bf16.msra.mxu0 %v4380
    %6080 = vmatprep.subr.bf16.mxu0 %v4385
    %6081 = vmatpush1.bf16.msra.mxu0 %v4384
    %6082 = vmatprep.subr.bf16.mxu0 %v4389
    %6083 = vmatpush1.bf16.msra.mxu0 %v4388
    %6084 = vmatprep.subr.bf16.mxu0 %v4393
    %6085 = vmatpush1.bf16.msra.mxu0 %v4392
    %6086 = vmatprep.subr.bf16.mxu0 %v4397
    %6087 = vmatpush1.bf16.msra.mxu0 %v4396
    %6088 = vmatprep.subr.bf16.mxu0 %v4401
    %6089 = vmatpush1.bf16.msra.mxu0 %v4400
    %6090 = vmatprep.mubr.bf16.mxu0 %v1127
    %6091 = vmatmul.mubr.bf16.gmra.mrb[0].mxu0 %v1126
    %v6092 = vpop.f32.mrb[0].mxu0
    %v6093 = vadd.f32 %v6052, %v6092
    %v6094 = vpop.f32.mrb[0].mxu0
    %v6095 = vadd.f32 %v6054, %v6094
    %v6096 = vpop.f32.mrb[0].mxu0
    %v6097 = vpop.f32.mrb[0].mxu0
    %6098 = vdwg.mxu0
    %6099 = vmatprep.subr.bf16.mxu0 %v4405
    %6100 = vmatpush1.bf16.msra.mxu0 %v4404
    %6101 = vmatprep.subr.bf16.mxu0 %v4409
    %6102 = vmatpush1.bf16.msra.mxu0 %v4408
    %6103 = vmatprep.subr.bf16.mxu0 %v4413
    %6104 = vmatpush1.bf16.msra.mxu0 %v4412
    %6105 = vmatprep.subr.bf16.mxu0 %v4417
    %6106 = vmatpush1.bf16.msra.mxu0 %v4416
    %6107 = vmatprep.subr.bf16.mxu0 %v4421
    %6108 = vmatpush1.bf16.msra.mxu0 %v4420
    %6109 = vmatprep.subr.bf16.mxu0 %v4425
    %6110 = vmatpush1.bf16.msra.mxu0 %v4424
    %6111 = vmatprep.subr.bf16.mxu0 %v4429
    %6112 = vmatpush1.bf16.msra.mxu0 %v4428
    %6113 = vmatprep.subr.bf16.mxu0 %v4433
    %6114 = vmatpush1.bf16.msra.mxu0 %v4432
    %6115 = vmatprep.subr.bf16.mxu0 %v4437
    %6116 = vmatpush1.bf16.msra.mxu0 %v4436
    %6117 = vmatprep.subr.bf16.mxu0 %v4441
    %6118 = vmatpush1.bf16.msra.mxu0 %v4440
    %6119 = vmatprep.subr.bf16.mxu0 %v4445
    %6120 = vmatpush1.bf16.msra.mxu0 %v4444
    %6121 = vmatprep.subr.bf16.mxu0 %v4449
    %6122 = vmatpush1.bf16.msra.mxu0 %v4448
    %6123 = vmatprep.subr.bf16.mxu0 %v4453
    %6124 = vmatpush1.bf16.msra.mxu0 %v4452
    %6125 = vmatprep.subr.bf16.mxu0 %v4457
    %6126 = vmatpush1.bf16.msra.mxu0 %v4456
    %6127 = vmatprep.subr.bf16.mxu0 %v4461
    %6128 = vmatpush1.bf16.msra.mxu0 %v4460
    %6129 = vmatprep.subr.bf16.mxu0 %v4465
    %6130 = vmatpush1.bf16.msra.mxu0 %v4464
    %6131 = vmatprep.mubr.bf16.mxu0 %v1129
    %6132 = vmatmul.mubr.bf16.gmra.mrb[0].mxu0 %v1128
    %v6133 = vpop.f32.mrb[0].mxu0
    %v6134 = vadd.f32 %v6093, %v6133
    %v6135 = vpop.f32.mrb[0].mxu0
    %v6136 = vadd.f32 %v6095, %v6135
    %v6137 = vpop.f32.mrb[0].mxu0
    %v6138 = vpop.f32.mrb[0].mxu0
    %6139 = vdwg.mxu0
    %6140 = vmatprep.subr.bf16.mxu0 %v4469
    %6141 = vmatpush1.bf16.msra.mxu0 %v4468
    %6142 = vmatprep.subr.bf16.mxu0 %v4473
    %6143 = vmatpush1.bf16.msra.mxu0 %v4472
    %6144 = vmatprep.subr.bf16.mxu0 %v4477
    %6145 = vmatpush1.bf16.msra.mxu0 %v4476
    %6146 = vmatprep.subr.bf16.mxu0 %v4481
    %6147 = vmatpush1.bf16.msra.mxu0 %v4480
    %6148 = vmatprep.subr.bf16.mxu0 %v4485
    %6149 = vmatpush1.bf16.msra.mxu0 %v4484
    %6150 = vmatprep.subr.bf16.mxu0 %v4489
    %6151 = vmatpush1.bf16.msra.mxu0 %v4488
    %6152 = vmatprep.subr.bf16.mxu0 %v4493
    %6153 = vmatpush1.bf16.msra.mxu0 %v4492
    %6154 = vmatprep.subr.bf16.mxu0 %v4497
    %6155 = vmatpush1.bf16.msra.mxu0 %v4496
    %6156 = vmatprep.subr.bf16.mxu0 %v4501
    %6157 = vmatpush1.bf16.msra.mxu0 %v4500
    %6158 = vmatprep.subr.bf16.mxu0 %v4505
    %6159 = vmatpush1.bf16.msra.mxu0 %v4504
    %6160 = vmatprep.subr.bf16.mxu0 %v4509
    %6161 = vmatpush1.bf16.msra.mxu0 %v4508
    %6162 = vmatprep.subr.bf16.mxu0 %v4513
    %6163 = vmatpush1.bf16.msra.mxu0 %v4512
    %6164 = vmatprep.subr.bf16.mxu0 %v4517
    %6165 = vmatpush1.bf16.msra.mxu0 %v4516
    %6166 = vmatprep.subr.bf16.mxu0 %v4521
    %6167 = vmatpush1.bf16.msra.mxu0 %v4520
    %6168 = vmatprep.subr.bf16.mxu0 %v4525
    %6169 = vmatpush1.bf16.msra.mxu0 %v4524
    %6170 = vmatprep.subr.bf16.mxu0 %v4529
    %6171 = vmatpush1.bf16.msra.mxu0 %v4528
    %6172 = vmatprep.mubr.bf16.mxu0 %v1131
    %6173 = vmatmul.mubr.bf16.gmra.mrb[0].mxu0 %v1130
    %v6174 = vpop.f32.mrb[0].mxu0
    %v6175 = vadd.f32 %v6134, %v6174
    %v6176 = vpop.f32.mrb[0].mxu0
    %v6177 = vadd.f32 %v6136, %v6176
    %v6178 = vpop.f32.mrb[0].mxu0
    %v6179 = vpop.f32.mrb[0].mxu0
    %6180 = vdwg.mxu0
    %6181 = vmatprep.subr.bf16.mxu0 %v4533
    %6182 = vmatpush1.bf16.msra.mxu0 %v4532
    %6183 = vmatprep.subr.bf16.mxu0 %v4537
    %6184 = vmatpush1.bf16.msra.mxu0 %v4536
    %6185 = vmatprep.subr.bf16.mxu0 %v4541
    %6186 = vmatpush1.bf16.msra.mxu0 %v4540
    %6187 = vmatprep.subr.bf16.mxu0 %v4545
    %6188 = vmatpush1.bf16.msra.mxu0 %v4544
    %6189 = vmatprep.subr.bf16.mxu0 %v4549
    %6190 = vmatpush1.bf16.msra.mxu0 %v4548
    %6191 = vmatprep.subr.bf16.mxu0 %v4553
    %6192 = vmatpush1.bf16.msra.mxu0 %v4552
    %6193 = vmatprep.subr.bf16.mxu0 %v4557
    %6194 = vmatpush1.bf16.msra.mxu0 %v4556
    %6195 = vmatprep.subr.bf16.mxu0 %v4561
    %6196 = vmatpush1.bf16.msra.mxu0 %v4560
    %6197 = vmatprep.subr.bf16.mxu0 %v4565
    %6198 = vmatpush1.bf16.msra.mxu0 %v4564
    %6199 = vmatprep.subr.bf16.mxu0 %v4569
    %6200 = vmatpush1.bf16.msra.mxu0 %v4568
    %6201 = vmatprep.subr.bf16.mxu0 %v4573
    %6202 = vmatpush1.bf16.msra.mxu0 %v4572
    %6203 = vmatprep.subr.bf16.mxu0 %v4577
    %6204 = vmatpush1.bf16.msra.mxu0 %v4576
    %6205 = vmatprep.subr.bf16.mxu0 %v4581
    %6206 = vmatpush1.bf16.msra.mxu0 %v4580
    %6207 = vmatprep.subr.bf16.mxu0 %v4585
    %6208 = vmatpush1.bf16.msra.mxu0 %v4584
    %6209 = vmatprep.subr.bf16.mxu0 %v4589
    %6210 = vmatpush1.bf16.msra.mxu0 %v4588
    %6211 = vmatprep.subr.bf16.mxu0 %v4593
    %6212 = vmatpush1.bf16.msra.mxu0 %v4592
    %6213 = vmatprep.mubr.bf16.mxu0 %v1133
    %6214 = vmatmul.mubr.bf16.gmra.mrb[0].mxu0 %v1132
    %v6215 = vpop.f32.mrb[0].mxu0
    %v6216 = vadd.f32 %v6175, %v6215
    %v6217 = vpop.f32.mrb[0].mxu0
    %v6218 = vadd.f32 %v6177, %v6217
    %v6219 = vpop.f32.mrb[0].mxu0
    %v6220 = vpop.f32.mrb[0].mxu0
    %6221 = vdwg.mxu0
    %6222 = vmatprep.subr.bf16.mxu0 %v4597
    %6223 = vmatpush1.bf16.msra.mxu0 %v4596
    %6224 = vmatprep.subr.bf16.mxu0 %v4601
    %6225 = vmatpush1.bf16.msra.mxu0 %v4600
    %6226 = vmatprep.subr.bf16.mxu0 %v4605
    %6227 = vmatpush1.bf16.msra.mxu0 %v4604
    %6228 = vmatprep.subr.bf16.mxu0 %v4609
    %6229 = vmatpush1.bf16.msra.mxu0 %v4608
    %6230 = vmatprep.subr.bf16.mxu0 %v4613
    %6231 = vmatpush1.bf16.msra.mxu0 %v4612
    %6232 = vmatprep.subr.bf16.mxu0 %v4617
    %6233 = vmatpush1.bf16.msra.mxu0 %v4616
    %6234 = vmatprep.subr.bf16.mxu0 %v4621
    %6235 = vmatpush1.bf16.msra.mxu0 %v4620
    %6236 = vmatprep.subr.bf16.mxu0 %v4625
    %6237 = vmatpush1.bf16.msra.mxu0 %v4624
    %6238 = vmatprep.subr.bf16.mxu0 %v4629
    %6239 = vmatpush1.bf16.msra.mxu0 %v4628
    %6240 = vmatprep.subr.bf16.mxu0 %v4633
    %6241 = vmatpush1.bf16.msra.mxu0 %v4632
    %6242 = vmatprep.subr.bf16.mxu0 %v4637
    %6243 = vmatpush1.bf16.msra.mxu0 %v4636
    %6244 = vmatprep.subr.bf16.mxu0 %v4641
    %6245 = vmatpush1.bf16.msra.mxu0 %v4640
    %6246 = vmatprep.subr.bf16.mxu0 %v4645
    %6247 = vmatpush1.bf16.msra.mxu0 %v4644
    %6248 = vmatprep.subr.bf16.mxu0 %v4649
    %6249 = vmatpush1.bf16.msra.mxu0 %v4648
    %6250 = vmatprep.subr.bf16.mxu0 %v4653
    %6251 = vmatpush1.bf16.msra.mxu0 %v4652
    %6252 = vmatprep.subr.bf16.mxu0 %v4657
    %6253 = vmatpush1.bf16.msra.mxu0 %v4656
    %6254 = vmatprep.mubr.bf16.mxu0 %v1135
    %6255 = vmatmul.mubr.bf16.gmra.mrb[0].mxu0 %v1134
    %v6256 = vpop.f32.mrb[0].mxu0
    %v6257 = vadd.f32 %v6216, %v6256
    %v6258 = vpop.f32.mrb[0].mxu0
    %v6259 = vadd.f32 %v6218, %v6258
    %v6260 = vpop.f32.mrb[0].mxu0
    %v6261 = vpop.f32.mrb[0].mxu0
    %6262 = vdwg.mxu0
    %6263 = vmatprep.subr.bf16.mxu0 %v4661
    %6264 = vmatpush1.bf16.msra.mxu0 %v4660
    %6265 = vmatprep.subr.bf16.mxu0 %v4665
    %6266 = vmatpush1.bf16.msra.mxu0 %v4664
    %6267 = vmatprep.subr.bf16.mxu0 %v4669
    %6268 = vmatpush1.bf16.msra.mxu0 %v4668
    %6269 = vmatprep.subr.bf16.mxu0 %v4673
    %6270 = vmatpush1.bf16.msra.mxu0 %v4672
    %6271 = vmatprep.subr.bf16.mxu0 %v4677
    %6272 = vmatpush1.bf16.msra.mxu0 %v4676
    %6273 = vmatprep.subr.bf16.mxu0 %v4681
    %6274 = vmatpush1.bf16.msra.mxu0 %v4680
    %6275 = vmatprep.subr.bf16.mxu0 %v4685
    %6276 = vmatpush1.bf16.msra.mxu0 %v4684
    %6277 = vmatprep.subr.bf16.mxu0 %v4689
    %6278 = vmatpush1.bf16.msra.mxu0 %v4688
    %6279 = vmatprep.subr.bf16.mxu0 %v4693
    %6280 = vmatpush1.bf16.msra.mxu0 %v4692
    %6281 = vmatprep.subr.bf16.mxu0 %v4697
    %6282 = vmatpush1.bf16.msra.mxu0 %v4696
    %6283 = vmatprep.subr.bf16.mxu0 %v4701
    %6284 = vmatpush1.bf16.msra.mxu0 %v4700
    %6285 = vmatprep.subr.bf16.mxu0 %v4705
    %6286 = vmatpush1.bf16.msra.mxu0 %v4704
    %6287 = vmatprep.subr.bf16.mxu0 %v4709
    %6288 = vmatpush1.bf16.msra.mxu0 %v4708
    %6289 = vmatprep.subr.bf16.mxu0 %v4713
    %6290 = vmatpush1.bf16.msra.mxu0 %v4712
    %6291 = vmatprep.subr.bf16.mxu0 %v4717
    %6292 = vmatpush1.bf16.msra.mxu0 %v4716
    %6293 = vmatprep.subr.bf16.mxu0 %v4721
    %6294 = vmatpush1.bf16.msra.mxu0 %v4720
    %6295 = vmatprep.mubr.bf16.mxu0 %v1137
    %6296 = vmatmul.mubr.bf16.gmra.mrb[0].mxu0 %v1136
    %v6297 = vpop.f32.mrb[0].mxu0
    %v6298 = vadd.f32 %v6257, %v6297
    %v6299 = vpop.f32.mrb[0].mxu0
    %v6300 = vadd.f32 %v6259, %v6299
    %v6301 = vpop.f32.mrb[0].mxu0
    %v6302 = vpop.f32.mrb[0].mxu0
    %6303 = vdwg.mxu0
    %6304 = vmatprep.subr.bf16.mxu0 %v4725
    %6305 = vmatpush1.bf16.msra.mxu0 %v4724
    %6306 = vmatprep.subr.bf16.mxu0 %v4729
    %6307 = vmatpush1.bf16.msra.mxu0 %v4728
    %6308 = vmatprep.subr.bf16.mxu0 %v4733
    %6309 = vmatpush1.bf16.msra.mxu0 %v4732
    %6310 = vmatprep.subr.bf16.mxu0 %v4737
    %6311 = vmatpush1.bf16.msra.mxu0 %v4736
    %6312 = vmatprep.subr.bf16.mxu0 %v4741
    %6313 = vmatpush1.bf16.msra.mxu0 %v4740
    %6314 = vmatprep.subr.bf16.mxu0 %v4745
    %6315 = vmatpush1.bf16.msra.mxu0 %v4744
    %6316 = vmatprep.subr.bf16.mxu0 %v4749
    %6317 = vmatpush1.bf16.msra.mxu0 %v4748
    %6318 = vmatprep.subr.bf16.mxu0 %v4753
    %6319 = vmatpush1.bf16.msra.mxu0 %v4752
    %6320 = vmatprep.subr.bf16.mxu0 %v4757
    %6321 = vmatpush1.bf16.msra.mxu0 %v4756
    %6322 = vmatprep.subr.bf16.mxu0 %v4761
    %6323 = vmatpush1.bf16.msra.mxu0 %v4760
    %6324 = vmatprep.subr.bf16.mxu0 %v4765
    %6325 = vmatpush1.bf16.msra.mxu0 %v4764
    %6326 = vmatprep.subr.bf16.mxu0 %v4769
    %6327 = vmatpush1.bf16.msra.mxu0 %v4768
    %6328 = vmatprep.subr.bf16.mxu0 %v4773
    %6329 = vmatpush1.bf16.msra.mxu0 %v4772
    %6330 = vmatprep.subr.bf16.mxu0 %v4777
    %6331 = vmatpush1.bf16.msra.mxu0 %v4776
    %6332 = vmatprep.subr.bf16.mxu0 %v4781
    %6333 = vmatpush1.bf16.msra.mxu0 %v4780
    %6334 = vmatprep.subr.bf16.mxu0 %v4785
    %6335 = vmatpush1.bf16.msra.mxu0 %v4784
    %6336 = vmatprep.mubr.bf16.mxu0 %v1139
    %6337 = vmatmul.mubr.bf16.gmra.mrb[0].mxu0 %v1138
    %v6338 = vpop.f32.mrb[0].mxu0
    %v6339 = vadd.f32 %v6298, %v6338
    %v6340 = vpop.f32.mrb[0].mxu0
    %v6341 = vadd.f32 %v6300, %v6340
    %v6342 = vpop.f32.mrb[0].mxu0
    %v6343 = vpop.f32.mrb[0].mxu0
    %6344 = vdwg.mxu0
    %6345 = vmatprep.subr.bf16.mxu0 %v4789
    %6346 = vmatpush1.bf16.msra.mxu0 %v4788
    %6347 = vmatprep.subr.bf16.mxu0 %v4793
    %6348 = vmatpush1.bf16.msra.mxu0 %v4792
    %6349 = vmatprep.subr.bf16.mxu0 %v4797
    %6350 = vmatpush1.bf16.msra.mxu0 %v4796
    %6351 = vmatprep.subr.bf16.mxu0 %v4801
    %6352 = vmatpush1.bf16.msra.mxu0 %v4800
    %6353 = vmatprep.subr.bf16.mxu0 %v4805
    %6354 = vmatpush1.bf16.msra.mxu0 %v4804
    %6355 = vmatprep.subr.bf16.mxu0 %v4809
    %6356 = vmatpush1.bf16.msra.mxu0 %v4808
    %6357 = vmatprep.subr.bf16.mxu0 %v4813
    %6358 = vmatpush1.bf16.msra.mxu0 %v4812
    %6359 = vmatprep.subr.bf16.mxu0 %v4817
    %6360 = vmatpush1.bf16.msra.mxu0 %v4816
    %6361 = vmatprep.subr.bf16.mxu0 %v4821
    %6362 = vmatpush1.bf16.msra.mxu0 %v4820
    %6363 = vmatprep.subr.bf16.mxu0 %v4825
    %6364 = vmatpush1.bf16.msra.mxu0 %v4824
    %6365 = vmatprep.subr.bf16.mxu0 %v4829
    %6366 = vmatpush1.bf16.msra.mxu0 %v4828
    %6367 = vmatprep.subr.bf16.mxu0 %v4833
    %6368 = vmatpush1.bf16.msra.mxu0 %v4832
    %6369 = vmatprep.subr.bf16.mxu0 %v4837
    %6370 = vmatpush1.bf16.msra.mxu0 %v4836
    %6371 = vmatprep.subr.bf16.mxu0 %v4841
    %6372 = vmatpush1.bf16.msra.mxu0 %v4840
    %6373 = vmatprep.subr.bf16.mxu0 %v4845
    %6374 = vmatpush1.bf16.msra.mxu0 %v4844
    %6375 = vmatprep.subr.bf16.mxu0 %v4849
    %6376 = vmatpush1.bf16.msra.mxu0 %v4848
    %6377 = vmatprep.mubr.bf16.mxu0 %v1141
    %6378 = vmatmul.mubr.bf16.gmra.mrb[0].mxu0 %v1140
    %v6379 = vpop.f32.mrb[0].mxu0
    %v6380 = vadd.f32 %v6339, %v6379
    %v6381 = vpop.f32.mrb[0].mxu0
    %v6382 = vadd.f32 %v6341, %v6381
    %v6383 = vpop.f32.mrb[0].mxu0
    %v6384 = vpop.f32.mrb[0].mxu0
    %6385 = vdwg.mxu0
    %6386 = vmatprep.subr.bf16.mxu0 %v4853
    %6387 = vmatpush1.bf16.msra.mxu0 %v4852
    %6388 = vmatprep.subr.bf16.mxu0 %v4857
    %6389 = vmatpush1.bf16.msra.mxu0 %v4856
    %6390 = vmatprep.subr.bf16.mxu0 %v4861
    %6391 = vmatpush1.bf16.msra.mxu0 %v4860
    %6392 = vmatprep.subr.bf16.mxu0 %v4865
    %6393 = vmatpush1.bf16.msra.mxu0 %v4864
    %6394 = vmatprep.subr.bf16.mxu0 %v4869
    %6395 = vmatpush1.bf16.msra.mxu0 %v4868
    %6396 = vmatprep.subr.bf16.mxu0 %v4873
    %6397 = vmatpush1.bf16.msra.mxu0 %v4872
    %6398 = vmatprep.subr.bf16.mxu0 %v4877
    %6399 = vmatpush1.bf16.msra.mxu0 %v4876
    %6400 = vmatprep.subr.bf16.mxu0 %v4881
    %6401 = vmatpush1.bf16.msra.mxu0 %v4880
    %6402 = vmatprep.subr.bf16.mxu0 0
    %6403 = vmatpush1.bf16.msra.mxu0 0
    %6404 = vmatprep.subr.bf16.mxu0 0
    %6405 = vmatpush1.bf16.msra.mxu0 0
    %6406 = vmatprep.subr.bf16.mxu0 0
    %6407 = vmatpush1.bf16.msra.mxu0 0
    %6408 = vmatprep.subr.bf16.mxu0 0
    %6409 = vmatpush1.bf16.msra.mxu0 0
    %6410 = vmatprep.subr.bf16.mxu0 0
    %6411 = vmatpush1.bf16.msra.mxu0 0
    %6412 = vmatprep.subr.bf16.mxu0 0
    %6413 = vmatpush1.bf16.msra.mxu0 0
    %6414 = vmatprep.subr.bf16.mxu0 0
    %6415 = vmatpush1.bf16.msra.mxu0 0
    %6416 = vmatprep.subr.bf16.mxu0 0
    %6417 = vmatpush1.bf16.msra.mxu0 0
    %6418 = vmatprep.mubr.bf16.mxu0 0
    %6419 = vmatmul.mubr.bf16.gmra.mrb[0].mxu0 %v1142
    %v6420 = vpop.f32.mrb[0].mxu0
    %v6421 = vadd.f32 %v6380, %v6420
    %v6422 = vpop.f32.mrb[0].mxu0
    %v6423 = vadd.f32 %v6382, %v6422
    %v6424 = vpop.f32.mrb[0].mxu0
    %v6425 = vpop.f32.mrb[0].mxu0
    %6426 = vdwg.mxu0
    %6427 = vmatprep.subr.bf16.mxu0 %v3959
    %6428 = vmatpush1.bf16.msra.mxu0 %v3958
    %6429 = vmatprep.subr.bf16.mxu0 %v3963
    %6430 = vmatpush1.bf16.msra.mxu0 %v3962
    %6431 = vmatprep.subr.bf16.mxu0 %v3967
    %6432 = vmatpush1.bf16.msra.mxu0 %v3966
    %6433 = vmatprep.subr.bf16.mxu0 %v3971
    %6434 = vmatpush1.bf16.msra.mxu0 %v3970
    %6435 = vmatprep.subr.bf16.mxu0 %v3975
    %6436 = vmatpush1.bf16.msra.mxu0 %v3974
    %6437 = vmatprep.subr.bf16.mxu0 %v3979
    %6438 = vmatpush1.bf16.msra.mxu0 %v3978
    %6439 = vmatprep.subr.bf16.mxu0 %v3983
    %6440 = vmatpush1.bf16.msra.mxu0 %v3982
    %6441 = vmatprep.subr.bf16.mxu0 %v3987
    %6442 = vmatpush1.bf16.msra.mxu0 %v3986
    %6443 = vmatprep.subr.bf16.mxu0 %v3991
    %6444 = vmatpush1.bf16.msra.mxu0 %v3990
    %6445 = vmatprep.subr.bf16.mxu0 %v3995
    %6446 = vmatpush1.bf16.msra.mxu0 %v3994
    %6447 = vmatprep.subr.bf16.mxu0 %v3999
    %6448 = vmatpush1.bf16.msra.mxu0 %v3998
    %6449 = vmatprep.subr.bf16.mxu0 %v4003
    %6450 = vmatpush1.bf16.msra.mxu0 %v4002
    %6451 = vmatprep.subr.bf16.mxu0 %v4007
    %6452 = vmatpush1.bf16.msra.mxu0 %v4006
    %6453 = vmatprep.subr.bf16.mxu0 %v4011
    %6454 = vmatpush1.bf16.msra.mxu0 %v4010
    %6455 = vmatprep.subr.bf16.mxu0 %v4015
    %6456 = vmatpush1.bf16.msra.mxu0 %v4014
    %6457 = vmatprep.subr.bf16.mxu0 %v4019
    %6458 = vmatpush1.bf16.msra.mxu0 %v4018
    %6459 = vmatprep.mubr.bf16.mxu0 %v1115
    %6460 = vmatmul.mubr.bf16.gmra.mrb[0].mxu0 %v1114
    %v6461 = vpop.f32.mrb[0].mxu0
    %v6462 = vadd.f32 %v1061, %v6461
    %v6463 = vpop.f32.mrb[0].mxu0
    %v6464 = vadd.f32 %v1065, %v6463
    %v6465 = vpop.f32.mrb[0].mxu0
    %v6466 = vpop.f32.mrb[0].mxu0
    %6467 = vdwg.mxu0
    %6468 = vmatprep.subr.bf16.mxu0 %v4023
    %6469 = vmatpush1.bf16.msra.mxu0 %v4022
    %6470 = vmatprep.subr.bf16.mxu0 %v4027
    %6471 = vmatpush1.bf16.msra.mxu0 %v4026
    %6472 = vmatprep.subr.bf16.mxu0 %v4031
    %6473 = vmatpush1.bf16.msra.mxu0 %v4030
    %6474 = vmatprep.subr.bf16.mxu0 %v4035
    %6475 = vmatpush1.bf16.msra.mxu0 %v4034
    %6476 = vmatprep.subr.bf16.mxu0 %v4039
    %6477 = vmatpush1.bf16.msra.mxu0 %v4038
    %6478 = vmatprep.subr.bf16.mxu0 %v4043
    %6479 = vmatpush1.bf16.msra.mxu0 %v4042
    %6480 = vmatprep.subr.bf16.mxu0 %v4047
    %6481 = vmatpush1.bf16.msra.mxu0 %v4046
    %6482 = vmatprep.subr.bf16.mxu0 %v4051
    %6483 = vmatpush1.bf16.msra.mxu0 %v4050
    %6484 = vmatprep.subr.bf16.mxu0 %v4055
    %6485 = vmatpush1.bf16.msra.mxu0 %v4054
    %6486 = vmatprep.subr.bf16.mxu0 %v4059
    %6487 = vmatpush1.bf16.msra.mxu0 %v4058
    %6488 = vmatprep.subr.bf16.mxu0 %v4063
    %6489 = vmatpush1.bf16.msra.mxu0 %v4062
    %6490 = vmatprep.subr.bf16.mxu0 %v4067
    %6491 = vmatpush1.bf16.msra.mxu0 %v4066
    %6492 = vmatprep.subr.bf16.mxu0 %v4071
    %6493 = vmatpush1.bf16.msra.mxu0 %v4070
    %6494 = vmatprep.subr.bf16.mxu0 %v4075
    %6495 = vmatpush1.bf16.msra.mxu0 %v4074
    %6496 = vmatprep.subr.bf16.mxu0 %v4079
    %6497 = vmatpush1.bf16.msra.mxu0 %v4078
    %6498 = vmatprep.subr.bf16.mxu0 %v4083
    %6499 = vmatpush1.bf16.msra.mxu0 %v4082
    %6500 = vmatprep.mubr.bf16.mxu0 %v1117
    %6501 = vmatmul.mubr.bf16.gmra.mrb[0].mxu0 %v1116
    %v6502 = vpop.f32.mrb[0].mxu0
    %v6503 = vadd.f32 %v6462, %v6502
    %v6504 = vpop.f32.mrb[0].mxu0
    %v6505 = vadd.f32 %v6464, %v6504
    %v6506 = vpop.f32.mrb[0].mxu0
    %v6507 = vpop.f32.mrb[0].mxu0
    %6508 = vdwg.mxu0
    %6509 = vmatprep.subr.bf16.mxu0 %v4087
    %6510 = vmatpush1.bf16.msra.mxu0 %v4086
    %6511 = vmatprep.subr.bf16.mxu0 %v4091
    %6512 = vmatpush1.bf16.msra.mxu0 %v4090
    %6513 = vmatprep.subr.bf16.mxu0 %v4095
    %6514 = vmatpush1.bf16.msra.mxu0 %v4094
    %6515 = vmatprep.subr.bf16.mxu0 %v4099
    %6516 = vmatpush1.bf16.msra.mxu0 %v4098
    %6517 = vmatprep.subr.bf16.mxu0 %v4103
    %6518 = vmatpush1.bf16.msra.mxu0 %v4102
    %6519 = vmatprep.subr.bf16.mxu0 %v4107
    %6520 = vmatpush1.bf16.msra.mxu0 %v4106
    %6521 = vmatprep.subr.bf16.mxu0 %v4111
    %6522 = vmatpush1.bf16.msra.mxu0 %v4110
    %6523 = vmatprep.subr.bf16.mxu0 %v4115
    %6524 = vmatpush1.bf16.msra.mxu0 %v4114
    %6525 = vmatprep.subr.bf16.mxu0 %v4119
    %6526 = vmatpush1.bf16.msra.mxu0 %v4118
    %6527 = vmatprep.subr.bf16.mxu0 %v4123
    %6528 = vmatpush1.bf16.msra.mxu0 %v4122
    %6529 = vmatprep.subr.bf16.mxu0 %v4127
    %6530 = vmatpush1.bf16.msra.mxu0 %v4126
    %6531 = vmatprep.subr.bf16.mxu0 %v4131
    %6532 = vmatpush1.bf16.msra.mxu0 %v4130
    %6533 = vmatprep.subr.bf16.mxu0 %v4135
    %6534 = vmatpush1.bf16.msra.mxu0 %v4134
    %6535 = vmatprep.subr.bf16.mxu0 %v4139
    %6536 = vmatpush1.bf16.msra.mxu0 %v4138
    %6537 = vmatprep.subr.bf16.mxu0 %v4143
    %6538 = vmatpush1.bf16.msra.mxu0 %v4142
    %6539 = vmatprep.subr.bf16.mxu0 %v4147
    %6540 = vmatpush1.bf16.msra.mxu0 %v4146
    %6541 = vmatprep.mubr.bf16.mxu0 %v1119
    %6542 = vmatmul.mubr.bf16.gmra.mrb[0].mxu0 %v1118
    %v6543 = vpop.f32.mrb[0].mxu0
    %v6544 = vadd.f32 %v6503, %v6543
    %v6545 = vpop.f32.mrb[0].mxu0
    %v6546 = vadd.f32 %v6505, %v6545
    %v6547 = vpop.f32.mrb[0].mxu0
    %v6548 = vpop.f32.mrb[0].mxu0
    %6549 = vdwg.mxu0
    %6550 = vmatprep.subr.bf16.mxu0 %v4151
    %6551 = vmatpush1.bf16.msra.mxu0 %v4150
    %6552 = vmatprep.subr.bf16.mxu0 %v4155
    %6553 = vmatpush1.bf16.msra.mxu0 %v4154
    %6554 = vmatprep.subr.bf16.mxu0 %v4159
    %6555 = vmatpush1.bf16.msra.mxu0 %v4158
    %6556 = vmatprep.subr.bf16.mxu0 %v4163
    %6557 = vmatpush1.bf16.msra.mxu0 %v4162
    %6558 = vmatprep.subr.bf16.mxu0 %v4167
    %6559 = vmatpush1.bf16.msra.mxu0 %v4166
    %6560 = vmatprep.subr.bf16.mxu0 %v4171
    %6561 = vmatpush1.bf16.msra.mxu0 %v4170
    %6562 = vmatprep.subr.bf16.mxu0 %v4175
    %6563 = vmatpush1.bf16.msra.mxu0 %v4174
    %6564 = vmatprep.subr.bf16.mxu0 %v4179
    %6565 = vmatpush1.bf16.msra.mxu0 %v4178
    %6566 = vmatprep.subr.bf16.mxu0 %v4183
    %6567 = vmatpush1.bf16.msra.mxu0 %v4182
    %6568 = vmatprep.subr.bf16.mxu0 %v4187
    %6569 = vmatpush1.bf16.msra.mxu0 %v4186
    %6570 = vmatprep.subr.bf16.mxu0 %v4191
    %6571 = vmatpush1.bf16.msra.mxu0 %v4190
    %6572 = vmatprep.subr.bf16.mxu0 %v4195
    %6573 = vmatpush1.bf16.msra.mxu0 %v4194
    %6574 = vmatprep.subr.bf16.mxu0 %v4199
    %6575 = vmatpush1.bf16.msra.mxu0 %v4198
    %6576 = vmatprep.subr.bf16.mxu0 %v4203
    %6577 = vmatpush1.bf16.msra.mxu0 %v4202
    %6578 = vmatprep.subr.bf16.mxu0 %v4207
    %6579 = vmatpush1.bf16.msra.mxu0 %v4206
    %6580 = vmatprep.subr.bf16.mxu0 %v4211
    %6581 = vmatpush1.bf16.msra.mxu0 %v4210
    %6582 = vmatprep.mubr.bf16.mxu0 %v1121
    %6583 = vmatmul.mubr.bf16.gmra.mrb[0].mxu0 %v1120
    %v6584 = vpop.f32.mrb[0].mxu0
    %v6585 = vadd.f32 %v6544, %v6584
    %v6586 = vpop.f32.mrb[0].mxu0
    %v6587 = vadd.f32 %v6546, %v6586
    %v6588 = vpop.f32.mrb[0].mxu0
    %v6589 = vpop.f32.mrb[0].mxu0
    %6590 = vdwg.mxu0
    %6591 = vmatprep.subr.bf16.mxu0 %v4215
    %6592 = vmatpush1.bf16.msra.mxu0 %v4214
    %6593 = vmatprep.subr.bf16.mxu0 %v4219
    %6594 = vmatpush1.bf16.msra.mxu0 %v4218
    %6595 = vmatprep.subr.bf16.mxu0 %v4223
    %6596 = vmatpush1.bf16.msra.mxu0 %v4222
    %6597 = vmatprep.subr.bf16.mxu0 %v4227
    %6598 = vmatpush1.bf16.msra.mxu0 %v4226
    %6599 = vmatprep.subr.bf16.mxu0 %v4231
    %6600 = vmatpush1.bf16.msra.mxu0 %v4230
    %6601 = vmatprep.subr.bf16.mxu0 %v4235
    %6602 = vmatpush1.bf16.msra.mxu0 %v4234
    %6603 = vmatprep.subr.bf16.mxu0 %v4239
    %6604 = vmatpush1.bf16.msra.mxu0 %v4238
    %6605 = vmatprep.subr.bf16.mxu0 %v4243
    %6606 = vmatpush1.bf16.msra.mxu0 %v4242
    %6607 = vmatprep.subr.bf16.mxu0 %v4247
    %6608 = vmatpush1.bf16.msra.mxu0 %v4246
    %6609 = vmatprep.subr.bf16.mxu0 %v4251
    %6610 = vmatpush1.bf16.msra.mxu0 %v4250
    %6611 = vmatprep.subr.bf16.mxu0 %v4255
    %6612 = vmatpush1.bf16.msra.mxu0 %v4254
    %6613 = vmatprep.subr.bf16.mxu0 %v4259
    %6614 = vmatpush1.bf16.msra.mxu0 %v4258
    %6615 = vmatprep.subr.bf16.mxu0 %v4263
    %6616 = vmatpush1.bf16.msra.mxu0 %v4262
    %6617 = vmatprep.subr.bf16.mxu0 %v4267
    %6618 = vmatpush1.bf16.msra.mxu0 %v4266
    %6619 = vmatprep.subr.bf16.mxu0 %v4271
    %6620 = vmatpush1.bf16.msra.mxu0 %v4270
    %6621 = vmatprep.subr.bf16.mxu0 %v4275
    %6622 = vmatpush1.bf16.msra.mxu0 %v4274
    %6623 = vmatprep.mubr.bf16.mxu0 %v1123
    %6624 = vmatmul.mubr.bf16.gmra.mrb[0].mxu0 %v1122
    %v6625 = vpop.f32.mrb[0].mxu0
    %v6626 = vadd.f32 %v6585, %v6625
    %v6627 = vpop.f32.mrb[0].mxu0
    %v6628 = vadd.f32 %v6587, %v6627
    %v6629 = vpop.f32.mrb[0].mxu0
    %v6630 = vpop.f32.mrb[0].mxu0
    %6631 = vdwg.mxu0
    %6632 = vmatprep.subr.bf16.mxu0 %v4279
    %6633 = vmatpush1.bf16.msra.mxu0 %v4278
    %6634 = vmatprep.subr.bf16.mxu0 %v4283
    %6635 = vmatpush1.bf16.msra.mxu0 %v4282
    %6636 = vmatprep.subr.bf16.mxu0 %v4287
    %6637 = vmatpush1.bf16.msra.mxu0 %v4286
    %6638 = vmatprep.subr.bf16.mxu0 %v4291
    %6639 = vmatpush1.bf16.msra.mxu0 %v4290
    %6640 = vmatprep.subr.bf16.mxu0 %v4295
    %6641 = vmatpush1.bf16.msra.mxu0 %v4294
    %6642 = vmatprep.subr.bf16.mxu0 %v4299
    %6643 = vmatpush1.bf16.msra.mxu0 %v4298
    %6644 = vmatprep.subr.bf16.mxu0 %v4303
    %6645 = vmatpush1.bf16.msra.mxu0 %v4302
    %6646 = vmatprep.subr.bf16.mxu0 %v4307
    %6647 = vmatpush1.bf16.msra.mxu0 %v4306
    %6648 = vmatprep.subr.bf16.mxu0 %v4311
    %6649 = vmatpush1.bf16.msra.mxu0 %v4310
    %6650 = vmatprep.subr.bf16.mxu0 %v4315
    %6651 = vmatpush1.bf16.msra.mxu0 %v4314
    %6652 = vmatprep.subr.bf16.mxu0 %v4319
    %6653 = vmatpush1.bf16.msra.mxu0 %v4318
    %6654 = vmatprep.subr.bf16.mxu0 %v4323
    %6655 = vmatpush1.bf16.msra.mxu0 %v4322
    %6656 = vmatprep.subr.bf16.mxu0 %v4327
    %6657 = vmatpush1.bf16.msra.mxu0 %v4326
    %6658 = vmatprep.subr.bf16.mxu0 %v4331
    %6659 = vmatpush1.bf16.msra.mxu0 %v4330
    %6660 = vmatprep.subr.bf16.mxu0 %v4335
    %6661 = vmatpush1.bf16.msra.mxu0 %v4334
    %6662 = vmatprep.subr.bf16.mxu0 %v4339
    %6663 = vmatpush1.bf16.msra.mxu0 %v4338
    %6664 = vmatprep.mubr.bf16.mxu0 %v1125
    %6665 = vmatmul.mubr.bf16.gmra.mrb[0].mxu0 %v1124
    %v6666 = vpop.f32.mrb[0].mxu0
    %v6667 = vadd.f32 %v6626, %v6666
    %v6668 = vpop.f32.mrb[0].mxu0
    %v6669 = vadd.f32 %v6628, %v6668
    %v6670 = vpop.f32.mrb[0].mxu0
    %v6671 = vpop.f32.mrb[0].mxu0
    %6672 = vdwg.mxu0
    %6673 = vmatprep.subr.bf16.mxu0 %v4343
    %6674 = vmatpush1.bf16.msra.mxu0 %v4342
    %6675 = vmatprep.subr.bf16.mxu0 %v4347
    %6676 = vmatpush1.bf16.msra.mxu0 %v4346
    %6677 = vmatprep.subr.bf16.mxu0 %v4351
    %6678 = vmatpush1.bf16.msra.mxu0 %v4350
    %6679 = vmatprep.subr.bf16.mxu0 %v4355
    %6680 = vmatpush1.bf16.msra.mxu0 %v4354
    %6681 = vmatprep.subr.bf16.mxu0 %v4359
    %6682 = vmatpush1.bf16.msra.mxu0 %v4358
    %6683 = vmatprep.subr.bf16.mxu0 %v4363
    %6684 = vmatpush1.bf16.msra.mxu0 %v4362
    %6685 = vmatprep.subr.bf16.mxu0 %v4367
    %6686 = vmatpush1.bf16.msra.mxu0 %v4366
    %6687 = vmatprep.subr.bf16.mxu0 %v4371
    %6688 = vmatpush1.bf16.msra.mxu0 %v4370
    %6689 = vmatprep.subr.bf16.mxu0 %v4375
    %6690 = vmatpush1.bf16.msra.mxu0 %v4374
    %6691 = vmatprep.subr.bf16.mxu0 %v4379
    %6692 = vmatpush1.bf16.msra.mxu0 %v4378
    %6693 = vmatprep.subr.bf16.mxu0 %v4383
    %6694 = vmatpush1.bf16.msra.mxu0 %v4382
    %6695 = vmatprep.subr.bf16.mxu0 %v4387
    %6696 = vmatpush1.bf16.msra.mxu0 %v4386
    %6697 = vmatprep.subr.bf16.mxu0 %v4391
    %6698 = vmatpush1.bf16.msra.mxu0 %v4390
    %6699 = vmatprep.subr.bf16.mxu0 %v4395
    %6700 = vmatpush1.bf16.msra.mxu0 %v4394
    %6701 = vmatprep.subr.bf16.mxu0 %v4399
    %6702 = vmatpush1.bf16.msra.mxu0 %v4398
    %6703 = vmatprep.subr.bf16.mxu0 %v4403
    %6704 = vmatpush1.bf16.msra.mxu0 %v4402
    %6705 = vmatprep.mubr.bf16.mxu0 %v1127
    %6706 = vmatmul.mubr.bf16.gmra.mrb[0].mxu0 %v1126
    %v6707 = vpop.f32.mrb[0].mxu0
    %v6708 = vadd.f32 %v6667, %v6707
    %v6709 = vpop.f32.mrb[0].mxu0
    %v6710 = vadd.f32 %v6669, %v6709
    %v6711 = vpop.f32.mrb[0].mxu0
    %v6712 = vpop.f32.mrb[0].mxu0
    %6713 = vdwg.mxu0
    %6714 = vmatprep.subr.bf16.mxu0 %v4407
    %6715 = vmatpush1.bf16.msra.mxu0 %v4406
    %6716 = vmatprep.subr.bf16.mxu0 %v4411
    %6717 = vmatpush1.bf16.msra.mxu0 %v4410
    %6718 = vmatprep.subr.bf16.mxu0 %v4415
    %6719 = vmatpush1.bf16.msra.mxu0 %v4414
    %6720 = vmatprep.subr.bf16.mxu0 %v4419
    %6721 = vmatpush1.bf16.msra.mxu0 %v4418
    %6722 = vmatprep.subr.bf16.mxu0 %v4423
    %6723 = vmatpush1.bf16.msra.mxu0 %v4422
    %6724 = vmatprep.subr.bf16.mxu0 %v4427
    %6725 = vmatpush1.bf16.msra.mxu0 %v4426
    %6726 = vmatprep.subr.bf16.mxu0 %v4431
    %6727 = vmatpush1.bf16.msra.mxu0 %v4430
    %6728 = vmatprep.subr.bf16.mxu0 %v4435
    %6729 = vmatpush1.bf16.msra.mxu0 %v4434
    %6730 = vmatprep.subr.bf16.mxu0 %v4439
    %6731 = vmatpush1.bf16.msra.mxu0 %v4438
    %6732 = vmatprep.subr.bf16.mxu0 %v4443
    %6733 = vmatpush1.bf16.msra.mxu0 %v4442
    %6734 = vmatprep.subr.bf16.mxu0 %v4447
    %6735 = vmatpush1.bf16.msra.mxu0 %v4446
    %6736 = vmatprep.subr.bf16.mxu0 %v4451
    %6737 = vmatpush1.bf16.msra.mxu0 %v4450
    %6738 = vmatprep.subr.bf16.mxu0 %v4455
    %6739 = vmatpush1.bf16.msra.mxu0 %v4454
    %6740 = vmatprep.subr.bf16.mxu0 %v4459
    %6741 = vmatpush1.bf16.msra.mxu0 %v4458
    %6742 = vmatprep.subr.bf16.mxu0 %v4463
    %6743 = vmatpush1.bf16.msra.mxu0 %v4462
    %6744 = vmatprep.subr.bf16.mxu0 %v4467
    %6745 = vmatpush1.bf16.msra.mxu0 %v4466
    %6746 = vmatprep.mubr.bf16.mxu0 %v1129
    %6747 = vmatmul.mubr.bf16.gmra.mrb[0].mxu0 %v1128
    %v6748 = vpop.f32.mrb[0].mxu0
    %v6749 = vadd.f32 %v6708, %v6748
    %v6750 = vpop.f32.mrb[0].mxu0
    %v6751 = vadd.f32 %v6710, %v6750
    %v6752 = vpop.f32.mrb[0].mxu0
    %v6753 = vpop.f32.mrb[0].mxu0
    %6754 = vdwg.mxu0
    %6755 = vmatprep.subr.bf16.mxu0 %v4471
    %6756 = vmatpush1.bf16.msra.mxu0 %v4470
    %6757 = vmatprep.subr.bf16.mxu0 %v4475
    %6758 = vmatpush1.bf16.msra.mxu0 %v4474
    %6759 = vmatprep.subr.bf16.mxu0 %v4479
    %6760 = vmatpush1.bf16.msra.mxu0 %v4478
    %6761 = vmatprep.subr.bf16.mxu0 %v4483
    %6762 = vmatpush1.bf16.msra.mxu0 %v4482
    %6763 = vmatprep.subr.bf16.mxu0 %v4487
    %6764 = vmatpush1.bf16.msra.mxu0 %v4486
    %6765 = vmatprep.subr.bf16.mxu0 %v4491
    %6766 = vmatpush1.bf16.msra.mxu0 %v4490
    %6767 = vmatprep.subr.bf16.mxu0 %v4495
    %6768 = vmatpush1.bf16.msra.mxu0 %v4494
    %6769 = vmatprep.subr.bf16.mxu0 %v4499
    %6770 = vmatpush1.bf16.msra.mxu0 %v4498
    %6771 = vmatprep.subr.bf16.mxu0 %v4503
    %6772 = vmatpush1.bf16.msra.mxu0 %v4502
    %6773 = vmatprep.subr.bf16.mxu0 %v4507
    %6774 = vmatpush1.bf16.msra.mxu0 %v4506
    %6775 = vmatprep.subr.bf16.mxu0 %v4511
    %6776 = vmatpush1.bf16.msra.mxu0 %v4510
    %6777 = vmatprep.subr.bf16.mxu0 %v4515
    %6778 = vmatpush1.bf16.msra.mxu0 %v4514
    %6779 = vmatprep.subr.bf16.mxu0 %v4519
    %6780 = vmatpush1.bf16.msra.mxu0 %v4518
    %6781 = vmatprep.subr.bf16.mxu0 %v4523
    %6782 = vmatpush1.bf16.msra.mxu0 %v4522
    %6783 = vmatprep.subr.bf16.mxu0 %v4527
    %6784 = vmatpush1.bf16.msra.mxu0 %v4526
    %6785 = vmatprep.subr.bf16.mxu0 %v4531
    %6786 = vmatpush1.bf16.msra.mxu0 %v4530
    %6787 = vmatprep.mubr.bf16.mxu0 %v1131
    %6788 = vmatmul.mubr.bf16.gmra.mrb[0].mxu0 %v1130
    %v6789 = vpop.f32.mrb[0].mxu0
    %v6790 = vadd.f32 %v6749, %v6789
    %v6791 = vpop.f32.mrb[0].mxu0
    %v6792 = vadd.f32 %v6751, %v6791
    %v6793 = vpop.f32.mrb[0].mxu0
    %v6794 = vpop.f32.mrb[0].mxu0
    %6795 = vdwg.mxu0
    %6796 = vmatprep.subr.bf16.mxu0 %v4535
    %6797 = vmatpush1.bf16.msra.mxu0 %v4534
    %6798 = vmatprep.subr.bf16.mxu0 %v4539
    %6799 = vmatpush1.bf16.msra.mxu0 %v4538
    %6800 = vmatprep.subr.bf16.mxu0 %v4543
    %6801 = vmatpush1.bf16.msra.mxu0 %v4542
    %6802 = vmatprep.subr.bf16.mxu0 %v4547
    %6803 = vmatpush1.bf16.msra.mxu0 %v4546
    %6804 = vmatprep.subr.bf16.mxu0 %v4551
    %6805 = vmatpush1.bf16.msra.mxu0 %v4550
    %6806 = vmatprep.subr.bf16.mxu0 %v4555
    %6807 = vmatpush1.bf16.msra.mxu0 %v4554
    %6808 = vmatprep.subr.bf16.mxu0 %v4559
    %6809 = vmatpush1.bf16.msra.mxu0 %v4558
    %6810 = vmatprep.subr.bf16.mxu0 %v4563
    %6811 = vmatpush1.bf16.msra.mxu0 %v4562
    %6812 = vmatprep.subr.bf16.mxu0 %v4567
    %6813 = vmatpush1.bf16.msra.mxu0 %v4566
    %6814 = vmatprep.subr.bf16.mxu0 %v4571
    %6815 = vmatpush1.bf16.msra.mxu0 %v4570
    %6816 = vmatprep.subr.bf16.mxu0 %v4575
    %6817 = vmatpush1.bf16.msra.mxu0 %v4574
    %6818 = vmatprep.subr.bf16.mxu0 %v4579
    %6819 = vmatpush1.bf16.msra.mxu0 %v4578
    %6820 = vmatprep.subr.bf16.mxu0 %v4583
    %6821 = vmatpush1.bf16.msra.mxu0 %v4582
    %6822 = vmatprep.subr.bf16.mxu0 %v4587
    %6823 = vmatpush1.bf16.msra.mxu0 %v4586
    %6824 = vmatprep.subr.bf16.mxu0 %v4591
    %6825 = vmatpush1.bf16.msra.mxu0 %v4590
    %6826 = vmatprep.subr.bf16.mxu0 %v4595
    %6827 = vmatpush1.bf16.msra.mxu0 %v4594
    %6828 = vmatprep.mubr.bf16.mxu0 %v1133
    %6829 = vmatmul.mubr.bf16.gmra.mrb[0].mxu0 %v1132
    %v6830 = vpop.f32.mrb[0].mxu0
    %v6831 = vadd.f32 %v6790, %v6830
    %v6832 = vpop.f32.mrb[0].mxu0
    %v6833 = vadd.f32 %v6792, %v6832
    %v6834 = vpop.f32.mrb[0].mxu0
    %v6835 = vpop.f32.mrb[0].mxu0
    %6836 = vdwg.mxu0
    %6837 = vmatprep.subr.bf16.mxu0 %v4599
    %6838 = vmatpush1.bf16.msra.mxu0 %v4598
    %6839 = vmatprep.subr.bf16.mxu0 %v4603
    %6840 = vmatpush1.bf16.msra.mxu0 %v4602
    %6841 = vmatprep.subr.bf16.mxu0 %v4607
    %6842 = vmatpush1.bf16.msra.mxu0 %v4606
    %6843 = vmatprep.subr.bf16.mxu0 %v4611
    %6844 = vmatpush1.bf16.msra.mxu0 %v4610
    %6845 = vmatprep.subr.bf16.mxu0 %v4615
    %6846 = vmatpush1.bf16.msra.mxu0 %v4614
    %6847 = vmatprep.subr.bf16.mxu0 %v4619
    %6848 = vmatpush1.bf16.msra.mxu0 %v4618
    %6849 = vmatprep.subr.bf16.mxu0 %v4623
    %6850 = vmatpush1.bf16.msra.mxu0 %v4622
    %6851 = vmatprep.subr.bf16.mxu0 %v4627
    %6852 = vmatpush1.bf16.msra.mxu0 %v4626
    %6853 = vmatprep.subr.bf16.mxu0 %v4631
    %6854 = vmatpush1.bf16.msra.mxu0 %v4630
    %6855 = vmatprep.subr.bf16.mxu0 %v4635
    %6856 = vmatpush1.bf16.msra.mxu0 %v4634
    %6857 = vmatprep.subr.bf16.mxu0 %v4639
    %6858 = vmatpush1.bf16.msra.mxu0 %v4638
    %6859 = vmatprep.subr.bf16.mxu0 %v4643
    %6860 = vmatpush1.bf16.msra.mxu0 %v4642
    %6861 = vmatprep.subr.bf16.mxu0 %v4647
    %6862 = vmatpush1.bf16.msra.mxu0 %v4646
    %6863 = vmatprep.subr.bf16.mxu0 %v4651
    %6864 = vmatpush1.bf16.msra.mxu0 %v4650
    %6865 = vmatprep.subr.bf16.mxu0 %v4655
    %6866 = vmatpush1.bf16.msra.mxu0 %v4654
    %6867 = vmatprep.subr.bf16.mxu0 %v4659
    %6868 = vmatpush1.bf16.msra.mxu0 %v4658
    %6869 = vmatprep.mubr.bf16.mxu0 %v1135
    %6870 = vmatmul.mubr.bf16.gmra.mrb[0].mxu0 %v1134
    %v6871 = vpop.f32.mrb[0].mxu0
    %v6872 = vadd.f32 %v6831, %v6871
    %v6873 = vpop.f32.mrb[0].mxu0
    %v6874 = vadd.f32 %v6833, %v6873
    %v6875 = vpop.f32.mrb[0].mxu0
    %v6876 = vpop.f32.mrb[0].mxu0
    %6877 = vdwg.mxu0
    %6878 = vmatprep.subr.bf16.mxu0 %v4663
    %6879 = vmatpush1.bf16.msra.mxu0 %v4662
    %6880 = vmatprep.subr.bf16.mxu0 %v4667
    %6881 = vmatpush1.bf16.msra.mxu0 %v4666
    %6882 = vmatprep.subr.bf16.mxu0 %v4671
    %6883 = vmatpush1.bf16.msra.mxu0 %v4670
    %6884 = vmatprep.subr.bf16.mxu0 %v4675
    %6885 = vmatpush1.bf16.msra.mxu0 %v4674
    %6886 = vmatprep.subr.bf16.mxu0 %v4679
    %6887 = vmatpush1.bf16.msra.mxu0 %v4678
    %6888 = vmatprep.subr.bf16.mxu0 %v4683
    %6889 = vmatpush1.bf16.msra.mxu0 %v4682
    %6890 = vmatprep.subr.bf16.mxu0 %v4687
    %6891 = vmatpush1.bf16.msra.mxu0 %v4686
    %6892 = vmatprep.subr.bf16.mxu0 %v4691
    %6893 = vmatpush1.bf16.msra.mxu0 %v4690
    %6894 = vmatprep.subr.bf16.mxu0 %v4695
    %6895 = vmatpush1.bf16.msra.mxu0 %v4694
    %6896 = vmatprep.subr.bf16.mxu0 %v4699
    %6897 = vmatpush1.bf16.msra.mxu0 %v4698
    %6898 = vmatprep.subr.bf16.mxu0 %v4703
    %6899 = vmatpush1.bf16.msra.mxu0 %v4702
    %6900 = vmatprep.subr.bf16.mxu0 %v4707
    %6901 = vmatpush1.bf16.msra.mxu0 %v4706
    %6902 = vmatprep.subr.bf16.mxu0 %v4711
    %6903 = vmatpush1.bf16.msra.mxu0 %v4710
    %6904 = vmatprep.subr.bf16.mxu0 %v4715
    %6905 = vmatpush1.bf16.msra.mxu0 %v4714
    %6906 = vmatprep.subr.bf16.mxu0 %v4719
    %6907 = vmatpush1.bf16.msra.mxu0 %v4718
    %6908 = vmatprep.subr.bf16.mxu0 %v4723
    %6909 = vmatpush1.bf16.msra.mxu0 %v4722
    %6910 = vmatprep.mubr.bf16.mxu0 %v1137
    %6911 = vmatmul.mubr.bf16.gmra.mrb[0].mxu0 %v1136
    %v6912 = vpop.f32.mrb[0].mxu0
    %v6913 = vadd.f32 %v6872, %v6912
    %v6914 = vpop.f32.mrb[0].mxu0
    %v6915 = vadd.f32 %v6874, %v6914
    %v6916 = vpop.f32.mrb[0].mxu0
    %v6917 = vpop.f32.mrb[0].mxu0
    %6918 = vdwg.mxu0
    %6919 = vmatprep.subr.bf16.mxu0 %v4727
    %6920 = vmatpush1.bf16.msra.mxu0 %v4726
    %6921 = vmatprep.subr.bf16.mxu0 %v4731
    %6922 = vmatpush1.bf16.msra.mxu0 %v4730
    %6923 = vmatprep.subr.bf16.mxu0 %v4735
    %6924 = vmatpush1.bf16.msra.mxu0 %v4734
    %6925 = vmatprep.subr.bf16.mxu0 %v4739
    %6926 = vmatpush1.bf16.msra.mxu0 %v4738
    %6927 = vmatprep.subr.bf16.mxu0 %v4743
    %6928 = vmatpush1.bf16.msra.mxu0 %v4742
    %6929 = vmatprep.subr.bf16.mxu0 %v4747
    %6930 = vmatpush1.bf16.msra.mxu0 %v4746
    %6931 = vmatprep.subr.bf16.mxu0 %v4751
    %6932 = vmatpush1.bf16.msra.mxu0 %v4750
    %6933 = vmatprep.subr.bf16.mxu0 %v4755
    %6934 = vmatpush1.bf16.msra.mxu0 %v4754
    %6935 = vmatprep.subr.bf16.mxu0 %v4759
    %6936 = vmatpush1.bf16.msra.mxu0 %v4758
    %6937 = vmatprep.subr.bf16.mxu0 %v4763
    %6938 = vmatpush1.bf16.msra.mxu0 %v4762
    %6939 = vmatprep.subr.bf16.mxu0 %v4767
    %6940 = vmatpush1.bf16.msra.mxu0 %v4766
    %6941 = vmatprep.subr.bf16.mxu0 %v4771
    %6942 = vmatpush1.bf16.msra.mxu0 %v4770
    %6943 = vmatprep.subr.bf16.mxu0 %v4775
    %6944 = vmatpush1.bf16.msra.mxu0 %v4774
    %6945 = vmatprep.subr.bf16.mxu0 %v4779
    %6946 = vmatpush1.bf16.msra.mxu0 %v4778
    %6947 = vmatprep.subr.bf16.mxu0 %v4783
    %6948 = vmatpush1.bf16.msra.mxu0 %v4782
    %6949 = vmatprep.subr.bf16.mxu0 %v4787
    %6950 = vmatpush1.bf16.msra.mxu0 %v4786
    %6951 = vmatprep.mubr.bf16.mxu0 %v1139
    %6952 = vmatmul.mubr.bf16.gmra.mrb[0].mxu0 %v1138
    %v6953 = vpop.f32.mrb[0].mxu0
    %v6954 = vadd.f32 %v6913, %v6953
    %v6955 = vpop.f32.mrb[0].mxu0
    %v6956 = vadd.f32 %v6915, %v6955
    %v6957 = vpop.f32.mrb[0].mxu0
    %v6958 = vpop.f32.mrb[0].mxu0
    %6959 = vdwg.mxu0
    %6960 = vmatprep.subr.bf16.mxu0 %v4791
    %6961 = vmatpush1.bf16.msra.mxu0 %v4790
    %6962 = vmatprep.subr.bf16.mxu0 %v4795
    %6963 = vmatpush1.bf16.msra.mxu0 %v4794
    %6964 = vmatprep.subr.bf16.mxu0 %v4799
    %6965 = vmatpush1.bf16.msra.mxu0 %v4798
    %6966 = vmatprep.subr.bf16.mxu0 %v4803
    %6967 = vmatpush1.bf16.msra.mxu0 %v4802
    %6968 = vmatprep.subr.bf16.mxu0 %v4807
    %6969 = vmatpush1.bf16.msra.mxu0 %v4806
    %6970 = vmatprep.subr.bf16.mxu0 %v4811
    %6971 = vmatpush1.bf16.msra.mxu0 %v4810
    %6972 = vmatprep.subr.bf16.mxu0 %v4815
    %6973 = vmatpush1.bf16.msra.mxu0 %v4814
    %6974 = vmatprep.subr.bf16.mxu0 %v4819
    %6975 = vmatpush1.bf16.msra.mxu0 %v4818
    %6976 = vmatprep.subr.bf16.mxu0 %v4823
    %6977 = vmatpush1.bf16.msra.mxu0 %v4822
    %6978 = vmatprep.subr.bf16.mxu0 %v4827
    %6979 = vmatpush1.bf16.msra.mxu0 %v4826
    %6980 = vmatprep.subr.bf16.mxu0 %v4831
    %6981 = vmatpush1.bf16.msra.mxu0 %v4830
    %6982 = vmatprep.subr.bf16.mxu0 %v4835
    %6983 = vmatpush1.bf16.msra.mxu0 %v4834
    %6984 = vmatprep.subr.bf16.mxu0 %v4839
    %6985 = vmatpush1.bf16.msra.mxu0 %v4838
    %6986 = vmatprep.subr.bf16.mxu0 %v4843
    %6987 = vmatpush1.bf16.msra.mxu0 %v4842
    %6988 = vmatprep.subr.bf16.mxu0 %v4847
    %6989 = vmatpush1.bf16.msra.mxu0 %v4846
    %6990 = vmatprep.subr.bf16.mxu0 %v4851
    %6991 = vmatpush1.bf16.msra.mxu0 %v4850
    %6992 = vmatprep.mubr.bf16.mxu0 %v1141
    %6993 = vmatmul.mubr.bf16.gmra.mrb[0].mxu0 %v1140
    %v6994 = vpop.f32.mrb[0].mxu0
    %v6995 = vadd.f32 %v6954, %v6994
    %v6996 = vpop.f32.mrb[0].mxu0
    %v6997 = vadd.f32 %v6956, %v6996
    %v6998 = vpop.f32.mrb[0].mxu0
    %v6999 = vpop.f32.mrb[0].mxu0
    %7000 = vdwg.mxu0
    %7001 = vmatprep.subr.bf16.mxu0 %v4855
    %7002 = vmatpush1.bf16.msra.mxu0 %v4854
    %7003 = vmatprep.subr.bf16.mxu0 %v4859
    %7004 = vmatpush1.bf16.msra.mxu0 %v4858
    %7005 = vmatprep.subr.bf16.mxu0 %v4863
    %7006 = vmatpush1.bf16.msra.mxu0 %v4862
    %7007 = vmatprep.subr.bf16.mxu0 %v4867
    %7008 = vmatpush1.bf16.msra.mxu0 %v4866
    %7009 = vmatprep.subr.bf16.mxu0 %v4871
    %7010 = vmatpush1.bf16.msra.mxu0 %v4870
    %7011 = vmatprep.subr.bf16.mxu0 %v4875
    %7012 = vmatpush1.bf16.msra.mxu0 %v4874
    %7013 = vmatprep.subr.bf16.mxu0 %v4879
    %7014 = vmatpush1.bf16.msra.mxu0 %v4878
    %7015 = vmatprep.subr.bf16.mxu0 %v4883
    %7016 = vmatpush1.bf16.msra.mxu0 %v4882
    %7017 = vmatprep.subr.bf16.mxu0 0
    %7018 = vmatpush1.bf16.msra.mxu0 0
    %7019 = vmatprep.subr.bf16.mxu0 0
    %7020 = vmatpush1.bf16.msra.mxu0 0
    %7021 = vmatprep.subr.bf16.mxu0 0
    %7022 = vmatpush1.bf16.msra.mxu0 0
    %7023 = vmatprep.subr.bf16.mxu0 0
    %7024 = vmatpush1.bf16.msra.mxu0 0
    %7025 = vmatprep.subr.bf16.mxu0 0
    %7026 = vmatpush1.bf16.msra.mxu0 0
    %7027 = vmatprep.subr.bf16.mxu0 0
    %7028 = vmatpush1.bf16.msra.mxu0 0
    %7029 = vmatprep.subr.bf16.mxu0 0
    %7030 = vmatpush1.bf16.msra.mxu0 0
    %7031 = vmatprep.subr.bf16.mxu0 0
    %7032 = vmatpush1.bf16.msra.mxu0 0
    %7033 = vmatprep.mubr.bf16.mxu0 0
    %7034 = vmatmul.mubr.bf16.gmra.mrb[0].mxu0 %v1142
    %v7035 = vpop.f32.mrb[0].mxu0
    %v7036 = vadd.f32 %v6995, %v7035
    %v7037 = vpop.f32.mrb[0].mxu0
    %v7038 = vadd.f32 %v6997, %v7037
    %v7039 = vpop.f32.mrb[0].mxu0
    %v7040 = vpop.f32.mrb[0].mxu0
    %7041 = vdwg.mxu0
    %v7042 = vpack.c.bf16 %v6421, %v6421
    %v7043 = vpack.c.bf16 %v6423, %v6423
    %v7044 = vpack.c.bf16 %v7036, %v7036
    %v7045 = vpack.c.bf16 %v7038, %v7038
    %v7046 = vld [vmem:[#allocation6] sm:$0xff]
    %v7047 = vld [vmem:[#allocation6 + $0x8] sm:$0xff]
    %v7048 = vld [vmem:[#allocation6 + $0x10] sm:$0xff]
    %v7049 = vld [vmem:[#allocation6 + $0x18] sm:$0xff]
    %v7050 = vld [vmem:[#allocation6 + $0x20] sm:$0xff]
    %v7051 = vld [vmem:[#allocation6 + $0x28] sm:$0xff]
    %v7052 = vld [vmem:[#allocation6 + $0x30] sm:$0xff]
    %v7053 = vld [vmem:[#allocation6 + $0x38] sm:$0xff]
    %v7054 = vld [vmem:[#allocation6 + $0x40] sm:$0xff]
    %v7055 = vld [vmem:[#allocation6 + $0x48] sm:$0xff]
    %v7056 = vld [vmem:[#allocation6 + $0x50] sm:$0xff]
    %v7057 = vld [vmem:[#allocation6 + $0x58] sm:$0xff]
    %v7058 = vld [vmem:[#allocation6 + $0x60] sm:$0xff]
    %v7059 = vld [vmem:[#allocation6 + $0x68] sm:$0xff]
    %v7060 = vld [vmem:[#allocation6 + $0x70] sm:$0xff]
    %v7061 = vld [vmem:[#allocation6 + $0x78] sm:$0xff]
    %v7062 = vld [vmem:[#allocation6 + $0x80] sm:$0xff]
    %v7063 = vld [vmem:[#allocation6 + $0x88] sm:$0xff]
    %v7064 = vld [vmem:[#allocation6 + $0x90] sm:$0xff]
    %v7065 = vld [vmem:[#allocation6 + $0x98] sm:$0xff]
    %v7066 = vld [vmem:[#allocation6 + $0xa0] sm:$0xff]
    %v7067 = vld [vmem:[#allocation6 + $0xa8] sm:$0xff]
    %v7068 = vld [vmem:[#allocation6 + $0xb0] sm:$0xff]
    %v7069 = vld [vmem:[#allocation6 + $0xb8] sm:$0xff]
    %v7070 = vld [vmem:[#allocation6 + $0xc0] sm:$0xff]
    %v7071 = vld [vmem:[#allocation6 + $0xc8] sm:$0xff]
    %v7072 = vld [vmem:[#allocation6 + $0xd0] sm:$0xff]
    %v7073 = vld [vmem:[#allocation6 + $0xd8] sm:$0xff]
    %v7074 = vld [vmem:[#allocation6 + $0xe0] sm:$0xff]
    %v7075 = vld [vmem:[#allocation6 + $0xe8] sm:$0xff]
    %v7076 = vld [vmem:[#allocation6 + $0xf0] sm:$0xff]
    %v7077 = vld [vmem:[#allocation6 + $0xf8] sm:$0xff]
    %v7078 = vld [vmem:[#allocation6 + $0x100] sm:$0xff]
    %v7079 = vld [vmem:[#allocation6 + $0x108] sm:$0xff]
    %v7080 = vld [vmem:[#allocation6 + $0x110] sm:$0xff]
    %v7081 = vld [vmem:[#allocation6 + $0x118] sm:$0xff]
    %v7082 = vld [vmem:[#allocation6 + $0x120] sm:$0xff]
    %v7083 = vld [vmem:[#allocation6 + $0x128] sm:$0xff]
    %v7084 = vld [vmem:[#allocation6 + $0x130] sm:$0xff]
    %v7085 = vld [vmem:[#allocation6 + $0x138] sm:$0xff]
    %v7086 = vld [vmem:[#allocation6 + $0x140] sm:$0xff]
    %v7087 = vld [vmem:[#allocation6 + $0x148] sm:$0xff]
    %v7088 = vld [vmem:[#allocation6 + $0x150] sm:$0xff]
    %v7089 = vld [vmem:[#allocation6 + $0x158] sm:$0xff]
    %v7090 = vld [vmem:[#allocation6 + $0x160] sm:$0xff]
    %v7091 = vld [vmem:[#allocation6 + $0x168] sm:$0xff]
    %v7092 = vld [vmem:[#allocation6 + $0x170] sm:$0xff]
    %v7093 = vld [vmem:[#allocation6 + $0x178] sm:$0xff]
    %v7094 = vld [vmem:[#allocation6 + $0x180] sm:$0xff]
    %v7095 = vld [vmem:[#allocation6 + $0x188] sm:$0xff]
    %v7096 = vld [vmem:[#allocation6 + $0x190] sm:$0xff]
    %v7097 = vld [vmem:[#allocation6 + $0x198] sm:$0xff]
    %v7098 = vld [vmem:[#allocation6 + $0x1a0] sm:$0xff]
    %v7099 = vld [vmem:[#allocation6 + $0x1a8] sm:$0xff]
    %v7100 = vld [vmem:[#allocation6 + $0x1b0] sm:$0xff]
    %v7101 = vld [vmem:[#allocation6 + $0x1b8] sm:$0xff]
    %v7102 = vld [vmem:[#allocation6 + $0x1c0] sm:$0xff]
    %v7103 = vld [vmem:[#allocation6 + $0x1c8] sm:$0xff]
    %v7104 = vld [vmem:[#allocation6 + $0x1d0] sm:$0xff]
    %v7105 = vld [vmem:[#allocation6 + $0x1d8] sm:$0xff]
    %v7106 = vld [vmem:[#allocation6 + $0x1e0] sm:$0xff]
    %v7107 = vld [vmem:[#allocation6 + $0x1e8] sm:$0xff]
    %v7108 = vld [vmem:[#allocation6 + $0x1f0] sm:$0xff]
    %v7109 = vld [vmem:[#allocation6 + $0x1f8] sm:$0xff]
    %v7110 = vld [vmem:[#allocation7] sm:$0x3]
    %v7112 = vlaneseq
    %v7113 = vshrl.u32 %v7112, 7
    %v7114 = vsub.s32 0, %v7113
    %v7115 = vrot.slane %v7110, %v7114
    %v7116 = vlaneseq
    %v7117 = vshrl.u32 %v7116, 7
    %v7118 = vsub.s32 1, %v7117
    %v7119 = vrot.slane %v7110, %v7118
    %v7186 = vunpack.c.l.b16 %v7046
    %v7187 = vunpack.c.h.b16 %v7046
    %v7188 = vunpack.c.l.b16 %v7047
    %v7189 = vunpack.c.h.b16 %v7047
    %v7190 = vunpack.c.l.b16 %v7048
    %v7191 = vunpack.c.h.b16 %v7048
    %v7192 = vunpack.c.l.b16 %v7049
    %v7193 = vunpack.c.h.b16 %v7049
    %v7194 = vunpack.c.l.b16 %v7050
    %v7195 = vunpack.c.h.b16 %v7050
    %v7196 = vunpack.c.l.b16 %v7051
    %v7197 = vunpack.c.h.b16 %v7051
    %v7198 = vunpack.c.l.b16 %v7052
    %v7199 = vunpack.c.h.b16 %v7052
    %v7200 = vunpack.c.l.b16 %v7053
    %v7201 = vunpack.c.h.b16 %v7053
    %v7202 = vunpack.c.l.b16 %v7054
    %v7203 = vunpack.c.h.b16 %v7054
    %v7204 = vunpack.c.l.b16 %v7055
    %v7205 = vunpack.c.h.b16 %v7055
    %v7206 = vunpack.c.l.b16 %v7056
    %v7207 = vunpack.c.h.b16 %v7056
    %v7208 = vunpack.c.l.b16 %v7057
    %v7209 = vunpack.c.h.b16 %v7057
    %v7210 = vunpack.c.l.b16 %v7058
    %v7211 = vunpack.c.h.b16 %v7058
    %v7212 = vunpack.c.l.b16 %v7059
    %v7213 = vunpack.c.h.b16 %v7059
    %v7214 = vunpack.c.l.b16 %v7060
    %v7215 = vunpack.c.h.b16 %v7060
    %v7216 = vunpack.c.l.b16 %v7061
    %v7217 = vunpack.c.h.b16 %v7061
    %v7218 = vunpack.c.l.b16 %v7062
    %v7219 = vunpack.c.h.b16 %v7062
    %v7220 = vunpack.c.l.b16 %v7063
    %v7221 = vunpack.c.h.b16 %v7063
    %v7222 = vunpack.c.l.b16 %v7064
    %v7223 = vunpack.c.h.b16 %v7064
    %v7224 = vunpack.c.l.b16 %v7065
    %v7225 = vunpack.c.h.b16 %v7065
    %v7226 = vunpack.c.l.b16 %v7066
    %v7227 = vunpack.c.h.b16 %v7066
    %v7228 = vunpack.c.l.b16 %v7067
    %v7229 = vunpack.c.h.b16 %v7067
    %v7230 = vunpack.c.l.b16 %v7068
    %v7231 = vunpack.c.h.b16 %v7068
    %v7232 = vunpack.c.l.b16 %v7069
    %v7233 = vunpack.c.h.b16 %v7069
    %v7234 = vunpack.c.l.b16 %v7070
    %v7235 = vunpack.c.h.b16 %v7070
    %v7236 = vunpack.c.l.b16 %v7071
    %v7237 = vunpack.c.h.b16 %v7071
    %v7238 = vunpack.c.l.b16 %v7072
    %v7239 = vunpack.c.h.b16 %v7072
    %v7240 = vunpack.c.l.b16 %v7073
    %v7241 = vunpack.c.h.b16 %v7073
    %v7242 = vunpack.c.l.b16 %v7074
    %v7243 = vunpack.c.h.b16 %v7074
    %v7244 = vunpack.c.l.b16 %v7075
    %v7245 = vunpack.c.h.b16 %v7075
    %v7246 = vunpack.c.l.b16 %v7076
    %v7247 = vunpack.c.h.b16 %v7076
    %v7248 = vunpack.c.l.b16 %v7077
    %v7249 = vunpack.c.h.b16 %v7077
    %v7250 = vunpack.c.l.b16 %v7078
    %v7251 = vunpack.c.h.b16 %v7078
    %v7252 = vunpack.c.l.b16 %v7079
    %v7253 = vunpack.c.h.b16 %v7079
    %v7254 = vunpack.c.l.b16 %v7080
    %v7255 = vunpack.c.h.b16 %v7080
    %v7256 = vunpack.c.l.b16 %v7081
    %v7257 = vunpack.c.h.b16 %v7081
    %v7258 = vunpack.c.l.b16 %v7082
    %v7259 = vunpack.c.h.b16 %v7082
    %v7260 = vunpack.c.l.b16 %v7083
    %v7261 = vunpack.c.h.b16 %v7083
    %v7262 = vunpack.c.l.b16 %v7084
    %v7263 = vunpack.c.h.b16 %v7084
    %v7264 = vunpack.c.l.b16 %v7085
    %v7265 = vunpack.c.h.b16 %v7085
    %v7266 = vunpack.c.l.b16 %v7086
    %v7267 = vunpack.c.h.b16 %v7086
    %v7268 = vunpack.c.l.b16 %v7087
    %v7269 = vunpack.c.h.b16 %v7087
    %v7270 = vunpack.c.l.b16 %v7088
    %v7271 = vunpack.c.h.b16 %v7088
    %v7272 = vunpack.c.l.b16 %v7089
    %v7273 = vunpack.c.h.b16 %v7089
    %v7274 = vunpack.c.l.b16 %v7090
    %v7275 = vunpack.c.h.b16 %v7090
    %v7276 = vunpack.c.l.b16 %v7091
    %v7277 = vunpack.c.h.b16 %v7091
    %v7278 = vunpack.c.l.b16 %v7092
    %v7279 = vunpack.c.h.b16 %v7092
    %v7280 = vunpack.c.l.b16 %v7093
    %v7281 = vunpack.c.h.b16 %v7093
    %v7282 = vunpack.c.l.b16 %v7094
    %v7283 = vunpack.c.h.b16 %v7094
    %v7284 = vunpack.c.l.b16 %v7095
    %v7285 = vunpack.c.h.b16 %v7095
    %v7286 = vunpack.c.l.b16 %v7096
    %v7287 = vunpack.c.h.b16 %v7096
    %v7288 = vunpack.c.l.b16 %v7097
    %v7289 = vunpack.c.h.b16 %v7097
    %v7290 = vunpack.c.l.b16 %v7098
    %v7291 = vunpack.c.h.b16 %v7098
    %v7292 = vunpack.c.l.b16 %v7099
    %v7293 = vunpack.c.h.b16 %v7099
    %v7294 = vunpack.c.l.b16 %v7100
    %v7295 = vunpack.c.h.b16 %v7100
    %v7296 = vunpack.c.l.b16 %v7101
    %v7297 = vunpack.c.h.b16 %v7101
    %v7298 = vunpack.c.l.b16 %v7102
    %v7299 = vunpack.c.h.b16 %v7102
    %v7300 = vunpack.c.l.b16 %v7103
    %v7301 = vunpack.c.h.b16 %v7103
    %v7302 = vunpack.c.l.b16 %v7104
    %v7303 = vunpack.c.h.b16 %v7104
    %v7304 = vunpack.c.l.b16 %v7105
    %v7305 = vunpack.c.h.b16 %v7105
    %v7306 = vunpack.c.l.b16 %v7106
    %v7307 = vunpack.c.h.b16 %v7106
    %v7308 = vunpack.c.l.b16 %v7107
    %v7309 = vunpack.c.h.b16 %v7107
    %v7310 = vunpack.c.l.b16 %v7108
    %v7311 = vunpack.c.h.b16 %v7108
    %v7312 = vunpack.c.l.b16 %v7109
    %v7313 = vunpack.c.h.b16 %v7109
    %v7314 = vpack.c.b16 %v7188, %v7186
    %v7315 = vpack.c.b16 %v7189, %v7187
    %v7316 = vpack.c.b16 %v7192, %v7190
    %v7317 = vpack.c.b16 %v7193, %v7191
    %v7318 = vpack.c.b16 %v7196, %v7194
    %v7319 = vpack.c.b16 %v7197, %v7195
    %v7320 = vpack.c.b16 %v7200, %v7198
    %v7321 = vpack.c.b16 %v7201, %v7199
    %v7322 = vpack.c.b16 %v7204, %v7202
    %v7323 = vpack.c.b16 %v7205, %v7203
    %v7324 = vpack.c.b16 %v7208, %v7206
    %v7325 = vpack.c.b16 %v7209, %v7207
    %v7326 = vpack.c.b16 %v7212, %v7210
    %v7327 = vpack.c.b16 %v7213, %v7211
    %v7328 = vpack.c.b16 %v7216, %v7214
    %v7329 = vpack.c.b16 %v7217, %v7215
    %v7330 = vpack.c.b16 %v7220, %v7218
    %v7331 = vpack.c.b16 %v7221, %v7219
    %v7332 = vpack.c.b16 %v7224, %v7222
    %v7333 = vpack.c.b16 %v7225, %v7223
    %v7334 = vpack.c.b16 %v7228, %v7226
    %v7335 = vpack.c.b16 %v7229, %v7227
    %v7336 = vpack.c.b16 %v7232, %v7230
    %v7337 = vpack.c.b16 %v7233, %v7231
    %v7338 = vpack.c.b16 %v7236, %v7234
    %v7339 = vpack.c.b16 %v7237, %v7235
    %v7340 = vpack.c.b16 %v7240, %v7238
    %v7341 = vpack.c.b16 %v7241, %v7239
    %v7342 = vpack.c.b16 %v7244, %v7242
    %v7343 = vpack.c.b16 %v7245, %v7243
    %v7344 = vpack.c.b16 %v7248, %v7246
    %v7345 = vpack.c.b16 %v7249, %v7247
    %v7346 = vpack.c.b16 %v7252, %v7250
    %v7347 = vpack.c.b16 %v7253, %v7251
    %v7348 = vpack.c.b16 %v7256, %v7254
    %v7349 = vpack.c.b16 %v7257, %v7255
    %v7350 = vpack.c.b16 %v7260, %v7258
    %v7351 = vpack.c.b16 %v7261, %v7259
    %v7352 = vpack.c.b16 %v7264, %v7262
    %v7353 = vpack.c.b16 %v7265, %v7263
    %v7354 = vpack.c.b16 %v7268, %v7266
    %v7355 = vpack.c.b16 %v7269, %v7267
    %v7356 = vpack.c.b16 %v7272, %v7270
    %v7357 = vpack.c.b16 %v7273, %v7271
    %v7358 = vpack.c.b16 %v7276, %v7274
    %v7359 = vpack.c.b16 %v7277, %v7275
    %v7360 = vpack.c.b16 %v7280, %v7278
    %v7361 = vpack.c.b16 %v7281, %v7279
    %v7362 = vpack.c.b16 %v7284, %v7282
    %v7363 = vpack.c.b16 %v7285, %v7283
    %v7364 = vpack.c.b16 %v7288, %v7286
    %v7365 = vpack.c.b16 %v7289, %v7287
    %v7366 = vpack.c.b16 %v7292, %v7290
    %v7367 = vpack.c.b16 %v7293, %v7291
    %v7368 = vpack.c.b16 %v7296, %v7294
    %v7369 = vpack.c.b16 %v7297, %v7295
    %v7370 = vpack.c.b16 %v7300, %v7298
    %v7371 = vpack.c.b16 %v7301, %v7299
    %v7372 = vpack.c.b16 %v7304, %v7302
    %v7373 = vpack.c.b16 %v7305, %v7303
    %v7374 = vpack.c.b16 %v7308, %v7306
    %v7375 = vpack.c.b16 %v7309, %v7307
    %v7376 = vpack.c.b16 %v7312, %v7310
    %v7377 = vpack.c.b16 %v7313, %v7311
    %7442 = vmatprep.subr.bf16.mxu0 %v7315
    %7443 = vmatpush1.bf16.msra.mxu0 %v7314
    %7444 = vmatprep.subr.bf16.mxu0 %v7317
    %7445 = vmatpush1.bf16.msra.mxu0 %v7316
    %7446 = vmatprep.subr.bf16.mxu0 %v7319
    %7447 = vmatpush1.bf16.msra.mxu0 %v7318
    %7448 = vmatprep.subr.bf16.mxu0 %v7321
    %7449 = vmatpush1.bf16.msra.mxu0 %v7320
    %7450 = vmatprep.subr.bf16.mxu0 %v7323
    %7451 = vmatpush1.bf16.msra.mxu0 %v7322
    %7452 = vmatprep.subr.bf16.mxu0 %v7325
    %7453 = vmatpush1.bf16.msra.mxu0 %v7324
    %7454 = vmatprep.subr.bf16.mxu0 %v7327
    %7455 = vmatpush1.bf16.msra.mxu0 %v7326
    %7456 = vmatprep.subr.bf16.mxu0 %v7329
    %7457 = vmatpush1.bf16.msra.mxu0 %v7328
    %7458 = vmatprep.subr.bf16.mxu0 %v7331
    %7459 = vmatpush1.bf16.msra.mxu0 %v7330
    %7460 = vmatprep.subr.bf16.mxu0 %v7333
    %7461 = vmatpush1.bf16.msra.mxu0 %v7332
    %7462 = vmatprep.subr.bf16.mxu0 %v7335
    %7463 = vmatpush1.bf16.msra.mxu0 %v7334
    %7464 = vmatprep.subr.bf16.mxu0 %v7337
    %7465 = vmatpush1.bf16.msra.mxu0 %v7336
    %7466 = vmatprep.subr.bf16.mxu0 %v7339
    %7467 = vmatpush1.bf16.msra.mxu0 %v7338
    %7468 = vmatprep.subr.bf16.mxu0 %v7341
    %7469 = vmatpush1.bf16.msra.mxu0 %v7340
    %7470 = vmatprep.subr.bf16.mxu0 %v7343
    %7471 = vmatpush1.bf16.msra.mxu0 %v7342
    %7472 = vmatprep.subr.bf16.mxu0 %v7345
    %7473 = vmatpush1.bf16.msra.mxu0 %v7344
    %7474 = vmatprep.mubr.bf16.mxu0 %v7043
    %7475 = vmatmul.mubr.bf16.gmra.mrb[0].mxu0 %v7042
    %v7476 = vpop.f32.mrb[0].mxu0
    %v7477 = vadd.f32 %v7115, %v7476
    %v7478 = vpop.f32.mrb[0].mxu0
    %v7479 = vadd.f32 %v7119, %v7478
    %v7480 = vpop.f32.mrb[0].mxu0
    %v7481 = vpop.f32.mrb[0].mxu0
    %7482 = vdwg.mxu0
    %7483 = vmatprep.subr.bf16.mxu0 %v7347
    %7484 = vmatpush1.bf16.msra.mxu0 %v7346
    %7485 = vmatprep.subr.bf16.mxu0 %v7349
    %7486 = vmatpush1.bf16.msra.mxu0 %v7348
    %7487 = vmatprep.subr.bf16.mxu0 %v7351
    %7488 = vmatpush1.bf16.msra.mxu0 %v7350
    %7489 = vmatprep.subr.bf16.mxu0 %v7353
    %7490 = vmatpush1.bf16.msra.mxu0 %v7352
    %7491 = vmatprep.subr.bf16.mxu0 %v7355
    %7492 = vmatpush1.bf16.msra.mxu0 %v7354
    %7493 = vmatprep.subr.bf16.mxu0 %v7357
    %7494 = vmatpush1.bf16.msra.mxu0 %v7356
    %7495 = vmatprep.subr.bf16.mxu0 %v7359
    %7496 = vmatpush1.bf16.msra.mxu0 %v7358
    %7497 = vmatprep.subr.bf16.mxu0 %v7361
    %7498 = vmatpush1.bf16.msra.mxu0 %v7360
    %7499 = vmatprep.subr.bf16.mxu0 %v7363
    %7500 = vmatpush1.bf16.msra.mxu0 %v7362
    %7501 = vmatprep.subr.bf16.mxu0 %v7365
    %7502 = vmatpush1.bf16.msra.mxu0 %v7364
    %7503 = vmatprep.subr.bf16.mxu0 %v7367
    %7504 = vmatpush1.bf16.msra.mxu0 %v7366
    %7505 = vmatprep.subr.bf16.mxu0 %v7369
    %7506 = vmatpush1.bf16.msra.mxu0 %v7368
    %7507 = vmatprep.subr.bf16.mxu0 %v7371
    %7508 = vmatpush1.bf16.msra.mxu0 %v7370
    %7509 = vmatprep.subr.bf16.mxu0 %v7373
    %7510 = vmatpush1.bf16.msra.mxu0 %v7372
    %7511 = vmatprep.subr.bf16.mxu0 %v7375
    %7512 = vmatpush1.bf16.msra.mxu0 %v7374
    %7513 = vmatprep.subr.bf16.mxu0 %v7377
    %7514 = vmatpush1.bf16.msra.mxu0 %v7376
    %7515 = vmatprep.mubr.bf16.mxu0 %v7045
    %7516 = vmatmul.mubr.bf16.gmra.mrb[0].mxu0 %v7044
    %v7517 = vpop.f32.mrb[0].mxu0
    %v7518 = vadd.f32 %v7477, %v7517
    %v7519 = vpop.f32.mrb[0].mxu0
    %v7520 = vadd.f32 %v7479, %v7519
    %v7521 = vpop.f32.mrb[0].mxu0
    %v7522 = vpop.f32.mrb[0].mxu0
    %7523 = vdwg.mxu0
    %7524 = vst [vmem:[%s7] sm:$0xff] %v7518
    %7525 = vst [vmem:[%s7 + $0x8] sm:$0xff] %v7520
    %v7526 = vpack.c.bf16 %v7518, %v7518
    %v7527 = vpack.c.bf16 %v7520, %v7520
    %v7528 = vld [vmem:[#allocation9] sm:$0xff]
    %v7529 = vld [vmem:[#allocation9 + $0x8] sm:$0xff]
    %v7530 = vld [vmem:[#allocation9 + $0x10] sm:$0xff]
    %v7531 = vld [vmem:[#allocation9 + $0x18] sm:$0xff]
    %v7532 = vld [vmem:[#allocation9 + $0x20] sm:$0xff]
    %v7533 = vld [vmem:[#allocation9 + $0x28] sm:$0xff]
    %v7534 = vld [vmem:[#allocation9 + $0x30] sm:$0xff]
    %v7535 = vld [vmem:[#allocation9 + $0x38] sm:$0xff]
    %v7536 = vld [vmem:[#allocation9 + $0x40] sm:$0xff]
    %v7537 = vld [vmem:[#allocation9 + $0x48] sm:$0xff]
    %v7538 = vld [vmem:[#allocation9 + $0x50] sm:$0xff]
    %v7539 = vld [vmem:[#allocation9 + $0x58] sm:$0xff]
    %v7540 = vld [vmem:[#allocation9 + $0x60] sm:$0xff]
    %v7541 = vld [vmem:[#allocation9 + $0x68] sm:$0xff]
    %v7542 = vld [vmem:[#allocation9 + $0x70] sm:$0xff]
    %v7543 = vld [vmem:[#allocation9 + $0x78] sm:$0xff]
    %v7544 = vld [vmem:[#allocation9 + $0x80] sm:$0xff]
    %v7545 = vld [vmem:[#allocation9 + $0x88] sm:$0xff]
    %v7546 = vld [vmem:[#allocation9 + $0x90] sm:$0xff]
    %v7547 = vld [vmem:[#allocation9 + $0x98] sm:$0xff]
    %v7548 = vld [vmem:[#allocation9 + $0xa0] sm:$0xff]
    %v7549 = vld [vmem:[#allocation9 + $0xa8] sm:$0xff]
    %v7550 = vld [vmem:[#allocation9 + $0xb0] sm:$0xff]
    %v7551 = vld [vmem:[#allocation9 + $0xb8] sm:$0xff]
    %v7552 = vld [vmem:[#allocation9 + $0xc0] sm:$0xff]
    %v7553 = vld [vmem:[#allocation9 + $0xc8] sm:$0xff]
    %v7554 = vld [vmem:[#allocation9 + $0xd0] sm:$0xff]
    %v7555 = vld [vmem:[#allocation9 + $0xd8] sm:$0xff]
    %v7556 = vld [vmem:[#allocation9 + $0xe0] sm:$0xff]
    %v7557 = vld [vmem:[#allocation9 + $0xe8] sm:$0xff]
    %v7558 = vld [vmem:[#allocation9 + $0xf0] sm:$0xff]
    %v7559 = vld [vmem:[#allocation9 + $0xf8] sm:$0xff]
    %v7560 = vld [vmem:[#allocation9 + $0x100] sm:$0xff]
    %v7561 = vld [vmem:[#allocation9 + $0x108] sm:$0xff]
    %v7562 = vld [vmem:[#allocation9 + $0x110] sm:$0xff]
    %v7563 = vld [vmem:[#allocation9 + $0x118] sm:$0xff]
    %v7564 = vld [vmem:[#allocation9 + $0x120] sm:$0xff]
    %v7565 = vld [vmem:[#allocation9 + $0x128] sm:$0xff]
    %v7566 = vld [vmem:[#allocation9 + $0x130] sm:$0xff]
    %v7567 = vld [vmem:[#allocation9 + $0x138] sm:$0xff]
    %v7568 = vld [vmem:[#allocation9 + $0x140] sm:$0xff]
    %v7569 = vld [vmem:[#allocation9 + $0x148] sm:$0xff]
    %v7570 = vld [vmem:[#allocation9 + $0x150] sm:$0xff]
    %v7571 = vld [vmem:[#allocation9 + $0x158] sm:$0xff]
    %v7572 = vld [vmem:[#allocation9 + $0x160] sm:$0xff]
    %v7573 = vld [vmem:[#allocation9 + $0x168] sm:$0xff]
    %v7574 = vld [vmem:[#allocation9 + $0x170] sm:$0xff]
    %v7575 = vld [vmem:[#allocation9 + $0x178] sm:$0xff]
    %v7576 = vld [vmem:[#allocation9 + $0x180] sm:$0xff]
    %v7577 = vld [vmem:[#allocation9 + $0x188] sm:$0xff]
    %v7578 = vld [vmem:[#allocation9 + $0x190] sm:$0xff]
    %v7579 = vld [vmem:[#allocation9 + $0x198] sm:$0xff]
    %v7580 = vld [vmem:[#allocation9 + $0x1a0] sm:$0xff]
    %v7581 = vld [vmem:[#allocation9 + $0x1a8] sm:$0xff]
    %v7582 = vld [vmem:[#allocation9 + $0x1b0] sm:$0xff]
    %v7583 = vld [vmem:[#allocation9 + $0x1b8] sm:$0xff]
    %v7584 = vld [vmem:[#allocation9 + $0x1c0] sm:$0xff]
    %v7585 = vld [vmem:[#allocation9 + $0x1c8] sm:$0xff]
    %v7586 = vld [vmem:[#allocation9 + $0x1d0] sm:$0xff]
    %v7587 = vld [vmem:[#allocation9 + $0x1d8] sm:$0xff]
    %v7588 = vld [vmem:[#allocation9 + $0x1e0] sm:$0xff]
    %v7589 = vld [vmem:[#allocation9 + $0x1e8] sm:$0xff]
    %v7590 = vld [vmem:[#allocation9 + $0x1f0] sm:$0xff]
    %v7591 = vld [vmem:[#allocation9 + $0x1f8] sm:$0xff]
    %v7592 = vld [vmem:[#allocation9 + $0x200] sm:$0xff]
    %v7593 = vld [vmem:[#allocation9 + $0x208] sm:$0xff]
    %v7594 = vld [vmem:[#allocation9 + $0x210] sm:$0xff]
    %v7595 = vld [vmem:[#allocation9 + $0x218] sm:$0xff]
    %v7596 = vld [vmem:[#allocation9 + $0x220] sm:$0xff]
    %v7597 = vld [vmem:[#allocation9 + $0x228] sm:$0xff]
    %v7598 = vld [vmem:[#allocation9 + $0x230] sm:$0xff]
    %v7599 = vld [vmem:[#allocation9 + $0x238] sm:$0xff]
    %v7600 = vld [vmem:[#allocation9 + $0x240] sm:$0xff]
    %v7601 = vld [vmem:[#allocation9 + $0x248] sm:$0xff]
    %v7602 = vld [vmem:[#allocation9 + $0x250] sm:$0xff]
    %v7603 = vld [vmem:[#allocation9 + $0x258] sm:$0xff]
    %v7604 = vld [vmem:[#allocation9 + $0x260] sm:$0xff]
    %v7605 = vld [vmem:[#allocation9 + $0x268] sm:$0xff]
    %v7606 = vld [vmem:[#allocation9 + $0x270] sm:$0xff]
    %v7607 = vld [vmem:[#allocation9 + $0x278] sm:$0xff]
    %v7608 = vld [vmem:[#allocation9 + $0x280] sm:$0xff]
    %v7609 = vld [vmem:[#allocation9 + $0x288] sm:$0xff]
    %v7610 = vld [vmem:[#allocation9 + $0x290] sm:$0xff]
    %v7611 = vld [vmem:[#allocation9 + $0x298] sm:$0xff]
    %v7612 = vld [vmem:[#allocation9 + $0x2a0] sm:$0xff]
    %v7613 = vld [vmem:[#allocation9 + $0x2a8] sm:$0xff]
    %v7614 = vld [vmem:[#allocation9 + $0x2b0] sm:$0xff]
    %v7615 = vld [vmem:[#allocation9 + $0x2b8] sm:$0xff]
    %v7616 = vld [vmem:[#allocation9 + $0x2c0] sm:$0xff]
    %v7617 = vld [vmem:[#allocation9 + $0x2c8] sm:$0xff]
    %v7618 = vld [vmem:[#allocation9 + $0x2d0] sm:$0xff]
    %v7619 = vld [vmem:[#allocation9 + $0x2d8] sm:$0xff]
    %v7620 = vld [vmem:[#allocation9 + $0x2e0] sm:$0xff]
    %v7621 = vld [vmem:[#allocation9 + $0x2e8] sm:$0xff]
    %v7622 = vld [vmem:[#allocation9 + $0x2f0] sm:$0xff]
    %v7623 = vld [vmem:[#allocation9 + $0x2f8] sm:$0xff]
    %v7624 = vld [vmem:[#allocation9 + $0x300] sm:$0xff]
    %v7625 = vld [vmem:[#allocation9 + $0x308] sm:$0xff]
    %v7626 = vld [vmem:[#allocation9 + $0x310] sm:$0xff]
    %v7627 = vld [vmem:[#allocation9 + $0x318] sm:$0xff]
    %v7628 = vld [vmem:[#allocation9 + $0x320] sm:$0xff]
    %v7629 = vld [vmem:[#allocation9 + $0x328] sm:$0xff]
    %v7630 = vld [vmem:[#allocation9 + $0x330] sm:$0xff]
    %v7631 = vld [vmem:[#allocation9 + $0x338] sm:$0xff]
    %v7632 = vld [vmem:[#allocation9 + $0x340] sm:$0xff]
    %v7633 = vld [vmem:[#allocation9 + $0x348] sm:$0xff]
    %v7634 = vld [vmem:[#allocation9 + $0x350] sm:$0xff]
    %v7635 = vld [vmem:[#allocation9 + $0x358] sm:$0xff]
    %v7636 = vld [vmem:[#allocation9 + $0x360] sm:$0xff]
    %v7637 = vld [vmem:[#allocation9 + $0x368] sm:$0xff]
    %v7638 = vld [vmem:[#allocation9 + $0x370] sm:$0xff]
    %v7639 = vld [vmem:[#allocation9 + $0x378] sm:$0xff]
    %v7640 = vld [vmem:[#allocation9 + $0x380] sm:$0xff]
    %v7641 = vld [vmem:[#allocation9 + $0x388] sm:$0xff]
    %v7642 = vld [vmem:[#allocation9 + $0x390] sm:$0xff]
    %v7643 = vld [vmem:[#allocation9 + $0x398] sm:$0xff]
    %v7644 = vld [vmem:[#allocation9 + $0x3a0] sm:$0xff]
    %v7645 = vld [vmem:[#allocation9 + $0x3a8] sm:$0xff]
    %v7646 = vld [vmem:[#allocation9 + $0x3b0] sm:$0xff]
    %v7647 = vld [vmem:[#allocation9 + $0x3b8] sm:$0xff]
    %v7648 = vld [vmem:[#allocation9 + $0x3c0] sm:$0xff]
    %v7649 = vld [vmem:[#allocation9 + $0x3c8] sm:$0xff]
    %v7650 = vld [vmem:[#allocation9 + $0x3d0] sm:$0xff]
    %v7651 = vld [vmem:[#allocation9 + $0x3d8] sm:$0xff]
    %v7652 = vld [vmem:[#allocation9 + $0x3e0] sm:$0xff]
    %v7653 = vld [vmem:[#allocation9 + $0x3e8] sm:$0xff]
    %v7654 = vld [vmem:[#allocation9 + $0x3f0] sm:$0xff]
    %v7655 = vld [vmem:[#allocation9 + $0x3f8] sm:$0xff]
    %v7656 = vld [vmem:[#allocation9 + $0x400] sm:$0xff]
    %v7657 = vld [vmem:[#allocation9 + $0x408] sm:$0xff]
    %v7658 = vld [vmem:[#allocation9 + $0x410] sm:$0xff]
    %v7659 = vld [vmem:[#allocation9 + $0x418] sm:$0xff]
    %v7660 = vld [vmem:[#allocation9 + $0x420] sm:$0xff]
    %v7661 = vld [vmem:[#allocation9 + $0x428] sm:$0xff]
    %v7662 = vld [vmem:[#allocation9 + $0x430] sm:$0xff]
    %v7663 = vld [vmem:[#allocation9 + $0x438] sm:$0xff]
    %v7664 = vld [vmem:[#allocation9 + $0x440] sm:$0xff]
    %v7665 = vld [vmem:[#allocation9 + $0x448] sm:$0xff]
    %v7666 = vld [vmem:[#allocation9 + $0x450] sm:$0xff]
    %v7667 = vld [vmem:[#allocation9 + $0x458] sm:$0xff]
    %v7668 = vld [vmem:[#allocation9 + $0x460] sm:$0xff]
    %v7669 = vld [vmem:[#allocation9 + $0x468] sm:$0xff]
    %v7670 = vld [vmem:[#allocation9 + $0x470] sm:$0xff]
    %v7671 = vld [vmem:[#allocation9 + $0x478] sm:$0xff]
    %v7672 = vld [vmem:[#allocation9 + $0x480] sm:$0xff]
    %v7673 = vld [vmem:[#allocation9 + $0x488] sm:$0xff]
    %v7674 = vld [vmem:[#allocation9 + $0x490] sm:$0xff]
    %v7675 = vld [vmem:[#allocation9 + $0x498] sm:$0xff]
    %v7676 = vld [vmem:[#allocation9 + $0x4a0] sm:$0xff]
    %v7677 = vld [vmem:[#allocation9 + $0x4a8] sm:$0xff]
    %v7678 = vld [vmem:[#allocation9 + $0x4b0] sm:$0xff]
    %v7679 = vld [vmem:[#allocation9 + $0x4b8] sm:$0xff]
    %v7680 = vld [vmem:[#allocation9 + $0x4c0] sm:$0xff]
    %v7681 = vld [vmem:[#allocation9 + $0x4c8] sm:$0xff]
    %v7682 = vld [vmem:[#allocation9 + $0x4d0] sm:$0xff]
    %v7683 = vld [vmem:[#allocation9 + $0x4d8] sm:$0xff]
    %v7684 = vld [vmem:[#allocation9 + $0x4e0] sm:$0xff]
    %v7685 = vld [vmem:[#allocation9 + $0x4e8] sm:$0xff]
    %v7686 = vld [vmem:[#allocation9 + $0x4f0] sm:$0xff]
    %v7687 = vld [vmem:[#allocation9 + $0x4f8] sm:$0xff]
    %v7688 = vld [vmem:[#allocation9 + $0x500] sm:$0xff]
    %v7689 = vld [vmem:[#allocation9 + $0x508] sm:$0xff]
    %v7690 = vld [vmem:[#allocation9 + $0x510] sm:$0xff]
    %v7691 = vld [vmem:[#allocation9 + $0x518] sm:$0xff]
    %v7692 = vld [vmem:[#allocation9 + $0x520] sm:$0xff]
    %v7693 = vld [vmem:[#allocation9 + $0x528] sm:$0xff]
    %v7694 = vld [vmem:[#allocation9 + $0x530] sm:$0xff]
    %v7695 = vld [vmem:[#allocation9 + $0x538] sm:$0xff]
    %v7696 = vld [vmem:[#allocation9 + $0x540] sm:$0xff]
    %v7697 = vld [vmem:[#allocation9 + $0x548] sm:$0xff]
    %v7698 = vld [vmem:[#allocation9 + $0x550] sm:$0xff]
    %v7699 = vld [vmem:[#allocation9 + $0x558] sm:$0xff]
    %v7700 = vld [vmem:[#allocation9 + $0x560] sm:$0xff]
    %v7701 = vld [vmem:[#allocation9 + $0x568] sm:$0xff]
    %v7702 = vld [vmem:[#allocation9 + $0x570] sm:$0xff]
    %v7703 = vld [vmem:[#allocation9 + $0x578] sm:$0xff]
    %v7704 = vld [vmem:[#allocation9 + $0x580] sm:$0xff]
    %v7705 = vld [vmem:[#allocation9 + $0x588] sm:$0xff]
    %v7706 = vld [vmem:[#allocation9 + $0x590] sm:$0xff]
    %v7707 = vld [vmem:[#allocation9 + $0x598] sm:$0xff]
    %v7708 = vld [vmem:[#allocation9 + $0x5a0] sm:$0xff]
    %v7709 = vld [vmem:[#allocation9 + $0x5a8] sm:$0xff]
    %v7710 = vld [vmem:[#allocation9 + $0x5b0] sm:$0xff]
    %v7711 = vld [vmem:[#allocation9 + $0x5b8] sm:$0xff]
    %v7712 = vld [vmem:[#allocation9 + $0x5c0] sm:$0xff]
    %v7713 = vld [vmem:[#allocation9 + $0x5c8] sm:$0xff]
    %v7714 = vld [vmem:[#allocation9 + $0x5d0] sm:$0xff]
    %v7715 = vld [vmem:[#allocation9 + $0x5d8] sm:$0xff]
    %v7716 = vld [vmem:[#allocation9 + $0x5e0] sm:$0xff]
    %v7717 = vld [vmem:[#allocation9 + $0x5e8] sm:$0xff]
    %v7718 = vld [vmem:[#allocation9 + $0x5f0] sm:$0xff]
    %v7719 = vld [vmem:[#allocation9 + $0x5f8] sm:$0xff]
    %v7720 = vld [vmem:[#allocation10] sm:$0xff]
    %v7721 = vld [vmem:[#allocation10 + $0x8] sm:$0xf]
    %v7724 = vlaneseq
    %v7725 = vshrl.u32 %v7724, 7
    %v7726 = vsub.s32 0, %v7725
    %v7727 = vrot.slane %v7720, %v7726
    %v7728 = vlaneseq
    %v7729 = vshrl.u32 %v7728, 7
    %v7730 = vsub.s32 1, %v7729
    %v7731 = vrot.slane %v7720, %v7730
    %v7732 = vlaneseq
    %v7733 = vshrl.u32 %v7732, 7
    %v7734 = vsub.s32 2, %v7733
    %v7735 = vrot.slane %v7720, %v7734
    %v7736 = vlaneseq
    %v7737 = vshrl.u32 %v7736, 7
    %v7738 = vsub.s32 3, %v7737
    %v7739 = vrot.slane %v7720, %v7738
    %v7740 = vlaneseq
    %v7741 = vshrl.u32 %v7740, 7
    %v7742 = vsub.s32 4, %v7741
    %v7743 = vrot.slane %v7720, %v7742
    %v7744 = vlaneseq
    %v7745 = vshrl.u32 %v7744, 7
    %v7746 = vsub.s32 5, %v7745
    %v7747 = vrot.slane %v7720, %v7746
    %v7748 = vlaneseq
    %v7749 = vshrl.u32 %v7748, 7
    %v7750 = vsub.s32 6, %v7749
    %v7751 = vrot.slane %v7720, %v7750
    %v7752 = vlaneseq
    %v7753 = vshrl.u32 %v7752, 7
    %v7754 = vsub.s32 7, %v7753
    %v7755 = vrot.slane %v7720, %v7754
    %v7756 = vlaneseq
    %v7757 = vshrl.u32 %v7756, 7
    %v7758 = vsub.s32 0, %v7757
    %v7759 = vrot.slane %v7721, %v7758
    %v7760 = vlaneseq
    %v7761 = vshrl.u32 %v7760, 7
    %v7762 = vsub.s32 1, %v7761
    %v7763 = vrot.slane %v7721, %v7762
    %v7764 = vlaneseq
    %v7765 = vshrl.u32 %v7764, 7
    %v7766 = vsub.s32 2, %v7765
    %v7767 = vrot.slane %v7721, %v7766
    %v7768 = vlaneseq
    %v7769 = vshrl.u32 %v7768, 7
    %v7770 = vsub.s32 3, %v7769
    %v7771 = vrot.slane %v7721, %v7770
    %v7976 = vunpack.c.l.b16 %v7528
    %v7977 = vunpack.c.h.b16 %v7528
    %v7978 = vunpack.c.l.b16 %v7529
    %v7979 = vunpack.c.h.b16 %v7529
    %v7980 = vunpack.c.l.b16 %v7530
    %v7981 = vunpack.c.h.b16 %v7530
    %v7982 = vunpack.c.l.b16 %v7531
    %v7983 = vunpack.c.h.b16 %v7531
    %v7984 = vunpack.c.l.b16 %v7532
    %v7985 = vunpack.c.h.b16 %v7532
    %v7986 = vunpack.c.l.b16 %v7533
    %v7987 = vunpack.c.h.b16 %v7533
    %v7988 = vunpack.c.l.b16 %v7534
    %v7989 = vunpack.c.h.b16 %v7534
    %v7990 = vunpack.c.l.b16 %v7535
    %v7991 = vunpack.c.h.b16 %v7535
    %v7992 = vunpack.c.l.b16 %v7536
    %v7993 = vunpack.c.h.b16 %v7536
    %v7994 = vunpack.c.l.b16 %v7537
    %v7995 = vunpack.c.h.b16 %v7537
    %v7996 = vunpack.c.l.b16 %v7538
    %v7997 = vunpack.c.h.b16 %v7538
    %v7998 = vunpack.c.l.b16 %v7539
    %v7999 = vunpack.c.h.b16 %v7539
    %v8000 = vunpack.c.l.b16 %v7540
    %v8001 = vunpack.c.h.b16 %v7540
    %v8002 = vunpack.c.l.b16 %v7541
    %v8003 = vunpack.c.h.b16 %v7541
    %v8004 = vunpack.c.l.b16 %v7542
    %v8005 = vunpack.c.h.b16 %v7542
    %v8006 = vunpack.c.l.b16 %v7543
    %v8007 = vunpack.c.h.b16 %v7543
    %v8008 = vunpack.c.l.b16 %v7544
    %v8009 = vunpack.c.h.b16 %v7544
    %v8010 = vunpack.c.l.b16 %v7545
    %v8011 = vunpack.c.h.b16 %v7545
    %v8012 = vunpack.c.l.b16 %v7546
    %v8013 = vunpack.c.h.b16 %v7546
    %v8014 = vunpack.c.l.b16 %v7547
    %v8015 = vunpack.c.h.b16 %v7547
    %v8016 = vunpack.c.l.b16 %v7548
    %v8017 = vunpack.c.h.b16 %v7548
    %v8018 = vunpack.c.l.b16 %v7549
    %v8019 = vunpack.c.h.b16 %v7549
    %v8020 = vunpack.c.l.b16 %v7550
    %v8021 = vunpack.c.h.b16 %v7550
    %v8022 = vunpack.c.l.b16 %v7551
    %v8023 = vunpack.c.h.b16 %v7551
    %v8024 = vunpack.c.l.b16 %v7552
    %v8025 = vunpack.c.h.b16 %v7552
    %v8026 = vunpack.c.l.b16 %v7553
    %v8027 = vunpack.c.h.b16 %v7553
    %v8028 = vunpack.c.l.b16 %v7554
    %v8029 = vunpack.c.h.b16 %v7554
    %v8030 = vunpack.c.l.b16 %v7555
    %v8031 = vunpack.c.h.b16 %v7555
    %v8032 = vunpack.c.l.b16 %v7556
    %v8033 = vunpack.c.h.b16 %v7556
    %v8034 = vunpack.c.l.b16 %v7557
    %v8035 = vunpack.c.h.b16 %v7557
    %v8036 = vunpack.c.l.b16 %v7558
    %v8037 = vunpack.c.h.b16 %v7558
    %v8038 = vunpack.c.l.b16 %v7559
    %v8039 = vunpack.c.h.b16 %v7559
    %v8040 = vunpack.c.l.b16 %v7560
    %v8041 = vunpack.c.h.b16 %v7560
    %v8042 = vunpack.c.l.b16 %v7561
    %v8043 = vunpack.c.h.b16 %v7561
    %v8044 = vunpack.c.l.b16 %v7562
    %v8045 = vunpack.c.h.b16 %v7562
    %v8046 = vunpack.c.l.b16 %v7563
    %v8047 = vunpack.c.h.b16 %v7563
    %v8048 = vunpack.c.l.b16 %v7564
    %v8049 = vunpack.c.h.b16 %v7564
    %v8050 = vunpack.c.l.b16 %v7565
    %v8051 = vunpack.c.h.b16 %v7565
    %v8052 = vunpack.c.l.b16 %v7566
    %v8053 = vunpack.c.h.b16 %v7566
    %v8054 = vunpack.c.l.b16 %v7567
    %v8055 = vunpack.c.h.b16 %v7567
    %v8056 = vunpack.c.l.b16 %v7568
    %v8057 = vunpack.c.h.b16 %v7568
    %v8058 = vunpack.c.l.b16 %v7569
    %v8059 = vunpack.c.h.b16 %v7569
    %v8060 = vunpack.c.l.b16 %v7570
    %v8061 = vunpack.c.h.b16 %v7570
    %v8062 = vunpack.c.l.b16 %v7571
    %v8063 = vunpack.c.h.b16 %v7571
    %v8064 = vunpack.c.l.b16 %v7572
    %v8065 = vunpack.c.h.b16 %v7572
    %v8066 = vunpack.c.l.b16 %v7573
    %v8067 = vunpack.c.h.b16 %v7573
    %v8068 = vunpack.c.l.b16 %v7574
    %v8069 = vunpack.c.h.b16 %v7574
    %v8070 = vunpack.c.l.b16 %v7575
    %v8071 = vunpack.c.h.b16 %v7575
    %v8072 = vunpack.c.l.b16 %v7576
    %v8073 = vunpack.c.h.b16 %v7576
    %v8074 = vunpack.c.l.b16 %v7577
    %v8075 = vunpack.c.h.b16 %v7577
    %v8076 = vunpack.c.l.b16 %v7578
    %v8077 = vunpack.c.h.b16 %v7578
    %v8078 = vunpack.c.l.b16 %v7579
    %v8079 = vunpack.c.h.b16 %v7579
    %v8080 = vunpack.c.l.b16 %v7580
    %v8081 = vunpack.c.h.b16 %v7580
    %v8082 = vunpack.c.l.b16 %v7581
    %v8083 = vunpack.c.h.b16 %v7581
    %v8084 = vunpack.c.l.b16 %v7582
    %v8085 = vunpack.c.h.b16 %v7582
    %v8086 = vunpack.c.l.b16 %v7583
    %v8087 = vunpack.c.h.b16 %v7583
    %v8088 = vunpack.c.l.b16 %v7584
    %v8089 = vunpack.c.h.b16 %v7584
    %v8090 = vunpack.c.l.b16 %v7585
    %v8091 = vunpack.c.h.b16 %v7585
    %v8092 = vunpack.c.l.b16 %v7586
    %v8093 = vunpack.c.h.b16 %v7586
    %v8094 = vunpack.c.l.b16 %v7587
    %v8095 = vunpack.c.h.b16 %v7587
    %v8096 = vunpack.c.l.b16 %v7588
    %v8097 = vunpack.c.h.b16 %v7588
    %v8098 = vunpack.c.l.b16 %v7589
    %v8099 = vunpack.c.h.b16 %v7589
    %v8100 = vunpack.c.l.b16 %v7590
    %v8101 = vunpack.c.h.b16 %v7590
    %v8102 = vunpack.c.l.b16 %v7591
    %v8103 = vunpack.c.h.b16 %v7591
    %v8104 = vunpack.c.l.b16 %v7592
    %v8105 = vunpack.c.h.b16 %v7592
    %v8106 = vunpack.c.l.b16 %v7593
    %v8107 = vunpack.c.h.b16 %v7593
    %v8108 = vunpack.c.l.b16 %v7594
    %v8109 = vunpack.c.h.b16 %v7594
    %v8110 = vunpack.c.l.b16 %v7595
    %v8111 = vunpack.c.h.b16 %v7595
    %v8112 = vunpack.c.l.b16 %v7596
    %v8113 = vunpack.c.h.b16 %v7596
    %v8114 = vunpack.c.l.b16 %v7597
    %v8115 = vunpack.c.h.b16 %v7597
    %v8116 = vunpack.c.l.b16 %v7598
    %v8117 = vunpack.c.h.b16 %v7598
    %v8118 = vunpack.c.l.b16 %v7599
    %v8119 = vunpack.c.h.b16 %v7599
    %v8120 = vunpack.c.l.b16 %v7600
    %v8121 = vunpack.c.h.b16 %v7600
    %v8122 = vunpack.c.l.b16 %v7601
    %v8123 = vunpack.c.h.b16 %v7601
    %v8124 = vunpack.c.l.b16 %v7602
    %v8125 = vunpack.c.h.b16 %v7602
    %v8126 = vunpack.c.l.b16 %v7603
    %v8127 = vunpack.c.h.b16 %v7603
    %v8128 = vunpack.c.l.b16 %v7604
    %v8129 = vunpack.c.h.b16 %v7604
    %v8130 = vunpack.c.l.b16 %v7605
    %v8131 = vunpack.c.h.b16 %v7605
    %v8132 = vunpack.c.l.b16 %v7606
    %v8133 = vunpack.c.h.b16 %v7606
    %v8134 = vunpack.c.l.b16 %v7607
    %v8135 = vunpack.c.h.b16 %v7607
    %v8136 = vunpack.c.l.b16 %v7608
    %v8137 = vunpack.c.h.b16 %v7608
    %v8138 = vunpack.c.l.b16 %v7609
    %v8139 = vunpack.c.h.b16 %v7609
    %v8140 = vunpack.c.l.b16 %v7610
    %v8141 = vunpack.c.h.b16 %v7610
    %v8142 = vunpack.c.l.b16 %v7611
    %v8143 = vunpack.c.h.b16 %v7611
    %v8144 = vunpack.c.l.b16 %v7612
    %v8145 = vunpack.c.h.b16 %v7612
    %v8146 = vunpack.c.l.b16 %v7613
    %v8147 = vunpack.c.h.b16 %v7613
    %v8148 = vunpack.c.l.b16 %v7614
    %v8149 = vunpack.c.h.b16 %v7614
    %v8150 = vunpack.c.l.b16 %v7615
    %v8151 = vunpack.c.h.b16 %v7615
    %v8152 = vunpack.c.l.b16 %v7616
    %v8153 = vunpack.c.h.b16 %v7616
    %v8154 = vunpack.c.l.b16 %v7617
    %v8155 = vunpack.c.h.b16 %v7617
    %v8156 = vunpack.c.l.b16 %v7618
    %v8157 = vunpack.c.h.b16 %v7618
    %v8158 = vunpack.c.l.b16 %v7619
    %v8159 = vunpack.c.h.b16 %v7619
    %v8160 = vunpack.c.l.b16 %v7620
    %v8161 = vunpack.c.h.b16 %v7620
    %v8162 = vunpack.c.l.b16 %v7621
    %v8163 = vunpack.c.h.b16 %v7621
    %v8164 = vunpack.c.l.b16 %v7622
    %v8165 = vunpack.c.h.b16 %v7622
    %v8166 = vunpack.c.l.b16 %v7623
    %v8167 = vunpack.c.h.b16 %v7623
    %v8168 = vunpack.c.l.b16 %v7624
    %v8169 = vunpack.c.h.b16 %v7624
    %v8170 = vunpack.c.l.b16 %v7625
    %v8171 = vunpack.c.h.b16 %v7625
    %v8172 = vunpack.c.l.b16 %v7626
    %v8173 = vunpack.c.h.b16 %v7626
    %v8174 = vunpack.c.l.b16 %v7627
    %v8175 = vunpack.c.h.b16 %v7627
    %v8176 = vunpack.c.l.b16 %v7628
    %v8177 = vunpack.c.h.b16 %v7628
    %v8178 = vunpack.c.l.b16 %v7629
    %v8179 = vunpack.c.h.b16 %v7629
    %v8180 = vunpack.c.l.b16 %v7630
    %v8181 = vunpack.c.h.b16 %v7630
    %v8182 = vunpack.c.l.b16 %v7631
    %v8183 = vunpack.c.h.b16 %v7631
    %v8184 = vunpack.c.l.b16 %v7632
    %v8185 = vunpack.c.h.b16 %v7632
    %v8186 = vunpack.c.l.b16 %v7633
    %v8187 = vunpack.c.h.b16 %v7633
    %v8188 = vunpack.c.l.b16 %v7634
    %v8189 = vunpack.c.h.b16 %v7634
    %v8190 = vunpack.c.l.b16 %v7635
    %v8191 = vunpack.c.h.b16 %v7635
    %v8192 = vunpack.c.l.b16 %v7636
    %v8193 = vunpack.c.h.b16 %v7636
    %v8194 = vunpack.c.l.b16 %v7637
    %v8195 = vunpack.c.h.b16 %v7637
    %v8196 = vunpack.c.l.b16 %v7638
    %v8197 = vunpack.c.h.b16 %v7638
    %v8198 = vunpack.c.l.b16 %v7639
    %v8199 = vunpack.c.h.b16 %v7639
    %v8200 = vunpack.c.l.b16 %v7640
    %v8201 = vunpack.c.h.b16 %v7640
    %v8202 = vunpack.c.l.b16 %v7641
    %v8203 = vunpack.c.h.b16 %v7641
    %v8204 = vunpack.c.l.b16 %v7642
    %v8205 = vunpack.c.h.b16 %v7642
    %v8206 = vunpack.c.l.b16 %v7643
    %v8207 = vunpack.c.h.b16 %v7643
    %v8208 = vunpack.c.l.b16 %v7644
    %v8209 = vunpack.c.h.b16 %v7644
    %v8210 = vunpack.c.l.b16 %v7645
    %v8211 = vunpack.c.h.b16 %v7645
    %v8212 = vunpack.c.l.b16 %v7646
    %v8213 = vunpack.c.h.b16 %v7646
    %v8214 = vunpack.c.l.b16 %v7647
    %v8215 = vunpack.c.h.b16 %v7647
    %v8216 = vunpack.c.l.b16 %v7648
    %v8217 = vunpack.c.h.b16 %v7648
    %v8218 = vunpack.c.l.b16 %v7649
    %v8219 = vunpack.c.h.b16 %v7649
    %v8220 = vunpack.c.l.b16 %v7650
    %v8221 = vunpack.c.h.b16 %v7650
    %v8222 = vunpack.c.l.b16 %v7651
    %v8223 = vunpack.c.h.b16 %v7651
    %v8224 = vunpack.c.l.b16 %v7652
    %v8225 = vunpack.c.h.b16 %v7652
    %v8226 = vunpack.c.l.b16 %v7653
    %v8227 = vunpack.c.h.b16 %v7653
    %v8228 = vunpack.c.l.b16 %v7654
    %v8229 = vunpack.c.h.b16 %v7654
    %v8230 = vunpack.c.l.b16 %v7655
    %v8231 = vunpack.c.h.b16 %v7655
    %v8232 = vunpack.c.l.b16 %v7656
    %v8233 = vunpack.c.h.b16 %v7656
    %v8234 = vunpack.c.l.b16 %v7657
    %v8235 = vunpack.c.h.b16 %v7657
    %v8236 = vunpack.c.l.b16 %v7658
    %v8237 = vunpack.c.h.b16 %v7658
    %v8238 = vunpack.c.l.b16 %v7659
    %v8239 = vunpack.c.h.b16 %v7659
    %v8240 = vunpack.c.l.b16 %v7660
    %v8241 = vunpack.c.h.b16 %v7660
    %v8242 = vunpack.c.l.b16 %v7661
    %v8243 = vunpack.c.h.b16 %v7661
    %v8244 = vunpack.c.l.b16 %v7662
    %v8245 = vunpack.c.h.b16 %v7662
    %v8246 = vunpack.c.l.b16 %v7663
    %v8247 = vunpack.c.h.b16 %v7663
    %v8248 = vunpack.c.l.b16 %v7664
    %v8249 = vunpack.c.h.b16 %v7664
    %v8250 = vunpack.c.l.b16 %v7665
    %v8251 = vunpack.c.h.b16 %v7665
    %v8252 = vunpack.c.l.b16 %v7666
    %v8253 = vunpack.c.h.b16 %v7666
    %v8254 = vunpack.c.l.b16 %v7667
    %v8255 = vunpack.c.h.b16 %v7667
    %v8256 = vunpack.c.l.b16 %v7668
    %v8257 = vunpack.c.h.b16 %v7668
    %v8258 = vunpack.c.l.b16 %v7669
    %v8259 = vunpack.c.h.b16 %v7669
    %v8260 = vunpack.c.l.b16 %v7670
    %v8261 = vunpack.c.h.b16 %v7670
    %v8262 = vunpack.c.l.b16 %v7671
    %v8263 = vunpack.c.h.b16 %v7671
    %v8264 = vunpack.c.l.b16 %v7672
    %v8265 = vunpack.c.h.b16 %v7672
    %v8266 = vunpack.c.l.b16 %v7673
    %v8267 = vunpack.c.h.b16 %v7673
    %v8268 = vunpack.c.l.b16 %v7674
    %v8269 = vunpack.c.h.b16 %v7674
    %v8270 = vunpack.c.l.b16 %v7675
    %v8271 = vunpack.c.h.b16 %v7675
    %v8272 = vunpack.c.l.b16 %v7676
    %v8273 = vunpack.c.h.b16 %v7676
    %v8274 = vunpack.c.l.b16 %v7677
    %v8275 = vunpack.c.h.b16 %v7677
    %v8276 = vunpack.c.l.b16 %v7678
    %v8277 = vunpack.c.h.b16 %v7678
    %v8278 = vunpack.c.l.b16 %v7679
    %v8279 = vunpack.c.h.b16 %v7679
    %v8280 = vunpack.c.l.b16 %v7680
    %v8281 = vunpack.c.h.b16 %v7680
    %v8282 = vunpack.c.l.b16 %v7681
    %v8283 = vunpack.c.h.b16 %v7681
    %v8284 = vunpack.c.l.b16 %v7682
    %v8285 = vunpack.c.h.b16 %v7682
    %v8286 = vunpack.c.l.b16 %v7683
    %v8287 = vunpack.c.h.b16 %v7683
    %v8288 = vunpack.c.l.b16 %v7684
    %v8289 = vunpack.c.h.b16 %v7684
    %v8290 = vunpack.c.l.b16 %v7685
    %v8291 = vunpack.c.h.b16 %v7685
    %v8292 = vunpack.c.l.b16 %v7686
    %v8293 = vunpack.c.h.b16 %v7686
    %v8294 = vunpack.c.l.b16 %v7687
    %v8295 = vunpack.c.h.b16 %v7687
    %v8296 = vunpack.c.l.b16 %v7688
    %v8297 = vunpack.c.h.b16 %v7688
    %v8298 = vunpack.c.l.b16 %v7689
    %v8299 = vunpack.c.h.b16 %v7689
    %v8300 = vunpack.c.l.b16 %v7690
    %v8301 = vunpack.c.h.b16 %v7690
    %v8302 = vunpack.c.l.b16 %v7691
    %v8303 = vunpack.c.h.b16 %v7691
    %v8304 = vunpack.c.l.b16 %v7692
    %v8305 = vunpack.c.h.b16 %v7692
    %v8306 = vunpack.c.l.b16 %v7693
    %v8307 = vunpack.c.h.b16 %v7693
    %v8308 = vunpack.c.l.b16 %v7694
    %v8309 = vunpack.c.h.b16 %v7694
    %v8310 = vunpack.c.l.b16 %v7695
    %v8311 = vunpack.c.h.b16 %v7695
    %v8312 = vunpack.c.l.b16 %v7696
    %v8313 = vunpack.c.h.b16 %v7696
    %v8314 = vunpack.c.l.b16 %v7697
    %v8315 = vunpack.c.h.b16 %v7697
    %v8316 = vunpack.c.l.b16 %v7698
    %v8317 = vunpack.c.h.b16 %v7698
    %v8318 = vunpack.c.l.b16 %v7699
    %v8319 = vunpack.c.h.b16 %v7699
    %v8320 = vunpack.c.l.b16 %v7700
    %v8321 = vunpack.c.h.b16 %v7700
    %v8322 = vunpack.c.l.b16 %v7701
    %v8323 = vunpack.c.h.b16 %v7701
    %v8324 = vunpack.c.l.b16 %v7702
    %v8325 = vunpack.c.h.b16 %v7702
    %v8326 = vunpack.c.l.b16 %v7703
    %v8327 = vunpack.c.h.b16 %v7703
    %v8328 = vunpack.c.l.b16 %v7704
    %v8329 = vunpack.c.h.b16 %v7704
    %v8330 = vunpack.c.l.b16 %v7705
    %v8331 = vunpack.c.h.b16 %v7705
    %v8332 = vunpack.c.l.b16 %v7706
    %v8333 = vunpack.c.h.b16 %v7706
    %v8334 = vunpack.c.l.b16 %v7707
    %v8335 = vunpack.c.h.b16 %v7707
    %v8336 = vunpack.c.l.b16 %v7708
    %v8337 = vunpack.c.h.b16 %v7708
    %v8338 = vunpack.c.l.b16 %v7709
    %v8339 = vunpack.c.h.b16 %v7709
    %v8340 = vunpack.c.l.b16 %v7710
    %v8341 = vunpack.c.h.b16 %v7710
    %v8342 = vunpack.c.l.b16 %v7711
    %v8343 = vunpack.c.h.b16 %v7711
    %v8344 = vunpack.c.l.b16 %v7712
    %v8345 = vunpack.c.h.b16 %v7712
    %v8346 = vunpack.c.l.b16 %v7713
    %v8347 = vunpack.c.h.b16 %v7713
    %v8348 = vunpack.c.l.b16 %v7714
    %v8349 = vunpack.c.h.b16 %v7714
    %v8350 = vunpack.c.l.b16 %v7715
    %v8351 = vunpack.c.h.b16 %v7715
    %v8352 = vunpack.c.l.b16 %v7716
    %v8353 = vunpack.c.h.b16 %v7716
    %v8354 = vunpack.c.l.b16 %v7717
    %v8355 = vunpack.c.h.b16 %v7717
    %v8356 = vunpack.c.l.b16 %v7718
    %v8357 = vunpack.c.h.b16 %v7718
    %v8358 = vunpack.c.l.b16 %v7719
    %v8359 = vunpack.c.h.b16 %v7719
    %v8360 = vpack.c.b16 %v7988, %v7976
    %v8361 = vpack.c.b16 %v7989, %v7977
    %v8362 = vpack.c.b16 %v7990, %v7978
    %v8363 = vpack.c.b16 %v7991, %v7979
    %v8364 = vpack.c.b16 %v7992, %v7980
    %v8365 = vpack.c.b16 %v7993, %v7981
    %v8366 = vpack.c.b16 %v7994, %v7982
    %v8367 = vpack.c.b16 %v7995, %v7983
    %v8368 = vpack.c.b16 %v7996, %v7984
    %v8369 = vpack.c.b16 %v7997, %v7985
    %v8370 = vpack.c.b16 %v7998, %v7986
    %v8371 = vpack.c.b16 %v7999, %v7987
    %v8372 = vpack.c.b16 %v8012, %v8000
    %v8373 = vpack.c.b16 %v8013, %v8001
    %v8374 = vpack.c.b16 %v8014, %v8002
    %v8375 = vpack.c.b16 %v8015, %v8003
    %v8376 = vpack.c.b16 %v8016, %v8004
    %v8377 = vpack.c.b16 %v8017, %v8005
    %v8378 = vpack.c.b16 %v8018, %v8006
    %v8379 = vpack.c.b16 %v8019, %v8007
    %v8380 = vpack.c.b16 %v8020, %v8008
    %v8381 = vpack.c.b16 %v8021, %v8009
    %v8382 = vpack.c.b16 %v8022, %v8010
    %v8383 = vpack.c.b16 %v8023, %v8011
    %v8384 = vpack.c.b16 %v8036, %v8024
    %v8385 = vpack.c.b16 %v8037, %v8025
    %v8386 = vpack.c.b16 %v8038, %v8026
    %v8387 = vpack.c.b16 %v8039, %v8027
    %v8388 = vpack.c.b16 %v8040, %v8028
    %v8389 = vpack.c.b16 %v8041, %v8029
    %v8390 = vpack.c.b16 %v8042, %v8030
    %v8391 = vpack.c.b16 %v8043, %v8031
    %v8392 = vpack.c.b16 %v8044, %v8032
    %v8393 = vpack.c.b16 %v8045, %v8033
    %v8394 = vpack.c.b16 %v8046, %v8034
    %v8395 = vpack.c.b16 %v8047, %v8035
    %v8396 = vpack.c.b16 %v8060, %v8048
    %v8397 = vpack.c.b16 %v8061, %v8049
    %v8398 = vpack.c.b16 %v8062, %v8050
    %v8399 = vpack.c.b16 %v8063, %v8051
    %v8400 = vpack.c.b16 %v8064, %v8052
    %v8401 = vpack.c.b16 %v8065, %v8053
    %v8402 = vpack.c.b16 %v8066, %v8054
    %v8403 = vpack.c.b16 %v8067, %v8055
    %v8404 = vpack.c.b16 %v8068, %v8056
    %v8405 = vpack.c.b16 %v8069, %v8057
    %v8406 = vpack.c.b16 %v8070, %v8058
    %v8407 = vpack.c.b16 %v8071, %v8059
    %v8408 = vpack.c.b16 %v8084, %v8072
    %v8409 = vpack.c.b16 %v8085, %v8073
    %v8410 = vpack.c.b16 %v8086, %v8074
    %v8411 = vpack.c.b16 %v8087, %v8075
    %v8412 = vpack.c.b16 %v8088, %v8076
    %v8413 = vpack.c.b16 %v8089, %v8077
    %v8414 = vpack.c.b16 %v8090, %v8078
    %v8415 = vpack.c.b16 %v8091, %v8079
    %v8416 = vpack.c.b16 %v8092, %v8080
    %v8417 = vpack.c.b16 %v8093, %v8081
    %v8418 = vpack.c.b16 %v8094, %v8082
    %v8419 = vpack.c.b16 %v8095, %v8083
    %v8420 = vpack.c.b16 %v8108, %v8096
    %v8421 = vpack.c.b16 %v8109, %v8097
    %v8422 = vpack.c.b16 %v8110, %v8098
    %v8423 = vpack.c.b16 %v8111, %v8099
    %v8424 = vpack.c.b16 %v8112, %v8100
    %v8425 = vpack.c.b16 %v8113, %v8101
    %v8426 = vpack.c.b16 %v8114, %v8102
    %v8427 = vpack.c.b16 %v8115, %v8103
    %v8428 = vpack.c.b16 %v8116, %v8104
    %v8429 = vpack.c.b16 %v8117, %v8105
    %v8430 = vpack.c.b16 %v8118, %v8106
    %v8431 = vpack.c.b16 %v8119, %v8107
    %v8432 = vpack.c.b16 %v8132, %v8120
    %v8433 = vpack.c.b16 %v8133, %v8121
    %v8434 = vpack.c.b16 %v8134, %v8122
    %v8435 = vpack.c.b16 %v8135, %v8123
    %v8436 = vpack.c.b16 %v8136, %v8124
    %v8437 = vpack.c.b16 %v8137, %v8125
    %v8438 = vpack.c.b16 %v8138, %v8126
    %v8439 = vpack.c.b16 %v8139, %v8127
    %v8440 = vpack.c.b16 %v8140, %v8128
    %v8441 = vpack.c.b16 %v8141, %v8129
    %v8442 = vpack.c.b16 %v8142, %v8130
    %v8443 = vpack.c.b16 %v8143, %v8131
    %v8444 = vpack.c.b16 %v8156, %v8144
    %v8445 = vpack.c.b16 %v8157, %v8145
    %v8446 = vpack.c.b16 %v8158, %v8146
    %v8447 = vpack.c.b16 %v8159, %v8147
    %v8448 = vpack.c.b16 %v8160, %v8148
    %v8449 = vpack.c.b16 %v8161, %v8149
    %v8450 = vpack.c.b16 %v8162, %v8150
    %v8451 = vpack.c.b16 %v8163, %v8151
    %v8452 = vpack.c.b16 %v8164, %v8152
    %v8453 = vpack.c.b16 %v8165, %v8153
    %v8454 = vpack.c.b16 %v8166, %v8154
    %v8455 = vpack.c.b16 %v8167, %v8155
    %v8456 = vpack.c.b16 %v8180, %v8168
    %v8457 = vpack.c.b16 %v8181, %v8169
    %v8458 = vpack.c.b16 %v8182, %v8170
    %v8459 = vpack.c.b16 %v8183, %v8171
    %v8460 = vpack.c.b16 %v8184, %v8172
    %v8461 = vpack.c.b16 %v8185, %v8173
    %v8462 = vpack.c.b16 %v8186, %v8174
    %v8463 = vpack.c.b16 %v8187, %v8175
    %v8464 = vpack.c.b16 %v8188, %v8176
    %v8465 = vpack.c.b16 %v8189, %v8177
    %v8466 = vpack.c.b16 %v8190, %v8178
    %v8467 = vpack.c.b16 %v8191, %v8179
    %v8468 = vpack.c.b16 %v8204, %v8192
    %v8469 = vpack.c.b16 %v8205, %v8193
    %v8470 = vpack.c.b16 %v8206, %v8194
    %v8471 = vpack.c.b16 %v8207, %v8195
    %v8472 = vpack.c.b16 %v8208, %v8196
    %v8473 = vpack.c.b16 %v8209, %v8197
    %v8474 = vpack.c.b16 %v8210, %v8198
    %v8475 = vpack.c.b16 %v8211, %v8199
    %v8476 = vpack.c.b16 %v8212, %v8200
    %v8477 = vpack.c.b16 %v8213, %v8201
    %v8478 = vpack.c.b16 %v8214, %v8202
    %v8479 = vpack.c.b16 %v8215, %v8203
    %v8480 = vpack.c.b16 %v8228, %v8216
    %v8481 = vpack.c.b16 %v8229, %v8217
    %v8482 = vpack.c.b16 %v8230, %v8218
    %v8483 = vpack.c.b16 %v8231, %v8219
    %v8484 = vpack.c.b16 %v8232, %v8220
    %v8485 = vpack.c.b16 %v8233, %v8221
    %v8486 = vpack.c.b16 %v8234, %v8222
    %v8487 = vpack.c.b16 %v8235, %v8223
    %v8488 = vpack.c.b16 %v8236, %v8224
    %v8489 = vpack.c.b16 %v8237, %v8225
    %v8490 = vpack.c.b16 %v8238, %v8226
    %v8491 = vpack.c.b16 %v8239, %v8227
    %v8492 = vpack.c.b16 %v8252, %v8240
    %v8493 = vpack.c.b16 %v8253, %v8241
    %v8494 = vpack.c.b16 %v8254, %v8242
    %v8495 = vpack.c.b16 %v8255, %v8243
    %v8496 = vpack.c.b16 %v8256, %v8244
    %v8497 = vpack.c.b16 %v8257, %v8245
    %v8498 = vpack.c.b16 %v8258, %v8246
    %v8499 = vpack.c.b16 %v8259, %v8247
    %v8500 = vpack.c.b16 %v8260, %v8248
    %v8501 = vpack.c.b16 %v8261, %v8249
    %v8502 = vpack.c.b16 %v8262, %v8250
    %v8503 = vpack.c.b16 %v8263, %v8251
    %v8504 = vpack.c.b16 %v8276, %v8264
    %v8505 = vpack.c.b16 %v8277, %v8265
    %v8506 = vpack.c.b16 %v8278, %v8266
    %v8507 = vpack.c.b16 %v8279, %v8267
    %v8508 = vpack.c.b16 %v8280, %v8268
    %v8509 = vpack.c.b16 %v8281, %v8269
    %v8510 = vpack.c.b16 %v8282, %v8270
    %v8511 = vpack.c.b16 %v8283, %v8271
    %v8512 = vpack.c.b16 %v8284, %v8272
    %v8513 = vpack.c.b16 %v8285, %v8273
    %v8514 = vpack.c.b16 %v8286, %v8274
    %v8515 = vpack.c.b16 %v8287, %v8275
    %v8516 = vpack.c.b16 %v8300, %v8288
    %v8517 = vpack.c.b16 %v8301, %v8289
    %v8518 = vpack.c.b16 %v8302, %v8290
    %v8519 = vpack.c.b16 %v8303, %v8291
    %v8520 = vpack.c.b16 %v8304, %v8292
    %v8521 = vpack.c.b16 %v8305, %v8293
    %v8522 = vpack.c.b16 %v8306, %v8294
    %v8523 = vpack.c.b16 %v8307, %v8295
    %v8524 = vpack.c.b16 %v8308, %v8296
    %v8525 = vpack.c.b16 %v8309, %v8297
    %v8526 = vpack.c.b16 %v8310, %v8298
    %v8527 = vpack.c.b16 %v8311, %v8299
    %v8528 = vpack.c.b16 %v8324, %v8312
    %v8529 = vpack.c.b16 %v8325, %v8313
    %v8530 = vpack.c.b16 %v8326, %v8314
    %v8531 = vpack.c.b16 %v8327, %v8315
    %v8532 = vpack.c.b16 %v8328, %v8316
    %v8533 = vpack.c.b16 %v8329, %v8317
    %v8534 = vpack.c.b16 %v8330, %v8318
    %v8535 = vpack.c.b16 %v8331, %v8319
    %v8536 = vpack.c.b16 %v8332, %v8320
    %v8537 = vpack.c.b16 %v8333, %v8321
    %v8538 = vpack.c.b16 %v8334, %v8322
    %v8539 = vpack.c.b16 %v8335, %v8323
    %v8540 = vpack.c.b16 %v8348, %v8336
    %v8541 = vpack.c.b16 %v8349, %v8337
    %v8542 = vpack.c.b16 %v8350, %v8338
    %v8543 = vpack.c.b16 %v8351, %v8339
    %v8544 = vpack.c.b16 %v8352, %v8340
    %v8545 = vpack.c.b16 %v8353, %v8341
    %v8546 = vpack.c.b16 %v8354, %v8342
    %v8547 = vpack.c.b16 %v8355, %v8343
    %v8548 = vpack.c.b16 %v8356, %v8344
    %v8549 = vpack.c.b16 %v8357, %v8345
    %v8550 = vpack.c.b16 %v8358, %v8346
    %v8551 = vpack.c.b16 %v8359, %v8347
    %8744 = vmatprep.subr.bf16.mxu0 %v8361
    %8745 = vmatpush1.bf16.msra.mxu0 %v8360
    %8746 = vmatprep.subr.bf16.mxu0 %v8373
    %8747 = vmatpush1.bf16.msra.mxu0 %v8372
    %8748 = vmatprep.subr.bf16.mxu0 %v8385
    %8749 = vmatpush1.bf16.msra.mxu0 %v8384
    %8750 = vmatprep.subr.bf16.mxu0 %v8397
    %8751 = vmatpush1.bf16.msra.mxu0 %v8396
    %8752 = vmatprep.subr.bf16.mxu0 %v8409
    %8753 = vmatpush1.bf16.msra.mxu0 %v8408
    %8754 = vmatprep.subr.bf16.mxu0 %v8421
    %8755 = vmatpush1.bf16.msra.mxu0 %v8420
    %8756 = vmatprep.subr.bf16.mxu0 %v8433
    %8757 = vmatpush1.bf16.msra.mxu0 %v8432
    %8758 = vmatprep.subr.bf16.mxu0 %v8445
    %8759 = vmatpush1.bf16.msra.mxu0 %v8444
    %8760 = vmatprep.subr.bf16.mxu0 %v8457
    %8761 = vmatpush1.bf16.msra.mxu0 %v8456
    %8762 = vmatprep.subr.bf16.mxu0 %v8469
    %8763 = vmatpush1.bf16.msra.mxu0 %v8468
    %8764 = vmatprep.subr.bf16.mxu0 %v8481
    %8765 = vmatpush1.bf16.msra.mxu0 %v8480
    %8766 = vmatprep.subr.bf16.mxu0 %v8493
    %8767 = vmatpush1.bf16.msra.mxu0 %v8492
    %8768 = vmatprep.subr.bf16.mxu0 %v8505
    %8769 = vmatpush1.bf16.msra.mxu0 %v8504
    %8770 = vmatprep.subr.bf16.mxu0 %v8517
    %8771 = vmatpush1.bf16.msra.mxu0 %v8516
    %8772 = vmatprep.subr.bf16.mxu0 %v8529
    %8773 = vmatpush1.bf16.msra.mxu0 %v8528
    %8774 = vmatprep.subr.bf16.mxu0 %v8541
    %8775 = vmatpush1.bf16.msra.mxu0 %v8540
    %8776 = vmatprep.mubr.bf16.mxu0 %v7527
    %8777 = vmatmul.mubr.bf16.gmra.mrb[0].mxu0 %v7526
    %v8778 = vpop.f32.mrb[0].mxu0
    %v8779 = vadd.f32 %v7727, %v8778
    %v8780 = vpop.f32.mrb[0].mxu0
    %v8781 = vadd.f32 %v7731, %v8780
    %v8782 = vpop.f32.mrb[0].mxu0
    %v8783 = vpop.f32.mrb[0].mxu0
    %8784 = vdwg.mxu0
    %8785 = vmatprep.subr.bf16.mxu0 %v8363
    %8786 = vmatpush1.bf16.msra.mxu0 %v8362
    %8787 = vmatprep.subr.bf16.mxu0 %v8375
    %8788 = vmatpush1.bf16.msra.mxu0 %v8374
    %8789 = vmatprep.subr.bf16.mxu0 %v8387
    %8790 = vmatpush1.bf16.msra.mxu0 %v8386
    %8791 = vmatprep.subr.bf16.mxu0 %v8399
    %8792 = vmatpush1.bf16.msra.mxu0 %v8398
    %8793 = vmatprep.subr.bf16.mxu0 %v8411
    %8794 = vmatpush1.bf16.msra.mxu0 %v8410
    %8795 = vmatprep.subr.bf16.mxu0 %v8423
    %8796 = vmatpush1.bf16.msra.mxu0 %v8422
    %8797 = vmatprep.subr.bf16.mxu0 %v8435
    %8798 = vmatpush1.bf16.msra.mxu0 %v8434
    %8799 = vmatprep.subr.bf16.mxu0 %v8447
    %8800 = vmatpush1.bf16.msra.mxu0 %v8446
    %8801 = vmatprep.subr.bf16.mxu0 %v8459
    %8802 = vmatpush1.bf16.msra.mxu0 %v8458
    %8803 = vmatprep.subr.bf16.mxu0 %v8471
    %8804 = vmatpush1.bf16.msra.mxu0 %v8470
    %8805 = vmatprep.subr.bf16.mxu0 %v8483
    %8806 = vmatpush1.bf16.msra.mxu0 %v8482
    %8807 = vmatprep.subr.bf16.mxu0 %v8495
    %8808 = vmatpush1.bf16.msra.mxu0 %v8494
    %8809 = vmatprep.subr.bf16.mxu0 %v8507
    %8810 = vmatpush1.bf16.msra.mxu0 %v8506
    %8811 = vmatprep.subr.bf16.mxu0 %v8519
    %8812 = vmatpush1.bf16.msra.mxu0 %v8518
    %8813 = vmatprep.subr.bf16.mxu0 %v8531
    %8814 = vmatpush1.bf16.msra.mxu0 %v8530
    %8815 = vmatprep.subr.bf16.mxu0 %v8543
    %8816 = vmatpush1.bf16.msra.mxu0 %v8542
    %8817 = vmatprep.mubr.bf16.mxu0 %v7527
    %8818 = vmatmul.mubr.bf16.gmra.mrb[0].mxu0 %v7526
    %v8819 = vpop.f32.mrb[0].mxu0
    %v8820 = vadd.f32 %v7735, %v8819
    %v8821 = vpop.f32.mrb[0].mxu0
    %v8822 = vadd.f32 %v7739, %v8821
    %v8823 = vpop.f32.mrb[0].mxu0
    %v8824 = vpop.f32.mrb[0].mxu0
    %8825 = vdwg.mxu0
    %8826 = vmatprep.subr.bf16.mxu0 %v8365
    %8827 = vmatpush1.bf16.msra.mxu0 %v8364
    %8828 = vmatprep.subr.bf16.mxu0 %v8377
    %8829 = vmatpush1.bf16.msra.mxu0 %v8376
    %8830 = vmatprep.subr.bf16.mxu0 %v8389
    %8831 = vmatpush1.bf16.msra.mxu0 %v8388
    %8832 = vmatprep.subr.bf16.mxu0 %v8401
    %8833 = vmatpush1.bf16.msra.mxu0 %v8400
    %8834 = vmatprep.subr.bf16.mxu0 %v8413
    %8835 = vmatpush1.bf16.msra.mxu0 %v8412
    %8836 = vmatprep.subr.bf16.mxu0 %v8425
    %8837 = vmatpush1.bf16.msra.mxu0 %v8424
    %8838 = vmatprep.subr.bf16.mxu0 %v8437
    %8839 = vmatpush1.bf16.msra.mxu0 %v8436
    %8840 = vmatprep.subr.bf16.mxu0 %v8449
    %8841 = vmatpush1.bf16.msra.mxu0 %v8448
    %8842 = vmatprep.subr.bf16.mxu0 %v8461
    %8843 = vmatpush1.bf16.msra.mxu0 %v8460
    %8844 = vmatprep.subr.bf16.mxu0 %v8473
    %8845 = vmatpush1.bf16.msra.mxu0 %v8472
    %8846 = vmatprep.subr.bf16.mxu0 %v8485
    %8847 = vmatpush1.bf16.msra.mxu0 %v8484
    %8848 = vmatprep.subr.bf16.mxu0 %v8497
    %8849 = vmatpush1.bf16.msra.mxu0 %v8496
    %8850 = vmatprep.subr.bf16.mxu0 %v8509
    %8851 = vmatpush1.bf16.msra.mxu0 %v8508
    %8852 = vmatprep.subr.bf16.mxu0 %v8521
    %8853 = vmatpush1.bf16.msra.mxu0 %v8520
    %8854 = vmatprep.subr.bf16.mxu0 %v8533
    %8855 = vmatpush1.bf16.msra.mxu0 %v8532
    %8856 = vmatprep.subr.bf16.mxu0 %v8545
    %8857 = vmatpush1.bf16.msra.mxu0 %v8544
    %8858 = vmatprep.mubr.bf16.mxu0 %v7527
    %8859 = vmatmul.mubr.bf16.gmra.mrb[0].mxu0 %v7526
    %v8860 = vpop.f32.mrb[0].mxu0
    %v8861 = vadd.f32 %v7743, %v8860
    %v8862 = vpop.f32.mrb[0].mxu0
    %v8863 = vadd.f32 %v7747, %v8862
    %v8864 = vpop.f32.mrb[0].mxu0
    %v8865 = vpop.f32.mrb[0].mxu0
    %8866 = vdwg.mxu0
    %8867 = vmatprep.subr.bf16.mxu0 %v8367
    %8868 = vmatpush1.bf16.msra.mxu0 %v8366
    %8869 = vmatprep.subr.bf16.mxu0 %v8379
    %8870 = vmatpush1.bf16.msra.mxu0 %v8378
    %8871 = vmatprep.subr.bf16.mxu0 %v8391
    %8872 = vmatpush1.bf16.msra.mxu0 %v8390
    %8873 = vmatprep.subr.bf16.mxu0 %v8403
    %8874 = vmatpush1.bf16.msra.mxu0 %v8402
    %8875 = vmatprep.subr.bf16.mxu0 %v8415
    %8876 = vmatpush1.bf16.msra.mxu0 %v8414
    %8877 = vmatprep.subr.bf16.mxu0 %v8427
    %8878 = vmatpush1.bf16.msra.mxu0 %v8426
    %8879 = vmatprep.subr.bf16.mxu0 %v8439
    %8880 = vmatpush1.bf16.msra.mxu0 %v8438
    %8881 = vmatprep.subr.bf16.mxu0 %v8451
    %8882 = vmatpush1.bf16.msra.mxu0 %v8450
    %8883 = vmatprep.subr.bf16.mxu0 %v8463
    %8884 = vmatpush1.bf16.msra.mxu0 %v8462
    %8885 = vmatprep.subr.bf16.mxu0 %v8475
    %8886 = vmatpush1.bf16.msra.mxu0 %v8474
    %8887 = vmatprep.subr.bf16.mxu0 %v8487
    %8888 = vmatpush1.bf16.msra.mxu0 %v8486
    %8889 = vmatprep.subr.bf16.mxu0 %v8499
    %8890 = vmatpush1.bf16.msra.mxu0 %v8498
    %8891 = vmatprep.subr.bf16.mxu0 %v8511
    %8892 = vmatpush1.bf16.msra.mxu0 %v8510
    %8893 = vmatprep.subr.bf16.mxu0 %v8523
    %8894 = vmatpush1.bf16.msra.mxu0 %v8522
    %8895 = vmatprep.subr.bf16.mxu0 %v8535
    %8896 = vmatpush1.bf16.msra.mxu0 %v8534
    %8897 = vmatprep.subr.bf16.mxu0 %v8547
    %8898 = vmatpush1.bf16.msra.mxu0 %v8546
    %8899 = vmatprep.mubr.bf16.mxu0 %v7527
    %8900 = vmatmul.mubr.bf16.gmra.mrb[0].mxu0 %v7526
    %v8901 = vpop.f32.mrb[0].mxu0
    %v8902 = vadd.f32 %v7751, %v8901
    %v8903 = vpop.f32.mrb[0].mxu0
    %v8904 = vadd.f32 %v7755, %v8903
    %v8905 = vpop.f32.mrb[0].mxu0
    %v8906 = vpop.f32.mrb[0].mxu0
    %8907 = vdwg.mxu0
    %8908 = vmatprep.subr.bf16.mxu0 %v8369
    %8909 = vmatpush1.bf16.msra.mxu0 %v8368
    %8910 = vmatprep.subr.bf16.mxu0 %v8381
    %8911 = vmatpush1.bf16.msra.mxu0 %v8380
    %8912 = vmatprep.subr.bf16.mxu0 %v8393
    %8913 = vmatpush1.bf16.msra.mxu0 %v8392
    %8914 = vmatprep.subr.bf16.mxu0 %v8405
    %8915 = vmatpush1.bf16.msra.mxu0 %v8404
    %8916 = vmatprep.subr.bf16.mxu0 %v8417
    %8917 = vmatpush1.bf16.msra.mxu0 %v8416
    %8918 = vmatprep.subr.bf16.mxu0 %v8429
    %8919 = vmatpush1.bf16.msra.mxu0 %v8428
    %8920 = vmatprep.subr.bf16.mxu0 %v8441
    %8921 = vmatpush1.bf16.msra.mxu0 %v8440
    %8922 = vmatprep.subr.bf16.mxu0 %v8453
    %8923 = vmatpush1.bf16.msra.mxu0 %v8452
    %8924 = vmatprep.subr.bf16.mxu0 %v8465
    %8925 = vmatpush1.bf16.msra.mxu0 %v8464
    %8926 = vmatprep.subr.bf16.mxu0 %v8477
    %8927 = vmatpush1.bf16.msra.mxu0 %v8476
    %8928 = vmatprep.subr.bf16.mxu0 %v8489
    %8929 = vmatpush1.bf16.msra.mxu0 %v8488
    %8930 = vmatprep.subr.bf16.mxu0 %v8501
    %8931 = vmatpush1.bf16.msra.mxu0 %v8500
    %8932 = vmatprep.subr.bf16.mxu0 %v8513
    %8933 = vmatpush1.bf16.msra.mxu0 %v8512
    %8934 = vmatprep.subr.bf16.mxu0 %v8525
    %8935 = vmatpush1.bf16.msra.mxu0 %v8524
    %8936 = vmatprep.subr.bf16.mxu0 %v8537
    %8937 = vmatpush1.bf16.msra.mxu0 %v8536
    %8938 = vmatprep.subr.bf16.mxu0 %v8549
    %8939 = vmatpush1.bf16.msra.mxu0 %v8548
    %8940 = vmatprep.mubr.bf16.mxu0 %v7527
    %8941 = vmatmul.mubr.bf16.gmra.mrb[0].mxu0 %v7526
    %v8942 = vpop.f32.mrb[0].mxu0
    %v8943 = vadd.f32 %v7759, %v8942
    %v8944 = vpop.f32.mrb[0].mxu0
    %v8945 = vadd.f32 %v7763, %v8944
    %v8946 = vpop.f32.mrb[0].mxu0
    %v8947 = vpop.f32.mrb[0].mxu0
    %8948 = vdwg.mxu0
    %8949 = vmatprep.subr.bf16.mxu0 %v8371
    %8950 = vmatpush1.bf16.msra.mxu0 %v8370
    %8951 = vmatprep.subr.bf16.mxu0 %v8383
    %8952 = vmatpush1.bf16.msra.mxu0 %v8382
    %8953 = vmatprep.subr.bf16.mxu0 %v8395
    %8954 = vmatpush1.bf16.msra.mxu0 %v8394
    %8955 = vmatprep.subr.bf16.mxu0 %v8407
    %8956 = vmatpush1.bf16.msra.mxu0 %v8406
    %8957 = vmatprep.subr.bf16.mxu0 %v8419
    %8958 = vmatpush1.bf16.msra.mxu0 %v8418
    %8959 = vmatprep.subr.bf16.mxu0 %v8431
    %8960 = vmatpush1.bf16.msra.mxu0 %v8430
    %8961 = vmatprep.subr.bf16.mxu0 %v8443
    %8962 = vmatpush1.bf16.msra.mxu0 %v8442
    %8963 = vmatprep.subr.bf16.mxu0 %v8455
    %8964 = vmatpush1.bf16.msra.mxu0 %v8454
    %8965 = vmatprep.subr.bf16.mxu0 %v8467
    %8966 = vmatpush1.bf16.msra.mxu0 %v8466
    %8967 = vmatprep.subr.bf16.mxu0 %v8479
    %8968 = vmatpush1.bf16.msra.mxu0 %v8478
    %8969 = vmatprep.subr.bf16.mxu0 %v8491
    %8970 = vmatpush1.bf16.msra.mxu0 %v8490
    %8971 = vmatprep.subr.bf16.mxu0 %v8503
    %8972 = vmatpush1.bf16.msra.mxu0 %v8502
    %8973 = vmatprep.subr.bf16.mxu0 %v8515
    %8974 = vmatpush1.bf16.msra.mxu0 %v8514
    %8975 = vmatprep.subr.bf16.mxu0 %v8527
    %8976 = vmatpush1.bf16.msra.mxu0 %v8526
    %8977 = vmatprep.subr.bf16.mxu0 %v8539
    %8978 = vmatpush1.bf16.msra.mxu0 %v8538
    %8979 = vmatprep.subr.bf16.mxu0 %v8551
    %8980 = vmatpush1.bf16.msra.mxu0 %v8550
    %8981 = vmatprep.mubr.bf16.mxu0 %v7527
    %8982 = vmatmul.mubr.bf16.gmra.mrb[0].mxu0 %v7526
    %v8983 = vpop.f32.mrb[0].mxu0
    %v8984 = vadd.f32 %v7767, %v8983
    %v8985 = vpop.f32.mrb[0].mxu0
    %v8986 = vadd.f32 %v7771, %v8985
    %v8987 = vpop.f32.mrb[0].mxu0
    %v8988 = vpop.f32.mrb[0].mxu0
    %8989 = vdwg.mxu0
    %v8990 = vmax.f32 %v8779, 0.0
    %v8991 = vmax.f32 %v8781, 0.0
    %v8992 = vmax.f32 %v8820, 0.0
    %v8993 = vmax.f32 %v8822, 0.0
    %v8994 = vmax.f32 %v8861, 0.0
    %v8995 = vmax.f32 %v8863, 0.0
    %v8996 = vmax.f32 %v8902, 0.0
    %v8997 = vmax.f32 %v8904, 0.0
    %v8998 = vmax.f32 %v8943, 0.0
    %v8999 = vmax.f32 %v8945, 0.0
    %v9000 = vmax.f32 %v8984, 0.0
    %v9001 = vmax.f32 %v8986, 0.0
    %9002 = vst [vmem:[%s8] sm:$0xff] %v8990
    %9003 = vst [vmem:[%s8 + $0x8] sm:$0xff] %v8991
    %9004 = vst [vmem:[%s8 + $0x10] sm:$0xff] %v8992
    %9005 = vst [vmem:[%s8 + $0x18] sm:$0xff] %v8993
    %9006 = vst [vmem:[%s8 + $0x20] sm:$0xff] %v8994
    %9007 = vst [vmem:[%s8 + $0x28] sm:$0xff] %v8995
    %9008 = vst [vmem:[%s8 + $0x30] sm:$0xff] %v8996
    %9009 = vst [vmem:[%s8 + $0x38] sm:$0xff] %v8997
    %9010 = vst [vmem:[%s8 + $0x40] sm:$0xff] %v8998
    %9011 = vst [vmem:[%s8 + $0x48] sm:$0xff] %v8999
    %9012 = vst [vmem:[%s8 + $0x50] sm:$0xff] %v9000
    %9013 = vst [vmem:[%s8 + $0x58] sm:$0xff] %v9001
    // Predicated region
    $region54: #{_encoder_forward.1} parent=1 // pred_check
      _
    $region55: #{_encoder_forward.1} parent=1 // pred_check_branch
      %9015 = sbr.rel (0) target = $region57
    $region56: #{_encoder_forward.1} parent=1 // pred_region
      _
    $region57: #{_encoder_forward.1} parent=1 // pred_fallthru
      _
    // Predicated region
    $region58: #{_encoder_forward.1} parent=1 // pred_check
      _
    $region59: #{_encoder_forward.1} parent=1 // pred_check_branch
      %9017 = sbr.rel (0) target = $region61
    $region60: #{_encoder_forward.1} parent=1 // pred_region
      _
    $region61: #{_encoder_forward.1} parent=1 // pred_fallthru
      _
    // Predicated region
    $region62: #{_encoder_forward.1} parent=1 // pred_check
      _
    $region63: #{_encoder_forward.1} parent=1 // pred_check_branch
      %9019 = sbr.rel (0) target = $region65
    $region64: #{_encoder_forward.1} parent=1 // pred_region
      _
    $region65: #{_encoder_forward.1} parent=1 // pred_fallthru
      _
    // Predicated region
    $region66: #{_encoder_forward.1} parent=1 // pred_check
      _
    $region67: #{_encoder_forward.1} parent=1 // pred_check_branch
      %9021 = sbr.rel (0) target = $region69
    $region68: #{_encoder_forward.1} parent=1 // pred_region
      _
    $region69: #{_encoder_forward.1} parent=1 // pred_fallthru
      _
    %9022 = vsyncpa [#allocation3], 1
    %9023 = vsyncpa [#allocation5], 1
    %9024 = vsyncpa [#allocation8], 1
    %9025 = vsyncpa [#allocation11], 1

</llo_original>
